<compile_context>
chip_gen: v5e
topology: v5e:2x2
jax: 0.10.0
libtpu: 0.0.40
codegen_flags: <defaults>
</compile_context>

<pallas_src>
import functools

import jax
import jax.numpy as jnp
from jax import lax
from jax.experimental import pallas as pl
from jax.experimental.pallas import tpu as pltpu


# ------------------------------ kernel helpers ------------------------------

def _zero_border(pad_ref):
    """Zero only the 1-wide spatial border of a padded (Hp, Wp, C) scratch."""
    hp, wp, c = pad_ref.shape
    dt = pad_ref.dtype
    row = jnp.zeros((1, wp, c), dt)
    col = jnp.zeros((hp, 1, c), dt)
    pad_ref[0:1, :, :] = row
    pad_ref[hp - 1:hp, :, :] = row
    pad_ref[:, 0:1, :] = col
    pad_ref[:, wp - 1:wp, :] = col


_TAPS = [(dy, dx) for dy in range(3) for dx in range(3)]


def _conv3x3_im2col(pad_ref, patches_ref, w_ref, bias_row, h, w):
    """3x3 'SAME' conv via im2col (single dot with K = 9*cin).

    pad_ref     : (h+2, w+2, cin) f32 scratch; interior already written, border zero.
    patches_ref : (h*w, 9*cin) bf16 scratch (explicit column-range stores).
    w_ref       : (9*cin, cout) bf16 weights, rows ordered (dy, dx, cin).
    bias_row    : (1, cout) f32.
    Returns (h*w, cout) float32.
    """
    cin = pad_ref.shape[-1]
    n = h * w
    for tap, (dy, dx) in enumerate(_TAPS):
        win = pad_ref[dy:dy + h, dx:dx + w, :].reshape(n, cin)
        patches_ref[:, tap * cin:(tap + 1) * cin] = win.astype(patches_ref.dtype)
    return jnp.dot(patches_ref[...], w_ref[...],
                   preferred_element_type=jnp.float32) + bias_row


# ------------------------------- fused kernel -------------------------------

def _spade_fused_kernel(seg_ref, attr_ref, sega_ref, ata_ref, x_ref,
                        w1_ref, b1_ref, w1a_ref, b1a_ref,
                        wgba_ref, w2_ref, b2_ref,
                        o_ref,
                        pad_raw, pad_rawa, pad_actv,
                        patches_m, patches_a, *, eps):
    _, H, W, nseg = seg_ref.shape
    natt = attr_ref.shape[-1]
    _, Ha, Wa, _ = sega_ref.shape
    nh = w1_ref.shape[-1]
    c2 = w2_ref.shape[-1]          # 2 * norm_nc
    C = c2 // 2
    HW = H * W

    # ---- avg branch: folded shared_avg conv + ReLU + spatial mean + merged heads
    _zero_border(pad_rawa)
    pad_rawa[1:Ha + 1, 1:Wa + 1, 0:nseg] = sega_ref[0]
    pad_rawa[1:Ha + 1, 1:Wa + 1, nseg:nseg + natt] = ata_ref[0]
    actv_a = _conv3x3_im2col(pad_rawa, patches_a, w1a_ref, b1a_ref[...], Ha, Wa)
    actv_a = jnp.maximum(actv_a, 0.0)                                  # (HaWa, nh)
    m = jnp.sum(actv_a, axis=0, keepdims=True) * (1.0 / float(Ha * Wa))
    gba = jnp.dot(m.astype(jnp.bfloat16), wgba_ref[...],
                  preferred_element_type=jnp.float32)                  # (1, 2C)

    # ---- main branch: folded shared conv + ReLU
    _zero_border(pad_raw)
    pad_raw[1:H + 1, 1:W + 1, 0:nseg] = seg_ref[0]
    pad_raw[1:H + 1, 1:W + 1, nseg:nseg + natt] = attr_ref[0]
    actv = _conv3x3_im2col(pad_raw, patches_m, w1_ref, b1_ref[...], H, W)
    actv = jnp.maximum(actv, 0.0)                                      # (HW, nh)

    # ---- merged gamma/beta conv: 9 accumulating per-tap dots (K = nh),
    #      no (HW, 9*nh) im2col intermediate.  gamma_avg/beta_avg folded into bias.
    _zero_border(pad_actv)
    pad_actv[1:H + 1, 1:W + 1, :] = actv.reshape(H, W, nh)
    gb = jnp.zeros((HW, c2), jnp.float32)
    for tap, (dy, dx) in enumerate(_TAPS):
        a_tap = pad_actv[dy:dy + H, dx:dx + W, :].reshape(HW, nh)
        gb = gb + jnp.dot(a_tap.astype(jnp.bfloat16),
                          w2_ref[tap * nh:(tap + 1) * nh, :],
                          preferred_element_type=jnp.float32)
    gb = gb + (b2_ref[...] + gba)                                      # (HW, 2C)
    gb_t = jnp.transpose(gb)                                           # (2C, HW)

    # ---- InstanceNorm(affine=False), two-pass mean/var, (C, HW) lane-dense
    x = x_ref[0]                                                       # (C, HW) f32
    inv_hw = 1.0 / float(HW)
    mu = jnp.sum(x, axis=-1, keepdims=True) * inv_hw
    d = x - mu
    var = jnp.sum(d * d, axis=-1, keepdims=True) * inv_hw              # biased
    normalized = d * lax.rsqrt(var + eps)
    o_ref[0] = normalized * (1.0 + gb_t[:C, :]) + gb_t[C:, :]


# --------------------------- weight preparation -----------------------------

def _fold_1x1_into_3x3(w_emb, w_emb_attr, w_shared):
    """Fold the 1x1 emb / emb_attr convs into the 3x3 conv -> (9*(label+attr), nh)."""
    med = w_emb.shape[1]
    w_seg = jnp.einsum("cm,xymh->xych", w_emb, w_shared[:, :, :med, :])
    w_at = jnp.einsum("cm,xymh->xych", w_emb_attr, w_shared[:, :, med:, :])
    w = jnp.concatenate([w_seg, w_at], axis=2)      # (3,3,label_nc+attr_nc,nh)
    return w.reshape(-1, w.shape[-1])               # rows ordered (dy, dx, c)


# ----------------------------- forward wrapper ------------------------------

def spade_avg_forward(params, x, segmap, attr, segmap_avg, attr_avg, eps=1e-5):
    """Inputs/outputs are NCHW float32, matching the PyTorch module."""
    N, C, H, W = x.shape
    ratio = segmap.shape[2] // H

    to_nhwc = lambda t: jnp.transpose(t, (0, 2, 3, 1))
    seg = to_nhwc(segmap[:, :, ::ratio, ::ratio])               # (N, H,  W,  label_nc)
    at = to_nhwc(attr[:, :, ::ratio, ::ratio])                  # (N, H,  W,  attr_nc)
    sega = to_nhwc(segmap_avg[:, :, ::ratio * 2, ::ratio * 2])  # (N, Ha, Wa, label_nc)
    ata = to_nhwc(attr_avg[:, :, ::ratio * 2, ::ratio * 2])     # (N, Ha, Wa, attr_nc)
    Ha, Wa = sega.shape[1], sega.shape[2]
    nseg, natt = seg.shape[-1], at.shape[-1]
    cr = nseg + natt
    nh = params["w_shared"].shape[-1]
    c2 = 2 * C
    HW = H * W

    bf = jnp.bfloat16
    # bf16 MXU operands (f32 accumulation inside the kernel).
    w1 = _fold_1x1_into_3x3(params["w_emb"], params["w_emb_attr"],
                            params["w_shared"]).astype(bf)              # (9*cr, nh)
    b1 = params["b_shared"].reshape(1, nh)
    w1a = _fold_1x1_into_3x3(params["w_emb"], params["w_emb_attr"],
                             params["w_shared_avg"]).astype(bf)          # (9*cr, nh)
    b1a = params["b_shared_avg"].reshape(1, nh)
    w2 = jnp.concatenate([params["w_gamma"], params["w_beta"]],
                         axis=-1).reshape(9 * nh, c2).astype(bf)         # (9*nh, 2C)
    b2 = jnp.concatenate([params["b_gamma"], params["b_beta"]]).reshape(1, c2)
    wgba = jnp.concatenate([params["w_gamma_avg"], params["w_beta_avg"]],
                           axis=-1).astype(bf)                           # (nh, 2C)

    x_flat = x.reshape(N, C, HW)          # NCHW-flat: free reshape, HW on lanes

    kernel = functools.partial(_spade_fused_kernel, eps=eps)
    out = pl.pallas_call(
        kernel,
        out_shape=jax.ShapeDtypeStruct((N, C, HW), jnp.float32),
        grid=(N,),
        in_specs=[
            pl.BlockSpec((1, H, W, nseg), lambda n: (n, 0, 0, 0)),
            pl.BlockSpec((1, H, W, natt), lambda n: (n, 0, 0, 0)),
            pl.BlockSpec((1, Ha, Wa, nseg), lambda n: (n, 0, 0, 0)),
            pl.BlockSpec((1, Ha, Wa, natt), lambda n: (n, 0, 0, 0)),
            pl.BlockSpec((1, C, HW), lambda n: (n, 0, 0)),
            pl.BlockSpec((9 * cr, nh), lambda n: (0, 0)),
            pl.BlockSpec((1, nh), lambda n: (0, 0)),
            pl.BlockSpec((9 * cr, nh), lambda n: (0, 0)),
            pl.BlockSpec((1, nh), lambda n: (0, 0)),
            pl.BlockSpec((nh, c2), lambda n: (0, 0)),
            pl.BlockSpec((9 * nh, c2), lambda n: (0, 0)),
            pl.BlockSpec((1, c2), lambda n: (0, 0)),
        ],
        out_specs=pl.BlockSpec((1, C, HW), lambda n: (n, 0, 0)),
        scratch_shapes=[
            pltpu.VMEM((H + 2, W + 2, cr), jnp.float32),    # padded raw (main)
            pltpu.VMEM((Ha + 2, Wa + 2, cr), jnp.float32),  # padded raw (avg)
            pltpu.VMEM((H + 2, W + 2, nh), jnp.float32),    # padded actv
            pltpu.VMEM((HW, 9 * cr), jnp.bfloat16),         # im2col patches (main)
            pltpu.VMEM((Ha * Wa, 9 * cr), jnp.bfloat16),    # im2col patches (avg)
        ],
        compiler_params=pltpu.CompilerParams(
            dimension_semantics=("parallel",),
            vmem_limit_bytes=32 * 1024 * 1024),
    )(seg, at, sega, ata, x_flat, w1, b1, w1a, b1a, wgba, w2, b2)

    return out.reshape(N, C, H, W)        # free reshape, no transpose needed


# ----------------------------- pure-JAX reference ---------------------------

def reference_forward(params, x, segmap, attr, segmap_avg, attr_avg):
    ratio = segmap.shape[2] // x.shape[2]
    to_nhwc = lambda t: jnp.transpose(t, (0, 2, 3, 1))
    seg = to_nhwc(segmap[:, :, ::ratio, ::ratio])
    seg_avg = to_nhwc(segmap_avg[:, :, ::ratio * 2, ::ratio * 2])
    at = to_nhwc(attr[:, :, ::ratio, ::ratio])
    at_avg = to_nhwc(attr_avg[:, :, ::ratio * 2, ::ratio * 2])
    xh = to_nhwc(x)

    def c1(t, w):
        return jnp.einsum("nhwc,cd->nhwd", t, w)

    def c3(t, w, b):
        y = lax.conv_general_dilated(t, w, (1, 1), "SAME",
                                     dimension_numbers=("NHWC", "HWIO", "NHWC"))
        return y + b[None, None, None, :]

    emb = jnp.concatenate([c1(seg, params["w_emb"]), c1(at, params["w_emb_attr"])], -1)
    emb_avg = jnp.concatenate([c1(seg_avg, params["w_emb"]),
                               c1(at_avg, params["w_emb_attr"])], -1)
    actv = jax.nn.relu(c3(emb, params["w_shared"], params["b_shared"]))
    gamma = c3(actv, params["w_gamma"], params["b_gamma"])
    beta = c3(actv, params["w_beta"], params["b_beta"])
    actv_avg = jax.nn.relu(c3(emb_avg, params["w_shared_avg"], params["b_shared_avg"]))
    m = jnp.mean(actv_avg, axis=(1, 2))
    gamma_avg = m @ params["w_gamma_avg"]
    beta_avg = m @ params["w_beta_avg"]
    mean = jnp.mean(xh, axis=(1, 2), keepdims=True)
    var = jnp.mean((xh - mean) ** 2, axis=(1, 2), keepdims=True)
    normalized = (xh - mean) / jnp.sqrt(var + 1e-5)
    out = (normalized * (1.0 + gamma + gamma_avg[:, None, None, :])
           + beta + beta_avg[:, None, None, :])
    return jnp.transpose(out, (0, 3, 1, 2))


# ----------------------------- params & main --------------------------------

def init_params(key, label_nc, mask_emb_dim, attr_nc, attr_emb_dim, nhidden, norm_nc):
    cin_shared = mask_emb_dim + attr_emb_dim
    ks = jax.random.split(key, 12)
    w = lambda k, s, sc: jax.random.normal(k, s, jnp.float32) * sc
    return dict(
        w_emb=w(ks[0], (label_nc, mask_emb_dim), 0.2),
        w_emb_attr=w(ks[1], (attr_nc, attr_emb_dim), 0.2),
        w_shared=w(ks[2], (3, 3, cin_shared, nhidden), 0.1),
        b_shared=w(ks[3], (nhidden,), 0.1),
        w_gamma=w(ks[4], (3, 3, nhidden, norm_nc), 0.05),
        b_gamma=w(ks[5], (norm_nc,), 0.05),
        w_beta=w(ks[6], (3, 3, nhidden, norm_nc), 0.05),
        b_beta=w(ks[7], (norm_nc,), 0.05),
        w_shared_avg=w(ks[8], (3, 3, cin_shared, nhidden), 0.1),
        b_shared_avg=w(ks[9], (nhidden,), 0.1),
        w_gamma_avg=w(ks[10], (nhidden, norm_nc), 0.05),
        w_beta_avg=w(ks[11], (nhidden, norm_nc), 0.05),
    )


if __name__ == "__main__":
    # module hyper-params (config_text='spadeinstance3x3')
    N, norm_nc, H, W = 2, 4, 16, 16
    label_nc, mask_emb_dim = 3, 16
    attr_nc, attr_emb_dim = 4, 8
    nhidden = 128
    ratio = 2
    Hs, Ws = H * ratio, W * ratio

    key = jax.random.PRNGKey(0)
    kp, kx, ks, ka, ksa, kaa = jax.random.split(key, 6)
    params = init_params(kp, label_nc, mask_emb_dim, attr_nc, attr_emb_dim,
                         nhidden, norm_nc)

    x = jax.random.normal(kx, (N, norm_nc, H, W), jnp.float32)
    segmap = jax.random.normal(ks, (N, label_nc, Hs, Ws), jnp.float32)
    attr = jax.random.normal(ka, (N, attr_nc, Hs, Ws), jnp.float32)
    segmap_avg = jax.random.normal(ksa, (N, label_nc, Hs, Ws), jnp.float32)
    attr_avg = jax.random.normal(kaa, (N, attr_nc, Hs, Ws), jnp.float32)

    out = jax.jit(spade_avg_forward)(params, x, segmap, attr, segmap_avg, attr_avg)
    out = jax.block_until_ready(out)

    ref = reference_forward(params, x, segmap, attr, segmap_avg, attr_avg)
    assert out.shape == (N, norm_nc, H, W)
    # Tolerance loosened to 1e-2: kernel uses bf16 MXU operands (f32 accumulation)
    # per the perf review; the reference is pure f32.
    assert jnp.allclose(out, ref, rtol=1e-2, atol=1e-2), \
        f"max abs err {jnp.max(jnp.abs(out - ref))}"

    print("KERNEL_OK")
</pallas_src>

<mosaic_0001>
module attributes {stable_mosaic.version = 11 : i64} {
  func.func @_spade_fused_kernel(%arg0: i32, %arg1: memref<1x16x16x3xf32, #tpu.memory_space<vmem>>, %arg2: memref<1x16x16x4xf32, #tpu.memory_space<vmem>>, %arg3: memref<1x8x8x3xf32, #tpu.memory_space<vmem>>, %arg4: memref<1x8x8x4xf32, #tpu.memory_space<vmem>>, %arg5: memref<1x4x256xf32, #tpu.memory_space<vmem>>, %arg6: memref<63x128xbf16, #tpu.memory_space<vmem>>, %arg7: memref<1x128xf32, #tpu.memory_space<vmem>>, %arg8: memref<63x128xbf16, #tpu.memory_space<vmem>>, %arg9: memref<1x128xf32, #tpu.memory_space<vmem>>, %arg10: memref<128x8xbf16, #tpu.memory_space<vmem>>, %arg11: memref<1152x8xbf16, #tpu.memory_space<vmem>>, %arg12: memref<1x8xf32, #tpu.memory_space<vmem>>, %arg13: memref<1x4x256xf32, #tpu.memory_space<vmem>>, %arg14: memref<18x18x7xf32, #tpu.memory_space<vmem>>, %arg15: memref<10x10x7xf32, #tpu.memory_space<vmem>>, %arg16: memref<18x18x128xf32, #tpu.memory_space<vmem>>, %arg17: memref<256x63xbf16, #tpu.memory_space<vmem>>, %arg18: memref<64x63xbf16, #tpu.memory_space<vmem>>) attributes {dimension_semantics = [#tpu.dimension_semantics<parallel>], iteration_bounds = array<i64: 2>, scalar_prefetch = 0 : i64, scratch_operands = 5 : i64, tpu.core_type = #tpu.core_type<tc>, window_params = [{transform_indices = @transform_0, window_bounds = array<i64: 1, 16, 16, 3>}, {transform_indices = @transform_1, window_bounds = array<i64: 1, 16, 16, 4>}, {transform_indices = @transform_2, window_bounds = array<i64: 1, 8, 8, 3>}, {transform_indices = @transform_3, window_bounds = array<i64: 1, 8, 8, 4>}, {transform_indices = @transform_4, window_bounds = array<i64: 1, 4, 256>}, {pipeline_mode = #tpu.pipeline_mode<synchronous>, transform_indices = @transform_5, window_bounds = array<i64: 63, 128>}, {pipeline_mode = #tpu.pipeline_mode<synchronous>, transform_indices = @transform_6, window_bounds = array<i64: 1, 128>}, {pipeline_mode = #tpu.pipeline_mode<synchronous>, transform_indices = @transform_7, window_bounds = array<i64: 63, 128>}, {pipeline_mode = #tpu.pipeline_mode<synchronous>, transform_indices = @transform_8, window_bounds = array<i64: 1, 128>}, {pipeline_mode = #tpu.pipeline_mode<synchronous>, transform_indices = @transform_9, window_bounds = array<i64: 128, 8>}, {pipeline_mode = #tpu.pipeline_mode<synchronous>, transform_indices = @transform_10, window_bounds = array<i64: 1152, 8>}, {pipeline_mode = #tpu.pipeline_mode<synchronous>, transform_indices = @transform_11, window_bounds = array<i64: 1, 8>}, {transform_indices = @transform_12, window_bounds = array<i64: 1, 4, 256>}]} {
    %cst = arith.constant 0.000000e+00 : f32
    %0 = vector.broadcast %cst : f32 to vector<1x10x7xf32>
    %cst_0 = arith.constant 0.000000e+00 : f32
    %1 = vector.broadcast %cst_0 : f32 to vector<10x1x7xf32>
    %c0 = arith.constant 0 : index
    %c0_1 = arith.constant 0 : index
    %c0_2 = arith.constant 0 : index
    %2 = vector.load %arg15[%c0, %c0_1, %c0_2] : memref<10x10x7xf32, #tpu.memory_space<vmem>>, vector<1x10x7xf32>
    tpu.vector_store %arg15[%c0, %c0_1, %c0_2], %0 {strides = array<i32>} : memref<10x10x7xf32, #tpu.memory_space<vmem>>, vector<1x10x7xf32>,
    %c9 = arith.constant 9 : index
    %c0_3 = arith.constant 0 : index
    %c0_4 = arith.constant 0 : index
    %3 = vector.load %arg15[%c9, %c0_3, %c0_4] : memref<10x10x7xf32, #tpu.memory_space<vmem>>, vector<1x10x7xf32>
    tpu.vector_store %arg15[%c9, %c0_3, %c0_4], %0 {strides = array<i32>} : memref<10x10x7xf32, #tpu.memory_space<vmem>>, vector<1x10x7xf32>,
    %c0_5 = arith.constant 0 : index
    %c0_6 = arith.constant 0 : index
    %c0_7 = arith.constant 0 : index
    %4 = vector.load %arg15[%c0_5, %c0_6, %c0_7] : memref<10x10x7xf32, #tpu.memory_space<vmem>>, vector<10x1x7xf32>
    tpu.vector_store %arg15[%c0_5, %c0_6, %c0_7], %1 {strides = array<i32>} : memref<10x10x7xf32, #tpu.memory_space<vmem>>, vector<10x1x7xf32>,
    %c0_8 = arith.constant 0 : index
    %c9_9 = arith.constant 9 : index
    %c0_10 = arith.constant 0 : index
    %5 = vector.load %arg15[%c0_8, %c9_9, %c0_10] : memref<10x10x7xf32, #tpu.memory_space<vmem>>, vector<10x1x7xf32>
    tpu.vector_store %arg15[%c0_8, %c9_9, %c0_10], %1 {strides = array<i32>} : memref<10x10x7xf32, #tpu.memory_space<vmem>>, vector<10x1x7xf32>,
    %c0_11 = arith.constant 0 : index
    %c0_12 = arith.constant 0 : index
    %c0_13 = arith.constant 0 : index
    %c0_14 = arith.constant 0 : index
    %6 = vector.load %arg3[%c0_11, %c0_12, %c0_13, %c0_14] : memref<1x8x8x3xf32, #tpu.memory_space<vmem>>, vector<1x8x8x3xf32>
    %7 = vector.shape_cast %6 : vector<1x8x8x3xf32> to vector<8x8x3xf32>
    %c1 = arith.constant 1 : index
    %c1_15 = arith.constant 1 : index
    %c0_16 = arith.constant 0 : index
    %8 = vector.load %arg15[%c1, %c1_15, %c0_16] : memref<10x10x7xf32, #tpu.memory_space<vmem>>, vector<8x8x3xf32>
    tpu.vector_store %arg15[%c1, %c1_15, %c0_16], %7 {strides = array<i32>} : memref<10x10x7xf32, #tpu.memory_space<vmem>>, vector<8x8x3xf32>,
    %c0_17 = arith.constant 0 : index
    %c0_18 = arith.constant 0 : index
    %c0_19 = arith.constant 0 : index
    %c0_20 = arith.constant 0 : index
    %9 = vector.load %arg4[%c0_17, %c0_18, %c0_19, %c0_20] : memref<1x8x8x4xf32, #tpu.memory_space<vmem>>, vector<1x8x8x4xf32>
    %10 = vector.shape_cast %9 : vector<1x8x8x4xf32> to vector<8x8x4xf32>
    %c1_21 = arith.constant 1 : index
    %c1_22 = arith.constant 1 : index
    %c3 = arith.constant 3 : index
    %11 = vector.load %arg15[%c1_21, %c1_22, %c3] : memref<10x10x7xf32, #tpu.memory_space<vmem>>, vector<8x8x4xf32>
    tpu.vector_store %arg15[%c1_21, %c1_22, %c3], %10 {strides = array<i32>} : memref<10x10x7xf32, #tpu.memory_space<vmem>>, vector<8x8x4xf32>,
    %c0_23 = arith.constant 0 : index
    %c0_24 = arith.constant 0 : index
    %12 = vector.load %arg9[%c0_23, %c0_24] : memref<1x128xf32, #tpu.memory_space<vmem>>, vector<1x128xf32>
    %c0_25 = arith.constant 0 : index
    %c0_26 = arith.constant 0 : index
    %c0_27 = arith.constant 0 : index
    %13 = vector.load %arg15[%c0_25, %c0_26, %c0_27] : memref<10x10x7xf32, #tpu.memory_space<vmem>>, vector<8x8x7xf32>
    %14 = vector.shape_cast %13 : vector<8x8x7xf32> to vector<64x7xf32>
    %15 = arith.truncf %14 : vector<64x7xf32> to vector<64x7xbf16>
    %c0_28 = arith.constant 0 : index
    %c0_29 = arith.constant 0 : index
    %16 = vector.load %arg18[%c0_28, %c0_29] : memref<64x63xbf16, #tpu.memory_space<vmem>>, vector<64x7xbf16>
    tpu.vector_store %arg18[%c0_28, %c0_29], %15 {strides = array<i32>} : memref<64x63xbf16, #tpu.memory_space<vmem>>, vector<64x7xbf16>,
    %c0_30 = arith.constant 0 : index
    %c1_31 = arith.constant 1 : index
    %c0_32 = arith.constant 0 : index
    %17 = vector.load %arg15[%c0_30, %c1_31, %c0_32] : memref<10x10x7xf32, #tpu.memory_space<vmem>>, vector<8x8x7xf32>
    %18 = vector.shape_cast %17 : vector<8x8x7xf32> to vector<64x7xf32>
    %19 = arith.truncf %18 : vector<64x7xf32> to vector<64x7xbf16>
    %c0_33 = arith.constant 0 : index
    %c7 = arith.constant 7 : index
    %20 = vector.load %arg18[%c0_33, %c7] : memref<64x63xbf16, #tpu.memory_space<vmem>>, vector<64x7xbf16>
    tpu.vector_store %arg18[%c0_33, %c7], %19 {strides = array<i32>} : memref<64x63xbf16, #tpu.memory_space<vmem>>, vector<64x7xbf16>,
    %c0_34 = arith.constant 0 : index
    %c2 = arith.constant 2 : index
    %c0_35 = arith.constant 0 : index
    %21 = vector.load %arg15[%c0_34, %c2, %c0_35] : memref<10x10x7xf32, #tpu.memory_space<vmem>>, vector<8x8x7xf32>
    %22 = vector.shape_cast %21 : vector<8x8x7xf32> to vector<64x7xf32>
    %23 = arith.truncf %22 : vector<64x7xf32> to vector<64x7xbf16>
    %c0_36 = arith.constant 0 : index
    %c14 = arith.constant 14 : index
    %24 = vector.load %arg18[%c0_36, %c14] : memref<64x63xbf16, #tpu.memory_space<vmem>>, vector<64x7xbf16>
    tpu.vector_store %arg18[%c0_36, %c14], %23 {strides = array<i32>} : memref<64x63xbf16, #tpu.memory_space<vmem>>, vector<64x7xbf16>,
    %c1_37 = arith.constant 1 : index
    %c0_38 = arith.constant 0 : index
    %c0_39 = arith.constant 0 : index
    %25 = vector.load %arg15[%c1_37, %c0_38, %c0_39] : memref<10x10x7xf32, #tpu.memory_space<vmem>>, vector<8x8x7xf32>
    %26 = vector.shape_cast %25 : vector<8x8x7xf32> to vector<64x7xf32>
    %27 = arith.truncf %26 : vector<64x7xf32> to vector<64x7xbf16>
    %c0_40 = arith.constant 0 : index
    %c21 = arith.constant 21 : index
    %28 = vector.load %arg18[%c0_40, %c21] : memref<64x63xbf16, #tpu.memory_space<vmem>>, vector<64x7xbf16>
    tpu.vector_store %arg18[%c0_40, %c21], %27 {strides = array<i32>} : memref<64x63xbf16, #tpu.memory_space<vmem>>, vector<64x7xbf16>,
    %c1_41 = arith.constant 1 : index
    %c1_42 = arith.constant 1 : index
    %c0_43 = arith.constant 0 : index
    %29 = vector.load %arg15[%c1_41, %c1_42, %c0_43] : memref<10x10x7xf32, #tpu.memory_space<vmem>>, vector<8x8x7xf32>
    %30 = vector.shape_cast %29 : vector<8x8x7xf32> to vector<64x7xf32>
    %31 = arith.truncf %30 : vector<64x7xf32> to vector<64x7xbf16>
    %c0_44 = arith.constant 0 : index
    %c28 = arith.constant 28 : index
    %32 = vector.load %arg18[%c0_44, %c28] : memref<64x63xbf16, #tpu.memory_space<vmem>>, vector<64x7xbf16>
    tpu.vector_store %arg18[%c0_44, %c28], %31 {strides = array<i32>} : memref<64x63xbf16, #tpu.memory_space<vmem>>, vector<64x7xbf16>,
    %c1_45 = arith.constant 1 : index
    %c2_46 = arith.constant 2 : index
    %c0_47 = arith.constant 0 : index
    %33 = vector.load %arg15[%c1_45, %c2_46, %c0_47] : memref<10x10x7xf32, #tpu.memory_space<vmem>>, vector<8x8x7xf32>
    %34 = vector.shape_cast %33 : vector<8x8x7xf32> to vector<64x7xf32>
    %35 = arith.truncf %34 : vector<64x7xf32> to vector<64x7xbf16>
    %c0_48 = arith.constant 0 : index
    %c35 = arith.constant 35 : index
    %36 = vector.load %arg18[%c0_48, %c35] : memref<64x63xbf16, #tpu.memory_space<vmem>>, vector<64x7xbf16>
    tpu.vector_store %arg18[%c0_48, %c35], %35 {strides = array<i32>} : memref<64x63xbf16, #tpu.memory_space<vmem>>, vector<64x7xbf16>,
    %c2_49 = arith.constant 2 : index
    %c0_50 = arith.constant 0 : index
    %c0_51 = arith.constant 0 : index
    %37 = vector.load %arg15[%c2_49, %c0_50, %c0_51] : memref<10x10x7xf32, #tpu.memory_space<vmem>>, vector<8x8x7xf32>
    %38 = vector.shape_cast %37 : vector<8x8x7xf32> to vector<64x7xf32>
    %39 = arith.truncf %38 : vector<64x7xf32> to vector<64x7xbf16>
    %c0_52 = arith.constant 0 : index
    %c42 = arith.constant 42 : index
    %40 = vector.load %arg18[%c0_52, %c42] : memref<64x63xbf16, #tpu.memory_space<vmem>>, vector<64x7xbf16>
    tpu.vector_store %arg18[%c0_52, %c42], %39 {strides = array<i32>} : memref<64x63xbf16, #tpu.memory_space<vmem>>, vector<64x7xbf16>,
    %c2_53 = arith.constant 2 : index
    %c1_54 = arith.constant 1 : index
    %c0_55 = arith.constant 0 : index
    %41 = vector.load %arg15[%c2_53, %c1_54, %c0_55] : memref<10x10x7xf32, #tpu.memory_space<vmem>>, vector<8x8x7xf32>
    %42 = vector.shape_cast %41 : vector<8x8x7xf32> to vector<64x7xf32>
    %43 = arith.truncf %42 : vector<64x7xf32> to vector<64x7xbf16>
    %c0_56 = arith.constant 0 : index
    %c49 = arith.constant 49 : index
    %44 = vector.load %arg18[%c0_56, %c49] : memref<64x63xbf16, #tpu.memory_space<vmem>>, vector<64x7xbf16>
    tpu.vector_store %arg18[%c0_56, %c49], %43 {strides = array<i32>} : memref<64x63xbf16, #tpu.memory_space<vmem>>, vector<64x7xbf16>,
    %c2_57 = arith.constant 2 : index
    %c2_58 = arith.constant 2 : index
    %c0_59 = arith.constant 0 : index
    %45 = vector.load %arg15[%c2_57, %c2_58, %c0_59] : memref<10x10x7xf32, #tpu.memory_space<vmem>>, vector<8x8x7xf32>
    %46 = vector.shape_cast %45 : vector<8x8x7xf32> to vector<64x7xf32>
    %47 = arith.truncf %46 : vector<64x7xf32> to vector<64x7xbf16>
    %c0_60 = arith.constant 0 : index
    %c56 = arith.constant 56 : index
    %48 = vector.load %arg18[%c0_60, %c56] : memref<64x63xbf16, #tpu.memory_space<vmem>>, vector<64x7xbf16>
    tpu.vector_store %arg18[%c0_60, %c56], %47 {strides = array<i32>} : memref<64x63xbf16, #tpu.memory_space<vmem>>, vector<64x7xbf16>,
    %c0_61 = arith.constant 0 : index
    %c0_62 = arith.constant 0 : index
    %49 = vector.load %arg18[%c0_61, %c0_62] : memref<64x63xbf16, #tpu.memory_space<vmem>>, vector<64x63xbf16>
    %c0_63 = arith.constant 0 : index
    %c0_64 = arith.constant 0 : index
    %50 = vector.load %arg8[%c0_63, %c0_64] : memref<63x128xbf16, #tpu.memory_space<vmem>>, vector<63x128xbf16>
    %cst_65 = arith.constant dense<0.000000e+00> : vector<64x128xf32>
    %51 = tpu.matmul %49, %50, %cst_65 {dimension_numbers = #tpu.dot_dimension_numbers<[1], [0], [0], [1], [0, 0, 1, 1], [], []>} : vector<64x63xbf16>, vector<63x128xbf16>, vector<64x128xf32> -> vector<64x128xf32>
    %52 = vector.broadcast %12 : vector<1x128xf32> to vector<64x128xf32>
    %53 = arith.addf %51, %52 : vector<64x128xf32>
    %cst_66 = arith.constant 0.000000e+00 : f32
    %54 = vector.broadcast %cst_66 : f32 to vector<64x128xf32>
    %55 = arith.maximumf %53, %54 : vector<64x128xf32>
    %cst_67 = arith.constant dense<0.000000e+00> : vector<128xf32>
    %56 = vector.multi_reduction <add>, %55, %cst_67 [0] : vector<64x128xf32> to vector<128xf32>
    %57 = vector.shape_cast %56 : vector<128xf32> to vector<1x128xf32>
    %cst_68 = arith.constant 1.562500e-02 : f32
    %58 = vector.broadcast %cst_68 : f32 to vector<1x128xf32>
    %59 = arith.mulf %57, %58 : vector<1x128xf32>
    %60 = arith.truncf %59 : vector<1x128xf32> to vector<1x128xbf16>
    %c0_69 = arith.constant 0 : index
    %c0_70 = arith.constant 0 : index
    %61 = vector.load %arg10[%c0_69, %c0_70] : memref<128x8xbf16, #tpu.memory_space<vmem>>, vector<128x8xbf16>
    %cst_71 = arith.constant dense<0.000000e+00> : vector<1x8xf32>
    %62 = tpu.matmul %60, %61, %cst_71 {dimension_numbers = #tpu.dot_dimension_numbers<[1], [0], [0], [1], [0, 0, 1, 1], [], []>} : vector<1x128xbf16>, vector<128x8xbf16>, vector<1x8xf32> -> vector<1x8xf32>
    %cst_72 = arith.constant 0.000000e+00 : f32
    %63 = vector.broadcast %cst_72 : f32 to vector<1x18x7xf32>
    %cst_73 = arith.constant 0.000000e+00 : f32
    %64 = vector.broadcast %cst_73 : f32 to vector<18x1x7xf32>
    %c0_74 = arith.constant 0 : index
    %c0_75 = arith.constant 0 : index
    %c0_76 = arith.constant 0 : index
    %65 = vector.load %arg14[%c0_74, %c0_75, %c0_76] : memref<18x18x7xf32, #tpu.memory_space<vmem>>, vector<1x18x7xf32>
    tpu.vector_store %arg14[%c0_74, %c0_75, %c0_76], %63 {strides = array<i32>} : memref<18x18x7xf32, #tpu.memory_space<vmem>>, vector<1x18x7xf32>,
    %c17 = arith.constant 17 : index
    %c0_77 = arith.constant 0 : index
    %c0_78 = arith.constant 0 : index
    %66 = vector.load %arg14[%c17, %c0_77, %c0_78] : memref<18x18x7xf32, #tpu.memory_space<vmem>>, vector<1x18x7xf32>
    tpu.vector_store %arg14[%c17, %c0_77, %c0_78], %63 {strides = array<i32>} : memref<18x18x7xf32, #tpu.memory_space<vmem>>, vector<1x18x7xf32>,
    %c0_79 = arith.constant 0 : index
    %c0_80 = arith.constant 0 : index
    %c0_81 = arith.constant 0 : index
    %67 = vector.load %arg14[%c0_79, %c0_80, %c0_81] : memref<18x18x7xf32, #tpu.memory_space<vmem>>, vector<18x1x7xf32>
    tpu.vector_store %arg14[%c0_79, %c0_80, %c0_81], %64 {strides = array<i32>} : memref<18x18x7xf32, #tpu.memory_space<vmem>>, vector<18x1x7xf32>,
    %c0_82 = arith.constant 0 : index
    %c17_83 = arith.constant 17 : index
    %c0_84 = arith.constant 0 : index
    %68 = vector.load %arg14[%c0_82, %c17_83, %c0_84] : memref<18x18x7xf32, #tpu.memory_space<vmem>>, vector<18x1x7xf32>
    tpu.vector_store %arg14[%c0_82, %c17_83, %c0_84], %64 {strides = array<i32>} : memref<18x18x7xf32, #tpu.memory_space<vmem>>, vector<18x1x7xf32>,
    %c0_85 = arith.constant 0 : index
    %c0_86 = arith.constant 0 : index
    %c0_87 = arith.constant 0 : index
    %c0_88 = arith.constant 0 : index
    %69 = vector.load %arg1[%c0_85, %c0_86, %c0_87, %c0_88] : memref<1x16x16x3xf32, #tpu.memory_space<vmem>>, vector<1x16x16x3xf32>
    %70 = vector.shape_cast %69 : vector<1x16x16x3xf32> to vector<16x16x3xf32>
    %c1_89 = arith.constant 1 : index
    %c1_90 = arith.constant 1 : index
    %c0_91 = arith.constant 0 : index
    %71 = vector.load %arg14[%c1_89, %c1_90, %c0_91] : memref<18x18x7xf32, #tpu.memory_space<vmem>>, vector<16x16x3xf32>
    tpu.vector_store %arg14[%c1_89, %c1_90, %c0_91], %70 {strides = array<i32>} : memref<18x18x7xf32, #tpu.memory_space<vmem>>, vector<16x16x3xf32>,
    %c0_92 = arith.constant 0 : index
    %c0_93 = arith.constant 0 : index
    %c0_94 = arith.constant 0 : index
    %c0_95 = arith.constant 0 : index
    %72 = vector.load %arg2[%c0_92, %c0_93, %c0_94, %c0_95] : memref<1x16x16x4xf32, #tpu.memory_space<vmem>>, vector<1x16x16x4xf32>
    %73 = vector.shape_cast %72 : vector<1x16x16x4xf32> to vector<16x16x4xf32>
    %c1_96 = arith.constant 1 : index
    %c1_97 = arith.constant 1 : index
    %c3_98 = arith.constant 3 : index
    %74 = vector.load %arg14[%c1_96, %c1_97, %c3_98] : memref<18x18x7xf32, #tpu.memory_space<vmem>>, vector<16x16x4xf32>
    tpu.vector_store %arg14[%c1_96, %c1_97, %c3_98], %73 {strides = array<i32>} : memref<18x18x7xf32, #tpu.memory_space<vmem>>, vector<16x16x4xf32>,
    %c0_99 = arith.constant 0 : index
    %c0_100 = arith.constant 0 : index
    %75 = vector.load %arg7[%c0_99, %c0_100] : memref<1x128xf32, #tpu.memory_space<vmem>>, vector<1x128xf32>
    %c0_101 = arith.constant 0 : index
    %c0_102 = arith.constant 0 : index
    %c0_103 = arith.constant 0 : index
    %76 = vector.load %arg14[%c0_101, %c0_102, %c0_103] : memref<18x18x7xf32, #tpu.memory_space<vmem>>, vector<16x16x7xf32>
    %77 = vector.shape_cast %76 : vector<16x16x7xf32> to vector<256x7xf32>
    %78 = arith.truncf %77 : vector<256x7xf32> to vector<256x7xbf16>
    %c0_104 = arith.constant 0 : index
    %c0_105 = arith.constant 0 : index
    %79 = vector.load %arg17[%c0_104, %c0_105] : memref<256x63xbf16, #tpu.memory_space<vmem>>, vector<256x7xbf16>
    tpu.vector_store %arg17[%c0_104, %c0_105], %78 {strides = array<i32>} : memref<256x63xbf16, #tpu.memory_space<vmem>>, vector<256x7xbf16>,
    %c0_106 = arith.constant 0 : index
    %c1_107 = arith.constant 1 : index
    %c0_108 = arith.constant 0 : index
    %80 = vector.load %arg14[%c0_106, %c1_107, %c0_108] : memref<18x18x7xf32, #tpu.memory_space<vmem>>, vector<16x16x7xf32>
    %81 = vector.shape_cast %80 : vector<16x16x7xf32> to vector<256x7xf32>
    %82 = arith.truncf %81 : vector<256x7xf32> to vector<256x7xbf16>
    %c0_109 = arith.constant 0 : index
    %c7_110 = arith.constant 7 : index
    %83 = vector.load %arg17[%c0_109, %c7_110] : memref<256x63xbf16, #tpu.memory_space<vmem>>, vector<256x7xbf16>
    tpu.vector_store %arg17[%c0_109, %c7_110], %82 {strides = array<i32>} : memref<256x63xbf16, #tpu.memory_space<vmem>>, vector<256x7xbf16>,
    %c0_111 = arith.constant 0 : index
    %c2_112 = arith.constant 2 : index
    %c0_113 = arith.constant 0 : index
    %84 = vector.load %arg14[%c0_111, %c2_112, %c0_113] : memref<18x18x7xf32, #tpu.memory_space<vmem>>, vector<16x16x7xf32>
    %85 = vector.shape_cast %84 : vector<16x16x7xf32> to vector<256x7xf32>
    %86 = arith.truncf %85 : vector<256x7xf32> to vector<256x7xbf16>
    %c0_114 = arith.constant 0 : index
    %c14_115 = arith.constant 14 : index
    %87 = vector.load %arg17[%c0_114, %c14_115] : memref<256x63xbf16, #tpu.memory_space<vmem>>, vector<256x7xbf16>
    tpu.vector_store %arg17[%c0_114, %c14_115], %86 {strides = array<i32>} : memref<256x63xbf16, #tpu.memory_space<vmem>>, vector<256x7xbf16>,
    %c1_116 = arith.constant 1 : index
    %c0_117 = arith.constant 0 : index
    %c0_118 = arith.constant 0 : index
    %88 = vector.load %arg14[%c1_116, %c0_117, %c0_118] : memref<18x18x7xf32, #tpu.memory_space<vmem>>, vector<16x16x7xf32>
    %89 = vector.shape_cast %88 : vector<16x16x7xf32> to vector<256x7xf32>
    %90 = arith.truncf %89 : vector<256x7xf32> to vector<256x7xbf16>
    %c0_119 = arith.constant 0 : index
    %c21_120 = arith.constant 21 : index
    %91 = vector.load %arg17[%c0_119, %c21_120] : memref<256x63xbf16, #tpu.memory_space<vmem>>, vector<256x7xbf16>
    tpu.vector_store %arg17[%c0_119, %c21_120], %90 {strides = array<i32>} : memref<256x63xbf16, #tpu.memory_space<vmem>>, vector<256x7xbf16>,
    %c1_121 = arith.constant 1 : index
    %c1_122 = arith.constant 1 : index
    %c0_123 = arith.constant 0 : index
    %92 = vector.load %arg14[%c1_121, %c1_122, %c0_123] : memref<18x18x7xf32, #tpu.memory_space<vmem>>, vector<16x16x7xf32>
    %93 = vector.shape_cast %92 : vector<16x16x7xf32> to vector<256x7xf32>
    %94 = arith.truncf %93 : vector<256x7xf32> to vector<256x7xbf16>
    %c0_124 = arith.constant 0 : index
    %c28_125 = arith.constant 28 : index
    %95 = vector.load %arg17[%c0_124, %c28_125] : memref<256x63xbf16, #tpu.memory_space<vmem>>, vector<256x7xbf16>
    tpu.vector_store %arg17[%c0_124, %c28_125], %94 {strides = array<i32>} : memref<256x63xbf16, #tpu.memory_space<vmem>>, vector<256x7xbf16>,
    %c1_126 = arith.constant 1 : index
    %c2_127 = arith.constant 2 : index
    %c0_128 = arith.constant 0 : index
    %96 = vector.load %arg14[%c1_126, %c2_127, %c0_128] : memref<18x18x7xf32, #tpu.memory_space<vmem>>, vector<16x16x7xf32>
    %97 = vector.shape_cast %96 : vector<16x16x7xf32> to vector<256x7xf32>
    %98 = arith.truncf %97 : vector<256x7xf32> to vector<256x7xbf16>
    %c0_129 = arith.constant 0 : index
    %c35_130 = arith.constant 35 : index
    %99 = vector.load %arg17[%c0_129, %c35_130] : memref<256x63xbf16, #tpu.memory_space<vmem>>, vector<256x7xbf16>
    tpu.vector_store %arg17[%c0_129, %c35_130], %98 {strides = array<i32>} : memref<256x63xbf16, #tpu.memory_space<vmem>>, vector<256x7xbf16>,
    %c2_131 = arith.constant 2 : index
    %c0_132 = arith.constant 0 : index
    %c0_133 = arith.constant 0 : index
    %100 = vector.load %arg14[%c2_131, %c0_132, %c0_133] : memref<18x18x7xf32, #tpu.memory_space<vmem>>, vector<16x16x7xf32>
    %101 = vector.shape_cast %100 : vector<16x16x7xf32> to vector<256x7xf32>
    %102 = arith.truncf %101 : vector<256x7xf32> to vector<256x7xbf16>
    %c0_134 = arith.constant 0 : index
    %c42_135 = arith.constant 42 : index
    %103 = vector.load %arg17[%c0_134, %c42_135] : memref<256x63xbf16, #tpu.memory_space<vmem>>, vector<256x7xbf16>
    tpu.vector_store %arg17[%c0_134, %c42_135], %102 {strides = array<i32>} : memref<256x63xbf16, #tpu.memory_space<vmem>>, vector<256x7xbf16>,
    %c2_136 = arith.constant 2 : index
    %c1_137 = arith.constant 1 : index
    %c0_138 = arith.constant 0 : index
    %104 = vector.load %arg14[%c2_136, %c1_137, %c0_138] : memref<18x18x7xf32, #tpu.memory_space<vmem>>, vector<16x16x7xf32>
    %105 = vector.shape_cast %104 : vector<16x16x7xf32> to vector<256x7xf32>
    %106 = arith.truncf %105 : vector<256x7xf32> to vector<256x7xbf16>
    %c0_139 = arith.constant 0 : index
    %c49_140 = arith.constant 49 : index
    %107 = vector.load %arg17[%c0_139, %c49_140] : memref<256x63xbf16, #tpu.memory_space<vmem>>, vector<256x7xbf16>
    tpu.vector_store %arg17[%c0_139, %c49_140], %106 {strides = array<i32>} : memref<256x63xbf16, #tpu.memory_space<vmem>>, vector<256x7xbf16>,
    %c2_141 = arith.constant 2 : index
    %c2_142 = arith.constant 2 : index
    %c0_143 = arith.constant 0 : index
    %108 = vector.load %arg14[%c2_141, %c2_142, %c0_143] : memref<18x18x7xf32, #tpu.memory_space<vmem>>, vector<16x16x7xf32>
    %109 = vector.shape_cast %108 : vector<16x16x7xf32> to vector<256x7xf32>
    %110 = arith.truncf %109 : vector<256x7xf32> to vector<256x7xbf16>
    %c0_144 = arith.constant 0 : index
    %c56_145 = arith.constant 56 : index
    %111 = vector.load %arg17[%c0_144, %c56_145] : memref<256x63xbf16, #tpu.memory_space<vmem>>, vector<256x7xbf16>
    tpu.vector_store %arg17[%c0_144, %c56_145], %110 {strides = array<i32>} : memref<256x63xbf16, #tpu.memory_space<vmem>>, vector<256x7xbf16>,
    %c0_146 = arith.constant 0 : index
    %c0_147 = arith.constant 0 : index
    %112 = vector.load %arg17[%c0_146, %c0_147] : memref<256x63xbf16, #tpu.memory_space<vmem>>, vector<256x63xbf16>
    %c0_148 = arith.constant 0 : index
    %c0_149 = arith.constant 0 : index
    %113 = vector.load %arg6[%c0_148, %c0_149] : memref<63x128xbf16, #tpu.memory_space<vmem>>, vector<63x128xbf16>
    %cst_150 = arith.constant dense<0.000000e+00> : vector<256x128xf32>
    %114 = tpu.matmul %112, %113, %cst_150 {dimension_numbers = #tpu.dot_dimension_numbers<[1], [0], [0], [1], [0, 0, 1, 1], [], []>} : vector<256x63xbf16>, vector<63x128xbf16>, vector<256x128xf32> -> vector<256x128xf32>
    %115 = vector.broadcast %75 : vector<1x128xf32> to vector<256x128xf32>
    %116 = arith.addf %114, %115 : vector<256x128xf32>
    %cst_151 = arith.constant 0.000000e+00 : f32
    %117 = vector.broadcast %cst_151 : f32 to vector<256x128xf32>
    %118 = arith.maximumf %116, %117 : vector<256x128xf32>
    %cst_152 = arith.constant 0.000000e+00 : f32
    %119 = vector.broadcast %cst_152 : f32 to vector<1x18x128xf32>
    %cst_153 = arith.constant 0.000000e+00 : f32
    %120 = vector.broadcast %cst_153 : f32 to vector<18x1x128xf32>
    %c0_154 = arith.constant 0 : index
    %c0_155 = arith.constant 0 : index
    %c0_156 = arith.constant 0 : index
    %121 = vector.load %arg16[%c0_154, %c0_155, %c0_156] : memref<18x18x128xf32, #tpu.memory_space<vmem>>, vector<1x18x128xf32>
    tpu.vector_store %arg16[%c0_154, %c0_155, %c0_156], %119 {strides = array<i32>} : memref<18x18x128xf32, #tpu.memory_space<vmem>>, vector<1x18x128xf32>,
    %c17_157 = arith.constant 17 : index
    %c0_158 = arith.constant 0 : index
    %c0_159 = arith.constant 0 : index
    %122 = vector.load %arg16[%c17_157, %c0_158, %c0_159] : memref<18x18x128xf32, #tpu.memory_space<vmem>>, vector<1x18x128xf32>
    tpu.vector_store %arg16[%c17_157, %c0_158, %c0_159], %119 {strides = array<i32>} : memref<18x18x128xf32, #tpu.memory_space<vmem>>, vector<1x18x128xf32>,
    %c0_160 = arith.constant 0 : index
    %c0_161 = arith.constant 0 : index
    %c0_162 = arith.constant 0 : index
    %123 = vector.load %arg16[%c0_160, %c0_161, %c0_162] : memref<18x18x128xf32, #tpu.memory_space<vmem>>, vector<18x1x128xf32>
    tpu.vector_store %arg16[%c0_160, %c0_161, %c0_162], %120 {strides = array<i32>} : memref<18x18x128xf32, #tpu.memory_space<vmem>>, vector<18x1x128xf32>,
    %c0_163 = arith.constant 0 : index
    %c17_164 = arith.constant 17 : index
    %c0_165 = arith.constant 0 : index
    %124 = vector.load %arg16[%c0_163, %c17_164, %c0_165] : memref<18x18x128xf32, #tpu.memory_space<vmem>>, vector<18x1x128xf32>
    tpu.vector_store %arg16[%c0_163, %c17_164, %c0_165], %120 {strides = array<i32>} : memref<18x18x128xf32, #tpu.memory_space<vmem>>, vector<18x1x128xf32>,
    %125 = vector.shape_cast %118 : vector<256x128xf32> to vector<16x16x128xf32>
    %c1_166 = arith.constant 1 : index
    %c1_167 = arith.constant 1 : index
    %c0_168 = arith.constant 0 : index
    %126 = vector.load %arg16[%c1_166, %c1_167, %c0_168] : memref<18x18x128xf32, #tpu.memory_space<vmem>>, vector<16x16x128xf32>
    tpu.vector_store %arg16[%c1_166, %c1_167, %c0_168], %125 {strides = array<i32>} : memref<18x18x128xf32, #tpu.memory_space<vmem>>, vector<16x16x128xf32>,
    %cst_169 = arith.constant 0.000000e+00 : f32
    %127 = vector.broadcast %cst_169 : f32 to vector<256x8xf32>
    %c0_170 = arith.constant 0 : index
    %c0_171 = arith.constant 0 : index
    %c0_172 = arith.constant 0 : index
    %128 = vector.load %arg16[%c0_170, %c0_171, %c0_172] : memref<18x18x128xf32, #tpu.memory_space<vmem>>, vector<16x16x128xf32>
    %129 = vector.shape_cast %128 : vector<16x16x128xf32> to vector<256x128xf32>
    %130 = arith.truncf %129 : vector<256x128xf32> to vector<256x128xbf16>
    %c0_173 = arith.constant 0 : index
    %c0_174 = arith.constant 0 : index
    %131 = vector.load %arg11[%c0_173, %c0_174] : memref<1152x8xbf16, #tpu.memory_space<vmem>>, vector<128x8xbf16>
    %cst_175 = arith.constant dense<0.000000e+00> : vector<256x8xf32>
    %132 = tpu.matmul %130, %131, %cst_175 {dimension_numbers = #tpu.dot_dimension_numbers<[1], [0], [0], [1], [0, 0, 1, 1], [], []>} : vector<256x128xbf16>, vector<128x8xbf16>, vector<256x8xf32> -> vector<256x8xf32>
    %133 = arith.addf %127, %132 : vector<256x8xf32>
    %c0_176 = arith.constant 0 : index
    %c1_177 = arith.constant 1 : index
    %c0_178 = arith.constant 0 : index
    %134 = vector.load %arg16[%c0_176, %c1_177, %c0_178] : memref<18x18x128xf32, #tpu.memory_space<vmem>>, vector<16x16x128xf32>
    %135 = vector.shape_cast %134 : vector<16x16x128xf32> to vector<256x128xf32>
    %136 = arith.truncf %135 : vector<256x128xf32> to vector<256x128xbf16>
    %c128 = arith.constant 128 : index
    %c0_179 = arith.constant 0 : index
    %137 = vector.load %arg11[%c128, %c0_179] : memref<1152x8xbf16, #tpu.memory_space<vmem>>, vector<128x8xbf16>
    %cst_180 = arith.constant dense<0.000000e+00> : vector<256x8xf32>
    %138 = tpu.matmul %136, %137, %cst_180 {dimension_numbers = #tpu.dot_dimension_numbers<[1], [0], [0], [1], [0, 0, 1, 1], [], []>} : vector<256x128xbf16>, vector<128x8xbf16>, vector<256x8xf32> -> vector<256x8xf32>
    %139 = arith.addf %133, %138 : vector<256x8xf32>
    %c0_181 = arith.constant 0 : index
    %c2_182 = arith.constant 2 : index
    %c0_183 = arith.constant 0 : index
    %140 = vector.load %arg16[%c0_181, %c2_182, %c0_183] : memref<18x18x128xf32, #tpu.memory_space<vmem>>, vector<16x16x128xf32>
    %141 = vector.shape_cast %140 : vector<16x16x128xf32> to vector<256x128xf32>
    %142 = arith.truncf %141 : vector<256x128xf32> to vector<256x128xbf16>
    %c256 = arith.constant 256 : index
    %c0_184 = arith.constant 0 : index
    %143 = vector.load %arg11[%c256, %c0_184] : memref<1152x8xbf16, #tpu.memory_space<vmem>>, vector<128x8xbf16>
    %cst_185 = arith.constant dense<0.000000e+00> : vector<256x8xf32>
    %144 = tpu.matmul %142, %143, %cst_185 {dimension_numbers = #tpu.dot_dimension_numbers<[1], [0], [0], [1], [0, 0, 1, 1], [], []>} : vector<256x128xbf16>, vector<128x8xbf16>, vector<256x8xf32> -> vector<256x8xf32>
    %145 = arith.addf %139, %144 : vector<256x8xf32>
    %c1_186 = arith.constant 1 : index
    %c0_187 = arith.constant 0 : index
    %c0_188 = arith.constant 0 : index
    %146 = vector.load %arg16[%c1_186, %c0_187, %c0_188] : memref<18x18x128xf32, #tpu.memory_space<vmem>>, vector<16x16x128xf32>
    %147 = vector.shape_cast %146 : vector<16x16x128xf32> to vector<256x128xf32>
    %148 = arith.truncf %147 : vector<256x128xf32> to vector<256x128xbf16>
    %c384 = arith.constant 384 : index
    %c0_189 = arith.constant 0 : index
    %149 = vector.load %arg11[%c384, %c0_189] : memref<1152x8xbf16, #tpu.memory_space<vmem>>, vector<128x8xbf16>
    %cst_190 = arith.constant dense<0.000000e+00> : vector<256x8xf32>
    %150 = tpu.matmul %148, %149, %cst_190 {dimension_numbers = #tpu.dot_dimension_numbers<[1], [0], [0], [1], [0, 0, 1, 1], [], []>} : vector<256x128xbf16>, vector<128x8xbf16>, vector<256x8xf32> -> vector<256x8xf32>
    %151 = arith.addf %145, %150 : vector<256x8xf32>
    %c1_191 = arith.constant 1 : index
    %c1_192 = arith.constant 1 : index
    %c0_193 = arith.constant 0 : index
    %152 = vector.load %arg16[%c1_191, %c1_192, %c0_193] : memref<18x18x128xf32, #tpu.memory_space<vmem>>, vector<16x16x128xf32>
    %153 = vector.shape_cast %152 : vector<16x16x128xf32> to vector<256x128xf32>
    %154 = arith.truncf %153 : vector<256x128xf32> to vector<256x128xbf16>
    %c512 = arith.constant 512 : index
    %c0_194 = arith.constant 0 : index
    %155 = vector.load %arg11[%c512, %c0_194] : memref<1152x8xbf16, #tpu.memory_space<vmem>>, vector<128x8xbf16>
    %cst_195 = arith.constant dense<0.000000e+00> : vector<256x8xf32>
    %156 = tpu.matmul %154, %155, %cst_195 {dimension_numbers = #tpu.dot_dimension_numbers<[1], [0], [0], [1], [0, 0, 1, 1], [], []>} : vector<256x128xbf16>, vector<128x8xbf16>, vector<256x8xf32> -> vector<256x8xf32>
    %157 = arith.addf %151, %156 : vector<256x8xf32>
    %c1_196 = arith.constant 1 : index
    %c2_197 = arith.constant 2 : index
    %c0_198 = arith.constant 0 : index
    %158 = vector.load %arg16[%c1_196, %c2_197, %c0_198] : memref<18x18x128xf32, #tpu.memory_space<vmem>>, vector<16x16x128xf32>
    %159 = vector.shape_cast %158 : vector<16x16x128xf32> to vector<256x128xf32>
    %160 = arith.truncf %159 : vector<256x128xf32> to vector<256x128xbf16>
    %c640 = arith.constant 640 : index
    %c0_199 = arith.constant 0 : index
    %161 = vector.load %arg11[%c640, %c0_199] : memref<1152x8xbf16, #tpu.memory_space<vmem>>, vector<128x8xbf16>
    %cst_200 = arith.constant dense<0.000000e+00> : vector<256x8xf32>
    %162 = tpu.matmul %160, %161, %cst_200 {dimension_numbers = #tpu.dot_dimension_numbers<[1], [0], [0], [1], [0, 0, 1, 1], [], []>} : vector<256x128xbf16>, vector<128x8xbf16>, vector<256x8xf32> -> vector<256x8xf32>
    %163 = arith.addf %157, %162 : vector<256x8xf32>
    %c2_201 = arith.constant 2 : index
    %c0_202 = arith.constant 0 : index
    %c0_203 = arith.constant 0 : index
    %164 = vector.load %arg16[%c2_201, %c0_202, %c0_203] : memref<18x18x128xf32, #tpu.memory_space<vmem>>, vector<16x16x128xf32>
    %165 = vector.shape_cast %164 : vector<16x16x128xf32> to vector<256x128xf32>
    %166 = arith.truncf %165 : vector<256x128xf32> to vector<256x128xbf16>
    %c768 = arith.constant 768 : index
    %c0_204 = arith.constant 0 : index
    %167 = vector.load %arg11[%c768, %c0_204] : memref<1152x8xbf16, #tpu.memory_space<vmem>>, vector<128x8xbf16>
    %cst_205 = arith.constant dense<0.000000e+00> : vector<256x8xf32>
    %168 = tpu.matmul %166, %167, %cst_205 {dimension_numbers = #tpu.dot_dimension_numbers<[1], [0], [0], [1], [0, 0, 1, 1], [], []>} : vector<256x128xbf16>, vector<128x8xbf16>, vector<256x8xf32> -> vector<256x8xf32>
    %169 = arith.addf %163, %168 : vector<256x8xf32>
    %c2_206 = arith.constant 2 : index
    %c1_207 = arith.constant 1 : index
    %c0_208 = arith.constant 0 : index
    %170 = vector.load %arg16[%c2_206, %c1_207, %c0_208] : memref<18x18x128xf32, #tpu.memory_space<vmem>>, vector<16x16x128xf32>
    %171 = vector.shape_cast %170 : vector<16x16x128xf32> to vector<256x128xf32>
    %172 = arith.truncf %171 : vector<256x128xf32> to vector<256x128xbf16>
    %c896 = arith.constant 896 : index
    %c0_209 = arith.constant 0 : index
    %173 = vector.load %arg11[%c896, %c0_209] : memref<1152x8xbf16, #tpu.memory_space<vmem>>, vector<128x8xbf16>
    %cst_210 = arith.constant dense<0.000000e+00> : vector<256x8xf32>
    %174 = tpu.matmul %172, %173, %cst_210 {dimension_numbers = #tpu.dot_dimension_numbers<[1], [0], [0], [1], [0, 0, 1, 1], [], []>} : vector<256x128xbf16>, vector<128x8xbf16>, vector<256x8xf32> -> vector<256x8xf32>
    %175 = arith.addf %169, %174 : vector<256x8xf32>
    %c2_211 = arith.constant 2 : index
    %c2_212 = arith.constant 2 : index
    %c0_213 = arith.constant 0 : index
    %176 = vector.load %arg16[%c2_211, %c2_212, %c0_213] : memref<18x18x128xf32, #tpu.memory_space<vmem>>, vector<16x16x128xf32>
    %177 = vector.shape_cast %176 : vector<16x16x128xf32> to vector<256x128xf32>
    %178 = arith.truncf %177 : vector<256x128xf32> to vector<256x128xbf16>
    %c1024 = arith.constant 1024 : index
    %c0_214 = arith.constant 0 : index
    %179 = vector.load %arg11[%c1024, %c0_214] : memref<1152x8xbf16, #tpu.memory_space<vmem>>, vector<128x8xbf16>
    %cst_215 = arith.constant dense<0.000000e+00> : vector<256x8xf32>
    %180 = tpu.matmul %178, %179, %cst_215 {dimension_numbers = #tpu.dot_dimension_numbers<[1], [0], [0], [1], [0, 0, 1, 1], [], []>} : vector<256x128xbf16>, vector<128x8xbf16>, vector<256x8xf32> -> vector<256x8xf32>
    %181 = arith.addf %175, %180 : vector<256x8xf32>
    %c0_216 = arith.constant 0 : index
    %c0_217 = arith.constant 0 : index
    %182 = vector.load %arg12[%c0_216, %c0_217] : memref<1x8xf32, #tpu.memory_space<vmem>>, vector<1x8xf32>
    %183 = arith.addf %182, %62 : vector<1x8xf32>
    %184 = vector.broadcast %183 : vector<1x8xf32> to vector<256x8xf32>
    %185 = arith.addf %181, %184 : vector<256x8xf32>
    %186 = tpu.transpose %185, [1, 0] : vector<256x8xf32> -> vector<8x256xf32>
    %c0_218 = arith.constant 0 : index
    %c0_219 = arith.constant 0 : index
    %c0_220 = arith.constant 0 : index
    %187 = vector.load %arg5[%c0_218, %c0_219, %c0_220] : memref<1x4x256xf32, #tpu.memory_space<vmem>>, vector<1x4x256xf32>
    %188 = vector.shape_cast %187 : vector<1x4x256xf32> to vector<4x256xf32>
    %cst_221 = arith.constant dense<0.000000e+00> : vector<4xf32>
    %189 = vector.multi_reduction <add>, %188, %cst_221 [1] : vector<4x256xf32> to vector<4xf32>
    %190 = vector.shape_cast %189 : vector<4xf32> to vector<4x1xf32>
    %cst_222 = arith.constant 3.906250e-03 : f32
    %191 = vector.broadcast %cst_222 : f32 to vector<4x1xf32>
    %192 = arith.mulf %190, %191 : vector<4x1xf32>
    %193 = vector.broadcast %192 : vector<4x1xf32> to vector<4x256xf32>
    %194 = arith.subf %188, %193 : vector<4x256xf32>
    %195 = arith.mulf %194, %194 : vector<4x256xf32>
    %cst_223 = arith.constant dense<0.000000e+00> : vector<4xf32>
    %196 = vector.multi_reduction <add>, %195, %cst_223 [1] : vector<4x256xf32> to vector<4xf32>
    %197 = vector.shape_cast %196 : vector<4xf32> to vector<4x1xf32>
    %cst_224 = arith.constant 3.906250e-03 : f32
    %198 = vector.broadcast %cst_224 : f32 to vector<4x1xf32>
    %199 = arith.mulf %197, %198 : vector<4x1xf32>
    %cst_225 = arith.constant 9.99999974E-6 : f32
    %200 = vector.broadcast %cst_225 : f32 to vector<4x1xf32>
    %201 = arith.addf %199, %200 : vector<4x1xf32>
    %202 = math.rsqrt %201 : vector<4x1xf32>
    %203 = vector.broadcast %202 : vector<4x1xf32> to vector<4x256xf32>
    %204 = arith.mulf %194, %203 : vector<4x256xf32>
    %205 = vector.extract_strided_slice %186 {offsets = [0, 0], sizes = [4, 256], strides = [1, 1]} : vector<8x256xf32> to vector<4x256xf32>
    %cst_226 = arith.constant 1.000000e+00 : f32
    %206 = vector.broadcast %cst_226 : f32 to vector<4x256xf32>
    %207 = arith.addf %206, %205 : vector<4x256xf32>
    %208 = arith.mulf %204, %207 : vector<4x256xf32>
    %209 = vector.extract_strided_slice %186 {offsets = [4, 0], sizes = [4, 256], strides = [1, 1]} : vector<8x256xf32> to vector<4x256xf32>
    %210 = arith.addf %208, %209 : vector<4x256xf32>
    %c0_227 = arith.constant 0 : index
    %c0_228 = arith.constant 0 : index
    %c0_229 = arith.constant 0 : index
    %211 = vector.load %arg13[%c0_227, %c0_228, %c0_229] : memref<1x4x256xf32, #tpu.memory_space<vmem>>, vector<1x4x256xf32>
    %212 = vector.shape_cast %211 : vector<1x4x256xf32> to vector<4x256xf32>
    %213 = vector.shape_cast %210 : vector<4x256xf32> to vector<1x4x256xf32>
    tpu.vector_store %arg13[%c0_227, %c0_228, %c0_229], %213 {strides = array<i32>} : memref<1x4x256xf32, #tpu.memory_space<vmem>>, vector<1x4x256xf32>,
    return
  }
  func.func @transform_0(%arg0: i32) -> (i32, i32, i32, i32) {
    %c0_i32 = arith.constant 0 : i32
    %c0_i32_0 = arith.constant 0 : i32
    %c0_i32_1 = arith.constant 0 : i32
    %c0_i32_2 = arith.constant 0 : i32
    return %arg0, %c0_i32, %c0_i32_0, %c0_i32_1 : i32, i32, i32, i32
  }
  func.func @transform_1(%arg0: i32) -> (i32, i32, i32, i32) {
    %c0_i32 = arith.constant 0 : i32
    %c0_i32_0 = arith.constant 0 : i32
    %c0_i32_1 = arith.constant 0 : i32
    %c0_i32_2 = arith.constant 0 : i32
    return %arg0, %c0_i32, %c0_i32_0, %c0_i32_1 : i32, i32, i32, i32
  }
  func.func @transform_2(%arg0: i32) -> (i32, i32, i32, i32) {
    %c0_i32 = arith.constant 0 : i32
    %c0_i32_0 = arith.constant 0 : i32
    %c0_i32_1 = arith.constant 0 : i32
    %c0_i32_2 = arith.constant 0 : i32
    return %arg0, %c0_i32, %c0_i32_0, %c0_i32_1 : i32, i32, i32, i32
  }
  func.func @transform_3(%arg0: i32) -> (i32, i32, i32, i32) {
    %c0_i32 = arith.constant 0 : i32
    %c0_i32_0 = arith.constant 0 : i32
    %c0_i32_1 = arith.constant 0 : i32
    %c0_i32_2 = arith.constant 0 : i32
    return %arg0, %c0_i32, %c0_i32_0, %c0_i32_1 : i32, i32, i32, i32
  }
  func.func @transform_4(%arg0: i32) -> (i32, i32, i32) {
    %c0_i32 = arith.constant 0 : i32
    %c0_i32_0 = arith.constant 0 : i32
    %c0_i32_1 = arith.constant 0 : i32
    return %arg0, %c0_i32, %c0_i32_0 : i32, i32, i32
  }
  func.func @transform_5(%arg0: i32) -> (i32, i32) {
    %c0_i32 = arith.constant 0 : i32
    %c0_i32_0 = arith.constant 0 : i32
    %c0_i32_1 = arith.constant 0 : i32
    return %c0_i32, %c0_i32_0 : i32, i32
  }
  func.func @transform_6(%arg0: i32) -> (i32, i32) {
    %c0_i32 = arith.constant 0 : i32
    %c0_i32_0 = arith.constant 0 : i32
    %c0_i32_1 = arith.constant 0 : i32
    return %c0_i32, %c0_i32_0 : i32, i32
  }
  func.func @transform_7(%arg0: i32) -> (i32, i32) {
    %c0_i32 = arith.constant 0 : i32
    %c0_i32_0 = arith.constant 0 : i32
    %c0_i32_1 = arith.constant 0 : i32
    return %c0_i32, %c0_i32_0 : i32, i32
  }
  func.func @transform_8(%arg0: i32) -> (i32, i32) {
    %c0_i32 = arith.constant 0 : i32
    %c0_i32_0 = arith.constant 0 : i32
    %c0_i32_1 = arith.constant 0 : i32
    return %c0_i32, %c0_i32_0 : i32, i32
  }
  func.func @transform_9(%arg0: i32) -> (i32, i32) {
    %c0_i32 = arith.constant 0 : i32
    %c0_i32_0 = arith.constant 0 : i32
    %c0_i32_1 = arith.constant 0 : i32
    return %c0_i32, %c0_i32_0 : i32, i32
  }
  func.func @transform_10(%arg0: i32) -> (i32, i32) {
    %c0_i32 = arith.constant 0 : i32
    %c0_i32_0 = arith.constant 0 : i32
    %c0_i32_1 = arith.constant 0 : i32
    return %c0_i32, %c0_i32_0 : i32, i32
  }
  func.func @transform_11(%arg0: i32) -> (i32, i32) {
    %c0_i32 = arith.constant 0 : i32
    %c0_i32_0 = arith.constant 0 : i32
    %c0_i32_1 = arith.constant 0 : i32
    return %c0_i32, %c0_i32_0 : i32, i32
  }
  func.func @transform_12(%arg0: i32) -> (i32, i32, i32) {
    %c0_i32 = arith.constant 0 : i32
    %c0_i32_0 = arith.constant 0 : i32
    %c0_i32_1 = arith.constant 0 : i32
    return %arg0, %c0_i32, %c0_i32_0 : i32, i32, i32
  }
}

</mosaic_0001>

<llo_original>
// kernel: spade_avg_forward.1
$region0: #{spade_avg_forward.1}
  #allocation0 [shape = 'u32[]', space=smem, size = 0x4, offset = 0x4, fixed_abs, tag = 'smem constant byte address 0x4 - core index']
  #allocation1 [shape = 'u32[72,128]{1,0:T(1,128)}', space=vmem, size = 0x9000, scoped, tag = 'internal scratch']
  #allocation2 [shape = 'f32[18,18,7]{2,1,0:T(8,128)}', space=vmem, size = 0x36000, scoped, tag = 'scratch operand']
  #allocation3 [shape = 'f32[10,10,7]{2,1,0:T(8,128)}', space=vmem, size = 0x14000, scoped, tag = 'scratch operand']
  #allocation4 [shape = 'f32[18,18,128]{2,1,0:T(8,128)}', space=vmem, size = 0x36000, scoped, tag = 'scratch operand']
  #allocation5 [shape = 'bf16[256,63]{1,0:T(8,128)(2,1)}', space=vmem, size = 0x10000, scoped, tag = 'scratch operand']
  #allocation6 [shape = 'bf16[64,63]{1,0:T(8,128)(2,1)}', space=vmem, size = 0x4000, scoped, tag = 'scratch operand']
  %s0 = inlined_call_operand.vmem [shape: f32[2,16,16,3], index: 0, kind: input, shape index: {}]
  %s1 = inlined_call_operand.vmem [shape: f32[2,16,16,4], index: 1, kind: input, shape index: {}]
  %s2 = inlined_call_operand.vmem [shape: f32[2,8,8,3], index: 2, kind: input, shape index: {}]
  %s3 = inlined_call_operand.vmem [shape: f32[2,8,8,4], index: 3, kind: input, shape index: {}]
  %s4 = inlined_call_operand.vmem [shape: f32[2,4,256], index: 4, kind: input, shape index: {}]
  %s5 = inlined_call_operand.vmem [shape: bf16[63,128], index: 5, kind: input, shape index: {}]
  %s6 = inlined_call_operand.vmem [shape: f32[1,128], index: 6, kind: input, shape index: {}]
  %s7 = inlined_call_operand.vmem [shape: bf16[63,128], index: 7, kind: input, shape index: {}]
  %s8 = inlined_call_operand.vmem [shape: f32[1,128], index: 8, kind: input, shape index: {}]
  %s9 = inlined_call_operand.vmem [shape: bf16[128,8], index: 9, kind: input, shape index: {}]
  %s10 = inlined_call_operand.vmem [shape: bf16[1152,8], index: 10, kind: input, shape index: {}]
  %s11 = inlined_call_operand.vmem [shape: f32[1,8], index: 11, kind: input, shape index: {}]
  %s12 = inlined_call_operand.vmem [shape: f32[2,4,256], index: 12, kind: output, shape index: {}]
  %s13 = sld [smem:[#allocation0]]
  $region81: #{spade_avg_forward.1} parent=0
    _
  %s15 = ssub.s32 1, %s13
  %s16 = scalar_select 0, %s15, %s13
  loop: start=0, step=1, limit=4
  $region2: #{spade_avg_forward.1} parent=0 // loop_pre_header
    _
  $region3: #{spade_avg_forward.1} parent=0 // loop_header
    %s18 = sphi 0, %s22
    %p19 = scmp.ge.s32.totalorder %s18, 4
    %s28 = sphi 0, %s30
    %s31 = sphi 0, %s28
    %s32 = sphi 0, %s31
    %s48 = sphi 0, %s32
    %s54 = sphi 0, %s56
    %s57 = sphi 0, %s54
    %s58 = sphi 0, %s57
    %s74 = sphi 0, %s58
    %s80 = sphi 0, %s82
    %s83 = sphi 0, %s80
    %s84 = sphi 0, %s83
    %s100 = sphi 0, %s84
    %s106 = sphi 0, %s108
    %s109 = sphi 0, %s106
    %s110 = sphi 0, %s109
    %s126 = sphi 0, %s110
    %s132 = sphi 0, %s134
    %s135 = sphi 0, %s132
    %s136 = sphi 0, %s135
    %s152 = sphi 0, %s136
    %s156 = sphi 0, %s156
    %s158 = sphi 0, %s156
    %s159 = sphi 0, %s158
    %s173 = sphi 0, %s159
    %s177 = sphi 0, %s177
    %s179 = sphi 0, %s177
    %s180 = sphi 0, %s179
    %s194 = sphi 0, %s180
    %s198 = sphi 0, %s198
    %s200 = sphi 0, %s198
    %s201 = sphi 0, %s200
    %s215 = sphi 0, %s201
    %s219 = sphi 0, %s219
    %s221 = sphi 0, %s219
    %s222 = sphi 0, %s221
    %s236 = sphi 0, %s222
    %s240 = sphi 0, %s240
    %s242 = sphi 0, %s240
    %s243 = sphi 0, %s242
    %s257 = sphi 0, %s243
    %s261 = sphi 0, %s261
    %s263 = sphi 0, %s261
    %s264 = sphi 0, %s263
    %s278 = sphi 0, %s264
    %s282 = sphi 0, %s282
    %s284 = sphi 0, %s282
    %s285 = sphi 0, %s284
    %s299 = sphi 0, %s285
    %s305 = sphi 0, %s307
    %s308 = sphi 0, %s305
    %s309 = sphi 0, %s308
    %s325 = sphi 0, %s309
  $region4: #{spade_avg_forward.1} parent=0 // loop_header_branch
    %21 = sbr.rel (%p19) target = $region8
  $region5: #{spade_avg_forward.1} parent=0 // loop_body
    %s23 = ssub.s32 %s18, 1
    %s24 = ssub.s32 %s18, 2
    %s25 = sadd.s32 %s18, 1
    %s26 = ssub.s32 %s18, %s25
    %p27 = scmp.eq.s32.totalorder %s26, 0
    %s29 = sadd.s32 %s28, 1
    %s30 = scalar_select %p27, %s28, %s29
    %p33 = pneg %p27
    %p34 = scmp.eq.s32.totalorder %s18, 1
    %p35 = por %p33, %p34
    %p36 = scmp.ne.s32.totalorder %s28, %s31
    %p37 = scmp.eq.s32.totalorder %s18, 0
    %p38 = por %p36, %p37
    %p39 = scmp.ne.s32.totalorder %s28, %s31
    %p40 = scmp.eq.s32.totalorder %s23, 1
    %p41 = por %p39, %p40
    %p42 = scmp.ne.s32.totalorder %s31, %s32
    %p43 = scmp.eq.s32.totalorder %s23, 0
    %p44 = por %p42, %p43
    %p45 = scmp.ne.s32.totalorder %s31, %s32
    %p46 = scmp.eq.s32.totalorder %s24, 1
    %p47 = por %p45, %p46
    %p49 = scmp.ne.s32.totalorder %s32, %s48
    %p50 = scmp.eq.s32.totalorder %s24, 0
    %p51 = por %p49, %p50
    %s52 = ssub.s32 %s18, %s25
    %p53 = scmp.eq.s32.totalorder %s52, 0
    %s55 = sadd.s32 %s54, 1
    %s56 = scalar_select %p53, %s54, %s55
    %p59 = pneg %p53
    %p60 = scmp.eq.s32.totalorder %s18, 1
    %p61 = por %p59, %p60
    %p62 = scmp.ne.s32.totalorder %s54, %s57
    %p63 = scmp.eq.s32.totalorder %s18, 0
    %p64 = por %p62, %p63
    %p65 = scmp.ne.s32.totalorder %s54, %s57
    %p66 = scmp.eq.s32.totalorder %s23, 1
    %p67 = por %p65, %p66
    %p68 = scmp.ne.s32.totalorder %s57, %s58
    %p69 = scmp.eq.s32.totalorder %s23, 0
    %p70 = por %p68, %p69
    %p71 = scmp.ne.s32.totalorder %s57, %s58
    %p72 = scmp.eq.s32.totalorder %s24, 1
    %p73 = por %p71, %p72
    %p75 = scmp.ne.s32.totalorder %s58, %s74
    %p76 = scmp.eq.s32.totalorder %s24, 0
    %p77 = por %p75, %p76
    %s78 = ssub.s32 %s18, %s25
    %p79 = scmp.eq.s32.totalorder %s78, 0
    %s81 = sadd.s32 %s80, 1
    %s82 = scalar_select %p79, %s80, %s81
    %p85 = pneg %p79
    %p86 = scmp.eq.s32.totalorder %s18, 1
    %p87 = por %p85, %p86
    %p88 = scmp.ne.s32.totalorder %s80, %s83
    %p89 = scmp.eq.s32.totalorder %s18, 0
    %p90 = por %p88, %p89
    %p91 = scmp.ne.s32.totalorder %s80, %s83
    %p92 = scmp.eq.s32.totalorder %s23, 1
    %p93 = por %p91, %p92
    %p94 = scmp.ne.s32.totalorder %s83, %s84
    %p95 = scmp.eq.s32.totalorder %s23, 0
    %p96 = por %p94, %p95
    %p97 = scmp.ne.s32.totalorder %s83, %s84
    %p98 = scmp.eq.s32.totalorder %s24, 1
    %p99 = por %p97, %p98
    %p101 = scmp.ne.s32.totalorder %s84, %s100
    %p102 = scmp.eq.s32.totalorder %s24, 0
    %p103 = por %p101, %p102
    %s104 = ssub.s32 %s18, %s25
    %p105 = scmp.eq.s32.totalorder %s104, 0
    %s107 = sadd.s32 %s106, 1
    %s108 = scalar_select %p105, %s106, %s107
    %p111 = pneg %p105
    %p112 = scmp.eq.s32.totalorder %s18, 1
    %p113 = por %p111, %p112
    %p114 = scmp.ne.s32.totalorder %s106, %s109
    %p115 = scmp.eq.s32.totalorder %s18, 0
    %p116 = por %p114, %p115
    %p117 = scmp.ne.s32.totalorder %s106, %s109
    %p118 = scmp.eq.s32.totalorder %s23, 1
    %p119 = por %p117, %p118
    %p120 = scmp.ne.s32.totalorder %s109, %s110
    %p121 = scmp.eq.s32.totalorder %s23, 0
    %p122 = por %p120, %p121
    %p123 = scmp.ne.s32.totalorder %s109, %s110
    %p124 = scmp.eq.s32.totalorder %s24, 1
    %p125 = por %p123, %p124
    %p127 = scmp.ne.s32.totalorder %s110, %s126
    %p128 = scmp.eq.s32.totalorder %s24, 0
    %p129 = por %p127, %p128
    %s130 = ssub.s32 %s18, %s25
    %p131 = scmp.eq.s32.totalorder %s130, 0
    %s133 = sadd.s32 %s132, 1
    %s134 = scalar_select %p131, %s132, %s133
    %p137 = pneg %p131
    %p138 = scmp.eq.s32.totalorder %s18, 1
    %p139 = por %p137, %p138
    %p140 = scmp.ne.s32.totalorder %s132, %s135
    %p141 = scmp.eq.s32.totalorder %s18, 0
    %p142 = por %p140, %p141
    %p143 = scmp.ne.s32.totalorder %s132, %s135
    %p144 = scmp.eq.s32.totalorder %s23, 1
    %p145 = por %p143, %p144
    %p146 = scmp.ne.s32.totalorder %s135, %s136
    %p147 = scmp.eq.s32.totalorder %s23, 0
    %p148 = por %p146, %p147
    %p149 = scmp.ne.s32.totalorder %s135, %s136
    %p150 = scmp.eq.s32.totalorder %s24, 1
    %p151 = por %p149, %p150
    %p153 = scmp.ne.s32.totalorder %s136, %s152
    %p154 = scmp.eq.s32.totalorder %s24, 0
    %p155 = por %p153, %p154
    %s157 = sadd.s32 %s156, 1
    %p160 = scmp.eq.s32.totalorder %s18, 1
    %p161 = scmp.ne.s32.totalorder %s156, %s158
    %p162 = scmp.eq.s32.totalorder %s18, 0
    %p163 = por %p161, %p162
    %p164 = scmp.ne.s32.totalorder %s156, %s158
    %p165 = scmp.eq.s32.totalorder %s23, 1
    %p166 = por %p164, %p165
    %p167 = scmp.ne.s32.totalorder %s158, %s159
    %p168 = scmp.eq.s32.totalorder %s23, 0
    %p169 = por %p167, %p168
    %p170 = scmp.ne.s32.totalorder %s158, %s159
    %p171 = scmp.eq.s32.totalorder %s24, 1
    %p172 = por %p170, %p171
    %p174 = scmp.ne.s32.totalorder %s159, %s173
    %p175 = scmp.eq.s32.totalorder %s24, 0
    %p176 = por %p174, %p175
    %s178 = sadd.s32 %s177, 1
    %p181 = scmp.eq.s32.totalorder %s18, 1
    %p182 = scmp.ne.s32.totalorder %s177, %s179
    %p183 = scmp.eq.s32.totalorder %s18, 0
    %p184 = por %p182, %p183
    %p185 = scmp.ne.s32.totalorder %s177, %s179
    %p186 = scmp.eq.s32.totalorder %s23, 1
    %p187 = por %p185, %p186
    %p188 = scmp.ne.s32.totalorder %s179, %s180
    %p189 = scmp.eq.s32.totalorder %s23, 0
    %p190 = por %p188, %p189
    %p191 = scmp.ne.s32.totalorder %s179, %s180
    %p192 = scmp.eq.s32.totalorder %s24, 1
    %p193 = por %p191, %p192
    %p195 = scmp.ne.s32.totalorder %s180, %s194
    %p196 = scmp.eq.s32.totalorder %s24, 0
    %p197 = por %p195, %p196
    %s199 = sadd.s32 %s198, 1
    %p202 = scmp.eq.s32.totalorder %s18, 1
    %p203 = scmp.ne.s32.totalorder %s198, %s200
    %p204 = scmp.eq.s32.totalorder %s18, 0
    %p205 = por %p203, %p204
    %p206 = scmp.ne.s32.totalorder %s198, %s200
    %p207 = scmp.eq.s32.totalorder %s23, 1
    %p208 = por %p206, %p207
    %p209 = scmp.ne.s32.totalorder %s200, %s201
    %p210 = scmp.eq.s32.totalorder %s23, 0
    %p211 = por %p209, %p210
    %p212 = scmp.ne.s32.totalorder %s200, %s201
    %p213 = scmp.eq.s32.totalorder %s24, 1
    %p214 = por %p212, %p213
    %p216 = scmp.ne.s32.totalorder %s201, %s215
    %p217 = scmp.eq.s32.totalorder %s24, 0
    %p218 = por %p216, %p217
    %s220 = sadd.s32 %s219, 1
    %p223 = scmp.eq.s32.totalorder %s18, 1
    %p224 = scmp.ne.s32.totalorder %s219, %s221
    %p225 = scmp.eq.s32.totalorder %s18, 0
    %p226 = por %p224, %p225
    %p227 = scmp.ne.s32.totalorder %s219, %s221
    %p228 = scmp.eq.s32.totalorder %s23, 1
    %p229 = por %p227, %p228
    %p230 = scmp.ne.s32.totalorder %s221, %s222
    %p231 = scmp.eq.s32.totalorder %s23, 0
    %p232 = por %p230, %p231
    %p233 = scmp.ne.s32.totalorder %s221, %s222
    %p234 = scmp.eq.s32.totalorder %s24, 1
    %p235 = por %p233, %p234
    %p237 = scmp.ne.s32.totalorder %s222, %s236
    %p238 = scmp.eq.s32.totalorder %s24, 0
    %p239 = por %p237, %p238
    %s241 = sadd.s32 %s240, 1
    %p244 = scmp.eq.s32.totalorder %s18, 1
    %p245 = scmp.ne.s32.totalorder %s240, %s242
    %p246 = scmp.eq.s32.totalorder %s18, 0
    %p247 = por %p245, %p246
    %p248 = scmp.ne.s32.totalorder %s240, %s242
    %p249 = scmp.eq.s32.totalorder %s23, 1
    %p250 = por %p248, %p249
    %p251 = scmp.ne.s32.totalorder %s242, %s243
    %p252 = scmp.eq.s32.totalorder %s23, 0
    %p253 = por %p251, %p252
    %p254 = scmp.ne.s32.totalorder %s242, %s243
    %p255 = scmp.eq.s32.totalorder %s24, 1
    %p256 = por %p254, %p255
    %p258 = scmp.ne.s32.totalorder %s243, %s257
    %p259 = scmp.eq.s32.totalorder %s24, 0
    %p260 = por %p258, %p259
    %s262 = sadd.s32 %s261, 1
    %p265 = scmp.eq.s32.totalorder %s18, 1
    %p266 = scmp.ne.s32.totalorder %s261, %s263
    %p267 = scmp.eq.s32.totalorder %s18, 0
    %p268 = por %p266, %p267
    %p269 = scmp.ne.s32.totalorder %s261, %s263
    %p270 = scmp.eq.s32.totalorder %s23, 1
    %p271 = por %p269, %p270
    %p272 = scmp.ne.s32.totalorder %s263, %s264
    %p273 = scmp.eq.s32.totalorder %s23, 0
    %p274 = por %p272, %p273
    %p275 = scmp.ne.s32.totalorder %s263, %s264
    %p276 = scmp.eq.s32.totalorder %s24, 1
    %p277 = por %p275, %p276
    %p279 = scmp.ne.s32.totalorder %s264, %s278
    %p280 = scmp.eq.s32.totalorder %s24, 0
    %p281 = por %p279, %p280
    %s283 = sadd.s32 %s282, 1
    %p286 = scmp.eq.s32.totalorder %s18, 1
    %p287 = scmp.ne.s32.totalorder %s282, %s284
    %p288 = scmp.eq.s32.totalorder %s18, 0
    %p289 = por %p287, %p288
    %p290 = scmp.ne.s32.totalorder %s282, %s284
    %p291 = scmp.eq.s32.totalorder %s23, 1
    %p292 = por %p290, %p291
    %p293 = scmp.ne.s32.totalorder %s284, %s285
    %p294 = scmp.eq.s32.totalorder %s23, 0
    %p295 = por %p293, %p294
    %p296 = scmp.ne.s32.totalorder %s284, %s285
    %p297 = scmp.eq.s32.totalorder %s24, 1
    %p298 = por %p296, %p297
    %p300 = scmp.ne.s32.totalorder %s285, %s299
    %p301 = scmp.eq.s32.totalorder %s24, 0
    %p302 = por %p300, %p301
    %s303 = ssub.s32 %s18, %s25
    %p304 = scmp.eq.s32.totalorder %s303, 0
    %s306 = sadd.s32 %s305, 1
    %s307 = scalar_select %p304, %s305, %s306
    %p310 = pneg %p304
    %p311 = scmp.eq.s32.totalorder %s18, 1
    %p312 = por %p310, %p311
    %p313 = scmp.ne.s32.totalorder %s305, %s308
    %p314 = scmp.eq.s32.totalorder %s18, 0
    %p315 = por %p313, %p314
    %p316 = scmp.ne.s32.totalorder %s305, %s308
    %p317 = scmp.eq.s32.totalorder %s23, 1
    %p318 = por %p316, %p317
    %p319 = scmp.ne.s32.totalorder %s308, %s309
    %p320 = scmp.eq.s32.totalorder %s23, 0
    %p321 = por %p319, %p320
    %p322 = scmp.ne.s32.totalorder %s308, %s309
    %p323 = scmp.eq.s32.totalorder %s24, 1
    %p324 = por %p322, %p323
    %p326 = scmp.ne.s32.totalorder %s309, %s325
    %p327 = scmp.eq.s32.totalorder %s24, 0
    %p328 = por %p326, %p327
    %p329 = scmp.le.s32.totalorder 1, %s18
    %p330 = scmp.lt.s32.totalorder %s18, 3
    %p331 = pnand %p329, %p330
    %p332 = pneg %p331
    // Predicated region
    $region9: #{spade_avg_forward.1} parent=5 // pred_check
      _
    $region10: #{spade_avg_forward.1} parent=5 // pred_check_branch
      %334 = sbr.rel (%p331) target = $region12
    $region11: #{spade_avg_forward.1} parent=5 // pred_region
      %s335 = ssub.s32 %s18, 1
      // Predicated region
      $region13: #{spade_avg_forward.1} parent=11 // pred_check
        %p336 = pneg %p169
      $region14: #{spade_avg_forward.1} parent=11 // pred_check_branch
        %338 = sbr.rel (%p336) target = $region16
      $region15: #{spade_avg_forward.1} parent=11 // pred_region
        _
      $region16: #{spade_avg_forward.1} parent=11 // pred_fallthru
        _
      // Predicated region
      $region17: #{spade_avg_forward.1} parent=11 // pred_check
        %p339 = pneg %p190
      $region18: #{spade_avg_forward.1} parent=11 // pred_check_branch
        %341 = sbr.rel (%p339) target = $region20
      $region19: #{spade_avg_forward.1} parent=11 // pred_region
        _
      $region20: #{spade_avg_forward.1} parent=11 // pred_fallthru
        _
      // Predicated region
      $region21: #{spade_avg_forward.1} parent=11 // pred_check
        %p342 = pneg %p211
      $region22: #{spade_avg_forward.1} parent=11 // pred_check_branch
        %344 = sbr.rel (%p342) target = $region24
      $region23: #{spade_avg_forward.1} parent=11 // pred_region
        _
      $region24: #{spade_avg_forward.1} parent=11 // pred_fallthru
        _
      // Predicated region
      $region25: #{spade_avg_forward.1} parent=11 // pred_check
        %p345 = pneg %p232
      $region26: #{spade_avg_forward.1} parent=11 // pred_check_branch
        %347 = sbr.rel (%p345) target = $region28
      $region27: #{spade_avg_forward.1} parent=11 // pred_region
        _
      $region28: #{spade_avg_forward.1} parent=11 // pred_fallthru
        _
      // Predicated region
      $region29: #{spade_avg_forward.1} parent=11 // pred_check
        %p348 = pneg %p253
      $region30: #{spade_avg_forward.1} parent=11 // pred_check_branch
        %350 = sbr.rel (%p348) target = $region32
      $region31: #{spade_avg_forward.1} parent=11 // pred_region
        _
      $region32: #{spade_avg_forward.1} parent=11 // pred_fallthru
        _
      // Predicated region
      $region33: #{spade_avg_forward.1} parent=11 // pred_check
        %p351 = pneg %p274
      $region34: #{spade_avg_forward.1} parent=11 // pred_check_branch
        %353 = sbr.rel (%p351) target = $region36
      $region35: #{spade_avg_forward.1} parent=11 // pred_region
        _
      $region36: #{spade_avg_forward.1} parent=11 // pred_fallthru
        _
      // Predicated region
      $region37: #{spade_avg_forward.1} parent=11 // pred_check
        %p354 = pneg %p295
      $region38: #{spade_avg_forward.1} parent=11 // pred_check_branch
        %356 = sbr.rel (%p354) target = $region40
      $region39: #{spade_avg_forward.1} parent=11 // pred_region
        _
      $region40: #{spade_avg_forward.1} parent=11 // pred_fallthru
        _
    $region12: #{spade_avg_forward.1} parent=5 // pred_fallthru
      _
    %p357 = scmp.lt.s32.totalorder %s18, 2
    // Predicated region
    $region41: #{spade_avg_forward.1} parent=5 // pred_check
      %p358 = pneg %p357
    $region42: #{spade_avg_forward.1} parent=5 // pred_check_branch
      %360 = sbr.rel (%p358) target = $region44
    $region43: #{spade_avg_forward.1} parent=5 // pred_region
      // Predicated region
      $region45: #{spade_avg_forward.1} parent=43 // pred_check
        %p361 = pneg %p38
      $region46: #{spade_avg_forward.1} parent=43 // pred_check_branch
        %363 = sbr.rel (%p361) target = $region48
      $region47: #{spade_avg_forward.1} parent=43 // pred_region
        %p364 = scmp.lt.s32.totalorder %s18, 1
        %s365 = scalar_select %p364, %s18, 1
        %s366 = smul.addr %s365, 32
        %s367 = smul.addr %s366, 8
        %s368 = scalar_lea.vmem %s0, %s367
      $region48: #{spade_avg_forward.1} parent=43 // pred_fallthru
        _
      // Predicated region
      $region49: #{spade_avg_forward.1} parent=43 // pred_check
        %p369 = pneg %p64
      $region50: #{spade_avg_forward.1} parent=43 // pred_check_branch
        %371 = sbr.rel (%p369) target = $region52
      $region51: #{spade_avg_forward.1} parent=43 // pred_region
        %p372 = scmp.lt.s32.totalorder %s18, 1
        %s373 = scalar_select %p372, %s18, 1
        %s374 = smul.addr %s373, 32
        %s375 = smul.addr %s374, 8
        %s376 = scalar_lea.vmem %s1, %s375
      $region52: #{spade_avg_forward.1} parent=43 // pred_fallthru
        _
      // Predicated region
      $region53: #{spade_avg_forward.1} parent=43 // pred_check
        %p377 = pneg %p90
      $region54: #{spade_avg_forward.1} parent=43 // pred_check_branch
        %379 = sbr.rel (%p377) target = $region56
      $region55: #{spade_avg_forward.1} parent=43 // pred_region
        %p380 = scmp.lt.s32.totalorder %s18, 1
        %s381 = scalar_select %p380, %s18, 1
        %s382 = smul.addr %s381, 8
        %s383 = smul.addr %s382, 8
        %s384 = scalar_lea.vmem %s2, %s383
      $region56: #{spade_avg_forward.1} parent=43 // pred_fallthru
        _
      // Predicated region
      $region57: #{spade_avg_forward.1} parent=43 // pred_check
        %p385 = pneg %p116
      $region58: #{spade_avg_forward.1} parent=43 // pred_check_branch
        %387 = sbr.rel (%p385) target = $region60
      $region59: #{spade_avg_forward.1} parent=43 // pred_region
        %p388 = scmp.lt.s32.totalorder %s18, 1
        %s389 = scalar_select %p388, %s18, 1
        %s390 = smul.addr %s389, 8
        %s391 = smul.addr %s390, 8
        %s392 = scalar_lea.vmem %s3, %s391
      $region60: #{spade_avg_forward.1} parent=43 // pred_fallthru
        _
      // Predicated region
      $region61: #{spade_avg_forward.1} parent=43 // pred_check
        %p393 = pneg %p142
      $region62: #{spade_avg_forward.1} parent=43 // pred_check_branch
        %395 = sbr.rel (%p393) target = $region64
      $region63: #{spade_avg_forward.1} parent=43 // pred_region
        %p396 = scmp.lt.s32.totalorder %s18, 1
        %s397 = scalar_select %p396, %s18, 1
        %s398 = smul.addr %s397, 2
        %s399 = smul.addr %s398, 4
        %s400 = scalar_lea.vmem %s4, %s399
      $region64: #{spade_avg_forward.1} parent=43 // pred_fallthru
        _
    $region44: #{spade_avg_forward.1} parent=5 // pred_fallthru
      _
    %p401 = scmp.le.s32.totalorder 1, %s18
    %p402 = scmp.lt.s32.totalorder %s18, 3
    %p403 = pnand %p401, %p402
    %p404 = pneg %p403
    // Predicated region
    $region65: #{spade_avg_forward.1} parent=5 // pred_check
      _
    $region66: #{spade_avg_forward.1} parent=5 // pred_check_branch
      %406 = sbr.rel (%p403) target = $region68
    $region67: #{spade_avg_forward.1} parent=5 // pred_region
      %s407 = ssub.s32 %s18, 1
      %p408 = scmp.lt.s32.totalorder %s23, 1
      %s409 = scalar_select %p408, %s23, 1
      %s410 = smul.addr %s409, 32
      %s411 = smul.addr %s410, 8
      %s412 = scalar_lea.vmem %s0, %s411
      %p413 = pneg %p44
      %p414 = pneg %p41
      %p415 = scmp.lt.s32.totalorder %s23, 1
      %s416 = scalar_select %p415, %s23, 1
      %s417 = smul.addr %s416, 32
      %s418 = smul.addr %s417, 8
      %s419 = scalar_lea.vmem %s1, %s418
      %p420 = pneg %p70
      %p421 = pneg %p67
      %p422 = scmp.lt.s32.totalorder %s23, 1
      %s423 = scalar_select %p422, %s23, 1
      %s424 = smul.addr %s423, 8
      %s425 = smul.addr %s424, 8
      %s426 = scalar_lea.vmem %s2, %s425
      %p427 = pneg %p96
      %p428 = pneg %p93
      %p429 = scmp.lt.s32.totalorder %s23, 1
      %s430 = scalar_select %p429, %s23, 1
      %s431 = smul.addr %s430, 8
      %s432 = smul.addr %s431, 8
      %s433 = scalar_lea.vmem %s3, %s432
      %p434 = pneg %p122
      %p435 = pneg %p119
      %p436 = scmp.lt.s32.totalorder %s23, 1
      %s437 = scalar_select %p436, %s23, 1
      %s438 = smul.addr %s437, 2
      %s439 = smul.addr %s438, 4
      %s440 = scalar_lea.vmem %s4, %s439
      %p441 = pneg %p148
      %p442 = pneg %p145
      %p443 = pneg %p169
      %p444 = pneg %p166
      %p445 = pneg %p190
      %p446 = pneg %p187
      %p447 = pneg %p211
      %p448 = pneg %p208
      %p449 = pneg %p232
      %p450 = pneg %p229
      %p451 = pneg %p253
      %p452 = pneg %p250
      %p453 = pneg %p274
      %p454 = pneg %p271
      %p455 = pneg %p295
      %p456 = pneg %p292
      %p457 = pneg %p321
      %p458 = pneg %p318
      %p459 = scmp.lt.s32.totalorder %s23, 1
      %s460 = scalar_select %p459, %s23, 1
      %s461 = smul.addr %s460, 2
      %s462 = smul.addr %s461, 4
      %s463 = scalar_lea.vmem %s12, %s462
      %p464 = scmp.lt.s32.totalorder %s23, 1
      %s465 = scalar_select %p464, %s23, 1
      %s466 = smul.addr %s465, 32
      %s467 = smul.addr %s466, 8
      %s468 = scalar_lea.vmem %s0, %s467
      %p469 = scmp.lt.s32.totalorder %s23, 1
      %s470 = scalar_select %p469, %s23, 1
      %s471 = smul.addr %s470, 32
      %s472 = smul.addr %s471, 8
      %s473 = scalar_lea.vmem %s1, %s472
      %p474 = scmp.lt.s32.totalorder %s23, 1
      %s475 = scalar_select %p474, %s23, 1
      %s476 = smul.addr %s475, 8
      %s477 = smul.addr %s476, 8
      %s478 = scalar_lea.vmem %s2, %s477
      %p479 = scmp.lt.s32.totalorder %s23, 1
      %s480 = scalar_select %p479, %s23, 1
      %s481 = smul.addr %s480, 8
      %s482 = smul.addr %s481, 8
      %s483 = scalar_lea.vmem %s3, %s482
      %p484 = scmp.lt.s32.totalorder %s23, 1
      %s485 = scalar_select %p484, %s23, 1
      %s486 = smul.addr %s485, 2
      %s487 = smul.addr %s486, 4
      %s488 = scalar_lea.vmem %s4, %s487
      %p489 = scmp.lt.s32.totalorder %s23, 1
      %s490 = scalar_select %p489, %s23, 1
      %s491 = smul.addr %s490, 2
      %s492 = smul.addr %s491, 4
      %s493 = scalar_lea.vmem %s12, %s492
      %vm495 = vcmask 56320
      %496 = vst.msk [vmem:[#allocation3] sm:$0xff] %vm495, 0.0
      %vm497 = vcmask 50176
      %498 = vst.msk [vmem:[#allocation3 + $0x8] sm:$0x3] %vm497, 0.0
      %s499 = scalar_lea.vmem [#allocation3], 144
      %500 = vst.msk [vmem:[%s499] sm:$0xff] %vm495, 0.0
      %501 = vst.msk [vmem:[%s499 + $0x8] sm:$0x3] %vm497, 0.0
      %vm502 = vcmask 49152
      %503 = vst.msk [vmem:[#allocation3] sm:$0x1] %vm502, 0.0
      %504 = vst.msk [vmem:[#allocation3 + $0x10] sm:$0x1] %vm502, 0.0
      %505 = vst.msk [vmem:[#allocation3 + $0x20] sm:$0x1] %vm502, 0.0
      %506 = vst.msk [vmem:[#allocation3 + $0x30] sm:$0x1] %vm502, 0.0
      %507 = vst.msk [vmem:[#allocation3 + $0x40] sm:$0x1] %vm502, 0.0
      %508 = vst.msk [vmem:[#allocation3 + $0x50] sm:$0x1] %vm502, 0.0
      %509 = vst.msk [vmem:[#allocation3 + $0x60] sm:$0x1] %vm502, 0.0
      %510 = vst.msk [vmem:[#allocation3 + $0x70] sm:$0x1] %vm502, 0.0
      %511 = vst.msk [vmem:[#allocation3 + $0x80] sm:$0x1] %vm502, 0.0
      %512 = vst.msk [vmem:[#allocation3 + $0x90] sm:$0x1] %vm502, 0.0
      %513 = vst.msk [vmem:[#allocation3 + $0x9] sm:$0x1] %vm502, 0.0
      %514 = vst.msk [vmem:[#allocation3 + $0x19] sm:$0x1] %vm502, 0.0
      %515 = vst.msk [vmem:[#allocation3 + $0x29] sm:$0x1] %vm502, 0.0
      %516 = vst.msk [vmem:[#allocation3 + $0x39] sm:$0x1] %vm502, 0.0
      %517 = vst.msk [vmem:[#allocation3 + $0x49] sm:$0x1] %vm502, 0.0
      %518 = vst.msk [vmem:[#allocation3 + $0x59] sm:$0x1] %vm502, 0.0
      %519 = vst.msk [vmem:[#allocation3 + $0x69] sm:$0x1] %vm502, 0.0
      %520 = vst.msk [vmem:[#allocation3 + $0x79] sm:$0x1] %vm502, 0.0
      %521 = vst.msk [vmem:[#allocation3 + $0x89] sm:$0x1] %vm502, 0.0
      %522 = vst.msk [vmem:[#allocation3 + $0x99] sm:$0x1] %vm502, 0.0
      %v523 = vld [vmem:[%s478] sm:$0xff]
      %v524 = vld [vmem:[%s478 + $0x8] sm:$0xff]
      %v525 = vld [vmem:[%s478 + $0x10] sm:$0xff]
      %v526 = vld [vmem:[%s478 + $0x18] sm:$0xff]
      %v527 = vld [vmem:[%s478 + $0x20] sm:$0xff]
      %v528 = vld [vmem:[%s478 + $0x28] sm:$0xff]
      %v529 = vld [vmem:[%s478 + $0x30] sm:$0xff]
      %v530 = vld [vmem:[%s478 + $0x38] sm:$0xff]
      %s531 = scalar_lea.vmem [#allocation3], 16
      %vm532 = vcmask 23552
      %533 = vst.msk [vmem:[%s531 + $0x1] sm:$0xff] %vm532, %v523
      %534 = vst.msk [vmem:[%s531 + $0x11] sm:$0xff] %vm532, %v524
      %535 = vst.msk [vmem:[%s531 + $0x21] sm:$0xff] %vm532, %v525
      %536 = vst.msk [vmem:[%s531 + $0x31] sm:$0xff] %vm532, %v526
      %537 = vst.msk [vmem:[%s531 + $0x41] sm:$0xff] %vm532, %v527
      %538 = vst.msk [vmem:[%s531 + $0x51] sm:$0xff] %vm532, %v528
      %539 = vst.msk [vmem:[%s531 + $0x61] sm:$0xff] %vm532, %v529
      %540 = vst.msk [vmem:[%s531 + $0x71] sm:$0xff] %vm532, %v530
      %v541 = vld [vmem:[%s483] sm:$0xff]
      %v542 = vld [vmem:[%s483 + $0x8] sm:$0xff]
      %v543 = vld [vmem:[%s483 + $0x10] sm:$0xff]
      %v544 = vld [vmem:[%s483 + $0x18] sm:$0xff]
      %v545 = vld [vmem:[%s483 + $0x20] sm:$0xff]
      %v546 = vld [vmem:[%s483 + $0x28] sm:$0xff]
      %v547 = vld [vmem:[%s483 + $0x30] sm:$0xff]
      %v548 = vld [vmem:[%s483 + $0x38] sm:$0xff]
      %557 = vrot.lane.b32.xlu0 %v541, 3
      %v558 = vpop.permute.xlu0 %557
      %559 = vrot.lane.b32.xlu0 %v542, 3
      %v560 = vpop.permute.xlu0 %559
      %561 = vrot.lane.b32.xlu0 %v543, 3
      %v562 = vpop.permute.xlu0 %561
      %563 = vrot.lane.b32.xlu0 %v544, 3
      %v564 = vpop.permute.xlu0 %563
      %565 = vrot.lane.b32.xlu0 %v545, 3
      %v566 = vpop.permute.xlu0 %565
      %567 = vrot.lane.b32.xlu0 %v546, 3
      %v568 = vpop.permute.xlu0 %567
      %569 = vrot.lane.b32.xlu0 %v547, 3
      %v570 = vpop.permute.xlu0 %569
      %571 = vrot.lane.b32.xlu0 %v548, 3
      %v572 = vpop.permute.xlu0 %571
      %vm581 = vcmask 56344
      %582 = vst.msk [vmem:[%s531 + $0x1] sm:$0xff] %vm581, %v558
      %583 = vst.msk [vmem:[%s531 + $0x11] sm:$0xff] %vm581, %v560
      %584 = vst.msk [vmem:[%s531 + $0x21] sm:$0xff] %vm581, %v562
      %585 = vst.msk [vmem:[%s531 + $0x31] sm:$0xff] %vm581, %v564
      %586 = vst.msk [vmem:[%s531 + $0x41] sm:$0xff] %vm581, %v566
      %587 = vst.msk [vmem:[%s531 + $0x51] sm:$0xff] %vm581, %v568
      %588 = vst.msk [vmem:[%s531 + $0x61] sm:$0xff] %vm581, %v570
      %589 = vst.msk [vmem:[%s531 + $0x71] sm:$0xff] %vm581, %v572
      %v590 = vld [vmem:[%s8] sm:$0x1]
      %v591 = vld [vmem:[#allocation3] sm:$0xff]
      %v592 = vld [vmem:[#allocation3 + $0x10] sm:$0xff]
      %v593 = vld [vmem:[#allocation3 + $0x20] sm:$0xff]
      %v594 = vld [vmem:[#allocation3 + $0x30] sm:$0xff]
      %v595 = vld [vmem:[#allocation3 + $0x40] sm:$0xff]
      %v596 = vld [vmem:[#allocation3 + $0x50] sm:$0xff]
      %v597 = vld [vmem:[#allocation3 + $0x60] sm:$0xff]
      %v598 = vld [vmem:[#allocation3 + $0x70] sm:$0xff]
      %v599 = vpack.c.bf16 %v591, %v591
      %v600 = vpack.c.bf16 %v592, %v592
      %v601 = vpack.c.bf16 %v593, %v593
      %v602 = vpack.c.bf16 %v594, %v594
      %v603 = vpack.c.bf16 %v595, %v595
      %v604 = vpack.c.bf16 %v596, %v596
      %v605 = vpack.c.bf16 %v597, %v597
      %v606 = vpack.c.bf16 %v598, %v598
      %vm607 = vcmask 52224
      %608 = vst.msk [vmem:[#allocation6] sm:$0xf] %vm607, %v599
      %609 = vst.msk [vmem:[#allocation6 + $0x4] sm:$0xf] %vm607, %v600
      %610 = vst.msk [vmem:[#allocation6 + $0x8] sm:$0xf] %vm607, %v601
      %611 = vst.msk [vmem:[#allocation6 + $0xc] sm:$0xf] %vm607, %v602
      %612 = vst.msk [vmem:[#allocation6 + $0x10] sm:$0xf] %vm607, %v603
      %613 = vst.msk [vmem:[#allocation6 + $0x14] sm:$0xf] %vm607, %v604
      %614 = vst.msk [vmem:[#allocation6 + $0x18] sm:$0xf] %vm607, %v605
      %615 = vst.msk [vmem:[#allocation6 + $0x1c] sm:$0xf] %vm607, %v606
      %v616 = vld [vmem:[#allocation3 + $0x1] sm:$0xff]
      %v617 = vld [vmem:[#allocation3 + $0x11] sm:$0xff]
      %v618 = vld [vmem:[#allocation3 + $0x21] sm:$0xff]
      %v619 = vld [vmem:[#allocation3 + $0x31] sm:$0xff]
      %v620 = vld [vmem:[#allocation3 + $0x41] sm:$0xff]
      %v621 = vld [vmem:[#allocation3 + $0x51] sm:$0xff]
      %v622 = vld [vmem:[#allocation3 + $0x61] sm:$0xff]
      %v623 = vld [vmem:[#allocation3 + $0x71] sm:$0xff]
      %v624 = vpack.c.bf16 %v616, %v616
      %v625 = vpack.c.bf16 %v617, %v617
      %v626 = vpack.c.bf16 %v618, %v618
      %v627 = vpack.c.bf16 %v619, %v619
      %v628 = vpack.c.bf16 %v620, %v620
      %v629 = vpack.c.bf16 %v621, %v621
      %v630 = vpack.c.bf16 %v622, %v622
      %v631 = vpack.c.bf16 %v623, %v623
      %640 = vrot.lane.b32.xlu0 %v624, 7
      %v641 = vpop.permute.xlu0 %640
      %642 = vrot.lane.b32.xlu0 %v625, 7
      %v643 = vpop.permute.xlu0 %642
      %644 = vrot.lane.b32.xlu0 %v626, 7
      %v645 = vpop.permute.xlu0 %644
      %646 = vrot.lane.b32.xlu0 %v627, 7
      %v647 = vpop.permute.xlu0 %646
      %648 = vrot.lane.b32.xlu0 %v628, 7
      %v649 = vpop.permute.xlu0 %648
      %650 = vrot.lane.b32.xlu0 %v629, 7
      %v651 = vpop.permute.xlu0 %650
      %652 = vrot.lane.b32.xlu0 %v630, 7
      %v653 = vpop.permute.xlu0 %652
      %654 = vrot.lane.b32.xlu0 %v631, 7
      %v655 = vpop.permute.xlu0 %654
      %vm664 = vcmask 109624
      %665 = vst.msk [vmem:[#allocation6] sm:$0xf] %vm664, %v641
      %666 = vst.msk [vmem:[#allocation6 + $0x4] sm:$0xf] %vm664, %v643
      %667 = vst.msk [vmem:[#allocation6 + $0x8] sm:$0xf] %vm664, %v645
      %668 = vst.msk [vmem:[#allocation6 + $0xc] sm:$0xf] %vm664, %v647
      %669 = vst.msk [vmem:[#allocation6 + $0x10] sm:$0xf] %vm664, %v649
      %670 = vst.msk [vmem:[#allocation6 + $0x14] sm:$0xf] %vm664, %v651
      %671 = vst.msk [vmem:[#allocation6 + $0x18] sm:$0xf] %vm664, %v653
      %672 = vst.msk [vmem:[#allocation6 + $0x1c] sm:$0xf] %vm664, %v655
      %v673 = vld [vmem:[#allocation3 + $0x2] sm:$0xff]
      %v674 = vld [vmem:[#allocation3 + $0x12] sm:$0xff]
      %v675 = vld [vmem:[#allocation3 + $0x22] sm:$0xff]
      %v676 = vld [vmem:[#allocation3 + $0x32] sm:$0xff]
      %v677 = vld [vmem:[#allocation3 + $0x42] sm:$0xff]
      %v678 = vld [vmem:[#allocation3 + $0x52] sm:$0xff]
      %v679 = vld [vmem:[#allocation3 + $0x62] sm:$0xff]
      %v680 = vld [vmem:[#allocation3 + $0x72] sm:$0xff]
      %v681 = vpack.c.bf16 %v673, %v673
      %v682 = vpack.c.bf16 %v674, %v674
      %v683 = vpack.c.bf16 %v675, %v675
      %v684 = vpack.c.bf16 %v676, %v676
      %v685 = vpack.c.bf16 %v677, %v677
      %v686 = vpack.c.bf16 %v678, %v678
      %v687 = vpack.c.bf16 %v679, %v679
      %v688 = vpack.c.bf16 %v680, %v680
      %697 = vrot.lane.b32.xlu0 %v681, 14
      %v698 = vpop.permute.xlu0 %697
      %699 = vrot.lane.b32.xlu0 %v682, 14
      %v700 = vpop.permute.xlu0 %699
      %701 = vrot.lane.b32.xlu0 %v683, 14
      %v702 = vpop.permute.xlu0 %701
      %703 = vrot.lane.b32.xlu0 %v684, 14
      %v704 = vpop.permute.xlu0 %703
      %705 = vrot.lane.b32.xlu0 %v685, 14
      %v706 = vpop.permute.xlu0 %705
      %707 = vrot.lane.b32.xlu0 %v686, 14
      %v708 = vpop.permute.xlu0 %707
      %709 = vrot.lane.b32.xlu0 %v687, 14
      %v710 = vpop.permute.xlu0 %709
      %711 = vrot.lane.b32.xlu0 %v688, 14
      %v712 = vpop.permute.xlu0 %711
      %vm721 = vcmask 167024
      %722 = vst.msk [vmem:[#allocation6] sm:$0xf] %vm721, %v698
      %723 = vst.msk [vmem:[#allocation6 + $0x4] sm:$0xf] %vm721, %v700
      %724 = vst.msk [vmem:[#allocation6 + $0x8] sm:$0xf] %vm721, %v702
      %725 = vst.msk [vmem:[#allocation6 + $0xc] sm:$0xf] %vm721, %v704
      %726 = vst.msk [vmem:[#allocation6 + $0x10] sm:$0xf] %vm721, %v706
      %727 = vst.msk [vmem:[#allocation6 + $0x14] sm:$0xf] %vm721, %v708
      %728 = vst.msk [vmem:[#allocation6 + $0x18] sm:$0xf] %vm721, %v710
      %729 = vst.msk [vmem:[#allocation6 + $0x1c] sm:$0xf] %vm721, %v712
      %v730 = vld [vmem:[%s531] sm:$0xff]
      %v731 = vld [vmem:[%s531 + $0x10] sm:$0xff]
      %v732 = vld [vmem:[%s531 + $0x20] sm:$0xff]
      %v733 = vld [vmem:[%s531 + $0x30] sm:$0xff]
      %v734 = vld [vmem:[%s531 + $0x40] sm:$0xff]
      %v735 = vld [vmem:[%s531 + $0x50] sm:$0xff]
      %v736 = vld [vmem:[%s531 + $0x60] sm:$0xff]
      %v737 = vld [vmem:[%s531 + $0x70] sm:$0xff]
      %v738 = vpack.c.bf16 %v730, %v730
      %v739 = vpack.c.bf16 %v731, %v731
      %v740 = vpack.c.bf16 %v732, %v732
      %v741 = vpack.c.bf16 %v733, %v733
      %v742 = vpack.c.bf16 %v734, %v734
      %v743 = vpack.c.bf16 %v735, %v735
      %v744 = vpack.c.bf16 %v736, %v736
      %v745 = vpack.c.bf16 %v737, %v737
      %754 = vrot.lane.b32.xlu0 %v738, 21
      %v755 = vpop.permute.xlu0 %754
      %756 = vrot.lane.b32.xlu0 %v739, 21
      %v757 = vpop.permute.xlu0 %756
      %758 = vrot.lane.b32.xlu0 %v740, 21
      %v759 = vpop.permute.xlu0 %758
      %760 = vrot.lane.b32.xlu0 %v741, 21
      %v761 = vpop.permute.xlu0 %760
      %762 = vrot.lane.b32.xlu0 %v742, 21
      %v763 = vpop.permute.xlu0 %762
      %764 = vrot.lane.b32.xlu0 %v743, 21
      %v765 = vpop.permute.xlu0 %764
      %766 = vrot.lane.b32.xlu0 %v744, 21
      %v767 = vpop.permute.xlu0 %766
      %768 = vrot.lane.b32.xlu0 %v745, 21
      %v769 = vpop.permute.xlu0 %768
      %vm778 = vcmask 224424
      %779 = vst.msk [vmem:[#allocation6] sm:$0xf] %vm778, %v755
      %780 = vst.msk [vmem:[#allocation6 + $0x4] sm:$0xf] %vm778, %v757
      %781 = vst.msk [vmem:[#allocation6 + $0x8] sm:$0xf] %vm778, %v759
      %782 = vst.msk [vmem:[#allocation6 + $0xc] sm:$0xf] %vm778, %v761
      %783 = vst.msk [vmem:[#allocation6 + $0x10] sm:$0xf] %vm778, %v763
      %784 = vst.msk [vmem:[#allocation6 + $0x14] sm:$0xf] %vm778, %v765
      %785 = vst.msk [vmem:[#allocation6 + $0x18] sm:$0xf] %vm778, %v767
      %786 = vst.msk [vmem:[#allocation6 + $0x1c] sm:$0xf] %vm778, %v769
      %v787 = vld [vmem:[%s531 + $0x1] sm:$0xff]
      %v788 = vld [vmem:[%s531 + $0x11] sm:$0xff]
      %v789 = vld [vmem:[%s531 + $0x21] sm:$0xff]
      %v790 = vld [vmem:[%s531 + $0x31] sm:$0xff]
      %v791 = vld [vmem:[%s531 + $0x41] sm:$0xff]
      %v792 = vld [vmem:[%s531 + $0x51] sm:$0xff]
      %v793 = vld [vmem:[%s531 + $0x61] sm:$0xff]
      %v794 = vld [vmem:[%s531 + $0x71] sm:$0xff]
      %v795 = vpack.c.bf16 %v787, %v787
      %v796 = vpack.c.bf16 %v788, %v788
      %v797 = vpack.c.bf16 %v789, %v789
      %v798 = vpack.c.bf16 %v790, %v790
      %v799 = vpack.c.bf16 %v791, %v791
      %v800 = vpack.c.bf16 %v792, %v792
      %v801 = vpack.c.bf16 %v793, %v793
      %v802 = vpack.c.bf16 %v794, %v794
      %811 = vrot.lane.b32.xlu0 %v795, 28
      %v812 = vpop.permute.xlu0 %811
      %813 = vrot.lane.b32.xlu0 %v796, 28
      %v814 = vpop.permute.xlu0 %813
      %815 = vrot.lane.b32.xlu0 %v797, 28
      %v816 = vpop.permute.xlu0 %815
      %817 = vrot.lane.b32.xlu0 %v798, 28
      %v818 = vpop.permute.xlu0 %817
      %819 = vrot.lane.b32.xlu0 %v799, 28
      %v820 = vpop.permute.xlu0 %819
      %821 = vrot.lane.b32.xlu0 %v800, 28
      %v822 = vpop.permute.xlu0 %821
      %823 = vrot.lane.b32.xlu0 %v801, 28
      %v824 = vpop.permute.xlu0 %823
      %825 = vrot.lane.b32.xlu0 %v802, 28
      %v826 = vpop.permute.xlu0 %825
      %vm835 = vcmask 281824
      %836 = vst.msk [vmem:[#allocation6] sm:$0xf] %vm835, %v812
      %837 = vst.msk [vmem:[#allocation6 + $0x4] sm:$0xf] %vm835, %v814
      %838 = vst.msk [vmem:[#allocation6 + $0x8] sm:$0xf] %vm835, %v816
      %839 = vst.msk [vmem:[#allocation6 + $0xc] sm:$0xf] %vm835, %v818
      %840 = vst.msk [vmem:[#allocation6 + $0x10] sm:$0xf] %vm835, %v820
      %841 = vst.msk [vmem:[#allocation6 + $0x14] sm:$0xf] %vm835, %v822
      %842 = vst.msk [vmem:[#allocation6 + $0x18] sm:$0xf] %vm835, %v824
      %843 = vst.msk [vmem:[#allocation6 + $0x1c] sm:$0xf] %vm835, %v826
      %v844 = vld [vmem:[%s531 + $0x2] sm:$0xff]
      %v845 = vld [vmem:[%s531 + $0x12] sm:$0xff]
      %v846 = vld [vmem:[%s531 + $0x22] sm:$0xff]
      %v847 = vld [vmem:[%s531 + $0x32] sm:$0xff]
      %v848 = vld [vmem:[%s531 + $0x42] sm:$0xff]
      %v849 = vld [vmem:[%s531 + $0x52] sm:$0xff]
      %v850 = vld [vmem:[%s531 + $0x62] sm:$0xff]
      %v851 = vld [vmem:[%s531 + $0x72] sm:$0xff]
      %v852 = vpack.c.bf16 %v844, %v844
      %v853 = vpack.c.bf16 %v845, %v845
      %v854 = vpack.c.bf16 %v846, %v846
      %v855 = vpack.c.bf16 %v847, %v847
      %v856 = vpack.c.bf16 %v848, %v848
      %v857 = vpack.c.bf16 %v849, %v849
      %v858 = vpack.c.bf16 %v850, %v850
      %v859 = vpack.c.bf16 %v851, %v851
      %868 = vrot.lane.b32.xlu0 %v852, 35
      %v869 = vpop.permute.xlu0 %868
      %870 = vrot.lane.b32.xlu0 %v853, 35
      %v871 = vpop.permute.xlu0 %870
      %872 = vrot.lane.b32.xlu0 %v854, 35
      %v873 = vpop.permute.xlu0 %872
      %874 = vrot.lane.b32.xlu0 %v855, 35
      %v875 = vpop.permute.xlu0 %874
      %876 = vrot.lane.b32.xlu0 %v856, 35
      %v877 = vpop.permute.xlu0 %876
      %878 = vrot.lane.b32.xlu0 %v857, 35
      %v879 = vpop.permute.xlu0 %878
      %880 = vrot.lane.b32.xlu0 %v858, 35
      %v881 = vpop.permute.xlu0 %880
      %882 = vrot.lane.b32.xlu0 %v859, 35
      %v883 = vpop.permute.xlu0 %882
      %vm892 = vcmask 339224
      %893 = vst.msk [vmem:[#allocation6] sm:$0xf] %vm892, %v869
      %894 = vst.msk [vmem:[#allocation6 + $0x4] sm:$0xf] %vm892, %v871
      %895 = vst.msk [vmem:[#allocation6 + $0x8] sm:$0xf] %vm892, %v873
      %896 = vst.msk [vmem:[#allocation6 + $0xc] sm:$0xf] %vm892, %v875
      %897 = vst.msk [vmem:[#allocation6 + $0x10] sm:$0xf] %vm892, %v877
      %898 = vst.msk [vmem:[#allocation6 + $0x14] sm:$0xf] %vm892, %v879
      %899 = vst.msk [vmem:[#allocation6 + $0x18] sm:$0xf] %vm892, %v881
      %900 = vst.msk [vmem:[#allocation6 + $0x1c] sm:$0xf] %vm892, %v883
      %s901 = scalar_lea.vmem [#allocation3], 32
      %v902 = vld [vmem:[%s901] sm:$0xff]
      %v903 = vld [vmem:[%s901 + $0x10] sm:$0xff]
      %v904 = vld [vmem:[%s901 + $0x20] sm:$0xff]
      %v905 = vld [vmem:[%s901 + $0x30] sm:$0xff]
      %v906 = vld [vmem:[%s901 + $0x40] sm:$0xff]
      %v907 = vld [vmem:[%s901 + $0x50] sm:$0xff]
      %v908 = vld [vmem:[%s901 + $0x60] sm:$0xff]
      %v909 = vld [vmem:[%s901 + $0x70] sm:$0xff]
      %v910 = vpack.c.bf16 %v902, %v902
      %v911 = vpack.c.bf16 %v903, %v903
      %v912 = vpack.c.bf16 %v904, %v904
      %v913 = vpack.c.bf16 %v905, %v905
      %v914 = vpack.c.bf16 %v906, %v906
      %v915 = vpack.c.bf16 %v907, %v907
      %v916 = vpack.c.bf16 %v908, %v908
      %v917 = vpack.c.bf16 %v909, %v909
      %926 = vrot.lane.b32.xlu0 %v910, 42
      %v927 = vpop.permute.xlu0 %926
      %928 = vrot.lane.b32.xlu0 %v911, 42
      %v929 = vpop.permute.xlu0 %928
      %930 = vrot.lane.b32.xlu0 %v912, 42
      %v931 = vpop.permute.xlu0 %930
      %932 = vrot.lane.b32.xlu0 %v913, 42
      %v933 = vpop.permute.xlu0 %932
      %934 = vrot.lane.b32.xlu0 %v914, 42
      %v935 = vpop.permute.xlu0 %934
      %936 = vrot.lane.b32.xlu0 %v915, 42
      %v937 = vpop.permute.xlu0 %936
      %938 = vrot.lane.b32.xlu0 %v916, 42
      %v939 = vpop.permute.xlu0 %938
      %940 = vrot.lane.b32.xlu0 %v917, 42
      %v941 = vpop.permute.xlu0 %940
      %vm950 = vcmask 396624
      %951 = vst.msk [vmem:[#allocation6] sm:$0xf] %vm950, %v927
      %952 = vst.msk [vmem:[#allocation6 + $0x4] sm:$0xf] %vm950, %v929
      %953 = vst.msk [vmem:[#allocation6 + $0x8] sm:$0xf] %vm950, %v931
      %954 = vst.msk [vmem:[#allocation6 + $0xc] sm:$0xf] %vm950, %v933
      %955 = vst.msk [vmem:[#allocation6 + $0x10] sm:$0xf] %vm950, %v935
      %956 = vst.msk [vmem:[#allocation6 + $0x14] sm:$0xf] %vm950, %v937
      %957 = vst.msk [vmem:[#allocation6 + $0x18] sm:$0xf] %vm950, %v939
      %958 = vst.msk [vmem:[#allocation6 + $0x1c] sm:$0xf] %vm950, %v941
      %v959 = vld [vmem:[%s901 + $0x1] sm:$0xff]
      %v960 = vld [vmem:[%s901 + $0x11] sm:$0xff]
      %v961 = vld [vmem:[%s901 + $0x21] sm:$0xff]
      %v962 = vld [vmem:[%s901 + $0x31] sm:$0xff]
      %v963 = vld [vmem:[%s901 + $0x41] sm:$0xff]
      %v964 = vld [vmem:[%s901 + $0x51] sm:$0xff]
      %v965 = vld [vmem:[%s901 + $0x61] sm:$0xff]
      %v966 = vld [vmem:[%s901 + $0x71] sm:$0xff]
      %v967 = vpack.c.bf16 %v959, %v959
      %v968 = vpack.c.bf16 %v960, %v960
      %v969 = vpack.c.bf16 %v961, %v961
      %v970 = vpack.c.bf16 %v962, %v962
      %v971 = vpack.c.bf16 %v963, %v963
      %v972 = vpack.c.bf16 %v964, %v964
      %v973 = vpack.c.bf16 %v965, %v965
      %v974 = vpack.c.bf16 %v966, %v966
      %983 = vrot.lane.b32.xlu0 %v967, 49
      %v984 = vpop.permute.xlu0 %983
      %985 = vrot.lane.b32.xlu0 %v968, 49
      %v986 = vpop.permute.xlu0 %985
      %987 = vrot.lane.b32.xlu0 %v969, 49
      %v988 = vpop.permute.xlu0 %987
      %989 = vrot.lane.b32.xlu0 %v970, 49
      %v990 = vpop.permute.xlu0 %989
      %991 = vrot.lane.b32.xlu0 %v971, 49
      %v992 = vpop.permute.xlu0 %991
      %993 = vrot.lane.b32.xlu0 %v972, 49
      %v994 = vpop.permute.xlu0 %993
      %995 = vrot.lane.b32.xlu0 %v973, 49
      %v996 = vpop.permute.xlu0 %995
      %997 = vrot.lane.b32.xlu0 %v974, 49
      %v998 = vpop.permute.xlu0 %997
      %vm1007 = vcmask 454024
      %1008 = vst.msk [vmem:[#allocation6] sm:$0xf] %vm1007, %v984
      %1009 = vst.msk [vmem:[#allocation6 + $0x4] sm:$0xf] %vm1007, %v986
      %1010 = vst.msk [vmem:[#allocation6 + $0x8] sm:$0xf] %vm1007, %v988
      %1011 = vst.msk [vmem:[#allocation6 + $0xc] sm:$0xf] %vm1007, %v990
      %1012 = vst.msk [vmem:[#allocation6 + $0x10] sm:$0xf] %vm1007, %v992
      %1013 = vst.msk [vmem:[#allocation6 + $0x14] sm:$0xf] %vm1007, %v994
      %1014 = vst.msk [vmem:[#allocation6 + $0x18] sm:$0xf] %vm1007, %v996
      %1015 = vst.msk [vmem:[#allocation6 + $0x1c] sm:$0xf] %vm1007, %v998
      %v1016 = vld [vmem:[%s901 + $0x2] sm:$0xff]
      %v1017 = vld [vmem:[%s901 + $0x12] sm:$0xff]
      %v1018 = vld [vmem:[%s901 + $0x22] sm:$0xff]
      %v1019 = vld [vmem:[%s901 + $0x32] sm:$0xff]
      %v1020 = vld [vmem:[%s901 + $0x42] sm:$0xff]
      %v1021 = vld [vmem:[%s901 + $0x52] sm:$0xff]
      %v1022 = vld [vmem:[%s901 + $0x62] sm:$0xff]
      %v1023 = vld [vmem:[%s901 + $0x72] sm:$0xff]
      %v1024 = vpack.c.bf16 %v1016, %v1016
      %v1025 = vpack.c.bf16 %v1017, %v1017
      %v1026 = vpack.c.bf16 %v1018, %v1018
      %v1027 = vpack.c.bf16 %v1019, %v1019
      %v1028 = vpack.c.bf16 %v1020, %v1020
      %v1029 = vpack.c.bf16 %v1021, %v1021
      %v1030 = vpack.c.bf16 %v1022, %v1022
      %v1031 = vpack.c.bf16 %v1023, %v1023
      %1040 = vrot.lane.b32.xlu0 %v1024, 56
      %v1041 = vpop.permute.xlu0 %1040
      %1042 = vrot.lane.b32.xlu0 %v1025, 56
      %v1043 = vpop.permute.xlu0 %1042
      %1044 = vrot.lane.b32.xlu0 %v1026, 56
      %v1045 = vpop.permute.xlu0 %1044
      %1046 = vrot.lane.b32.xlu0 %v1027, 56
      %v1047 = vpop.permute.xlu0 %1046
      %1048 = vrot.lane.b32.xlu0 %v1028, 56
      %v1049 = vpop.permute.xlu0 %1048
      %1050 = vrot.lane.b32.xlu0 %v1029, 56
      %v1051 = vpop.permute.xlu0 %1050
      %1052 = vrot.lane.b32.xlu0 %v1030, 56
      %v1053 = vpop.permute.xlu0 %1052
      %1054 = vrot.lane.b32.xlu0 %v1031, 56
      %v1055 = vpop.permute.xlu0 %1054
      %vm1064 = vcmask 511424
      %1065 = vst.msk [vmem:[#allocation6] sm:$0xf] %vm1064, %v1041
      %1066 = vst.msk [vmem:[#allocation6 + $0x4] sm:$0xf] %vm1064, %v1043
      %1067 = vst.msk [vmem:[#allocation6 + $0x8] sm:$0xf] %vm1064, %v1045
      %1068 = vst.msk [vmem:[#allocation6 + $0xc] sm:$0xf] %vm1064, %v1047
      %1069 = vst.msk [vmem:[#allocation6 + $0x10] sm:$0xf] %vm1064, %v1049
      %1070 = vst.msk [vmem:[#allocation6 + $0x14] sm:$0xf] %vm1064, %v1051
      %1071 = vst.msk [vmem:[#allocation6 + $0x18] sm:$0xf] %vm1064, %v1053
      %1072 = vst.msk [vmem:[#allocation6 + $0x1c] sm:$0xf] %vm1064, %v1055
      %v1073 = vld [vmem:[#allocation6] sm:$0xf]
      %v1074 = vld [vmem:[#allocation6 + $0x4] sm:$0xf]
      %v1075 = vld [vmem:[#allocation6 + $0x8] sm:$0xf]
      %v1076 = vld [vmem:[#allocation6 + $0xc] sm:$0xf]
      %v1077 = vld [vmem:[#allocation6 + $0x10] sm:$0xf]
      %v1078 = vld [vmem:[#allocation6 + $0x14] sm:$0xf]
      %v1079 = vld [vmem:[#allocation6 + $0x18] sm:$0xf]
      %v1080 = vld [vmem:[#allocation6 + $0x1c] sm:$0xf]
      %v1081 = vld [vmem:[%s7] sm:$0xf]
      %v1082 = vld [vmem:[%s7 + $0x4] sm:$0xf]
      %v1083 = vld [vmem:[%s7 + $0x8] sm:$0xf]
      %v1084 = vld [vmem:[%s7 + $0xc] sm:$0xf]
      %v1085 = vld [vmem:[%s7 + $0x10] sm:$0xf]
      %v1086 = vld [vmem:[%s7 + $0x14] sm:$0xf]
      %v1087 = vld [vmem:[%s7 + $0x18] sm:$0xf]
      %v1088 = vld [vmem:[%s7 + $0x1c] sm:$0xf]
      %v1090 = vperm.slane %v590, 0
      %v1100 = vunpack.c.l.b16 %v1073
      %v1101 = vunpack.c.l.b16 %v1074
      %v1102 = vunpack.c.l.b16 %v1075
      %v1103 = vunpack.c.l.b16 %v1076
      %v1104 = vunpack.c.l.b16 %v1077
      %v1105 = vunpack.c.l.b16 %v1078
      %v1106 = vunpack.c.l.b16 %v1079
      %v1107 = vunpack.c.l.b16 %v1080
      %v1108 = vpack.c.b16 %v1101, %v1100
      %v1109 = vpack.c.b16 %v1103, %v1102
      %v1110 = vpack.c.b16 %v1105, %v1104
      %v1111 = vpack.c.b16 %v1107, %v1106
      %v1120 = vunpack.c.l.b16 %v1081
      %v1121 = vunpack.c.l.b16 %v1082
      %v1122 = vunpack.c.l.b16 %v1083
      %v1123 = vunpack.c.l.b16 %v1084
      %v1124 = vunpack.c.l.b16 %v1085
      %v1125 = vunpack.c.l.b16 %v1086
      %v1126 = vunpack.c.l.b16 %v1087
      %v1127 = vunpack.c.l.b16 %v1088
      %v1128 = vpack.c.b16 %v1121, %v1120
      %v1129 = vpack.c.b16 %v1123, %v1122
      %v1130 = vpack.c.b16 %v1125, %v1124
      %v1131 = vpack.c.b16 %v1127, %v1126
      %vm1135 = vcmask 515072
      %v1137 = vsel %vm1135, %v1108, 0
      %v1140 = vsel %vm1135, %v1109, 0
      %v1143 = vsel %vm1135, %v1110, 0
      %v1146 = vsel %vm1135, %v1111, 0
      %vm1148 = vcmask 1046528
      %vm1149 = vcmask 1047552
      %v1150 = vsel %vm1148, 4294967295, 65535
      %v1151 = vsel %vm1149, %v1150, 0
      %v1153 = vand.u32 %v1131, %v1151
      %1155 = vmatpush.bf16.msra.mxu0 0
      %1156 = vmatpush.bf16.msra.mxu0 0
      %1157 = vmatpush.bf16.msra.mxu0 0
      %1158 = vmatpush.bf16.msra.mxu0 0
      %1159 = vmatpush.bf16.msra.mxu0 %v1153
      %1160 = vmatpush.bf16.msra.mxu0 %v1130
      %1161 = vmatpush.bf16.msra.mxu0 %v1129
      %1162 = vmatpush.bf16.msra.mxu0 %v1128
      %1163 = vmatmul.bf16.gmra.mxu0 %v1137
      %v1164 = vpop.f32.mrf.mxu0
      %v1165 = vadd.f32 %v1090, %v1164
      %v1166 = vpop.f32.mrf.mxu0
      %v1167 = vadd.f32 %v1090, %v1166
      %1168 = vmatmul.bf16.gmra.mxu0 %v1140
      %v1169 = vpop.f32.mrf.mxu0
      %v1170 = vadd.f32 %v1090, %v1169
      %v1171 = vpop.f32.mrf.mxu0
      %v1172 = vadd.f32 %v1090, %v1171
      %1173 = vmatmul.bf16.gmra.mxu0 %v1143
      %v1174 = vpop.f32.mrf.mxu0
      %v1175 = vadd.f32 %v1090, %v1174
      %v1176 = vpop.f32.mrf.mxu0
      %v1177 = vadd.f32 %v1090, %v1176
      %1178 = vmatmul.bf16.gmra.mxu0 %v1146
      %v1179 = vpop.f32.mrf.mxu0
      %v1180 = vadd.f32 %v1090, %v1179
      %v1181 = vpop.f32.mrf.mxu0
      %v1182 = vadd.f32 %v1090, %v1181
      %1183 = vdwg.mxu0
      %v1184 = vmax.f32 %v1165, 0.0
      %v1185 = vmax.f32 %v1167, 0.0
      %v1186 = vmax.f32 %v1170, 0.0
      %v1187 = vmax.f32 %v1172, 0.0
      %v1188 = vmax.f32 %v1175, 0.0
      %v1189 = vmax.f32 %v1177, 0.0
      %v1190 = vmax.f32 %v1180, 0.0
      %v1191 = vmax.f32 %v1182, 0.0
      %v1192 = vadd.f32 %v1184, %v1185
      %v1193 = vadd.f32 %v1192, %v1186
      %v1194 = vadd.f32 %v1193, %v1187
      %v1195 = vadd.f32 %v1194, %v1188
      %v1196 = vadd.f32 %v1195, %v1189
      %v1197 = vadd.f32 %v1196, %v1190
      %v1198 = vadd.f32 %v1197, %v1191
      %v1199 = vrot.slane %v1198, 4
      %v1200 = vadd.f32 %v1198, %v1199
      %v1201 = vrot.slane %v1200, 2
      %v1202 = vadd.f32 %v1200, %v1201
      %v1203 = vrot.slane %v1202, 1
      %v1204 = vadd.f32 %v1202, %v1203
      %v1205 = vmul.f32 %v1204, 0.015625
      %v1206 = vpack.c.bf16 %v1205, %v1205
      %v1207 = vld [vmem:[%s9] sm:$0xf]
      %v1208 = vld [vmem:[%s9 + $0x4] sm:$0xf]
      %v1209 = vld [vmem:[%s9 + $0x8] sm:$0xf]
      %v1210 = vld [vmem:[%s9 + $0xc] sm:$0xf]
      %v1211 = vld [vmem:[%s9 + $0x10] sm:$0xf]
      %v1212 = vld [vmem:[%s9 + $0x14] sm:$0xf]
      %v1213 = vld [vmem:[%s9 + $0x18] sm:$0xf]
      %v1214 = vld [vmem:[%s9 + $0x1c] sm:$0xf]
      %v1215 = vld [vmem:[%s9 + $0x20] sm:$0xf]
      %v1216 = vld [vmem:[%s9 + $0x24] sm:$0xf]
      %v1217 = vld [vmem:[%s9 + $0x28] sm:$0xf]
      %v1218 = vld [vmem:[%s9 + $0x2c] sm:$0xf]
      %v1219 = vld [vmem:[%s9 + $0x30] sm:$0xf]
      %v1220 = vld [vmem:[%s9 + $0x34] sm:$0xf]
      %v1221 = vld [vmem:[%s9 + $0x38] sm:$0xf]
      %v1222 = vld [vmem:[%s9 + $0x3c] sm:$0xf]
      %v1239 = vunpack.c.l.b16 %v1207
      %v1240 = vunpack.c.l.b16 %v1208
      %v1241 = vunpack.c.l.b16 %v1209
      %v1242 = vunpack.c.l.b16 %v1210
      %v1243 = vunpack.c.l.b16 %v1211
      %v1244 = vunpack.c.l.b16 %v1212
      %v1245 = vunpack.c.l.b16 %v1213
      %v1246 = vunpack.c.l.b16 %v1214
      %v1247 = vunpack.c.l.b16 %v1215
      %v1248 = vunpack.c.l.b16 %v1216
      %v1249 = vunpack.c.l.b16 %v1217
      %v1250 = vunpack.c.l.b16 %v1218
      %v1251 = vunpack.c.l.b16 %v1219
      %v1252 = vunpack.c.l.b16 %v1220
      %v1253 = vunpack.c.l.b16 %v1221
      %v1254 = vunpack.c.l.b16 %v1222
      %v1255 = vpack.c.b16 %v1240, %v1239
      %v1256 = vpack.c.b16 %v1242, %v1241
      %v1257 = vpack.c.b16 %v1244, %v1243
      %v1258 = vpack.c.b16 %v1246, %v1245
      %v1259 = vpack.c.b16 %v1248, %v1247
      %v1260 = vpack.c.b16 %v1250, %v1249
      %v1261 = vpack.c.b16 %v1252, %v1251
      %v1262 = vpack.c.b16 %v1254, %v1253
      %1271 = vmatpush.bf16.msra.mxu0 %v1262
      %1272 = vmatpush.bf16.msra.mxu0 %v1261
      %1273 = vmatpush.bf16.msra.mxu0 %v1260
      %1274 = vmatpush.bf16.msra.mxu0 %v1259
      %1275 = vmatpush.bf16.msra.mxu0 %v1258
      %1276 = vmatpush.bf16.msra.mxu0 %v1257
      %1277 = vmatpush.bf16.msra.mxu0 %v1256
      %1278 = vmatpush.bf16.msra.mxu0 %v1255
      %1279 = vmatmul.bf16.gmra.mxu0 %v1206
      %v1280 = vpop.f32.mrf.mxu0
      %v1281 = vadd.f32 0.0, %v1280
      %v1282 = vpop.f32.mrf.mxu0
      %1283 = vdwg.mxu0
      %1284 = vst.msk [vmem:[#allocation2] sm:$0xff] %vm495, 0.0
      %1285 = vst.msk [vmem:[#allocation2 + $0x8] sm:$0xff] %vm495, 0.0
      %1286 = vst.msk [vmem:[#allocation2 + $0x10] sm:$0x3] %vm497, 0.0
      %s1287 = scalar_lea.vmem [#allocation2], 408
      %1288 = vst.msk [vmem:[%s1287] sm:$0xff] %vm495, 0.0
      %1289 = vst.msk [vmem:[%s1287 + $0x8] sm:$0xff] %vm495, 0.0
      %1290 = vst.msk [vmem:[%s1287 + $0x10] sm:$0x3] %vm497, 0.0
      %1291 = vst.msk [vmem:[#allocation2] sm:$0x1] %vm502, 0.0
      %1292 = vst.msk [vmem:[#allocation2 + $0x18] sm:$0x1] %vm502, 0.0
      %1293 = vst.msk [vmem:[#allocation2 + $0x30] sm:$0x1] %vm502, 0.0
      %1294 = vst.msk [vmem:[#allocation2 + $0x48] sm:$0x1] %vm502, 0.0
      %1295 = vst.msk [vmem:[#allocation2 + $0x60] sm:$0x1] %vm502, 0.0
      %1296 = vst.msk [vmem:[#allocation2 + $0x78] sm:$0x1] %vm502, 0.0
      %1297 = vst.msk [vmem:[#allocation2 + $0x90] sm:$0x1] %vm502, 0.0
      %1298 = vst.msk [vmem:[#allocation2 + $0xa8] sm:$0x1] %vm502, 0.0
      %1299 = vst.msk [vmem:[#allocation2 + $0xc0] sm:$0x1] %vm502, 0.0
      %1300 = vst.msk [vmem:[#allocation2 + $0xd8] sm:$0x1] %vm502, 0.0
      %1301 = vst.msk [vmem:[#allocation2 + $0xf0] sm:$0x1] %vm502, 0.0
      %1302 = vst.msk [vmem:[#allocation2 + $0x108] sm:$0x1] %vm502, 0.0
      %1303 = vst.msk [vmem:[#allocation2 + $0x120] sm:$0x1] %vm502, 0.0
      %1304 = vst.msk [vmem:[#allocation2 + $0x138] sm:$0x1] %vm502, 0.0
      %1305 = vst.msk [vmem:[#allocation2 + $0x150] sm:$0x1] %vm502, 0.0
      %1306 = vst.msk [vmem:[#allocation2 + $0x168] sm:$0x1] %vm502, 0.0
      %1307 = vst.msk [vmem:[#allocation2 + $0x180] sm:$0x1] %vm502, 0.0
      %1308 = vst.msk [vmem:[#allocation2 + $0x198] sm:$0x1] %vm502, 0.0
      %1309 = vst.msk [vmem:[#allocation2 + $0x11] sm:$0x1] %vm502, 0.0
      %1310 = vst.msk [vmem:[#allocation2 + $0x29] sm:$0x1] %vm502, 0.0
      %1311 = vst.msk [vmem:[#allocation2 + $0x41] sm:$0x1] %vm502, 0.0
      %1312 = vst.msk [vmem:[#allocation2 + $0x59] sm:$0x1] %vm502, 0.0
      %1313 = vst.msk [vmem:[#allocation2 + $0x71] sm:$0x1] %vm502, 0.0
      %1314 = vst.msk [vmem:[#allocation2 + $0x89] sm:$0x1] %vm502, 0.0
      %1315 = vst.msk [vmem:[#allocation2 + $0xa1] sm:$0x1] %vm502, 0.0
      %1316 = vst.msk [vmem:[#allocation2 + $0xb9] sm:$0x1] %vm502, 0.0
      %1317 = vst.msk [vmem:[#allocation2 + $0xd1] sm:$0x1] %vm502, 0.0
      %1318 = vst.msk [vmem:[#allocation2 + $0xe9] sm:$0x1] %vm502, 0.0
      %1319 = vst.msk [vmem:[#allocation2 + $0x101] sm:$0x1] %vm502, 0.0
      %1320 = vst.msk [vmem:[#allocation2 + $0x119] sm:$0x1] %vm502, 0.0
      %1321 = vst.msk [vmem:[#allocation2 + $0x131] sm:$0x1] %vm502, 0.0
      %1322 = vst.msk [vmem:[#allocation2 + $0x149] sm:$0x1] %vm502, 0.0
      %1323 = vst.msk [vmem:[#allocation2 + $0x161] sm:$0x1] %vm502, 0.0
      %1324 = vst.msk [vmem:[#allocation2 + $0x179] sm:$0x1] %vm502, 0.0
      %1325 = vst.msk [vmem:[#allocation2 + $0x191] sm:$0x1] %vm502, 0.0
      %1326 = vst.msk [vmem:[#allocation2 + $0x1a9] sm:$0x1] %vm502, 0.0
      %v1327 = vld [vmem:[%s468] sm:$0xff]
      %v1328 = vld [vmem:[%s468 + $0x8] sm:$0xff]
      %v1329 = vld [vmem:[%s468 + $0x10] sm:$0xff]
      %v1330 = vld [vmem:[%s468 + $0x18] sm:$0xff]
      %v1331 = vld [vmem:[%s468 + $0x20] sm:$0xff]
      %v1332 = vld [vmem:[%s468 + $0x28] sm:$0xff]
      %v1333 = vld [vmem:[%s468 + $0x30] sm:$0xff]
      %v1334 = vld [vmem:[%s468 + $0x38] sm:$0xff]
      %v1335 = vld [vmem:[%s468 + $0x40] sm:$0xff]
      %v1336 = vld [vmem:[%s468 + $0x48] sm:$0xff]
      %v1337 = vld [vmem:[%s468 + $0x50] sm:$0xff]
      %v1338 = vld [vmem:[%s468 + $0x58] sm:$0xff]
      %v1339 = vld [vmem:[%s468 + $0x60] sm:$0xff]
      %v1340 = vld [vmem:[%s468 + $0x68] sm:$0xff]
      %v1341 = vld [vmem:[%s468 + $0x70] sm:$0xff]
      %v1342 = vld [vmem:[%s468 + $0x78] sm:$0xff]
      %v1343 = vld [vmem:[%s468 + $0x80] sm:$0xff]
      %v1344 = vld [vmem:[%s468 + $0x88] sm:$0xff]
      %v1345 = vld [vmem:[%s468 + $0x90] sm:$0xff]
      %v1346 = vld [vmem:[%s468 + $0x98] sm:$0xff]
      %v1347 = vld [vmem:[%s468 + $0xa0] sm:$0xff]
      %v1348 = vld [vmem:[%s468 + $0xa8] sm:$0xff]
      %v1349 = vld [vmem:[%s468 + $0xb0] sm:$0xff]
      %v1350 = vld [vmem:[%s468 + $0xb8] sm:$0xff]
      %v1351 = vld [vmem:[%s468 + $0xc0] sm:$0xff]
      %v1352 = vld [vmem:[%s468 + $0xc8] sm:$0xff]
      %v1353 = vld [vmem:[%s468 + $0xd0] sm:$0xff]
      %v1354 = vld [vmem:[%s468 + $0xd8] sm:$0xff]
      %v1355 = vld [vmem:[%s468 + $0xe0] sm:$0xff]
      %v1356 = vld [vmem:[%s468 + $0xe8] sm:$0xff]
      %v1357 = vld [vmem:[%s468 + $0xf0] sm:$0xff]
      %v1358 = vld [vmem:[%s468 + $0xf8] sm:$0xff]
      %s1359 = scalar_lea.vmem [#allocation2], 24
      %1360 = vst.msk [vmem:[%s1359 + $0x1] sm:$0xff] %vm532, %v1327
      %1361 = vst.msk [vmem:[%s1359 + $0x9] sm:$0xff] %vm532, %v1328
      %1362 = vst.msk [vmem:[%s1359 + $0x19] sm:$0xff] %vm532, %v1329
      %1363 = vst.msk [vmem:[%s1359 + $0x21] sm:$0xff] %vm532, %v1330
      %1364 = vst.msk [vmem:[%s1359 + $0x31] sm:$0xff] %vm532, %v1331
      %1365 = vst.msk [vmem:[%s1359 + $0x39] sm:$0xff] %vm532, %v1332
      %1366 = vst.msk [vmem:[%s1359 + $0x49] sm:$0xff] %vm532, %v1333
      %1367 = vst.msk [vmem:[%s1359 + $0x51] sm:$0xff] %vm532, %v1334
      %1368 = vst.msk [vmem:[%s1359 + $0x61] sm:$0xff] %vm532, %v1335
      %1369 = vst.msk [vmem:[%s1359 + $0x69] sm:$0xff] %vm532, %v1336
      %1370 = vst.msk [vmem:[%s1359 + $0x79] sm:$0xff] %vm532, %v1337
      %1371 = vst.msk [vmem:[%s1359 + $0x81] sm:$0xff] %vm532, %v1338
      %1372 = vst.msk [vmem:[%s1359 + $0x91] sm:$0xff] %vm532, %v1339
      %1373 = vst.msk [vmem:[%s1359 + $0x99] sm:$0xff] %vm532, %v1340
      %1374 = vst.msk [vmem:[%s1359 + $0xa9] sm:$0xff] %vm532, %v1341
      %1375 = vst.msk [vmem:[%s1359 + $0xb1] sm:$0xff] %vm532, %v1342
      %1376 = vst.msk [vmem:[%s1359 + $0xc1] sm:$0xff] %vm532, %v1343
      %1377 = vst.msk [vmem:[%s1359 + $0xc9] sm:$0xff] %vm532, %v1344
      %1378 = vst.msk [vmem:[%s1359 + $0xd9] sm:$0xff] %vm532, %v1345
      %1379 = vst.msk [vmem:[%s1359 + $0xe1] sm:$0xff] %vm532, %v1346
      %1380 = vst.msk [vmem:[%s1359 + $0xf1] sm:$0xff] %vm532, %v1347
      %1381 = vst.msk [vmem:[%s1359 + $0xf9] sm:$0xff] %vm532, %v1348
      %1382 = vst.msk [vmem:[%s1359 + $0x109] sm:$0xff] %vm532, %v1349
      %1383 = vst.msk [vmem:[%s1359 + $0x111] sm:$0xff] %vm532, %v1350
      %1384 = vst.msk [vmem:[%s1359 + $0x121] sm:$0xff] %vm532, %v1351
      %1385 = vst.msk [vmem:[%s1359 + $0x129] sm:$0xff] %vm532, %v1352
      %1386 = vst.msk [vmem:[%s1359 + $0x139] sm:$0xff] %vm532, %v1353
      %1387 = vst.msk [vmem:[%s1359 + $0x141] sm:$0xff] %vm532, %v1354
      %1388 = vst.msk [vmem:[%s1359 + $0x151] sm:$0xff] %vm532, %v1355
      %1389 = vst.msk [vmem:[%s1359 + $0x159] sm:$0xff] %vm532, %v1356
      %1390 = vst.msk [vmem:[%s1359 + $0x169] sm:$0xff] %vm532, %v1357
      %1391 = vst.msk [vmem:[%s1359 + $0x171] sm:$0xff] %vm532, %v1358
      %v1392 = vld [vmem:[%s473] sm:$0xff]
      %v1393 = vld [vmem:[%s473 + $0x8] sm:$0xff]
      %v1394 = vld [vmem:[%s473 + $0x10] sm:$0xff]
      %v1395 = vld [vmem:[%s473 + $0x18] sm:$0xff]
      %v1396 = vld [vmem:[%s473 + $0x20] sm:$0xff]
      %v1397 = vld [vmem:[%s473 + $0x28] sm:$0xff]
      %v1398 = vld [vmem:[%s473 + $0x30] sm:$0xff]
      %v1399 = vld [vmem:[%s473 + $0x38] sm:$0xff]
      %v1400 = vld [vmem:[%s473 + $0x40] sm:$0xff]
      %v1401 = vld [vmem:[%s473 + $0x48] sm:$0xff]
      %v1402 = vld [vmem:[%s473 + $0x50] sm:$0xff]
      %v1403 = vld [vmem:[%s473 + $0x58] sm:$0xff]
      %v1404 = vld [vmem:[%s473 + $0x60] sm:$0xff]
      %v1405 = vld [vmem:[%s473 + $0x68] sm:$0xff]
      %v1406 = vld [vmem:[%s473 + $0x70] sm:$0xff]
      %v1407 = vld [vmem:[%s473 + $0x78] sm:$0xff]
      %v1408 = vld [vmem:[%s473 + $0x80] sm:$0xff]
      %v1409 = vld [vmem:[%s473 + $0x88] sm:$0xff]
      %v1410 = vld [vmem:[%s473 + $0x90] sm:$0xff]
      %v1411 = vld [vmem:[%s473 + $0x98] sm:$0xff]
      %v1412 = vld [vmem:[%s473 + $0xa0] sm:$0xff]
      %v1413 = vld [vmem:[%s473 + $0xa8] sm:$0xff]
      %v1414 = vld [vmem:[%s473 + $0xb0] sm:$0xff]
      %v1415 = vld [vmem:[%s473 + $0xb8] sm:$0xff]
      %v1416 = vld [vmem:[%s473 + $0xc0] sm:$0xff]
      %v1417 = vld [vmem:[%s473 + $0xc8] sm:$0xff]
      %v1418 = vld [vmem:[%s473 + $0xd0] sm:$0xff]
      %v1419 = vld [vmem:[%s473 + $0xd8] sm:$0xff]
      %v1420 = vld [vmem:[%s473 + $0xe0] sm:$0xff]
      %v1421 = vld [vmem:[%s473 + $0xe8] sm:$0xff]
      %v1422 = vld [vmem:[%s473 + $0xf0] sm:$0xff]
      %v1423 = vld [vmem:[%s473 + $0xf8] sm:$0xff]
      %1456 = vrot.lane.b32.xlu0 %v1392, 3
      %v1457 = vpop.permute.xlu0 %1456
      %1458 = vrot.lane.b32.xlu0 %v1393, 3
      %v1459 = vpop.permute.xlu0 %1458
      %1460 = vrot.lane.b32.xlu0 %v1394, 3
      %v1461 = vpop.permute.xlu0 %1460
      %1462 = vrot.lane.b32.xlu0 %v1395, 3
      %v1463 = vpop.permute.xlu0 %1462
      %1464 = vrot.lane.b32.xlu0 %v1396, 3
      %v1465 = vpop.permute.xlu0 %1464
      %1466 = vrot.lane.b32.xlu0 %v1397, 3
      %v1467 = vpop.permute.xlu0 %1466
      %1468 = vrot.lane.b32.xlu0 %v1398, 3
      %v1469 = vpop.permute.xlu0 %1468
      %1470 = vrot.lane.b32.xlu0 %v1399, 3
      %v1471 = vpop.permute.xlu0 %1470
      %1472 = vrot.lane.b32.xlu0 %v1400, 3
      %v1473 = vpop.permute.xlu0 %1472
      %1474 = vrot.lane.b32.xlu0 %v1401, 3
      %v1475 = vpop.permute.xlu0 %1474
      %1476 = vrot.lane.b32.xlu0 %v1402, 3
      %v1477 = vpop.permute.xlu0 %1476
      %1478 = vrot.lane.b32.xlu0 %v1403, 3
      %v1479 = vpop.permute.xlu0 %1478
      %1480 = vrot.lane.b32.xlu0 %v1404, 3
      %v1481 = vpop.permute.xlu0 %1480
      %1482 = vrot.lane.b32.xlu0 %v1405, 3
      %v1483 = vpop.permute.xlu0 %1482
      %1484 = vrot.lane.b32.xlu0 %v1406, 3
      %v1485 = vpop.permute.xlu0 %1484
      %1486 = vrot.lane.b32.xlu0 %v1407, 3
      %v1487 = vpop.permute.xlu0 %1486
      %1488 = vrot.lane.b32.xlu0 %v1408, 3
      %v1489 = vpop.permute.xlu0 %1488
      %1490 = vrot.lane.b32.xlu0 %v1409, 3
      %v1491 = vpop.permute.xlu0 %1490
      %1492 = vrot.lane.b32.xlu0 %v1410, 3
      %v1493 = vpop.permute.xlu0 %1492
      %1494 = vrot.lane.b32.xlu0 %v1411, 3
      %v1495 = vpop.permute.xlu0 %1494
      %1496 = vrot.lane.b32.xlu0 %v1412, 3
      %v1497 = vpop.permute.xlu0 %1496
      %1498 = vrot.lane.b32.xlu0 %v1413, 3
      %v1499 = vpop.permute.xlu0 %1498
      %1500 = vrot.lane.b32.xlu0 %v1414, 3
      %v1501 = vpop.permute.xlu0 %1500
      %1502 = vrot.lane.b32.xlu0 %v1415, 3
      %v1503 = vpop.permute.xlu0 %1502
      %1504 = vrot.lane.b32.xlu0 %v1416, 3
      %v1505 = vpop.permute.xlu0 %1504
      %1506 = vrot.lane.b32.xlu0 %v1417, 3
      %v1507 = vpop.permute.xlu0 %1506
      %1508 = vrot.lane.b32.xlu0 %v1418, 3
      %v1509 = vpop.permute.xlu0 %1508
      %1510 = vrot.lane.b32.xlu0 %v1419, 3
      %v1511 = vpop.permute.xlu0 %1510
      %1512 = vrot.lane.b32.xlu0 %v1420, 3
      %v1513 = vpop.permute.xlu0 %1512
      %1514 = vrot.lane.b32.xlu0 %v1421, 3
      %v1515 = vpop.permute.xlu0 %1514
      %1516 = vrot.lane.b32.xlu0 %v1422, 3
      %v1517 = vpop.permute.xlu0 %1516
      %1518 = vrot.lane.b32.xlu0 %v1423, 3
      %v1519 = vpop.permute.xlu0 %1518
      %1552 = vst.msk [vmem:[%s1359 + $0x1] sm:$0xff] %vm581, %v1457
      %1553 = vst.msk [vmem:[%s1359 + $0x9] sm:$0xff] %vm581, %v1459
      %1554 = vst.msk [vmem:[%s1359 + $0x19] sm:$0xff] %vm581, %v1461
      %1555 = vst.msk [vmem:[%s1359 + $0x21] sm:$0xff] %vm581, %v1463
      %1556 = vst.msk [vmem:[%s1359 + $0x31] sm:$0xff] %vm581, %v1465
      %1557 = vst.msk [vmem:[%s1359 + $0x39] sm:$0xff] %vm581, %v1467
      %1558 = vst.msk [vmem:[%s1359 + $0x49] sm:$0xff] %vm581, %v1469
      %1559 = vst.msk [vmem:[%s1359 + $0x51] sm:$0xff] %vm581, %v1471
      %1560 = vst.msk [vmem:[%s1359 + $0x61] sm:$0xff] %vm581, %v1473
      %1561 = vst.msk [vmem:[%s1359 + $0x69] sm:$0xff] %vm581, %v1475
      %1562 = vst.msk [vmem:[%s1359 + $0x79] sm:$0xff] %vm581, %v1477
      %1563 = vst.msk [vmem:[%s1359 + $0x81] sm:$0xff] %vm581, %v1479
      %1564 = vst.msk [vmem:[%s1359 + $0x91] sm:$0xff] %vm581, %v1481
      %1565 = vst.msk [vmem:[%s1359 + $0x99] sm:$0xff] %vm581, %v1483
      %1566 = vst.msk [vmem:[%s1359 + $0xa9] sm:$0xff] %vm581, %v1485
      %1567 = vst.msk [vmem:[%s1359 + $0xb1] sm:$0xff] %vm581, %v1487
      %1568 = vst.msk [vmem:[%s1359 + $0xc1] sm:$0xff] %vm581, %v1489
      %1569 = vst.msk [vmem:[%s1359 + $0xc9] sm:$0xff] %vm581, %v1491
      %1570 = vst.msk [vmem:[%s1359 + $0xd9] sm:$0xff] %vm581, %v1493
      %1571 = vst.msk [vmem:[%s1359 + $0xe1] sm:$0xff] %vm581, %v1495
      %1572 = vst.msk [vmem:[%s1359 + $0xf1] sm:$0xff] %vm581, %v1497
      %1573 = vst.msk [vmem:[%s1359 + $0xf9] sm:$0xff] %vm581, %v1499
      %1574 = vst.msk [vmem:[%s1359 + $0x109] sm:$0xff] %vm581, %v1501
      %1575 = vst.msk [vmem:[%s1359 + $0x111] sm:$0xff] %vm581, %v1503
      %1576 = vst.msk [vmem:[%s1359 + $0x121] sm:$0xff] %vm581, %v1505
      %1577 = vst.msk [vmem:[%s1359 + $0x129] sm:$0xff] %vm581, %v1507
      %1578 = vst.msk [vmem:[%s1359 + $0x139] sm:$0xff] %vm581, %v1509
      %1579 = vst.msk [vmem:[%s1359 + $0x141] sm:$0xff] %vm581, %v1511
      %1580 = vst.msk [vmem:[%s1359 + $0x151] sm:$0xff] %vm581, %v1513
      %1581 = vst.msk [vmem:[%s1359 + $0x159] sm:$0xff] %vm581, %v1515
      %1582 = vst.msk [vmem:[%s1359 + $0x169] sm:$0xff] %vm581, %v1517
      %1583 = vst.msk [vmem:[%s1359 + $0x171] sm:$0xff] %vm581, %v1519
      %v1584 = vld [vmem:[%s6] sm:$0x1]
      %v1585 = vld [vmem:[#allocation2] sm:$0xff]
      %v1586 = vld [vmem:[#allocation2 + $0x8] sm:$0xff]
      %v1587 = vld [vmem:[#allocation2 + $0x18] sm:$0xff]
      %v1588 = vld [vmem:[#allocation2 + $0x20] sm:$0xff]
      %v1589 = vld [vmem:[#allocation2 + $0x30] sm:$0xff]
      %v1590 = vld [vmem:[#allocation2 + $0x38] sm:$0xff]
      %v1591 = vld [vmem:[#allocation2 + $0x48] sm:$0xff]
      %v1592 = vld [vmem:[#allocation2 + $0x50] sm:$0xff]
      %v1593 = vld [vmem:[#allocation2 + $0x60] sm:$0xff]
      %v1594 = vld [vmem:[#allocation2 + $0x68] sm:$0xff]
      %v1595 = vld [vmem:[#allocation2 + $0x78] sm:$0xff]
      %v1596 = vld [vmem:[#allocation2 + $0x80] sm:$0xff]
      %v1597 = vld [vmem:[#allocation2 + $0x90] sm:$0xff]
      %v1598 = vld [vmem:[#allocation2 + $0x98] sm:$0xff]
      %v1599 = vld [vmem:[#allocation2 + $0xa8] sm:$0xff]
      %v1600 = vld [vmem:[#allocation2 + $0xb0] sm:$0xff]
      %v1601 = vld [vmem:[#allocation2 + $0xc0] sm:$0xff]
      %v1602 = vld [vmem:[#allocation2 + $0xc8] sm:$0xff]
      %v1603 = vld [vmem:[#allocation2 + $0xd8] sm:$0xff]
      %v1604 = vld [vmem:[#allocation2 + $0xe0] sm:$0xff]
      %v1605 = vld [vmem:[#allocation2 + $0xf0] sm:$0xff]
      %v1606 = vld [vmem:[#allocation2 + $0xf8] sm:$0xff]
      %v1607 = vld [vmem:[#allocation2 + $0x108] sm:$0xff]
      %v1608 = vld [vmem:[#allocation2 + $0x110] sm:$0xff]
      %v1609 = vld [vmem:[#allocation2 + $0x120] sm:$0xff]
      %v1610 = vld [vmem:[#allocation2 + $0x128] sm:$0xff]
      %v1611 = vld [vmem:[#allocation2 + $0x138] sm:$0xff]
      %v1612 = vld [vmem:[#allocation2 + $0x140] sm:$0xff]
      %v1613 = vld [vmem:[#allocation2 + $0x150] sm:$0xff]
      %v1614 = vld [vmem:[#allocation2 + $0x158] sm:$0xff]
      %v1615 = vld [vmem:[#allocation2 + $0x168] sm:$0xff]
      %v1616 = vld [vmem:[#allocation2 + $0x170] sm:$0xff]
      %v1617 = vpack.c.bf16 %v1585, %v1585
      %v1618 = vpack.c.bf16 %v1586, %v1586
      %v1619 = vpack.c.bf16 %v1587, %v1587
      %v1620 = vpack.c.bf16 %v1588, %v1588
      %v1621 = vpack.c.bf16 %v1589, %v1589
      %v1622 = vpack.c.bf16 %v1590, %v1590
      %v1623 = vpack.c.bf16 %v1591, %v1591
      %v1624 = vpack.c.bf16 %v1592, %v1592
      %v1625 = vpack.c.bf16 %v1593, %v1593
      %v1626 = vpack.c.bf16 %v1594, %v1594
      %v1627 = vpack.c.bf16 %v1595, %v1595
      %v1628 = vpack.c.bf16 %v1596, %v1596
      %v1629 = vpack.c.bf16 %v1597, %v1597
      %v1630 = vpack.c.bf16 %v1598, %v1598
      %v1631 = vpack.c.bf16 %v1599, %v1599
      %v1632 = vpack.c.bf16 %v1600, %v1600
      %v1633 = vpack.c.bf16 %v1601, %v1601
      %v1634 = vpack.c.bf16 %v1602, %v1602
      %v1635 = vpack.c.bf16 %v1603, %v1603
      %v1636 = vpack.c.bf16 %v1604, %v1604
      %v1637 = vpack.c.bf16 %v1605, %v1605
      %v1638 = vpack.c.bf16 %v1606, %v1606
      %v1639 = vpack.c.bf16 %v1607, %v1607
      %v1640 = vpack.c.bf16 %v1608, %v1608
      %v1641 = vpack.c.bf16 %v1609, %v1609
      %v1642 = vpack.c.bf16 %v1610, %v1610
      %v1643 = vpack.c.bf16 %v1611, %v1611
      %v1644 = vpack.c.bf16 %v1612, %v1612
      %v1645 = vpack.c.bf16 %v1613, %v1613
      %v1646 = vpack.c.bf16 %v1614, %v1614
      %v1647 = vpack.c.bf16 %v1615, %v1615
      %v1648 = vpack.c.bf16 %v1616, %v1616
      %1649 = vst.msk [vmem:[#allocation5] sm:$0xf] %vm607, %v1617
      %1650 = vst.msk [vmem:[#allocation5 + $0x4] sm:$0xf] %vm607, %v1618
      %1651 = vst.msk [vmem:[#allocation5 + $0x8] sm:$0xf] %vm607, %v1619
      %1652 = vst.msk [vmem:[#allocation5 + $0xc] sm:$0xf] %vm607, %v1620
      %1653 = vst.msk [vmem:[#allocation5 + $0x10] sm:$0xf] %vm607, %v1621
      %1654 = vst.msk [vmem:[#allocation5 + $0x14] sm:$0xf] %vm607, %v1622
      %1655 = vst.msk [vmem:[#allocation5 + $0x18] sm:$0xf] %vm607, %v1623
      %1656 = vst.msk [vmem:[#allocation5 + $0x1c] sm:$0xf] %vm607, %v1624
      %1657 = vst.msk [vmem:[#allocation5 + $0x20] sm:$0xf] %vm607, %v1625
      %1658 = vst.msk [vmem:[#allocation5 + $0x24] sm:$0xf] %vm607, %v1626
      %1659 = vst.msk [vmem:[#allocation5 + $0x28] sm:$0xf] %vm607, %v1627
      %1660 = vst.msk [vmem:[#allocation5 + $0x2c] sm:$0xf] %vm607, %v1628
      %1661 = vst.msk [vmem:[#allocation5 + $0x30] sm:$0xf] %vm607, %v1629
      %1662 = vst.msk [vmem:[#allocation5 + $0x34] sm:$0xf] %vm607, %v1630
      %1663 = vst.msk [vmem:[#allocation5 + $0x38] sm:$0xf] %vm607, %v1631
      %1664 = vst.msk [vmem:[#allocation5 + $0x3c] sm:$0xf] %vm607, %v1632
      %1665 = vst.msk [vmem:[#allocation5 + $0x40] sm:$0xf] %vm607, %v1633
      %1666 = vst.msk [vmem:[#allocation5 + $0x44] sm:$0xf] %vm607, %v1634
      %1667 = vst.msk [vmem:[#allocation5 + $0x48] sm:$0xf] %vm607, %v1635
      %1668 = vst.msk [vmem:[#allocation5 + $0x4c] sm:$0xf] %vm607, %v1636
      %1669 = vst.msk [vmem:[#allocation5 + $0x50] sm:$0xf] %vm607, %v1637
      %1670 = vst.msk [vmem:[#allocation5 + $0x54] sm:$0xf] %vm607, %v1638
      %1671 = vst.msk [vmem:[#allocation5 + $0x58] sm:$0xf] %vm607, %v1639
      %1672 = vst.msk [vmem:[#allocation5 + $0x5c] sm:$0xf] %vm607, %v1640
      %1673 = vst.msk [vmem:[#allocation5 + $0x60] sm:$0xf] %vm607, %v1641
      %1674 = vst.msk [vmem:[#allocation5 + $0x64] sm:$0xf] %vm607, %v1642
      %1675 = vst.msk [vmem:[#allocation5 + $0x68] sm:$0xf] %vm607, %v1643
      %1676 = vst.msk [vmem:[#allocation5 + $0x6c] sm:$0xf] %vm607, %v1644
      %1677 = vst.msk [vmem:[#allocation5 + $0x70] sm:$0xf] %vm607, %v1645
      %1678 = vst.msk [vmem:[#allocation5 + $0x74] sm:$0xf] %vm607, %v1646
      %1679 = vst.msk [vmem:[#allocation5 + $0x78] sm:$0xf] %vm607, %v1647
      %1680 = vst.msk [vmem:[#allocation5 + $0x7c] sm:$0xf] %vm607, %v1648
      %v1681 = vld [vmem:[#allocation2 + $0x1] sm:$0xff]
      %v1682 = vld [vmem:[#allocation2 + $0x9] sm:$0xff]
      %v1683 = vld [vmem:[#allocation2 + $0x19] sm:$0xff]
      %v1684 = vld [vmem:[#allocation2 + $0x21] sm:$0xff]
      %v1685 = vld [vmem:[#allocation2 + $0x31] sm:$0xff]
      %v1686 = vld [vmem:[#allocation2 + $0x39] sm:$0xff]
      %v1687 = vld [vmem:[#allocation2 + $0x49] sm:$0xff]
      %v1688 = vld [vmem:[#allocation2 + $0x51] sm:$0xff]
      %v1689 = vld [vmem:[#allocation2 + $0x61] sm:$0xff]
      %v1690 = vld [vmem:[#allocation2 + $0x69] sm:$0xff]
      %v1691 = vld [vmem:[#allocation2 + $0x79] sm:$0xff]
      %v1692 = vld [vmem:[#allocation2 + $0x81] sm:$0xff]
      %v1693 = vld [vmem:[#allocation2 + $0x91] sm:$0xff]
      %v1694 = vld [vmem:[#allocation2 + $0x99] sm:$0xff]
      %v1695 = vld [vmem:[#allocation2 + $0xa9] sm:$0xff]
      %v1696 = vld [vmem:[#allocation2 + $0xb1] sm:$0xff]
      %v1697 = vld [vmem:[#allocation2 + $0xc1] sm:$0xff]
      %v1698 = vld [vmem:[#allocation2 + $0xc9] sm:$0xff]
      %v1699 = vld [vmem:[#allocation2 + $0xd9] sm:$0xff]
      %v1700 = vld [vmem:[#allocation2 + $0xe1] sm:$0xff]
      %v1701 = vld [vmem:[#allocation2 + $0xf1] sm:$0xff]
      %v1702 = vld [vmem:[#allocation2 + $0xf9] sm:$0xff]
      %v1703 = vld [vmem:[#allocation2 + $0x109] sm:$0xff]
      %v1704 = vld [vmem:[#allocation2 + $0x111] sm:$0xff]
      %v1705 = vld [vmem:[#allocation2 + $0x121] sm:$0xff]
      %v1706 = vld [vmem:[#allocation2 + $0x129] sm:$0xff]
      %v1707 = vld [vmem:[#allocation2 + $0x139] sm:$0xff]
      %v1708 = vld [vmem:[#allocation2 + $0x141] sm:$0xff]
      %v1709 = vld [vmem:[#allocation2 + $0x151] sm:$0xff]
      %v1710 = vld [vmem:[#allocation2 + $0x159] sm:$0xff]
      %v1711 = vld [vmem:[#allocation2 + $0x169] sm:$0xff]
      %v1712 = vld [vmem:[#allocation2 + $0x171] sm:$0xff]
      %v1713 = vpack.c.bf16 %v1681, %v1681
      %v1714 = vpack.c.bf16 %v1682, %v1682
      %v1715 = vpack.c.bf16 %v1683, %v1683
      %v1716 = vpack.c.bf16 %v1684, %v1684
      %v1717 = vpack.c.bf16 %v1685, %v1685
      %v1718 = vpack.c.bf16 %v1686, %v1686
      %v1719 = vpack.c.bf16 %v1687, %v1687
      %v1720 = vpack.c.bf16 %v1688, %v1688
      %v1721 = vpack.c.bf16 %v1689, %v1689
      %v1722 = vpack.c.bf16 %v1690, %v1690
      %v1723 = vpack.c.bf16 %v1691, %v1691
      %v1724 = vpack.c.bf16 %v1692, %v1692
      %v1725 = vpack.c.bf16 %v1693, %v1693
      %v1726 = vpack.c.bf16 %v1694, %v1694
      %v1727 = vpack.c.bf16 %v1695, %v1695
      %v1728 = vpack.c.bf16 %v1696, %v1696
      %v1729 = vpack.c.bf16 %v1697, %v1697
      %v1730 = vpack.c.bf16 %v1698, %v1698
      %v1731 = vpack.c.bf16 %v1699, %v1699
      %v1732 = vpack.c.bf16 %v1700, %v1700
      %v1733 = vpack.c.bf16 %v1701, %v1701
      %v1734 = vpack.c.bf16 %v1702, %v1702
      %v1735 = vpack.c.bf16 %v1703, %v1703
      %v1736 = vpack.c.bf16 %v1704, %v1704
      %v1737 = vpack.c.bf16 %v1705, %v1705
      %v1738 = vpack.c.bf16 %v1706, %v1706
      %v1739 = vpack.c.bf16 %v1707, %v1707
      %v1740 = vpack.c.bf16 %v1708, %v1708
      %v1741 = vpack.c.bf16 %v1709, %v1709
      %v1742 = vpack.c.bf16 %v1710, %v1710
      %v1743 = vpack.c.bf16 %v1711, %v1711
      %v1744 = vpack.c.bf16 %v1712, %v1712
      %1777 = vrot.lane.b32.xlu0 %v1713, 7
      %v1778 = vpop.permute.xlu0 %1777
      %1779 = vrot.lane.b32.xlu0 %v1714, 7
      %v1780 = vpop.permute.xlu0 %1779
      %1781 = vrot.lane.b32.xlu0 %v1715, 7
      %v1782 = vpop.permute.xlu0 %1781
      %1783 = vrot.lane.b32.xlu0 %v1716, 7
      %v1784 = vpop.permute.xlu0 %1783
      %1785 = vrot.lane.b32.xlu0 %v1717, 7
      %v1786 = vpop.permute.xlu0 %1785
      %1787 = vrot.lane.b32.xlu0 %v1718, 7
      %v1788 = vpop.permute.xlu0 %1787
      %1789 = vrot.lane.b32.xlu0 %v1719, 7
      %v1790 = vpop.permute.xlu0 %1789
      %1791 = vrot.lane.b32.xlu0 %v1720, 7
      %v1792 = vpop.permute.xlu0 %1791
      %1793 = vrot.lane.b32.xlu0 %v1721, 7
      %v1794 = vpop.permute.xlu0 %1793
      %1795 = vrot.lane.b32.xlu0 %v1722, 7
      %v1796 = vpop.permute.xlu0 %1795
      %1797 = vrot.lane.b32.xlu0 %v1723, 7
      %v1798 = vpop.permute.xlu0 %1797
      %1799 = vrot.lane.b32.xlu0 %v1724, 7
      %v1800 = vpop.permute.xlu0 %1799
      %1801 = vrot.lane.b32.xlu0 %v1725, 7
      %v1802 = vpop.permute.xlu0 %1801
      %1803 = vrot.lane.b32.xlu0 %v1726, 7
      %v1804 = vpop.permute.xlu0 %1803
      %1805 = vrot.lane.b32.xlu0 %v1727, 7
      %v1806 = vpop.permute.xlu0 %1805
      %1807 = vrot.lane.b32.xlu0 %v1728, 7
      %v1808 = vpop.permute.xlu0 %1807
      %1809 = vrot.lane.b32.xlu0 %v1729, 7
      %v1810 = vpop.permute.xlu0 %1809
      %1811 = vrot.lane.b32.xlu0 %v1730, 7
      %v1812 = vpop.permute.xlu0 %1811
      %1813 = vrot.lane.b32.xlu0 %v1731, 7
      %v1814 = vpop.permute.xlu0 %1813
      %1815 = vrot.lane.b32.xlu0 %v1732, 7
      %v1816 = vpop.permute.xlu0 %1815
      %1817 = vrot.lane.b32.xlu0 %v1733, 7
      %v1818 = vpop.permute.xlu0 %1817
      %1819 = vrot.lane.b32.xlu0 %v1734, 7
      %v1820 = vpop.permute.xlu0 %1819
      %1821 = vrot.lane.b32.xlu0 %v1735, 7
      %v1822 = vpop.permute.xlu0 %1821
      %1823 = vrot.lane.b32.xlu0 %v1736, 7
      %v1824 = vpop.permute.xlu0 %1823
      %1825 = vrot.lane.b32.xlu0 %v1737, 7
      %v1826 = vpop.permute.xlu0 %1825
      %1827 = vrot.lane.b32.xlu0 %v1738, 7
      %v1828 = vpop.permute.xlu0 %1827
      %1829 = vrot.lane.b32.xlu0 %v1739, 7
      %v1830 = vpop.permute.xlu0 %1829
      %1831 = vrot.lane.b32.xlu0 %v1740, 7
      %v1832 = vpop.permute.xlu0 %1831
      %1833 = vrot.lane.b32.xlu0 %v1741, 7
      %v1834 = vpop.permute.xlu0 %1833
      %1835 = vrot.lane.b32.xlu0 %v1742, 7
      %v1836 = vpop.permute.xlu0 %1835
      %1837 = vrot.lane.b32.xlu0 %v1743, 7
      %v1838 = vpop.permute.xlu0 %1837
      %1839 = vrot.lane.b32.xlu0 %v1744, 7
      %v1840 = vpop.permute.xlu0 %1839
      %1873 = vst.msk [vmem:[#allocation5] sm:$0xf] %vm664, %v1778
      %1874 = vst.msk [vmem:[#allocation5 + $0x4] sm:$0xf] %vm664, %v1780
      %1875 = vst.msk [vmem:[#allocation5 + $0x8] sm:$0xf] %vm664, %v1782
      %1876 = vst.msk [vmem:[#allocation5 + $0xc] sm:$0xf] %vm664, %v1784
      %1877 = vst.msk [vmem:[#allocation5 + $0x10] sm:$0xf] %vm664, %v1786
      %1878 = vst.msk [vmem:[#allocation5 + $0x14] sm:$0xf] %vm664, %v1788
      %1879 = vst.msk [vmem:[#allocation5 + $0x18] sm:$0xf] %vm664, %v1790
      %1880 = vst.msk [vmem:[#allocation5 + $0x1c] sm:$0xf] %vm664, %v1792
      %1881 = vst.msk [vmem:[#allocation5 + $0x20] sm:$0xf] %vm664, %v1794
      %1882 = vst.msk [vmem:[#allocation5 + $0x24] sm:$0xf] %vm664, %v1796
      %1883 = vst.msk [vmem:[#allocation5 + $0x28] sm:$0xf] %vm664, %v1798
      %1884 = vst.msk [vmem:[#allocation5 + $0x2c] sm:$0xf] %vm664, %v1800
      %1885 = vst.msk [vmem:[#allocation5 + $0x30] sm:$0xf] %vm664, %v1802
      %1886 = vst.msk [vmem:[#allocation5 + $0x34] sm:$0xf] %vm664, %v1804
      %1887 = vst.msk [vmem:[#allocation5 + $0x38] sm:$0xf] %vm664, %v1806
      %1888 = vst.msk [vmem:[#allocation5 + $0x3c] sm:$0xf] %vm664, %v1808
      %1889 = vst.msk [vmem:[#allocation5 + $0x40] sm:$0xf] %vm664, %v1810
      %1890 = vst.msk [vmem:[#allocation5 + $0x44] sm:$0xf] %vm664, %v1812
      %1891 = vst.msk [vmem:[#allocation5 + $0x48] sm:$0xf] %vm664, %v1814
      %1892 = vst.msk [vmem:[#allocation5 + $0x4c] sm:$0xf] %vm664, %v1816
      %1893 = vst.msk [vmem:[#allocation5 + $0x50] sm:$0xf] %vm664, %v1818
      %1894 = vst.msk [vmem:[#allocation5 + $0x54] sm:$0xf] %vm664, %v1820
      %1895 = vst.msk [vmem:[#allocation5 + $0x58] sm:$0xf] %vm664, %v1822
      %1896 = vst.msk [vmem:[#allocation5 + $0x5c] sm:$0xf] %vm664, %v1824
      %1897 = vst.msk [vmem:[#allocation5 + $0x60] sm:$0xf] %vm664, %v1826
      %1898 = vst.msk [vmem:[#allocation5 + $0x64] sm:$0xf] %vm664, %v1828
      %1899 = vst.msk [vmem:[#allocation5 + $0x68] sm:$0xf] %vm664, %v1830
      %1900 = vst.msk [vmem:[#allocation5 + $0x6c] sm:$0xf] %vm664, %v1832
      %1901 = vst.msk [vmem:[#allocation5 + $0x70] sm:$0xf] %vm664, %v1834
      %1902 = vst.msk [vmem:[#allocation5 + $0x74] sm:$0xf] %vm664, %v1836
      %1903 = vst.msk [vmem:[#allocation5 + $0x78] sm:$0xf] %vm664, %v1838
      %1904 = vst.msk [vmem:[#allocation5 + $0x7c] sm:$0xf] %vm664, %v1840
      %v1905 = vld [vmem:[#allocation2 + $0x2] sm:$0xff]
      %v1906 = vld [vmem:[#allocation2 + $0xa] sm:$0xff]
      %v1907 = vld [vmem:[#allocation2 + $0x1a] sm:$0xff]
      %v1908 = vld [vmem:[#allocation2 + $0x22] sm:$0xff]
      %v1909 = vld [vmem:[#allocation2 + $0x32] sm:$0xff]
      %v1910 = vld [vmem:[#allocation2 + $0x3a] sm:$0xff]
      %v1911 = vld [vmem:[#allocation2 + $0x4a] sm:$0xff]
      %v1912 = vld [vmem:[#allocation2 + $0x52] sm:$0xff]
      %v1913 = vld [vmem:[#allocation2 + $0x62] sm:$0xff]
      %v1914 = vld [vmem:[#allocation2 + $0x6a] sm:$0xff]
      %v1915 = vld [vmem:[#allocation2 + $0x7a] sm:$0xff]
      %v1916 = vld [vmem:[#allocation2 + $0x82] sm:$0xff]
      %v1917 = vld [vmem:[#allocation2 + $0x92] sm:$0xff]
      %v1918 = vld [vmem:[#allocation2 + $0x9a] sm:$0xff]
      %v1919 = vld [vmem:[#allocation2 + $0xaa] sm:$0xff]
      %v1920 = vld [vmem:[#allocation2 + $0xb2] sm:$0xff]
      %v1921 = vld [vmem:[#allocation2 + $0xc2] sm:$0xff]
      %v1922 = vld [vmem:[#allocation2 + $0xca] sm:$0xff]
      %v1923 = vld [vmem:[#allocation2 + $0xda] sm:$0xff]
      %v1924 = vld [vmem:[#allocation2 + $0xe2] sm:$0xff]
      %v1925 = vld [vmem:[#allocation2 + $0xf2] sm:$0xff]
      %v1926 = vld [vmem:[#allocation2 + $0xfa] sm:$0xff]
      %v1927 = vld [vmem:[#allocation2 + $0x10a] sm:$0xff]
      %v1928 = vld [vmem:[#allocation2 + $0x112] sm:$0xff]
      %v1929 = vld [vmem:[#allocation2 + $0x122] sm:$0xff]
      %v1930 = vld [vmem:[#allocation2 + $0x12a] sm:$0xff]
      %v1931 = vld [vmem:[#allocation2 + $0x13a] sm:$0xff]
      %v1932 = vld [vmem:[#allocation2 + $0x142] sm:$0xff]
      %v1933 = vld [vmem:[#allocation2 + $0x152] sm:$0xff]
      %v1934 = vld [vmem:[#allocation2 + $0x15a] sm:$0xff]
      %v1935 = vld [vmem:[#allocation2 + $0x16a] sm:$0xff]
      %v1936 = vld [vmem:[#allocation2 + $0x172] sm:$0xff]
      %v1937 = vpack.c.bf16 %v1905, %v1905
      %v1938 = vpack.c.bf16 %v1906, %v1906
      %v1939 = vpack.c.bf16 %v1907, %v1907
      %v1940 = vpack.c.bf16 %v1908, %v1908
      %v1941 = vpack.c.bf16 %v1909, %v1909
      %v1942 = vpack.c.bf16 %v1910, %v1910
      %v1943 = vpack.c.bf16 %v1911, %v1911
      %v1944 = vpack.c.bf16 %v1912, %v1912
      %v1945 = vpack.c.bf16 %v1913, %v1913
      %v1946 = vpack.c.bf16 %v1914, %v1914
      %v1947 = vpack.c.bf16 %v1915, %v1915
      %v1948 = vpack.c.bf16 %v1916, %v1916
      %v1949 = vpack.c.bf16 %v1917, %v1917
      %v1950 = vpack.c.bf16 %v1918, %v1918
      %v1951 = vpack.c.bf16 %v1919, %v1919
      %v1952 = vpack.c.bf16 %v1920, %v1920
      %v1953 = vpack.c.bf16 %v1921, %v1921
      %v1954 = vpack.c.bf16 %v1922, %v1922
      %v1955 = vpack.c.bf16 %v1923, %v1923
      %v1956 = vpack.c.bf16 %v1924, %v1924
      %v1957 = vpack.c.bf16 %v1925, %v1925
      %v1958 = vpack.c.bf16 %v1926, %v1926
      %v1959 = vpack.c.bf16 %v1927, %v1927
      %v1960 = vpack.c.bf16 %v1928, %v1928
      %v1961 = vpack.c.bf16 %v1929, %v1929
      %v1962 = vpack.c.bf16 %v1930, %v1930
      %v1963 = vpack.c.bf16 %v1931, %v1931
      %v1964 = vpack.c.bf16 %v1932, %v1932
      %v1965 = vpack.c.bf16 %v1933, %v1933
      %v1966 = vpack.c.bf16 %v1934, %v1934
      %v1967 = vpack.c.bf16 %v1935, %v1935
      %v1968 = vpack.c.bf16 %v1936, %v1936
      %2001 = vrot.lane.b32.xlu0 %v1937, 14
      %v2002 = vpop.permute.xlu0 %2001
      %2003 = vrot.lane.b32.xlu0 %v1938, 14
      %v2004 = vpop.permute.xlu0 %2003
      %2005 = vrot.lane.b32.xlu0 %v1939, 14
      %v2006 = vpop.permute.xlu0 %2005
      %2007 = vrot.lane.b32.xlu0 %v1940, 14
      %v2008 = vpop.permute.xlu0 %2007
      %2009 = vrot.lane.b32.xlu0 %v1941, 14
      %v2010 = vpop.permute.xlu0 %2009
      %2011 = vrot.lane.b32.xlu0 %v1942, 14
      %v2012 = vpop.permute.xlu0 %2011
      %2013 = vrot.lane.b32.xlu0 %v1943, 14
      %v2014 = vpop.permute.xlu0 %2013
      %2015 = vrot.lane.b32.xlu0 %v1944, 14
      %v2016 = vpop.permute.xlu0 %2015
      %2017 = vrot.lane.b32.xlu0 %v1945, 14
      %v2018 = vpop.permute.xlu0 %2017
      %2019 = vrot.lane.b32.xlu0 %v1946, 14
      %v2020 = vpop.permute.xlu0 %2019
      %2021 = vrot.lane.b32.xlu0 %v1947, 14
      %v2022 = vpop.permute.xlu0 %2021
      %2023 = vrot.lane.b32.xlu0 %v1948, 14
      %v2024 = vpop.permute.xlu0 %2023
      %2025 = vrot.lane.b32.xlu0 %v1949, 14
      %v2026 = vpop.permute.xlu0 %2025
      %2027 = vrot.lane.b32.xlu0 %v1950, 14
      %v2028 = vpop.permute.xlu0 %2027
      %2029 = vrot.lane.b32.xlu0 %v1951, 14
      %v2030 = vpop.permute.xlu0 %2029
      %2031 = vrot.lane.b32.xlu0 %v1952, 14
      %v2032 = vpop.permute.xlu0 %2031
      %2033 = vrot.lane.b32.xlu0 %v1953, 14
      %v2034 = vpop.permute.xlu0 %2033
      %2035 = vrot.lane.b32.xlu0 %v1954, 14
      %v2036 = vpop.permute.xlu0 %2035
      %2037 = vrot.lane.b32.xlu0 %v1955, 14
      %v2038 = vpop.permute.xlu0 %2037
      %2039 = vrot.lane.b32.xlu0 %v1956, 14
      %v2040 = vpop.permute.xlu0 %2039
      %2041 = vrot.lane.b32.xlu0 %v1957, 14
      %v2042 = vpop.permute.xlu0 %2041
      %2043 = vrot.lane.b32.xlu0 %v1958, 14
      %v2044 = vpop.permute.xlu0 %2043
      %2045 = vrot.lane.b32.xlu0 %v1959, 14
      %v2046 = vpop.permute.xlu0 %2045
      %2047 = vrot.lane.b32.xlu0 %v1960, 14
      %v2048 = vpop.permute.xlu0 %2047
      %2049 = vrot.lane.b32.xlu0 %v1961, 14
      %v2050 = vpop.permute.xlu0 %2049
      %2051 = vrot.lane.b32.xlu0 %v1962, 14
      %v2052 = vpop.permute.xlu0 %2051
      %2053 = vrot.lane.b32.xlu0 %v1963, 14
      %v2054 = vpop.permute.xlu0 %2053
      %2055 = vrot.lane.b32.xlu0 %v1964, 14
      %v2056 = vpop.permute.xlu0 %2055
      %2057 = vrot.lane.b32.xlu0 %v1965, 14
      %v2058 = vpop.permute.xlu0 %2057
      %2059 = vrot.lane.b32.xlu0 %v1966, 14
      %v2060 = vpop.permute.xlu0 %2059
      %2061 = vrot.lane.b32.xlu0 %v1967, 14
      %v2062 = vpop.permute.xlu0 %2061
      %2063 = vrot.lane.b32.xlu0 %v1968, 14
      %v2064 = vpop.permute.xlu0 %2063
      %2097 = vst.msk [vmem:[#allocation5] sm:$0xf] %vm721, %v2002
      %2098 = vst.msk [vmem:[#allocation5 + $0x4] sm:$0xf] %vm721, %v2004
      %2099 = vst.msk [vmem:[#allocation5 + $0x8] sm:$0xf] %vm721, %v2006
      %2100 = vst.msk [vmem:[#allocation5 + $0xc] sm:$0xf] %vm721, %v2008
      %2101 = vst.msk [vmem:[#allocation5 + $0x10] sm:$0xf] %vm721, %v2010
      %2102 = vst.msk [vmem:[#allocation5 + $0x14] sm:$0xf] %vm721, %v2012
      %2103 = vst.msk [vmem:[#allocation5 + $0x18] sm:$0xf] %vm721, %v2014
      %2104 = vst.msk [vmem:[#allocation5 + $0x1c] sm:$0xf] %vm721, %v2016
      %2105 = vst.msk [vmem:[#allocation5 + $0x20] sm:$0xf] %vm721, %v2018
      %2106 = vst.msk [vmem:[#allocation5 + $0x24] sm:$0xf] %vm721, %v2020
      %2107 = vst.msk [vmem:[#allocation5 + $0x28] sm:$0xf] %vm721, %v2022
      %2108 = vst.msk [vmem:[#allocation5 + $0x2c] sm:$0xf] %vm721, %v2024
      %2109 = vst.msk [vmem:[#allocation5 + $0x30] sm:$0xf] %vm721, %v2026
      %2110 = vst.msk [vmem:[#allocation5 + $0x34] sm:$0xf] %vm721, %v2028
      %2111 = vst.msk [vmem:[#allocation5 + $0x38] sm:$0xf] %vm721, %v2030
      %2112 = vst.msk [vmem:[#allocation5 + $0x3c] sm:$0xf] %vm721, %v2032
      %2113 = vst.msk [vmem:[#allocation5 + $0x40] sm:$0xf] %vm721, %v2034
      %2114 = vst.msk [vmem:[#allocation5 + $0x44] sm:$0xf] %vm721, %v2036
      %2115 = vst.msk [vmem:[#allocation5 + $0x48] sm:$0xf] %vm721, %v2038
      %2116 = vst.msk [vmem:[#allocation5 + $0x4c] sm:$0xf] %vm721, %v2040
      %2117 = vst.msk [vmem:[#allocation5 + $0x50] sm:$0xf] %vm721, %v2042
      %2118 = vst.msk [vmem:[#allocation5 + $0x54] sm:$0xf] %vm721, %v2044
      %2119 = vst.msk [vmem:[#allocation5 + $0x58] sm:$0xf] %vm721, %v2046
      %2120 = vst.msk [vmem:[#allocation5 + $0x5c] sm:$0xf] %vm721, %v2048
      %2121 = vst.msk [vmem:[#allocation5 + $0x60] sm:$0xf] %vm721, %v2050
      %2122 = vst.msk [vmem:[#allocation5 + $0x64] sm:$0xf] %vm721, %v2052
      %2123 = vst.msk [vmem:[#allocation5 + $0x68] sm:$0xf] %vm721, %v2054
      %2124 = vst.msk [vmem:[#allocation5 + $0x6c] sm:$0xf] %vm721, %v2056
      %2125 = vst.msk [vmem:[#allocation5 + $0x70] sm:$0xf] %vm721, %v2058
      %2126 = vst.msk [vmem:[#allocation5 + $0x74] sm:$0xf] %vm721, %v2060
      %2127 = vst.msk [vmem:[#allocation5 + $0x78] sm:$0xf] %vm721, %v2062
      %2128 = vst.msk [vmem:[#allocation5 + $0x7c] sm:$0xf] %vm721, %v2064
      %v2129 = vld [vmem:[%s1359] sm:$0xff]
      %v2130 = vld [vmem:[%s1359 + $0x8] sm:$0xff]
      %v2131 = vld [vmem:[%s1359 + $0x18] sm:$0xff]
      %v2132 = vld [vmem:[%s1359 + $0x20] sm:$0xff]
      %v2133 = vld [vmem:[%s1359 + $0x30] sm:$0xff]
      %v2134 = vld [vmem:[%s1359 + $0x38] sm:$0xff]
      %v2135 = vld [vmem:[%s1359 + $0x48] sm:$0xff]
      %v2136 = vld [vmem:[%s1359 + $0x50] sm:$0xff]
      %v2137 = vld [vmem:[%s1359 + $0x60] sm:$0xff]
      %v2138 = vld [vmem:[%s1359 + $0x68] sm:$0xff]
      %v2139 = vld [vmem:[%s1359 + $0x78] sm:$0xff]
      %v2140 = vld [vmem:[%s1359 + $0x80] sm:$0xff]
      %v2141 = vld [vmem:[%s1359 + $0x90] sm:$0xff]
      %v2142 = vld [vmem:[%s1359 + $0x98] sm:$0xff]
      %v2143 = vld [vmem:[%s1359 + $0xa8] sm:$0xff]
      %v2144 = vld [vmem:[%s1359 + $0xb0] sm:$0xff]
      %v2145 = vld [vmem:[%s1359 + $0xc0] sm:$0xff]
      %v2146 = vld [vmem:[%s1359 + $0xc8] sm:$0xff]
      %v2147 = vld [vmem:[%s1359 + $0xd8] sm:$0xff]
      %v2148 = vld [vmem:[%s1359 + $0xe0] sm:$0xff]
      %v2149 = vld [vmem:[%s1359 + $0xf0] sm:$0xff]
      %v2150 = vld [vmem:[%s1359 + $0xf8] sm:$0xff]
      %v2151 = vld [vmem:[%s1359 + $0x108] sm:$0xff]
      %v2152 = vld [vmem:[%s1359 + $0x110] sm:$0xff]
      %v2153 = vld [vmem:[%s1359 + $0x120] sm:$0xff]
      %v2154 = vld [vmem:[%s1359 + $0x128] sm:$0xff]
      %v2155 = vld [vmem:[%s1359 + $0x138] sm:$0xff]
      %v2156 = vld [vmem:[%s1359 + $0x140] sm:$0xff]
      %v2157 = vld [vmem:[%s1359 + $0x150] sm:$0xff]
      %v2158 = vld [vmem:[%s1359 + $0x158] sm:$0xff]
      %v2159 = vld [vmem:[%s1359 + $0x168] sm:$0xff]
      %v2160 = vld [vmem:[%s1359 + $0x170] sm:$0xff]
      %v2161 = vpack.c.bf16 %v2129, %v2129
      %v2162 = vpack.c.bf16 %v2130, %v2130
      %v2163 = vpack.c.bf16 %v2131, %v2131
      %v2164 = vpack.c.bf16 %v2132, %v2132
      %v2165 = vpack.c.bf16 %v2133, %v2133
      %v2166 = vpack.c.bf16 %v2134, %v2134
      %v2167 = vpack.c.bf16 %v2135, %v2135
      %v2168 = vpack.c.bf16 %v2136, %v2136
      %v2169 = vpack.c.bf16 %v2137, %v2137
      %v2170 = vpack.c.bf16 %v2138, %v2138
      %v2171 = vpack.c.bf16 %v2139, %v2139
      %v2172 = vpack.c.bf16 %v2140, %v2140
      %v2173 = vpack.c.bf16 %v2141, %v2141
      %v2174 = vpack.c.bf16 %v2142, %v2142
      %v2175 = vpack.c.bf16 %v2143, %v2143
      %v2176 = vpack.c.bf16 %v2144, %v2144
      %v2177 = vpack.c.bf16 %v2145, %v2145
      %v2178 = vpack.c.bf16 %v2146, %v2146
      %v2179 = vpack.c.bf16 %v2147, %v2147
      %v2180 = vpack.c.bf16 %v2148, %v2148
      %v2181 = vpack.c.bf16 %v2149, %v2149
      %v2182 = vpack.c.bf16 %v2150, %v2150
      %v2183 = vpack.c.bf16 %v2151, %v2151
      %v2184 = vpack.c.bf16 %v2152, %v2152
      %v2185 = vpack.c.bf16 %v2153, %v2153
      %v2186 = vpack.c.bf16 %v2154, %v2154
      %v2187 = vpack.c.bf16 %v2155, %v2155
      %v2188 = vpack.c.bf16 %v2156, %v2156
      %v2189 = vpack.c.bf16 %v2157, %v2157
      %v2190 = vpack.c.bf16 %v2158, %v2158
      %v2191 = vpack.c.bf16 %v2159, %v2159
      %v2192 = vpack.c.bf16 %v2160, %v2160
      %2225 = vrot.lane.b32.xlu0 %v2161, 21
      %v2226 = vpop.permute.xlu0 %2225
      %2227 = vrot.lane.b32.xlu0 %v2162, 21
      %v2228 = vpop.permute.xlu0 %2227
      %2229 = vrot.lane.b32.xlu0 %v2163, 21
      %v2230 = vpop.permute.xlu0 %2229
      %2231 = vrot.lane.b32.xlu0 %v2164, 21
      %v2232 = vpop.permute.xlu0 %2231
      %2233 = vrot.lane.b32.xlu0 %v2165, 21
      %v2234 = vpop.permute.xlu0 %2233
      %2235 = vrot.lane.b32.xlu0 %v2166, 21
      %v2236 = vpop.permute.xlu0 %2235
      %2237 = vrot.lane.b32.xlu0 %v2167, 21
      %v2238 = vpop.permute.xlu0 %2237
      %2239 = vrot.lane.b32.xlu0 %v2168, 21
      %v2240 = vpop.permute.xlu0 %2239
      %2241 = vrot.lane.b32.xlu0 %v2169, 21
      %v2242 = vpop.permute.xlu0 %2241
      %2243 = vrot.lane.b32.xlu0 %v2170, 21
      %v2244 = vpop.permute.xlu0 %2243
      %2245 = vrot.lane.b32.xlu0 %v2171, 21
      %v2246 = vpop.permute.xlu0 %2245
      %2247 = vrot.lane.b32.xlu0 %v2172, 21
      %v2248 = vpop.permute.xlu0 %2247
      %2249 = vrot.lane.b32.xlu0 %v2173, 21
      %v2250 = vpop.permute.xlu0 %2249
      %2251 = vrot.lane.b32.xlu0 %v2174, 21
      %v2252 = vpop.permute.xlu0 %2251
      %2253 = vrot.lane.b32.xlu0 %v2175, 21
      %v2254 = vpop.permute.xlu0 %2253
      %2255 = vrot.lane.b32.xlu0 %v2176, 21
      %v2256 = vpop.permute.xlu0 %2255
      %2257 = vrot.lane.b32.xlu0 %v2177, 21
      %v2258 = vpop.permute.xlu0 %2257
      %2259 = vrot.lane.b32.xlu0 %v2178, 21
      %v2260 = vpop.permute.xlu0 %2259
      %2261 = vrot.lane.b32.xlu0 %v2179, 21
      %v2262 = vpop.permute.xlu0 %2261
      %2263 = vrot.lane.b32.xlu0 %v2180, 21
      %v2264 = vpop.permute.xlu0 %2263
      %2265 = vrot.lane.b32.xlu0 %v2181, 21
      %v2266 = vpop.permute.xlu0 %2265
      %2267 = vrot.lane.b32.xlu0 %v2182, 21
      %v2268 = vpop.permute.xlu0 %2267
      %2269 = vrot.lane.b32.xlu0 %v2183, 21
      %v2270 = vpop.permute.xlu0 %2269
      %2271 = vrot.lane.b32.xlu0 %v2184, 21
      %v2272 = vpop.permute.xlu0 %2271
      %2273 = vrot.lane.b32.xlu0 %v2185, 21
      %v2274 = vpop.permute.xlu0 %2273
      %2275 = vrot.lane.b32.xlu0 %v2186, 21
      %v2276 = vpop.permute.xlu0 %2275
      %2277 = vrot.lane.b32.xlu0 %v2187, 21
      %v2278 = vpop.permute.xlu0 %2277
      %2279 = vrot.lane.b32.xlu0 %v2188, 21
      %v2280 = vpop.permute.xlu0 %2279
      %2281 = vrot.lane.b32.xlu0 %v2189, 21
      %v2282 = vpop.permute.xlu0 %2281
      %2283 = vrot.lane.b32.xlu0 %v2190, 21
      %v2284 = vpop.permute.xlu0 %2283
      %2285 = vrot.lane.b32.xlu0 %v2191, 21
      %v2286 = vpop.permute.xlu0 %2285
      %2287 = vrot.lane.b32.xlu0 %v2192, 21
      %v2288 = vpop.permute.xlu0 %2287
      %2321 = vst.msk [vmem:[#allocation5] sm:$0xf] %vm778, %v2226
      %2322 = vst.msk [vmem:[#allocation5 + $0x4] sm:$0xf] %vm778, %v2228
      %2323 = vst.msk [vmem:[#allocation5 + $0x8] sm:$0xf] %vm778, %v2230
      %2324 = vst.msk [vmem:[#allocation5 + $0xc] sm:$0xf] %vm778, %v2232
      %2325 = vst.msk [vmem:[#allocation5 + $0x10] sm:$0xf] %vm778, %v2234
      %2326 = vst.msk [vmem:[#allocation5 + $0x14] sm:$0xf] %vm778, %v2236
      %2327 = vst.msk [vmem:[#allocation5 + $0x18] sm:$0xf] %vm778, %v2238
      %2328 = vst.msk [vmem:[#allocation5 + $0x1c] sm:$0xf] %vm778, %v2240
      %2329 = vst.msk [vmem:[#allocation5 + $0x20] sm:$0xf] %vm778, %v2242
      %2330 = vst.msk [vmem:[#allocation5 + $0x24] sm:$0xf] %vm778, %v2244
      %2331 = vst.msk [vmem:[#allocation5 + $0x28] sm:$0xf] %vm778, %v2246
      %2332 = vst.msk [vmem:[#allocation5 + $0x2c] sm:$0xf] %vm778, %v2248
      %2333 = vst.msk [vmem:[#allocation5 + $0x30] sm:$0xf] %vm778, %v2250
      %2334 = vst.msk [vmem:[#allocation5 + $0x34] sm:$0xf] %vm778, %v2252
      %2335 = vst.msk [vmem:[#allocation5 + $0x38] sm:$0xf] %vm778, %v2254
      %2336 = vst.msk [vmem:[#allocation5 + $0x3c] sm:$0xf] %vm778, %v2256
      %2337 = vst.msk [vmem:[#allocation5 + $0x40] sm:$0xf] %vm778, %v2258
      %2338 = vst.msk [vmem:[#allocation5 + $0x44] sm:$0xf] %vm778, %v2260
      %2339 = vst.msk [vmem:[#allocation5 + $0x48] sm:$0xf] %vm778, %v2262
      %2340 = vst.msk [vmem:[#allocation5 + $0x4c] sm:$0xf] %vm778, %v2264
      %2341 = vst.msk [vmem:[#allocation5 + $0x50] sm:$0xf] %vm778, %v2266
      %2342 = vst.msk [vmem:[#allocation5 + $0x54] sm:$0xf] %vm778, %v2268
      %2343 = vst.msk [vmem:[#allocation5 + $0x58] sm:$0xf] %vm778, %v2270
      %2344 = vst.msk [vmem:[#allocation5 + $0x5c] sm:$0xf] %vm778, %v2272
      %2345 = vst.msk [vmem:[#allocation5 + $0x60] sm:$0xf] %vm778, %v2274
      %2346 = vst.msk [vmem:[#allocation5 + $0x64] sm:$0xf] %vm778, %v2276
      %2347 = vst.msk [vmem:[#allocation5 + $0x68] sm:$0xf] %vm778, %v2278
      %2348 = vst.msk [vmem:[#allocation5 + $0x6c] sm:$0xf] %vm778, %v2280
      %2349 = vst.msk [vmem:[#allocation5 + $0x70] sm:$0xf] %vm778, %v2282
      %2350 = vst.msk [vmem:[#allocation5 + $0x74] sm:$0xf] %vm778, %v2284
      %2351 = vst.msk [vmem:[#allocation5 + $0x78] sm:$0xf] %vm778, %v2286
      %2352 = vst.msk [vmem:[#allocation5 + $0x7c] sm:$0xf] %vm778, %v2288
      %v2353 = vld [vmem:[%s1359 + $0x1] sm:$0xff]
      %v2354 = vld [vmem:[%s1359 + $0x9] sm:$0xff]
      %v2355 = vld [vmem:[%s1359 + $0x19] sm:$0xff]
      %v2356 = vld [vmem:[%s1359 + $0x21] sm:$0xff]
      %v2357 = vld [vmem:[%s1359 + $0x31] sm:$0xff]
      %v2358 = vld [vmem:[%s1359 + $0x39] sm:$0xff]
      %v2359 = vld [vmem:[%s1359 + $0x49] sm:$0xff]
      %v2360 = vld [vmem:[%s1359 + $0x51] sm:$0xff]
      %v2361 = vld [vmem:[%s1359 + $0x61] sm:$0xff]
      %v2362 = vld [vmem:[%s1359 + $0x69] sm:$0xff]
      %v2363 = vld [vmem:[%s1359 + $0x79] sm:$0xff]
      %v2364 = vld [vmem:[%s1359 + $0x81] sm:$0xff]
      %v2365 = vld [vmem:[%s1359 + $0x91] sm:$0xff]
      %v2366 = vld [vmem:[%s1359 + $0x99] sm:$0xff]
      %v2367 = vld [vmem:[%s1359 + $0xa9] sm:$0xff]
      %v2368 = vld [vmem:[%s1359 + $0xb1] sm:$0xff]
      %v2369 = vld [vmem:[%s1359 + $0xc1] sm:$0xff]
      %v2370 = vld [vmem:[%s1359 + $0xc9] sm:$0xff]
      %v2371 = vld [vmem:[%s1359 + $0xd9] sm:$0xff]
      %v2372 = vld [vmem:[%s1359 + $0xe1] sm:$0xff]
      %v2373 = vld [vmem:[%s1359 + $0xf1] sm:$0xff]
      %v2374 = vld [vmem:[%s1359 + $0xf9] sm:$0xff]
      %v2375 = vld [vmem:[%s1359 + $0x109] sm:$0xff]
      %v2376 = vld [vmem:[%s1359 + $0x111] sm:$0xff]
      %v2377 = vld [vmem:[%s1359 + $0x121] sm:$0xff]
      %v2378 = vld [vmem:[%s1359 + $0x129] sm:$0xff]
      %v2379 = vld [vmem:[%s1359 + $0x139] sm:$0xff]
      %v2380 = vld [vmem:[%s1359 + $0x141] sm:$0xff]
      %v2381 = vld [vmem:[%s1359 + $0x151] sm:$0xff]
      %v2382 = vld [vmem:[%s1359 + $0x159] sm:$0xff]
      %v2383 = vld [vmem:[%s1359 + $0x169] sm:$0xff]
      %v2384 = vld [vmem:[%s1359 + $0x171] sm:$0xff]
      %v2385 = vpack.c.bf16 %v2353, %v2353
      %v2386 = vpack.c.bf16 %v2354, %v2354
      %v2387 = vpack.c.bf16 %v2355, %v2355
      %v2388 = vpack.c.bf16 %v2356, %v2356
      %v2389 = vpack.c.bf16 %v2357, %v2357
      %v2390 = vpack.c.bf16 %v2358, %v2358
      %v2391 = vpack.c.bf16 %v2359, %v2359
      %v2392 = vpack.c.bf16 %v2360, %v2360
      %v2393 = vpack.c.bf16 %v2361, %v2361
      %v2394 = vpack.c.bf16 %v2362, %v2362
      %v2395 = vpack.c.bf16 %v2363, %v2363
      %v2396 = vpack.c.bf16 %v2364, %v2364
      %v2397 = vpack.c.bf16 %v2365, %v2365
      %v2398 = vpack.c.bf16 %v2366, %v2366
      %v2399 = vpack.c.bf16 %v2367, %v2367
      %v2400 = vpack.c.bf16 %v2368, %v2368
      %v2401 = vpack.c.bf16 %v2369, %v2369
      %v2402 = vpack.c.bf16 %v2370, %v2370
      %v2403 = vpack.c.bf16 %v2371, %v2371
      %v2404 = vpack.c.bf16 %v2372, %v2372
      %v2405 = vpack.c.bf16 %v2373, %v2373
      %v2406 = vpack.c.bf16 %v2374, %v2374
      %v2407 = vpack.c.bf16 %v2375, %v2375
      %v2408 = vpack.c.bf16 %v2376, %v2376
      %v2409 = vpack.c.bf16 %v2377, %v2377
      %v2410 = vpack.c.bf16 %v2378, %v2378
      %v2411 = vpack.c.bf16 %v2379, %v2379
      %v2412 = vpack.c.bf16 %v2380, %v2380
      %v2413 = vpack.c.bf16 %v2381, %v2381
      %v2414 = vpack.c.bf16 %v2382, %v2382
      %v2415 = vpack.c.bf16 %v2383, %v2383
      %v2416 = vpack.c.bf16 %v2384, %v2384
      %2449 = vrot.lane.b32.xlu0 %v2385, 28
      %v2450 = vpop.permute.xlu0 %2449
      %2451 = vrot.lane.b32.xlu0 %v2386, 28
      %v2452 = vpop.permute.xlu0 %2451
      %2453 = vrot.lane.b32.xlu0 %v2387, 28
      %v2454 = vpop.permute.xlu0 %2453
      %2455 = vrot.lane.b32.xlu0 %v2388, 28
      %v2456 = vpop.permute.xlu0 %2455
      %2457 = vrot.lane.b32.xlu0 %v2389, 28
      %v2458 = vpop.permute.xlu0 %2457
      %2459 = vrot.lane.b32.xlu0 %v2390, 28
      %v2460 = vpop.permute.xlu0 %2459
      %2461 = vrot.lane.b32.xlu0 %v2391, 28
      %v2462 = vpop.permute.xlu0 %2461
      %2463 = vrot.lane.b32.xlu0 %v2392, 28
      %v2464 = vpop.permute.xlu0 %2463
      %2465 = vrot.lane.b32.xlu0 %v2393, 28
      %v2466 = vpop.permute.xlu0 %2465
      %2467 = vrot.lane.b32.xlu0 %v2394, 28
      %v2468 = vpop.permute.xlu0 %2467
      %2469 = vrot.lane.b32.xlu0 %v2395, 28
      %v2470 = vpop.permute.xlu0 %2469
      %2471 = vrot.lane.b32.xlu0 %v2396, 28
      %v2472 = vpop.permute.xlu0 %2471
      %2473 = vrot.lane.b32.xlu0 %v2397, 28
      %v2474 = vpop.permute.xlu0 %2473
      %2475 = vrot.lane.b32.xlu0 %v2398, 28
      %v2476 = vpop.permute.xlu0 %2475
      %2477 = vrot.lane.b32.xlu0 %v2399, 28
      %v2478 = vpop.permute.xlu0 %2477
      %2479 = vrot.lane.b32.xlu0 %v2400, 28
      %v2480 = vpop.permute.xlu0 %2479
      %2481 = vrot.lane.b32.xlu0 %v2401, 28
      %v2482 = vpop.permute.xlu0 %2481
      %2483 = vrot.lane.b32.xlu0 %v2402, 28
      %v2484 = vpop.permute.xlu0 %2483
      %2485 = vrot.lane.b32.xlu0 %v2403, 28
      %v2486 = vpop.permute.xlu0 %2485
      %2487 = vrot.lane.b32.xlu0 %v2404, 28
      %v2488 = vpop.permute.xlu0 %2487
      %2489 = vrot.lane.b32.xlu0 %v2405, 28
      %v2490 = vpop.permute.xlu0 %2489
      %2491 = vrot.lane.b32.xlu0 %v2406, 28
      %v2492 = vpop.permute.xlu0 %2491
      %2493 = vrot.lane.b32.xlu0 %v2407, 28
      %v2494 = vpop.permute.xlu0 %2493
      %2495 = vrot.lane.b32.xlu0 %v2408, 28
      %v2496 = vpop.permute.xlu0 %2495
      %2497 = vrot.lane.b32.xlu0 %v2409, 28
      %v2498 = vpop.permute.xlu0 %2497
      %2499 = vrot.lane.b32.xlu0 %v2410, 28
      %v2500 = vpop.permute.xlu0 %2499
      %2501 = vrot.lane.b32.xlu0 %v2411, 28
      %v2502 = vpop.permute.xlu0 %2501
      %2503 = vrot.lane.b32.xlu0 %v2412, 28
      %v2504 = vpop.permute.xlu0 %2503
      %2505 = vrot.lane.b32.xlu0 %v2413, 28
      %v2506 = vpop.permute.xlu0 %2505
      %2507 = vrot.lane.b32.xlu0 %v2414, 28
      %v2508 = vpop.permute.xlu0 %2507
      %2509 = vrot.lane.b32.xlu0 %v2415, 28
      %v2510 = vpop.permute.xlu0 %2509
      %2511 = vrot.lane.b32.xlu0 %v2416, 28
      %v2512 = vpop.permute.xlu0 %2511
      %2545 = vst.msk [vmem:[#allocation5] sm:$0xf] %vm835, %v2450
      %2546 = vst.msk [vmem:[#allocation5 + $0x4] sm:$0xf] %vm835, %v2452
      %2547 = vst.msk [vmem:[#allocation5 + $0x8] sm:$0xf] %vm835, %v2454
      %2548 = vst.msk [vmem:[#allocation5 + $0xc] sm:$0xf] %vm835, %v2456
      %2549 = vst.msk [vmem:[#allocation5 + $0x10] sm:$0xf] %vm835, %v2458
      %2550 = vst.msk [vmem:[#allocation5 + $0x14] sm:$0xf] %vm835, %v2460
      %2551 = vst.msk [vmem:[#allocation5 + $0x18] sm:$0xf] %vm835, %v2462
      %2552 = vst.msk [vmem:[#allocation5 + $0x1c] sm:$0xf] %vm835, %v2464
      %2553 = vst.msk [vmem:[#allocation5 + $0x20] sm:$0xf] %vm835, %v2466
      %2554 = vst.msk [vmem:[#allocation5 + $0x24] sm:$0xf] %vm835, %v2468
      %2555 = vst.msk [vmem:[#allocation5 + $0x28] sm:$0xf] %vm835, %v2470
      %2556 = vst.msk [vmem:[#allocation5 + $0x2c] sm:$0xf] %vm835, %v2472
      %2557 = vst.msk [vmem:[#allocation5 + $0x30] sm:$0xf] %vm835, %v2474
      %2558 = vst.msk [vmem:[#allocation5 + $0x34] sm:$0xf] %vm835, %v2476
      %2559 = vst.msk [vmem:[#allocation5 + $0x38] sm:$0xf] %vm835, %v2478
      %2560 = vst.msk [vmem:[#allocation5 + $0x3c] sm:$0xf] %vm835, %v2480
      %2561 = vst.msk [vmem:[#allocation5 + $0x40] sm:$0xf] %vm835, %v2482
      %2562 = vst.msk [vmem:[#allocation5 + $0x44] sm:$0xf] %vm835, %v2484
      %2563 = vst.msk [vmem:[#allocation5 + $0x48] sm:$0xf] %vm835, %v2486
      %2564 = vst.msk [vmem:[#allocation5 + $0x4c] sm:$0xf] %vm835, %v2488
      %2565 = vst.msk [vmem:[#allocation5 + $0x50] sm:$0xf] %vm835, %v2490
      %2566 = vst.msk [vmem:[#allocation5 + $0x54] sm:$0xf] %vm835, %v2492
      %2567 = vst.msk [vmem:[#allocation5 + $0x58] sm:$0xf] %vm835, %v2494
      %2568 = vst.msk [vmem:[#allocation5 + $0x5c] sm:$0xf] %vm835, %v2496
      %2569 = vst.msk [vmem:[#allocation5 + $0x60] sm:$0xf] %vm835, %v2498
      %2570 = vst.msk [vmem:[#allocation5 + $0x64] sm:$0xf] %vm835, %v2500
      %2571 = vst.msk [vmem:[#allocation5 + $0x68] sm:$0xf] %vm835, %v2502
      %2572 = vst.msk [vmem:[#allocation5 + $0x6c] sm:$0xf] %vm835, %v2504
      %2573 = vst.msk [vmem:[#allocation5 + $0x70] sm:$0xf] %vm835, %v2506
      %2574 = vst.msk [vmem:[#allocation5 + $0x74] sm:$0xf] %vm835, %v2508
      %2575 = vst.msk [vmem:[#allocation5 + $0x78] sm:$0xf] %vm835, %v2510
      %2576 = vst.msk [vmem:[#allocation5 + $0x7c] sm:$0xf] %vm835, %v2512
      %v2577 = vld [vmem:[%s1359 + $0x2] sm:$0xff]
      %v2578 = vld [vmem:[%s1359 + $0xa] sm:$0xff]
      %v2579 = vld [vmem:[%s1359 + $0x1a] sm:$0xff]
      %v2580 = vld [vmem:[%s1359 + $0x22] sm:$0xff]
      %v2581 = vld [vmem:[%s1359 + $0x32] sm:$0xff]
      %v2582 = vld [vmem:[%s1359 + $0x3a] sm:$0xff]
      %v2583 = vld [vmem:[%s1359 + $0x4a] sm:$0xff]
      %v2584 = vld [vmem:[%s1359 + $0x52] sm:$0xff]
      %v2585 = vld [vmem:[%s1359 + $0x62] sm:$0xff]
      %v2586 = vld [vmem:[%s1359 + $0x6a] sm:$0xff]
      %v2587 = vld [vmem:[%s1359 + $0x7a] sm:$0xff]
      %v2588 = vld [vmem:[%s1359 + $0x82] sm:$0xff]
      %v2589 = vld [vmem:[%s1359 + $0x92] sm:$0xff]
      %v2590 = vld [vmem:[%s1359 + $0x9a] sm:$0xff]
      %v2591 = vld [vmem:[%s1359 + $0xaa] sm:$0xff]
      %v2592 = vld [vmem:[%s1359 + $0xb2] sm:$0xff]
      %v2593 = vld [vmem:[%s1359 + $0xc2] sm:$0xff]
      %v2594 = vld [vmem:[%s1359 + $0xca] sm:$0xff]
      %v2595 = vld [vmem:[%s1359 + $0xda] sm:$0xff]
      %v2596 = vld [vmem:[%s1359 + $0xe2] sm:$0xff]
      %v2597 = vld [vmem:[%s1359 + $0xf2] sm:$0xff]
      %v2598 = vld [vmem:[%s1359 + $0xfa] sm:$0xff]
      %v2599 = vld [vmem:[%s1359 + $0x10a] sm:$0xff]
      %v2600 = vld [vmem:[%s1359 + $0x112] sm:$0xff]
      %v2601 = vld [vmem:[%s1359 + $0x122] sm:$0xff]
      %v2602 = vld [vmem:[%s1359 + $0x12a] sm:$0xff]
      %v2603 = vld [vmem:[%s1359 + $0x13a] sm:$0xff]
      %v2604 = vld [vmem:[%s1359 + $0x142] sm:$0xff]
      %v2605 = vld [vmem:[%s1359 + $0x152] sm:$0xff]
      %v2606 = vld [vmem:[%s1359 + $0x15a] sm:$0xff]
      %v2607 = vld [vmem:[%s1359 + $0x16a] sm:$0xff]
      %v2608 = vld [vmem:[%s1359 + $0x172] sm:$0xff]
      %v2609 = vpack.c.bf16 %v2577, %v2577
      %v2610 = vpack.c.bf16 %v2578, %v2578
      %v2611 = vpack.c.bf16 %v2579, %v2579
      %v2612 = vpack.c.bf16 %v2580, %v2580
      %v2613 = vpack.c.bf16 %v2581, %v2581
      %v2614 = vpack.c.bf16 %v2582, %v2582
      %v2615 = vpack.c.bf16 %v2583, %v2583
      %v2616 = vpack.c.bf16 %v2584, %v2584
      %v2617 = vpack.c.bf16 %v2585, %v2585
      %v2618 = vpack.c.bf16 %v2586, %v2586
      %v2619 = vpack.c.bf16 %v2587, %v2587
      %v2620 = vpack.c.bf16 %v2588, %v2588
      %v2621 = vpack.c.bf16 %v2589, %v2589
      %v2622 = vpack.c.bf16 %v2590, %v2590
      %v2623 = vpack.c.bf16 %v2591, %v2591
      %v2624 = vpack.c.bf16 %v2592, %v2592
      %v2625 = vpack.c.bf16 %v2593, %v2593
      %v2626 = vpack.c.bf16 %v2594, %v2594
      %v2627 = vpack.c.bf16 %v2595, %v2595
      %v2628 = vpack.c.bf16 %v2596, %v2596
      %v2629 = vpack.c.bf16 %v2597, %v2597
      %v2630 = vpack.c.bf16 %v2598, %v2598
      %v2631 = vpack.c.bf16 %v2599, %v2599
      %v2632 = vpack.c.bf16 %v2600, %v2600
      %v2633 = vpack.c.bf16 %v2601, %v2601
      %v2634 = vpack.c.bf16 %v2602, %v2602
      %v2635 = vpack.c.bf16 %v2603, %v2603
      %v2636 = vpack.c.bf16 %v2604, %v2604
      %v2637 = vpack.c.bf16 %v2605, %v2605
      %v2638 = vpack.c.bf16 %v2606, %v2606
      %v2639 = vpack.c.bf16 %v2607, %v2607
      %v2640 = vpack.c.bf16 %v2608, %v2608
      %2673 = vrot.lane.b32.xlu0 %v2609, 35
      %v2674 = vpop.permute.xlu0 %2673
      %2675 = vrot.lane.b32.xlu0 %v2610, 35
      %v2676 = vpop.permute.xlu0 %2675
      %2677 = vrot.lane.b32.xlu0 %v2611, 35
      %v2678 = vpop.permute.xlu0 %2677
      %2679 = vrot.lane.b32.xlu0 %v2612, 35
      %v2680 = vpop.permute.xlu0 %2679
      %2681 = vrot.lane.b32.xlu0 %v2613, 35
      %v2682 = vpop.permute.xlu0 %2681
      %2683 = vrot.lane.b32.xlu0 %v2614, 35
      %v2684 = vpop.permute.xlu0 %2683
      %2685 = vrot.lane.b32.xlu0 %v2615, 35
      %v2686 = vpop.permute.xlu0 %2685
      %2687 = vrot.lane.b32.xlu0 %v2616, 35
      %v2688 = vpop.permute.xlu0 %2687
      %2689 = vrot.lane.b32.xlu0 %v2617, 35
      %v2690 = vpop.permute.xlu0 %2689
      %2691 = vrot.lane.b32.xlu0 %v2618, 35
      %v2692 = vpop.permute.xlu0 %2691
      %2693 = vrot.lane.b32.xlu0 %v2619, 35
      %v2694 = vpop.permute.xlu0 %2693
      %2695 = vrot.lane.b32.xlu0 %v2620, 35
      %v2696 = vpop.permute.xlu0 %2695
      %2697 = vrot.lane.b32.xlu0 %v2621, 35
      %v2698 = vpop.permute.xlu0 %2697
      %2699 = vrot.lane.b32.xlu0 %v2622, 35
      %v2700 = vpop.permute.xlu0 %2699
      %2701 = vrot.lane.b32.xlu0 %v2623, 35
      %v2702 = vpop.permute.xlu0 %2701
      %2703 = vrot.lane.b32.xlu0 %v2624, 35
      %v2704 = vpop.permute.xlu0 %2703
      %2705 = vrot.lane.b32.xlu0 %v2625, 35
      %v2706 = vpop.permute.xlu0 %2705
      %2707 = vrot.lane.b32.xlu0 %v2626, 35
      %v2708 = vpop.permute.xlu0 %2707
      %2709 = vrot.lane.b32.xlu0 %v2627, 35
      %v2710 = vpop.permute.xlu0 %2709
      %2711 = vrot.lane.b32.xlu0 %v2628, 35
      %v2712 = vpop.permute.xlu0 %2711
      %2713 = vrot.lane.b32.xlu0 %v2629, 35
      %v2714 = vpop.permute.xlu0 %2713
      %2715 = vrot.lane.b32.xlu0 %v2630, 35
      %v2716 = vpop.permute.xlu0 %2715
      %2717 = vrot.lane.b32.xlu0 %v2631, 35
      %v2718 = vpop.permute.xlu0 %2717
      %2719 = vrot.lane.b32.xlu0 %v2632, 35
      %v2720 = vpop.permute.xlu0 %2719
      %2721 = vrot.lane.b32.xlu0 %v2633, 35
      %v2722 = vpop.permute.xlu0 %2721
      %2723 = vrot.lane.b32.xlu0 %v2634, 35
      %v2724 = vpop.permute.xlu0 %2723
      %2725 = vrot.lane.b32.xlu0 %v2635, 35
      %v2726 = vpop.permute.xlu0 %2725
      %2727 = vrot.lane.b32.xlu0 %v2636, 35
      %v2728 = vpop.permute.xlu0 %2727
      %2729 = vrot.lane.b32.xlu0 %v2637, 35
      %v2730 = vpop.permute.xlu0 %2729
      %2731 = vrot.lane.b32.xlu0 %v2638, 35
      %v2732 = vpop.permute.xlu0 %2731
      %2733 = vrot.lane.b32.xlu0 %v2639, 35
      %v2734 = vpop.permute.xlu0 %2733
      %2735 = vrot.lane.b32.xlu0 %v2640, 35
      %v2736 = vpop.permute.xlu0 %2735
      %2769 = vst.msk [vmem:[#allocation5] sm:$0xf] %vm892, %v2674
      %2770 = vst.msk [vmem:[#allocation5 + $0x4] sm:$0xf] %vm892, %v2676
      %2771 = vst.msk [vmem:[#allocation5 + $0x8] sm:$0xf] %vm892, %v2678
      %2772 = vst.msk [vmem:[#allocation5 + $0xc] sm:$0xf] %vm892, %v2680
      %2773 = vst.msk [vmem:[#allocation5 + $0x10] sm:$0xf] %vm892, %v2682
      %2774 = vst.msk [vmem:[#allocation5 + $0x14] sm:$0xf] %vm892, %v2684
      %2775 = vst.msk [vmem:[#allocation5 + $0x18] sm:$0xf] %vm892, %v2686
      %2776 = vst.msk [vmem:[#allocation5 + $0x1c] sm:$0xf] %vm892, %v2688
      %2777 = vst.msk [vmem:[#allocation5 + $0x20] sm:$0xf] %vm892, %v2690
      %2778 = vst.msk [vmem:[#allocation5 + $0x24] sm:$0xf] %vm892, %v2692
      %2779 = vst.msk [vmem:[#allocation5 + $0x28] sm:$0xf] %vm892, %v2694
      %2780 = vst.msk [vmem:[#allocation5 + $0x2c] sm:$0xf] %vm892, %v2696
      %2781 = vst.msk [vmem:[#allocation5 + $0x30] sm:$0xf] %vm892, %v2698
      %2782 = vst.msk [vmem:[#allocation5 + $0x34] sm:$0xf] %vm892, %v2700
      %2783 = vst.msk [vmem:[#allocation5 + $0x38] sm:$0xf] %vm892, %v2702
      %2784 = vst.msk [vmem:[#allocation5 + $0x3c] sm:$0xf] %vm892, %v2704
      %2785 = vst.msk [vmem:[#allocation5 + $0x40] sm:$0xf] %vm892, %v2706
      %2786 = vst.msk [vmem:[#allocation5 + $0x44] sm:$0xf] %vm892, %v2708
      %2787 = vst.msk [vmem:[#allocation5 + $0x48] sm:$0xf] %vm892, %v2710
      %2788 = vst.msk [vmem:[#allocation5 + $0x4c] sm:$0xf] %vm892, %v2712
      %2789 = vst.msk [vmem:[#allocation5 + $0x50] sm:$0xf] %vm892, %v2714
      %2790 = vst.msk [vmem:[#allocation5 + $0x54] sm:$0xf] %vm892, %v2716
      %2791 = vst.msk [vmem:[#allocation5 + $0x58] sm:$0xf] %vm892, %v2718
      %2792 = vst.msk [vmem:[#allocation5 + $0x5c] sm:$0xf] %vm892, %v2720
      %2793 = vst.msk [vmem:[#allocation5 + $0x60] sm:$0xf] %vm892, %v2722
      %2794 = vst.msk [vmem:[#allocation5 + $0x64] sm:$0xf] %vm892, %v2724
      %2795 = vst.msk [vmem:[#allocation5 + $0x68] sm:$0xf] %vm892, %v2726
      %2796 = vst.msk [vmem:[#allocation5 + $0x6c] sm:$0xf] %vm892, %v2728
      %2797 = vst.msk [vmem:[#allocation5 + $0x70] sm:$0xf] %vm892, %v2730
      %2798 = vst.msk [vmem:[#allocation5 + $0x74] sm:$0xf] %vm892, %v2732
      %2799 = vst.msk [vmem:[#allocation5 + $0x78] sm:$0xf] %vm892, %v2734
      %2800 = vst.msk [vmem:[#allocation5 + $0x7c] sm:$0xf] %vm892, %v2736
      %s2801 = scalar_lea.vmem [#allocation2], 48
      %v2802 = vld [vmem:[%s2801] sm:$0xff]
      %v2803 = vld [vmem:[%s2801 + $0x8] sm:$0xff]
      %v2804 = vld [vmem:[%s2801 + $0x18] sm:$0xff]
      %v2805 = vld [vmem:[%s2801 + $0x20] sm:$0xff]
      %v2806 = vld [vmem:[%s2801 + $0x30] sm:$0xff]
      %v2807 = vld [vmem:[%s2801 + $0x38] sm:$0xff]
      %v2808 = vld [vmem:[%s2801 + $0x48] sm:$0xff]
      %v2809 = vld [vmem:[%s2801 + $0x50] sm:$0xff]
      %v2810 = vld [vmem:[%s2801 + $0x60] sm:$0xff]
      %v2811 = vld [vmem:[%s2801 + $0x68] sm:$0xff]
      %v2812 = vld [vmem:[%s2801 + $0x78] sm:$0xff]
      %v2813 = vld [vmem:[%s2801 + $0x80] sm:$0xff]
      %v2814 = vld [vmem:[%s2801 + $0x90] sm:$0xff]
      %v2815 = vld [vmem:[%s2801 + $0x98] sm:$0xff]
      %v2816 = vld [vmem:[%s2801 + $0xa8] sm:$0xff]
      %v2817 = vld [vmem:[%s2801 + $0xb0] sm:$0xff]
      %v2818 = vld [vmem:[%s2801 + $0xc0] sm:$0xff]
      %v2819 = vld [vmem:[%s2801 + $0xc8] sm:$0xff]
      %v2820 = vld [vmem:[%s2801 + $0xd8] sm:$0xff]
      %v2821 = vld [vmem:[%s2801 + $0xe0] sm:$0xff]
      %v2822 = vld [vmem:[%s2801 + $0xf0] sm:$0xff]
      %v2823 = vld [vmem:[%s2801 + $0xf8] sm:$0xff]
      %v2824 = vld [vmem:[%s2801 + $0x108] sm:$0xff]
      %v2825 = vld [vmem:[%s2801 + $0x110] sm:$0xff]
      %v2826 = vld [vmem:[%s2801 + $0x120] sm:$0xff]
      %v2827 = vld [vmem:[%s2801 + $0x128] sm:$0xff]
      %v2828 = vld [vmem:[%s2801 + $0x138] sm:$0xff]
      %v2829 = vld [vmem:[%s2801 + $0x140] sm:$0xff]
      %v2830 = vld [vmem:[%s2801 + $0x150] sm:$0xff]
      %v2831 = vld [vmem:[%s2801 + $0x158] sm:$0xff]
      %v2832 = vld [vmem:[%s2801 + $0x168] sm:$0xff]
      %v2833 = vld [vmem:[%s2801 + $0x170] sm:$0xff]
      %v2834 = vpack.c.bf16 %v2802, %v2802
      %v2835 = vpack.c.bf16 %v2803, %v2803
      %v2836 = vpack.c.bf16 %v2804, %v2804
      %v2837 = vpack.c.bf16 %v2805, %v2805
      %v2838 = vpack.c.bf16 %v2806, %v2806
      %v2839 = vpack.c.bf16 %v2807, %v2807
      %v2840 = vpack.c.bf16 %v2808, %v2808
      %v2841 = vpack.c.bf16 %v2809, %v2809
      %v2842 = vpack.c.bf16 %v2810, %v2810
      %v2843 = vpack.c.bf16 %v2811, %v2811
      %v2844 = vpack.c.bf16 %v2812, %v2812
      %v2845 = vpack.c.bf16 %v2813, %v2813
      %v2846 = vpack.c.bf16 %v2814, %v2814
      %v2847 = vpack.c.bf16 %v2815, %v2815
      %v2848 = vpack.c.bf16 %v2816, %v2816
      %v2849 = vpack.c.bf16 %v2817, %v2817
      %v2850 = vpack.c.bf16 %v2818, %v2818
      %v2851 = vpack.c.bf16 %v2819, %v2819
      %v2852 = vpack.c.bf16 %v2820, %v2820
      %v2853 = vpack.c.bf16 %v2821, %v2821
      %v2854 = vpack.c.bf16 %v2822, %v2822
      %v2855 = vpack.c.bf16 %v2823, %v2823
      %v2856 = vpack.c.bf16 %v2824, %v2824
      %v2857 = vpack.c.bf16 %v2825, %v2825
      %v2858 = vpack.c.bf16 %v2826, %v2826
      %v2859 = vpack.c.bf16 %v2827, %v2827
      %v2860 = vpack.c.bf16 %v2828, %v2828
      %v2861 = vpack.c.bf16 %v2829, %v2829
      %v2862 = vpack.c.bf16 %v2830, %v2830
      %v2863 = vpack.c.bf16 %v2831, %v2831
      %v2864 = vpack.c.bf16 %v2832, %v2832
      %v2865 = vpack.c.bf16 %v2833, %v2833
      %2898 = vrot.lane.b32.xlu0 %v2834, 42
      %v2899 = vpop.permute.xlu0 %2898
      %2900 = vrot.lane.b32.xlu0 %v2835, 42
      %v2901 = vpop.permute.xlu0 %2900
      %2902 = vrot.lane.b32.xlu0 %v2836, 42
      %v2903 = vpop.permute.xlu0 %2902
      %2904 = vrot.lane.b32.xlu0 %v2837, 42
      %v2905 = vpop.permute.xlu0 %2904
      %2906 = vrot.lane.b32.xlu0 %v2838, 42
      %v2907 = vpop.permute.xlu0 %2906
      %2908 = vrot.lane.b32.xlu0 %v2839, 42
      %v2909 = vpop.permute.xlu0 %2908
      %2910 = vrot.lane.b32.xlu0 %v2840, 42
      %v2911 = vpop.permute.xlu0 %2910
      %2912 = vrot.lane.b32.xlu0 %v2841, 42
      %v2913 = vpop.permute.xlu0 %2912
      %2914 = vrot.lane.b32.xlu0 %v2842, 42
      %v2915 = vpop.permute.xlu0 %2914
      %2916 = vrot.lane.b32.xlu0 %v2843, 42
      %v2917 = vpop.permute.xlu0 %2916
      %2918 = vrot.lane.b32.xlu0 %v2844, 42
      %v2919 = vpop.permute.xlu0 %2918
      %2920 = vrot.lane.b32.xlu0 %v2845, 42
      %v2921 = vpop.permute.xlu0 %2920
      %2922 = vrot.lane.b32.xlu0 %v2846, 42
      %v2923 = vpop.permute.xlu0 %2922
      %2924 = vrot.lane.b32.xlu0 %v2847, 42
      %v2925 = vpop.permute.xlu0 %2924
      %2926 = vrot.lane.b32.xlu0 %v2848, 42
      %v2927 = vpop.permute.xlu0 %2926
      %2928 = vrot.lane.b32.xlu0 %v2849, 42
      %v2929 = vpop.permute.xlu0 %2928
      %2930 = vrot.lane.b32.xlu0 %v2850, 42
      %v2931 = vpop.permute.xlu0 %2930
      %2932 = vrot.lane.b32.xlu0 %v2851, 42
      %v2933 = vpop.permute.xlu0 %2932
      %2934 = vrot.lane.b32.xlu0 %v2852, 42
      %v2935 = vpop.permute.xlu0 %2934
      %2936 = vrot.lane.b32.xlu0 %v2853, 42
      %v2937 = vpop.permute.xlu0 %2936
      %2938 = vrot.lane.b32.xlu0 %v2854, 42
      %v2939 = vpop.permute.xlu0 %2938
      %2940 = vrot.lane.b32.xlu0 %v2855, 42
      %v2941 = vpop.permute.xlu0 %2940
      %2942 = vrot.lane.b32.xlu0 %v2856, 42
      %v2943 = vpop.permute.xlu0 %2942
      %2944 = vrot.lane.b32.xlu0 %v2857, 42
      %v2945 = vpop.permute.xlu0 %2944
      %2946 = vrot.lane.b32.xlu0 %v2858, 42
      %v2947 = vpop.permute.xlu0 %2946
      %2948 = vrot.lane.b32.xlu0 %v2859, 42
      %v2949 = vpop.permute.xlu0 %2948
      %2950 = vrot.lane.b32.xlu0 %v2860, 42
      %v2951 = vpop.permute.xlu0 %2950
      %2952 = vrot.lane.b32.xlu0 %v2861, 42
      %v2953 = vpop.permute.xlu0 %2952
      %2954 = vrot.lane.b32.xlu0 %v2862, 42
      %v2955 = vpop.permute.xlu0 %2954
      %2956 = vrot.lane.b32.xlu0 %v2863, 42
      %v2957 = vpop.permute.xlu0 %2956
      %2958 = vrot.lane.b32.xlu0 %v2864, 42
      %v2959 = vpop.permute.xlu0 %2958
      %2960 = vrot.lane.b32.xlu0 %v2865, 42
      %v2961 = vpop.permute.xlu0 %2960
      %2994 = vst.msk [vmem:[#allocation5] sm:$0xf] %vm950, %v2899
      %2995 = vst.msk [vmem:[#allocation5 + $0x4] sm:$0xf] %vm950, %v2901
      %2996 = vst.msk [vmem:[#allocation5 + $0x8] sm:$0xf] %vm950, %v2903
      %2997 = vst.msk [vmem:[#allocation5 + $0xc] sm:$0xf] %vm950, %v2905
      %2998 = vst.msk [vmem:[#allocation5 + $0x10] sm:$0xf] %vm950, %v2907
      %2999 = vst.msk [vmem:[#allocation5 + $0x14] sm:$0xf] %vm950, %v2909
      %3000 = vst.msk [vmem:[#allocation5 + $0x18] sm:$0xf] %vm950, %v2911
      %3001 = vst.msk [vmem:[#allocation5 + $0x1c] sm:$0xf] %vm950, %v2913
      %3002 = vst.msk [vmem:[#allocation5 + $0x20] sm:$0xf] %vm950, %v2915
      %3003 = vst.msk [vmem:[#allocation5 + $0x24] sm:$0xf] %vm950, %v2917
      %3004 = vst.msk [vmem:[#allocation5 + $0x28] sm:$0xf] %vm950, %v2919
      %3005 = vst.msk [vmem:[#allocation5 + $0x2c] sm:$0xf] %vm950, %v2921
      %3006 = vst.msk [vmem:[#allocation5 + $0x30] sm:$0xf] %vm950, %v2923
      %3007 = vst.msk [vmem:[#allocation5 + $0x34] sm:$0xf] %vm950, %v2925
      %3008 = vst.msk [vmem:[#allocation5 + $0x38] sm:$0xf] %vm950, %v2927
      %3009 = vst.msk [vmem:[#allocation5 + $0x3c] sm:$0xf] %vm950, %v2929
      %3010 = vst.msk [vmem:[#allocation5 + $0x40] sm:$0xf] %vm950, %v2931
      %3011 = vst.msk [vmem:[#allocation5 + $0x44] sm:$0xf] %vm950, %v2933
      %3012 = vst.msk [vmem:[#allocation5 + $0x48] sm:$0xf] %vm950, %v2935
      %3013 = vst.msk [vmem:[#allocation5 + $0x4c] sm:$0xf] %vm950, %v2937
      %3014 = vst.msk [vmem:[#allocation5 + $0x50] sm:$0xf] %vm950, %v2939
      %3015 = vst.msk [vmem:[#allocation5 + $0x54] sm:$0xf] %vm950, %v2941
      %3016 = vst.msk [vmem:[#allocation5 + $0x58] sm:$0xf] %vm950, %v2943
      %3017 = vst.msk [vmem:[#allocation5 + $0x5c] sm:$0xf] %vm950, %v2945
      %3018 = vst.msk [vmem:[#allocation5 + $0x60] sm:$0xf] %vm950, %v2947
      %3019 = vst.msk [vmem:[#allocation5 + $0x64] sm:$0xf] %vm950, %v2949
      %3020 = vst.msk [vmem:[#allocation5 + $0x68] sm:$0xf] %vm950, %v2951
      %3021 = vst.msk [vmem:[#allocation5 + $0x6c] sm:$0xf] %vm950, %v2953
      %3022 = vst.msk [vmem:[#allocation5 + $0x70] sm:$0xf] %vm950, %v2955
      %3023 = vst.msk [vmem:[#allocation5 + $0x74] sm:$0xf] %vm950, %v2957
      %3024 = vst.msk [vmem:[#allocation5 + $0x78] sm:$0xf] %vm950, %v2959
      %3025 = vst.msk [vmem:[#allocation5 + $0x7c] sm:$0xf] %vm950, %v2961
      %v3026 = vld [vmem:[%s2801 + $0x1] sm:$0xff]
      %v3027 = vld [vmem:[%s2801 + $0x9] sm:$0xff]
      %v3028 = vld [vmem:[%s2801 + $0x19] sm:$0xff]
      %v3029 = vld [vmem:[%s2801 + $0x21] sm:$0xff]
      %v3030 = vld [vmem:[%s2801 + $0x31] sm:$0xff]
      %v3031 = vld [vmem:[%s2801 + $0x39] sm:$0xff]
      %v3032 = vld [vmem:[%s2801 + $0x49] sm:$0xff]
      %v3033 = vld [vmem:[%s2801 + $0x51] sm:$0xff]
      %v3034 = vld [vmem:[%s2801 + $0x61] sm:$0xff]
      %v3035 = vld [vmem:[%s2801 + $0x69] sm:$0xff]
      %v3036 = vld [vmem:[%s2801 + $0x79] sm:$0xff]
      %v3037 = vld [vmem:[%s2801 + $0x81] sm:$0xff]
      %v3038 = vld [vmem:[%s2801 + $0x91] sm:$0xff]
      %v3039 = vld [vmem:[%s2801 + $0x99] sm:$0xff]
      %v3040 = vld [vmem:[%s2801 + $0xa9] sm:$0xff]
      %v3041 = vld [vmem:[%s2801 + $0xb1] sm:$0xff]
      %v3042 = vld [vmem:[%s2801 + $0xc1] sm:$0xff]
      %v3043 = vld [vmem:[%s2801 + $0xc9] sm:$0xff]
      %v3044 = vld [vmem:[%s2801 + $0xd9] sm:$0xff]
      %v3045 = vld [vmem:[%s2801 + $0xe1] sm:$0xff]
      %v3046 = vld [vmem:[%s2801 + $0xf1] sm:$0xff]
      %v3047 = vld [vmem:[%s2801 + $0xf9] sm:$0xff]
      %v3048 = vld [vmem:[%s2801 + $0x109] sm:$0xff]
      %v3049 = vld [vmem:[%s2801 + $0x111] sm:$0xff]
      %v3050 = vld [vmem:[%s2801 + $0x121] sm:$0xff]
      %v3051 = vld [vmem:[%s2801 + $0x129] sm:$0xff]
      %v3052 = vld [vmem:[%s2801 + $0x139] sm:$0xff]
      %v3053 = vld [vmem:[%s2801 + $0x141] sm:$0xff]
      %v3054 = vld [vmem:[%s2801 + $0x151] sm:$0xff]
      %v3055 = vld [vmem:[%s2801 + $0x159] sm:$0xff]
      %v3056 = vld [vmem:[%s2801 + $0x169] sm:$0xff]
      %v3057 = vld [vmem:[%s2801 + $0x171] sm:$0xff]
      %v3058 = vpack.c.bf16 %v3026, %v3026
      %v3059 = vpack.c.bf16 %v3027, %v3027
      %v3060 = vpack.c.bf16 %v3028, %v3028
      %v3061 = vpack.c.bf16 %v3029, %v3029
      %v3062 = vpack.c.bf16 %v3030, %v3030
      %v3063 = vpack.c.bf16 %v3031, %v3031
      %v3064 = vpack.c.bf16 %v3032, %v3032
      %v3065 = vpack.c.bf16 %v3033, %v3033
      %v3066 = vpack.c.bf16 %v3034, %v3034
      %v3067 = vpack.c.bf16 %v3035, %v3035
      %v3068 = vpack.c.bf16 %v3036, %v3036
      %v3069 = vpack.c.bf16 %v3037, %v3037
      %v3070 = vpack.c.bf16 %v3038, %v3038
      %v3071 = vpack.c.bf16 %v3039, %v3039
      %v3072 = vpack.c.bf16 %v3040, %v3040
      %v3073 = vpack.c.bf16 %v3041, %v3041
      %v3074 = vpack.c.bf16 %v3042, %v3042
      %v3075 = vpack.c.bf16 %v3043, %v3043
      %v3076 = vpack.c.bf16 %v3044, %v3044
      %v3077 = vpack.c.bf16 %v3045, %v3045
      %v3078 = vpack.c.bf16 %v3046, %v3046
      %v3079 = vpack.c.bf16 %v3047, %v3047
      %v3080 = vpack.c.bf16 %v3048, %v3048
      %v3081 = vpack.c.bf16 %v3049, %v3049
      %v3082 = vpack.c.bf16 %v3050, %v3050
      %v3083 = vpack.c.bf16 %v3051, %v3051
      %v3084 = vpack.c.bf16 %v3052, %v3052
      %v3085 = vpack.c.bf16 %v3053, %v3053
      %v3086 = vpack.c.bf16 %v3054, %v3054
      %v3087 = vpack.c.bf16 %v3055, %v3055
      %v3088 = vpack.c.bf16 %v3056, %v3056
      %v3089 = vpack.c.bf16 %v3057, %v3057
      %3122 = vrot.lane.b32.xlu0 %v3058, 49
      %v3123 = vpop.permute.xlu0 %3122
      %3124 = vrot.lane.b32.xlu0 %v3059, 49
      %v3125 = vpop.permute.xlu0 %3124
      %3126 = vrot.lane.b32.xlu0 %v3060, 49
      %v3127 = vpop.permute.xlu0 %3126
      %3128 = vrot.lane.b32.xlu0 %v3061, 49
      %v3129 = vpop.permute.xlu0 %3128
      %3130 = vrot.lane.b32.xlu0 %v3062, 49
      %v3131 = vpop.permute.xlu0 %3130
      %3132 = vrot.lane.b32.xlu0 %v3063, 49
      %v3133 = vpop.permute.xlu0 %3132
      %3134 = vrot.lane.b32.xlu0 %v3064, 49
      %v3135 = vpop.permute.xlu0 %3134
      %3136 = vrot.lane.b32.xlu0 %v3065, 49
      %v3137 = vpop.permute.xlu0 %3136
      %3138 = vrot.lane.b32.xlu0 %v3066, 49
      %v3139 = vpop.permute.xlu0 %3138
      %3140 = vrot.lane.b32.xlu0 %v3067, 49
      %v3141 = vpop.permute.xlu0 %3140
      %3142 = vrot.lane.b32.xlu0 %v3068, 49
      %v3143 = vpop.permute.xlu0 %3142
      %3144 = vrot.lane.b32.xlu0 %v3069, 49
      %v3145 = vpop.permute.xlu0 %3144
      %3146 = vrot.lane.b32.xlu0 %v3070, 49
      %v3147 = vpop.permute.xlu0 %3146
      %3148 = vrot.lane.b32.xlu0 %v3071, 49
      %v3149 = vpop.permute.xlu0 %3148
      %3150 = vrot.lane.b32.xlu0 %v3072, 49
      %v3151 = vpop.permute.xlu0 %3150
      %3152 = vrot.lane.b32.xlu0 %v3073, 49
      %v3153 = vpop.permute.xlu0 %3152
      %3154 = vrot.lane.b32.xlu0 %v3074, 49
      %v3155 = vpop.permute.xlu0 %3154
      %3156 = vrot.lane.b32.xlu0 %v3075, 49
      %v3157 = vpop.permute.xlu0 %3156
      %3158 = vrot.lane.b32.xlu0 %v3076, 49
      %v3159 = vpop.permute.xlu0 %3158
      %3160 = vrot.lane.b32.xlu0 %v3077, 49
      %v3161 = vpop.permute.xlu0 %3160
      %3162 = vrot.lane.b32.xlu0 %v3078, 49
      %v3163 = vpop.permute.xlu0 %3162
      %3164 = vrot.lane.b32.xlu0 %v3079, 49
      %v3165 = vpop.permute.xlu0 %3164
      %3166 = vrot.lane.b32.xlu0 %v3080, 49
      %v3167 = vpop.permute.xlu0 %3166
      %3168 = vrot.lane.b32.xlu0 %v3081, 49
      %v3169 = vpop.permute.xlu0 %3168
      %3170 = vrot.lane.b32.xlu0 %v3082, 49
      %v3171 = vpop.permute.xlu0 %3170
      %3172 = vrot.lane.b32.xlu0 %v3083, 49
      %v3173 = vpop.permute.xlu0 %3172
      %3174 = vrot.lane.b32.xlu0 %v3084, 49
      %v3175 = vpop.permute.xlu0 %3174
      %3176 = vrot.lane.b32.xlu0 %v3085, 49
      %v3177 = vpop.permute.xlu0 %3176
      %3178 = vrot.lane.b32.xlu0 %v3086, 49
      %v3179 = vpop.permute.xlu0 %3178
      %3180 = vrot.lane.b32.xlu0 %v3087, 49
      %v3181 = vpop.permute.xlu0 %3180
      %3182 = vrot.lane.b32.xlu0 %v3088, 49
      %v3183 = vpop.permute.xlu0 %3182
      %3184 = vrot.lane.b32.xlu0 %v3089, 49
      %v3185 = vpop.permute.xlu0 %3184
      %3218 = vst.msk [vmem:[#allocation5] sm:$0xf] %vm1007, %v3123
      %3219 = vst.msk [vmem:[#allocation5 + $0x4] sm:$0xf] %vm1007, %v3125
      %3220 = vst.msk [vmem:[#allocation5 + $0x8] sm:$0xf] %vm1007, %v3127
      %3221 = vst.msk [vmem:[#allocation5 + $0xc] sm:$0xf] %vm1007, %v3129
      %3222 = vst.msk [vmem:[#allocation5 + $0x10] sm:$0xf] %vm1007, %v3131
      %3223 = vst.msk [vmem:[#allocation5 + $0x14] sm:$0xf] %vm1007, %v3133
      %3224 = vst.msk [vmem:[#allocation5 + $0x18] sm:$0xf] %vm1007, %v3135
      %3225 = vst.msk [vmem:[#allocation5 + $0x1c] sm:$0xf] %vm1007, %v3137
      %3226 = vst.msk [vmem:[#allocation5 + $0x20] sm:$0xf] %vm1007, %v3139
      %3227 = vst.msk [vmem:[#allocation5 + $0x24] sm:$0xf] %vm1007, %v3141
      %3228 = vst.msk [vmem:[#allocation5 + $0x28] sm:$0xf] %vm1007, %v3143
      %3229 = vst.msk [vmem:[#allocation5 + $0x2c] sm:$0xf] %vm1007, %v3145
      %3230 = vst.msk [vmem:[#allocation5 + $0x30] sm:$0xf] %vm1007, %v3147
      %3231 = vst.msk [vmem:[#allocation5 + $0x34] sm:$0xf] %vm1007, %v3149
      %3232 = vst.msk [vmem:[#allocation5 + $0x38] sm:$0xf] %vm1007, %v3151
      %3233 = vst.msk [vmem:[#allocation5 + $0x3c] sm:$0xf] %vm1007, %v3153
      %3234 = vst.msk [vmem:[#allocation5 + $0x40] sm:$0xf] %vm1007, %v3155
      %3235 = vst.msk [vmem:[#allocation5 + $0x44] sm:$0xf] %vm1007, %v3157
      %3236 = vst.msk [vmem:[#allocation5 + $0x48] sm:$0xf] %vm1007, %v3159
      %3237 = vst.msk [vmem:[#allocation5 + $0x4c] sm:$0xf] %vm1007, %v3161
      %3238 = vst.msk [vmem:[#allocation5 + $0x50] sm:$0xf] %vm1007, %v3163
      %3239 = vst.msk [vmem:[#allocation5 + $0x54] sm:$0xf] %vm1007, %v3165
      %3240 = vst.msk [vmem:[#allocation5 + $0x58] sm:$0xf] %vm1007, %v3167
      %3241 = vst.msk [vmem:[#allocation5 + $0x5c] sm:$0xf] %vm1007, %v3169
      %3242 = vst.msk [vmem:[#allocation5 + $0x60] sm:$0xf] %vm1007, %v3171
      %3243 = vst.msk [vmem:[#allocation5 + $0x64] sm:$0xf] %vm1007, %v3173
      %3244 = vst.msk [vmem:[#allocation5 + $0x68] sm:$0xf] %vm1007, %v3175
      %3245 = vst.msk [vmem:[#allocation5 + $0x6c] sm:$0xf] %vm1007, %v3177
      %3246 = vst.msk [vmem:[#allocation5 + $0x70] sm:$0xf] %vm1007, %v3179
      %3247 = vst.msk [vmem:[#allocation5 + $0x74] sm:$0xf] %vm1007, %v3181
      %3248 = vst.msk [vmem:[#allocation5 + $0x78] sm:$0xf] %vm1007, %v3183
      %3249 = vst.msk [vmem:[#allocation5 + $0x7c] sm:$0xf] %vm1007, %v3185
      %v3250 = vld [vmem:[%s2801 + $0x2] sm:$0xff]
      %v3251 = vld [vmem:[%s2801 + $0xa] sm:$0xff]
      %v3252 = vld [vmem:[%s2801 + $0x1a] sm:$0xff]
      %v3253 = vld [vmem:[%s2801 + $0x22] sm:$0xff]
      %v3254 = vld [vmem:[%s2801 + $0x32] sm:$0xff]
      %v3255 = vld [vmem:[%s2801 + $0x3a] sm:$0xff]
      %v3256 = vld [vmem:[%s2801 + $0x4a] sm:$0xff]
      %v3257 = vld [vmem:[%s2801 + $0x52] sm:$0xff]
      %v3258 = vld [vmem:[%s2801 + $0x62] sm:$0xff]
      %v3259 = vld [vmem:[%s2801 + $0x6a] sm:$0xff]
      %v3260 = vld [vmem:[%s2801 + $0x7a] sm:$0xff]
      %v3261 = vld [vmem:[%s2801 + $0x82] sm:$0xff]
      %v3262 = vld [vmem:[%s2801 + $0x92] sm:$0xff]
      %v3263 = vld [vmem:[%s2801 + $0x9a] sm:$0xff]
      %v3264 = vld [vmem:[%s2801 + $0xaa] sm:$0xff]
      %v3265 = vld [vmem:[%s2801 + $0xb2] sm:$0xff]
      %v3266 = vld [vmem:[%s2801 + $0xc2] sm:$0xff]
      %v3267 = vld [vmem:[%s2801 + $0xca] sm:$0xff]
      %v3268 = vld [vmem:[%s2801 + $0xda] sm:$0xff]
      %v3269 = vld [vmem:[%s2801 + $0xe2] sm:$0xff]
      %v3270 = vld [vmem:[%s2801 + $0xf2] sm:$0xff]
      %v3271 = vld [vmem:[%s2801 + $0xfa] sm:$0xff]
      %v3272 = vld [vmem:[%s2801 + $0x10a] sm:$0xff]
      %v3273 = vld [vmem:[%s2801 + $0x112] sm:$0xff]
      %v3274 = vld [vmem:[%s2801 + $0x122] sm:$0xff]
      %v3275 = vld [vmem:[%s2801 + $0x12a] sm:$0xff]
      %v3276 = vld [vmem:[%s2801 + $0x13a] sm:$0xff]
      %v3277 = vld [vmem:[%s2801 + $0x142] sm:$0xff]
      %v3278 = vld [vmem:[%s2801 + $0x152] sm:$0xff]
      %v3279 = vld [vmem:[%s2801 + $0x15a] sm:$0xff]
      %v3280 = vld [vmem:[%s2801 + $0x16a] sm:$0xff]
      %v3281 = vld [vmem:[%s2801 + $0x172] sm:$0xff]
      %v3282 = vpack.c.bf16 %v3250, %v3250
      %v3283 = vpack.c.bf16 %v3251, %v3251
      %v3284 = vpack.c.bf16 %v3252, %v3252
      %v3285 = vpack.c.bf16 %v3253, %v3253
      %v3286 = vpack.c.bf16 %v3254, %v3254
      %v3287 = vpack.c.bf16 %v3255, %v3255
      %v3288 = vpack.c.bf16 %v3256, %v3256
      %v3289 = vpack.c.bf16 %v3257, %v3257
      %v3290 = vpack.c.bf16 %v3258, %v3258
      %v3291 = vpack.c.bf16 %v3259, %v3259
      %v3292 = vpack.c.bf16 %v3260, %v3260
      %v3293 = vpack.c.bf16 %v3261, %v3261
      %v3294 = vpack.c.bf16 %v3262, %v3262
      %v3295 = vpack.c.bf16 %v3263, %v3263
      %v3296 = vpack.c.bf16 %v3264, %v3264
      %v3297 = vpack.c.bf16 %v3265, %v3265
      %v3298 = vpack.c.bf16 %v3266, %v3266
      %v3299 = vpack.c.bf16 %v3267, %v3267
      %v3300 = vpack.c.bf16 %v3268, %v3268
      %v3301 = vpack.c.bf16 %v3269, %v3269
      %v3302 = vpack.c.bf16 %v3270, %v3270
      %v3303 = vpack.c.bf16 %v3271, %v3271
      %v3304 = vpack.c.bf16 %v3272, %v3272
      %v3305 = vpack.c.bf16 %v3273, %v3273
      %v3306 = vpack.c.bf16 %v3274, %v3274
      %v3307 = vpack.c.bf16 %v3275, %v3275
      %v3308 = vpack.c.bf16 %v3276, %v3276
      %v3309 = vpack.c.bf16 %v3277, %v3277
      %v3310 = vpack.c.bf16 %v3278, %v3278
      %v3311 = vpack.c.bf16 %v3279, %v3279
      %v3312 = vpack.c.bf16 %v3280, %v3280
      %v3313 = vpack.c.bf16 %v3281, %v3281
      %3346 = vrot.lane.b32.xlu0 %v3282, 56
      %v3347 = vpop.permute.xlu0 %3346
      %3348 = vrot.lane.b32.xlu0 %v3283, 56
      %v3349 = vpop.permute.xlu0 %3348
      %3350 = vrot.lane.b32.xlu0 %v3284, 56
      %v3351 = vpop.permute.xlu0 %3350
      %3352 = vrot.lane.b32.xlu0 %v3285, 56
      %v3353 = vpop.permute.xlu0 %3352
      %3354 = vrot.lane.b32.xlu0 %v3286, 56
      %v3355 = vpop.permute.xlu0 %3354
      %3356 = vrot.lane.b32.xlu0 %v3287, 56
      %v3357 = vpop.permute.xlu0 %3356
      %3358 = vrot.lane.b32.xlu0 %v3288, 56
      %v3359 = vpop.permute.xlu0 %3358
      %3360 = vrot.lane.b32.xlu0 %v3289, 56
      %v3361 = vpop.permute.xlu0 %3360
      %3362 = vrot.lane.b32.xlu0 %v3290, 56
      %v3363 = vpop.permute.xlu0 %3362
      %3364 = vrot.lane.b32.xlu0 %v3291, 56
      %v3365 = vpop.permute.xlu0 %3364
      %3366 = vrot.lane.b32.xlu0 %v3292, 56
      %v3367 = vpop.permute.xlu0 %3366
      %3368 = vrot.lane.b32.xlu0 %v3293, 56
      %v3369 = vpop.permute.xlu0 %3368
      %3370 = vrot.lane.b32.xlu0 %v3294, 56
      %v3371 = vpop.permute.xlu0 %3370
      %3372 = vrot.lane.b32.xlu0 %v3295, 56
      %v3373 = vpop.permute.xlu0 %3372
      %3374 = vrot.lane.b32.xlu0 %v3296, 56
      %v3375 = vpop.permute.xlu0 %3374
      %3376 = vrot.lane.b32.xlu0 %v3297, 56
      %v3377 = vpop.permute.xlu0 %3376
      %3378 = vrot.lane.b32.xlu0 %v3298, 56
      %v3379 = vpop.permute.xlu0 %3378
      %3380 = vrot.lane.b32.xlu0 %v3299, 56
      %v3381 = vpop.permute.xlu0 %3380
      %3382 = vrot.lane.b32.xlu0 %v3300, 56
      %v3383 = vpop.permute.xlu0 %3382
      %3384 = vrot.lane.b32.xlu0 %v3301, 56
      %v3385 = vpop.permute.xlu0 %3384
      %3386 = vrot.lane.b32.xlu0 %v3302, 56
      %v3387 = vpop.permute.xlu0 %3386
      %3388 = vrot.lane.b32.xlu0 %v3303, 56
      %v3389 = vpop.permute.xlu0 %3388
      %3390 = vrot.lane.b32.xlu0 %v3304, 56
      %v3391 = vpop.permute.xlu0 %3390
      %3392 = vrot.lane.b32.xlu0 %v3305, 56
      %v3393 = vpop.permute.xlu0 %3392
      %3394 = vrot.lane.b32.xlu0 %v3306, 56
      %v3395 = vpop.permute.xlu0 %3394
      %3396 = vrot.lane.b32.xlu0 %v3307, 56
      %v3397 = vpop.permute.xlu0 %3396
      %3398 = vrot.lane.b32.xlu0 %v3308, 56
      %v3399 = vpop.permute.xlu0 %3398
      %3400 = vrot.lane.b32.xlu0 %v3309, 56
      %v3401 = vpop.permute.xlu0 %3400
      %3402 = vrot.lane.b32.xlu0 %v3310, 56
      %v3403 = vpop.permute.xlu0 %3402
      %3404 = vrot.lane.b32.xlu0 %v3311, 56
      %v3405 = vpop.permute.xlu0 %3404
      %3406 = vrot.lane.b32.xlu0 %v3312, 56
      %v3407 = vpop.permute.xlu0 %3406
      %3408 = vrot.lane.b32.xlu0 %v3313, 56
      %v3409 = vpop.permute.xlu0 %3408
      %3442 = vst.msk [vmem:[#allocation5] sm:$0xf] %vm1064, %v3347
      %3443 = vst.msk [vmem:[#allocation5 + $0x4] sm:$0xf] %vm1064, %v3349
      %3444 = vst.msk [vmem:[#allocation5 + $0x8] sm:$0xf] %vm1064, %v3351
      %3445 = vst.msk [vmem:[#allocation5 + $0xc] sm:$0xf] %vm1064, %v3353
      %3446 = vst.msk [vmem:[#allocation5 + $0x10] sm:$0xf] %vm1064, %v3355
      %3447 = vst.msk [vmem:[#allocation5 + $0x14] sm:$0xf] %vm1064, %v3357
      %3448 = vst.msk [vmem:[#allocation5 + $0x18] sm:$0xf] %vm1064, %v3359
      %3449 = vst.msk [vmem:[#allocation5 + $0x1c] sm:$0xf] %vm1064, %v3361
      %3450 = vst.msk [vmem:[#allocation5 + $0x20] sm:$0xf] %vm1064, %v3363
      %3451 = vst.msk [vmem:[#allocation5 + $0x24] sm:$0xf] %vm1064, %v3365
      %3452 = vst.msk [vmem:[#allocation5 + $0x28] sm:$0xf] %vm1064, %v3367
      %3453 = vst.msk [vmem:[#allocation5 + $0x2c] sm:$0xf] %vm1064, %v3369
      %3454 = vst.msk [vmem:[#allocation5 + $0x30] sm:$0xf] %vm1064, %v3371
      %3455 = vst.msk [vmem:[#allocation5 + $0x34] sm:$0xf] %vm1064, %v3373
      %3456 = vst.msk [vmem:[#allocation5 + $0x38] sm:$0xf] %vm1064, %v3375
      %3457 = vst.msk [vmem:[#allocation5 + $0x3c] sm:$0xf] %vm1064, %v3377
      %3458 = vst.msk [vmem:[#allocation5 + $0x40] sm:$0xf] %vm1064, %v3379
      %3459 = vst.msk [vmem:[#allocation5 + $0x44] sm:$0xf] %vm1064, %v3381
      %3460 = vst.msk [vmem:[#allocation5 + $0x48] sm:$0xf] %vm1064, %v3383
      %3461 = vst.msk [vmem:[#allocation5 + $0x4c] sm:$0xf] %vm1064, %v3385
      %3462 = vst.msk [vmem:[#allocation5 + $0x50] sm:$0xf] %vm1064, %v3387
      %3463 = vst.msk [vmem:[#allocation5 + $0x54] sm:$0xf] %vm1064, %v3389
      %3464 = vst.msk [vmem:[#allocation5 + $0x58] sm:$0xf] %vm1064, %v3391
      %3465 = vst.msk [vmem:[#allocation5 + $0x5c] sm:$0xf] %vm1064, %v3393
      %3466 = vst.msk [vmem:[#allocation5 + $0x60] sm:$0xf] %vm1064, %v3395
      %3467 = vst.msk [vmem:[#allocation5 + $0x64] sm:$0xf] %vm1064, %v3397
      %3468 = vst.msk [vmem:[#allocation5 + $0x68] sm:$0xf] %vm1064, %v3399
      %3469 = vst.msk [vmem:[#allocation5 + $0x6c] sm:$0xf] %vm1064, %v3401
      %3470 = vst.msk [vmem:[#allocation5 + $0x70] sm:$0xf] %vm1064, %v3403
      %3471 = vst.msk [vmem:[#allocation5 + $0x74] sm:$0xf] %vm1064, %v3405
      %3472 = vst.msk [vmem:[#allocation5 + $0x78] sm:$0xf] %vm1064, %v3407
      %3473 = vst.msk [vmem:[#allocation5 + $0x7c] sm:$0xf] %vm1064, %v3409
      %v3474 = vld [vmem:[#allocation5] sm:$0xf]
      %v3475 = vld [vmem:[#allocation5 + $0x4] sm:$0xf]
      %v3476 = vld [vmem:[#allocation5 + $0x8] sm:$0xf]
      %v3477 = vld [vmem:[#allocation5 + $0xc] sm:$0xf]
      %v3478 = vld [vmem:[#allocation5 + $0x10] sm:$0xf]
      %v3479 = vld [vmem:[#allocation5 + $0x14] sm:$0xf]
      %v3480 = vld [vmem:[#allocation5 + $0x18] sm:$0xf]
      %v3481 = vld [vmem:[#allocation5 + $0x1c] sm:$0xf]
      %v3482 = vld [vmem:[#allocation5 + $0x20] sm:$0xf]
      %v3483 = vld [vmem:[#allocation5 + $0x24] sm:$0xf]
      %v3484 = vld [vmem:[#allocation5 + $0x28] sm:$0xf]
      %v3485 = vld [vmem:[#allocation5 + $0x2c] sm:$0xf]
      %v3486 = vld [vmem:[#allocation5 + $0x30] sm:$0xf]
      %v3487 = vld [vmem:[#allocation5 + $0x34] sm:$0xf]
      %v3488 = vld [vmem:[#allocation5 + $0x38] sm:$0xf]
      %v3489 = vld [vmem:[#allocation5 + $0x3c] sm:$0xf]
      %v3490 = vld [vmem:[#allocation5 + $0x40] sm:$0xf]
      %v3491 = vld [vmem:[#allocation5 + $0x44] sm:$0xf]
      %v3492 = vld [vmem:[#allocation5 + $0x48] sm:$0xf]
      %v3493 = vld [vmem:[#allocation5 + $0x4c] sm:$0xf]
      %v3494 = vld [vmem:[#allocation5 + $0x50] sm:$0xf]
      %v3495 = vld [vmem:[#allocation5 + $0x54] sm:$0xf]
      %v3496 = vld [vmem:[#allocation5 + $0x58] sm:$0xf]
      %v3497 = vld [vmem:[#allocation5 + $0x5c] sm:$0xf]
      %v3498 = vld [vmem:[#allocation5 + $0x60] sm:$0xf]
      %v3499 = vld [vmem:[#allocation5 + $0x64] sm:$0xf]
      %v3500 = vld [vmem:[#allocation5 + $0x68] sm:$0xf]
      %v3501 = vld [vmem:[#allocation5 + $0x6c] sm:$0xf]
      %v3502 = vld [vmem:[#allocation5 + $0x70] sm:$0xf]
      %v3503 = vld [vmem:[#allocation5 + $0x74] sm:$0xf]
      %v3504 = vld [vmem:[#allocation5 + $0x78] sm:$0xf]
      %v3505 = vld [vmem:[#allocation5 + $0x7c] sm:$0xf]
      %v3506 = vld [vmem:[%s5] sm:$0xf]
      %v3507 = vld [vmem:[%s5 + $0x4] sm:$0xf]
      %v3508 = vld [vmem:[%s5 + $0x8] sm:$0xf]
      %v3509 = vld [vmem:[%s5 + $0xc] sm:$0xf]
      %v3510 = vld [vmem:[%s5 + $0x10] sm:$0xf]
      %v3511 = vld [vmem:[%s5 + $0x14] sm:$0xf]
      %v3512 = vld [vmem:[%s5 + $0x18] sm:$0xf]
      %v3513 = vld [vmem:[%s5 + $0x1c] sm:$0xf]
      %v3515 = vperm.slane %v1584, 0
      %v3549 = vunpack.c.l.b16 %v3474
      %v3550 = vunpack.c.l.b16 %v3475
      %v3551 = vunpack.c.l.b16 %v3476
      %v3552 = vunpack.c.l.b16 %v3477
      %v3553 = vunpack.c.l.b16 %v3478
      %v3554 = vunpack.c.l.b16 %v3479
      %v3555 = vunpack.c.l.b16 %v3480
      %v3556 = vunpack.c.l.b16 %v3481
      %v3557 = vunpack.c.l.b16 %v3482
      %v3558 = vunpack.c.l.b16 %v3483
      %v3559 = vunpack.c.l.b16 %v3484
      %v3560 = vunpack.c.l.b16 %v3485
      %v3561 = vunpack.c.l.b16 %v3486
      %v3562 = vunpack.c.l.b16 %v3487
      %v3563 = vunpack.c.l.b16 %v3488
      %v3564 = vunpack.c.l.b16 %v3489
      %v3565 = vunpack.c.l.b16 %v3490
      %v3566 = vunpack.c.l.b16 %v3491
      %v3567 = vunpack.c.l.b16 %v3492
      %v3568 = vunpack.c.l.b16 %v3493
      %v3569 = vunpack.c.l.b16 %v3494
      %v3570 = vunpack.c.l.b16 %v3495
      %v3571 = vunpack.c.l.b16 %v3496
      %v3572 = vunpack.c.l.b16 %v3497
      %v3573 = vunpack.c.l.b16 %v3498
      %v3574 = vunpack.c.l.b16 %v3499
      %v3575 = vunpack.c.l.b16 %v3500
      %v3576 = vunpack.c.l.b16 %v3501
      %v3577 = vunpack.c.l.b16 %v3502
      %v3578 = vunpack.c.l.b16 %v3503
      %v3579 = vunpack.c.l.b16 %v3504
      %v3580 = vunpack.c.l.b16 %v3505
      %v3581 = vpack.c.b16 %v3550, %v3549
      %v3582 = vpack.c.b16 %v3552, %v3551
      %v3583 = vpack.c.b16 %v3554, %v3553
      %v3584 = vpack.c.b16 %v3556, %v3555
      %v3585 = vpack.c.b16 %v3558, %v3557
      %v3586 = vpack.c.b16 %v3560, %v3559
      %v3587 = vpack.c.b16 %v3562, %v3561
      %v3588 = vpack.c.b16 %v3564, %v3563
      %v3589 = vpack.c.b16 %v3566, %v3565
      %v3590 = vpack.c.b16 %v3568, %v3567
      %v3591 = vpack.c.b16 %v3570, %v3569
      %v3592 = vpack.c.b16 %v3572, %v3571
      %v3593 = vpack.c.b16 %v3574, %v3573
      %v3594 = vpack.c.b16 %v3576, %v3575
      %v3595 = vpack.c.b16 %v3578, %v3577
      %v3596 = vpack.c.b16 %v3580, %v3579
      %v3605 = vunpack.c.l.b16 %v3506
      %v3606 = vunpack.c.l.b16 %v3507
      %v3607 = vunpack.c.l.b16 %v3508
      %v3608 = vunpack.c.l.b16 %v3509
      %v3609 = vunpack.c.l.b16 %v3510
      %v3610 = vunpack.c.l.b16 %v3511
      %v3611 = vunpack.c.l.b16 %v3512
      %v3612 = vunpack.c.l.b16 %v3513
      %v3613 = vpack.c.b16 %v3606, %v3605
      %v3614 = vpack.c.b16 %v3608, %v3607
      %v3615 = vpack.c.b16 %v3610, %v3609
      %v3616 = vpack.c.b16 %v3612, %v3611
      %v3621 = vsel %vm1135, %v3581, 0
      %v3624 = vsel %vm1135, %v3582, 0
      %v3627 = vsel %vm1135, %v3583, 0
      %v3630 = vsel %vm1135, %v3584, 0
      %v3633 = vsel %vm1135, %v3585, 0
      %v3636 = vsel %vm1135, %v3586, 0
      %v3639 = vsel %vm1135, %v3587, 0
      %v3642 = vsel %vm1135, %v3588, 0
      %v3645 = vsel %vm1135, %v3589, 0
      %v3648 = vsel %vm1135, %v3590, 0
      %v3651 = vsel %vm1135, %v3591, 0
      %v3654 = vsel %vm1135, %v3592, 0
      %v3657 = vsel %vm1135, %v3593, 0
      %v3660 = vsel %vm1135, %v3594, 0
      %v3663 = vsel %vm1135, %v3595, 0
      %v3666 = vsel %vm1135, %v3596, 0
      %v3669 = vand.u32 %v3616, %v1151
      %3671 = vmatpush.bf16.msra.mxu0 0
      %3672 = vmatpush.bf16.msra.mxu0 0
      %3673 = vmatpush.bf16.msra.mxu0 0
      %3674 = vmatpush.bf16.msra.mxu0 0
      %3675 = vmatpush.bf16.msra.mxu0 %v3669
      %3676 = vmatpush.bf16.msra.mxu0 %v3615
      %3677 = vmatpush.bf16.msra.mxu0 %v3614
      %3678 = vmatpush.bf16.msra.mxu0 %v3613
      %3679 = vmatmul.bf16.gmra.mxu0 %v3621
      %v3680 = vpop.f32.mrf.mxu0
      %v3681 = vadd.f32 %v3515, %v3680
      %v3682 = vpop.f32.mrf.mxu0
      %v3683 = vadd.f32 %v3515, %v3682
      %3684 = vmatmul.bf16.gmra.mxu0 %v3624
      %v3685 = vpop.f32.mrf.mxu0
      %v3686 = vadd.f32 %v3515, %v3685
      %v3687 = vpop.f32.mrf.mxu0
      %v3688 = vadd.f32 %v3515, %v3687
      %3689 = vmatmul.bf16.gmra.mxu0 %v3627
      %v3690 = vpop.f32.mrf.mxu0
      %v3691 = vadd.f32 %v3515, %v3690
      %v3692 = vpop.f32.mrf.mxu0
      %v3693 = vadd.f32 %v3515, %v3692
      %3694 = vmatmul.bf16.gmra.mxu0 %v3630
      %v3695 = vpop.f32.mrf.mxu0
      %v3696 = vadd.f32 %v3515, %v3695
      %v3697 = vpop.f32.mrf.mxu0
      %v3698 = vadd.f32 %v3515, %v3697
      %3699 = vmatmul.bf16.gmra.mxu0 %v3633
      %v3700 = vpop.f32.mrf.mxu0
      %v3701 = vadd.f32 %v3515, %v3700
      %v3702 = vpop.f32.mrf.mxu0
      %v3703 = vadd.f32 %v3515, %v3702
      %3704 = vmatmul.bf16.gmra.mxu0 %v3636
      %v3705 = vpop.f32.mrf.mxu0
      %v3706 = vadd.f32 %v3515, %v3705
      %v3707 = vpop.f32.mrf.mxu0
      %v3708 = vadd.f32 %v3515, %v3707
      %3709 = vmatmul.bf16.gmra.mxu0 %v3639
      %v3710 = vpop.f32.mrf.mxu0
      %v3711 = vadd.f32 %v3515, %v3710
      %v3712 = vpop.f32.mrf.mxu0
      %v3713 = vadd.f32 %v3515, %v3712
      %3714 = vmatmul.bf16.gmra.mxu0 %v3642
      %v3715 = vpop.f32.mrf.mxu0
      %v3716 = vadd.f32 %v3515, %v3715
      %v3717 = vpop.f32.mrf.mxu0
      %v3718 = vadd.f32 %v3515, %v3717
      %3719 = vmatmul.bf16.gmra.mxu0 %v3645
      %v3720 = vpop.f32.mrf.mxu0
      %v3721 = vadd.f32 %v3515, %v3720
      %v3722 = vpop.f32.mrf.mxu0
      %v3723 = vadd.f32 %v3515, %v3722
      %3724 = vmatmul.bf16.gmra.mxu0 %v3648
      %v3725 = vpop.f32.mrf.mxu0
      %v3726 = vadd.f32 %v3515, %v3725
      %v3727 = vpop.f32.mrf.mxu0
      %v3728 = vadd.f32 %v3515, %v3727
      %3729 = vmatmul.bf16.gmra.mxu0 %v3651
      %v3730 = vpop.f32.mrf.mxu0
      %v3731 = vadd.f32 %v3515, %v3730
      %v3732 = vpop.f32.mrf.mxu0
      %v3733 = vadd.f32 %v3515, %v3732
      %3734 = vmatmul.bf16.gmra.mxu0 %v3654
      %v3735 = vpop.f32.mrf.mxu0
      %v3736 = vadd.f32 %v3515, %v3735
      %v3737 = vpop.f32.mrf.mxu0
      %v3738 = vadd.f32 %v3515, %v3737
      %3739 = vmatmul.bf16.gmra.mxu0 %v3657
      %v3740 = vpop.f32.mrf.mxu0
      %v3741 = vadd.f32 %v3515, %v3740
      %v3742 = vpop.f32.mrf.mxu0
      %v3743 = vadd.f32 %v3515, %v3742
      %3744 = vmatmul.bf16.gmra.mxu0 %v3660
      %v3745 = vpop.f32.mrf.mxu0
      %v3746 = vadd.f32 %v3515, %v3745
      %v3747 = vpop.f32.mrf.mxu0
      %v3748 = vadd.f32 %v3515, %v3747
      %3749 = vmatmul.bf16.gmra.mxu0 %v3663
      %v3750 = vpop.f32.mrf.mxu0
      %v3751 = vadd.f32 %v3515, %v3750
      %v3752 = vpop.f32.mrf.mxu0
      %v3753 = vadd.f32 %v3515, %v3752
      %3754 = vmatmul.bf16.gmra.mxu0 %v3666
      %v3755 = vpop.f32.mrf.mxu0
      %v3756 = vadd.f32 %v3515, %v3755
      %v3757 = vpop.f32.mrf.mxu0
      %v3758 = vadd.f32 %v3515, %v3757
      %3759 = vdwg.mxu0
      %v3760 = vmax.f32 %v3681, 0.0
      %v3761 = vmax.f32 %v3683, 0.0
      %v3762 = vmax.f32 %v3686, 0.0
      %v3763 = vmax.f32 %v3688, 0.0
      %v3764 = vmax.f32 %v3691, 0.0
      %v3765 = vmax.f32 %v3693, 0.0
      %v3766 = vmax.f32 %v3696, 0.0
      %v3767 = vmax.f32 %v3698, 0.0
      %v3768 = vmax.f32 %v3701, 0.0
      %v3769 = vmax.f32 %v3703, 0.0
      %v3770 = vmax.f32 %v3706, 0.0
      %v3771 = vmax.f32 %v3708, 0.0
      %v3772 = vmax.f32 %v3711, 0.0
      %v3773 = vmax.f32 %v3713, 0.0
      %v3774 = vmax.f32 %v3716, 0.0
      %v3775 = vmax.f32 %v3718, 0.0
      %v3776 = vmax.f32 %v3721, 0.0
      %v3777 = vmax.f32 %v3723, 0.0
      %v3778 = vmax.f32 %v3726, 0.0
      %v3779 = vmax.f32 %v3728, 0.0
      %v3780 = vmax.f32 %v3731, 0.0
      %v3781 = vmax.f32 %v3733, 0.0
      %v3782 = vmax.f32 %v3736, 0.0
      %v3783 = vmax.f32 %v3738, 0.0
      %v3784 = vmax.f32 %v3741, 0.0
      %v3785 = vmax.f32 %v3743, 0.0
      %v3786 = vmax.f32 %v3746, 0.0
      %v3787 = vmax.f32 %v3748, 0.0
      %v3788 = vmax.f32 %v3751, 0.0
      %v3789 = vmax.f32 %v3753, 0.0
      %v3790 = vmax.f32 %v3756, 0.0
      %v3791 = vmax.f32 %v3758, 0.0
      %3792 = vst [vmem:[#allocation4] sm:$0xff] 0.0
      %3793 = vst [vmem:[#allocation4 + $0x8] sm:$0xff] 0.0
      %3794 = vst [vmem:[#allocation4 + $0x10] sm:$0x3] 0.0
      %s3795 = scalar_lea.vmem [#allocation4], 408
      %3796 = vst [vmem:[%s3795] sm:$0xff] 0.0
      %3797 = vst [vmem:[%s3795 + $0x8] sm:$0xff] 0.0
      %3798 = vst [vmem:[%s3795 + $0x10] sm:$0x3] 0.0
      %3799 = vst [vmem:[#allocation4] sm:$0x1] 0.0
      %3800 = vst [vmem:[#allocation4 + $0x18] sm:$0x1] 0.0
      %3801 = vst [vmem:[#allocation4 + $0x30] sm:$0x1] 0.0
      %3802 = vst [vmem:[#allocation4 + $0x48] sm:$0x1] 0.0
      %3803 = vst [vmem:[#allocation4 + $0x60] sm:$0x1] 0.0
      %3804 = vst [vmem:[#allocation4 + $0x78] sm:$0x1] 0.0
      %3805 = vst [vmem:[#allocation4 + $0x90] sm:$0x1] 0.0
      %3806 = vst [vmem:[#allocation4 + $0xa8] sm:$0x1] 0.0
      %3807 = vst [vmem:[#allocation4 + $0xc0] sm:$0x1] 0.0
      %3808 = vst [vmem:[#allocation4 + $0xd8] sm:$0x1] 0.0
      %3809 = vst [vmem:[#allocation4 + $0xf0] sm:$0x1] 0.0
      %3810 = vst [vmem:[#allocation4 + $0x108] sm:$0x1] 0.0
      %3811 = vst [vmem:[#allocation4 + $0x120] sm:$0x1] 0.0
      %3812 = vst [vmem:[#allocation4 + $0x138] sm:$0x1] 0.0
      %3813 = vst [vmem:[#allocation4 + $0x150] sm:$0x1] 0.0
      %3814 = vst [vmem:[#allocation4 + $0x168] sm:$0x1] 0.0
      %3815 = vst [vmem:[#allocation4 + $0x180] sm:$0x1] 0.0
      %3816 = vst [vmem:[#allocation4 + $0x198] sm:$0x1] 0.0
      %3817 = vst [vmem:[#allocation4 + $0x11] sm:$0x1] 0.0
      %3818 = vst [vmem:[#allocation4 + $0x29] sm:$0x1] 0.0
      %3819 = vst [vmem:[#allocation4 + $0x41] sm:$0x1] 0.0
      %3820 = vst [vmem:[#allocation4 + $0x59] sm:$0x1] 0.0
      %3821 = vst [vmem:[#allocation4 + $0x71] sm:$0x1] 0.0
      %3822 = vst [vmem:[#allocation4 + $0x89] sm:$0x1] 0.0
      %3823 = vst [vmem:[#allocation4 + $0xa1] sm:$0x1] 0.0
      %3824 = vst [vmem:[#allocation4 + $0xb9] sm:$0x1] 0.0
      %3825 = vst [vmem:[#allocation4 + $0xd1] sm:$0x1] 0.0
      %3826 = vst [vmem:[#allocation4 + $0xe9] sm:$0x1] 0.0
      %3827 = vst [vmem:[#allocation4 + $0x101] sm:$0x1] 0.0
      %3828 = vst [vmem:[#allocation4 + $0x119] sm:$0x1] 0.0
      %3829 = vst [vmem:[#allocation4 + $0x131] sm:$0x1] 0.0
      %3830 = vst [vmem:[#allocation4 + $0x149] sm:$0x1] 0.0
      %3831 = vst [vmem:[#allocation4 + $0x161] sm:$0x1] 0.0
      %3832 = vst [vmem:[#allocation4 + $0x179] sm:$0x1] 0.0
      %3833 = vst [vmem:[#allocation4 + $0x191] sm:$0x1] 0.0
      %3834 = vst [vmem:[#allocation4 + $0x1a9] sm:$0x1] 0.0
      %s3835 = scalar_lea.vmem [#allocation4], 24
      %3836 = vst [vmem:[%s3835 + $0x1] sm:$0xff] %v3760
      %3837 = vst [vmem:[%s3835 + $0x9] sm:$0xff] %v3761
      %3838 = vst [vmem:[%s3835 + $0x19] sm:$0xff] %v3762
      %3839 = vst [vmem:[%s3835 + $0x21] sm:$0xff] %v3763
      %3840 = vst [vmem:[%s3835 + $0x31] sm:$0xff] %v3764
      %3841 = vst [vmem:[%s3835 + $0x39] sm:$0xff] %v3765
      %3842 = vst [vmem:[%s3835 + $0x49] sm:$0xff] %v3766
      %3843 = vst [vmem:[%s3835 + $0x51] sm:$0xff] %v3767
      %3844 = vst [vmem:[%s3835 + $0x61] sm:$0xff] %v3768
      %3845 = vst [vmem:[%s3835 + $0x69] sm:$0xff] %v3769
      %3846 = vst [vmem:[%s3835 + $0x79] sm:$0xff] %v3770
      %3847 = vst [vmem:[%s3835 + $0x81] sm:$0xff] %v3771
      %3848 = vst [vmem:[%s3835 + $0x91] sm:$0xff] %v3772
      %3849 = vst [vmem:[%s3835 + $0x99] sm:$0xff] %v3773
      %3850 = vst [vmem:[%s3835 + $0xa9] sm:$0xff] %v3774
      %3851 = vst [vmem:[%s3835 + $0xb1] sm:$0xff] %v3775
      %3852 = vst [vmem:[%s3835 + $0xc1] sm:$0xff] %v3776
      %3853 = vst [vmem:[%s3835 + $0xc9] sm:$0xff] %v3777
      %3854 = vst [vmem:[%s3835 + $0xd9] sm:$0xff] %v3778
      %3855 = vst [vmem:[%s3835 + $0xe1] sm:$0xff] %v3779
      %3856 = vst [vmem:[%s3835 + $0xf1] sm:$0xff] %v3780
      %3857 = vst [vmem:[%s3835 + $0xf9] sm:$0xff] %v3781
      %3858 = vst [vmem:[%s3835 + $0x109] sm:$0xff] %v3782
      %3859 = vst [vmem:[%s3835 + $0x111] sm:$0xff] %v3783
      %3860 = vst [vmem:[%s3835 + $0x121] sm:$0xff] %v3784
      %3861 = vst [vmem:[%s3835 + $0x129] sm:$0xff] %v3785
      %3862 = vst [vmem:[%s3835 + $0x139] sm:$0xff] %v3786
      %3863 = vst [vmem:[%s3835 + $0x141] sm:$0xff] %v3787
      %3864 = vst [vmem:[%s3835 + $0x151] sm:$0xff] %v3788
      %3865 = vst [vmem:[%s3835 + $0x159] sm:$0xff] %v3789
      %3866 = vst [vmem:[%s3835 + $0x169] sm:$0xff] %v3790
      %3867 = vst [vmem:[%s3835 + $0x171] sm:$0xff] %v3791
      %v3868 = vld [vmem:[#allocation4] sm:$0xff]
      %v3869 = vld [vmem:[#allocation4 + $0x8] sm:$0xff]
      %v3870 = vld [vmem:[#allocation4 + $0x18] sm:$0xff]
      %v3871 = vld [vmem:[#allocation4 + $0x20] sm:$0xff]
      %v3872 = vld [vmem:[#allocation4 + $0x30] sm:$0xff]
      %v3873 = vld [vmem:[#allocation4 + $0x38] sm:$0xff]
      %v3874 = vld [vmem:[#allocation4 + $0x48] sm:$0xff]
      %v3875 = vld [vmem:[#allocation4 + $0x50] sm:$0xff]
      %v3876 = vld [vmem:[#allocation4 + $0x60] sm:$0xff]
      %v3877 = vld [vmem:[#allocation4 + $0x68] sm:$0xff]
      %v3878 = vld [vmem:[#allocation4 + $0x78] sm:$0xff]
      %v3879 = vld [vmem:[#allocation4 + $0x80] sm:$0xff]
      %v3880 = vld [vmem:[#allocation4 + $0x90] sm:$0xff]
      %v3881 = vld [vmem:[#allocation4 + $0x98] sm:$0xff]
      %v3882 = vld [vmem:[#allocation4 + $0xa8] sm:$0xff]
      %v3883 = vld [vmem:[#allocation4 + $0xb0] sm:$0xff]
      %v3884 = vld [vmem:[#allocation4 + $0xc0] sm:$0xff]
      %v3885 = vld [vmem:[#allocation4 + $0xc8] sm:$0xff]
      %v3886 = vld [vmem:[#allocation4 + $0xd8] sm:$0xff]
      %v3887 = vld [vmem:[#allocation4 + $0xe0] sm:$0xff]
      %v3888 = vld [vmem:[#allocation4 + $0xf0] sm:$0xff]
      %v3889 = vld [vmem:[#allocation4 + $0xf8] sm:$0xff]
      %v3890 = vld [vmem:[#allocation4 + $0x108] sm:$0xff]
      %v3891 = vld [vmem:[#allocation4 + $0x110] sm:$0xff]
      %v3892 = vld [vmem:[#allocation4 + $0x120] sm:$0xff]
      %v3893 = vld [vmem:[#allocation4 + $0x128] sm:$0xff]
      %v3894 = vld [vmem:[#allocation4 + $0x138] sm:$0xff]
      %v3895 = vld [vmem:[#allocation4 + $0x140] sm:$0xff]
      %v3896 = vld [vmem:[#allocation4 + $0x150] sm:$0xff]
      %v3897 = vld [vmem:[#allocation4 + $0x158] sm:$0xff]
      %v3898 = vld [vmem:[#allocation4 + $0x168] sm:$0xff]
      %v3899 = vld [vmem:[#allocation4 + $0x170] sm:$0xff]
      %v3900 = vpack.c.bf16 %v3869, %v3868
      %v3901 = vpack.c.bf16 %v3871, %v3870
      %v3902 = vpack.c.bf16 %v3873, %v3872
      %v3903 = vpack.c.bf16 %v3875, %v3874
      %v3904 = vpack.c.bf16 %v3877, %v3876
      %v3905 = vpack.c.bf16 %v3879, %v3878
      %v3906 = vpack.c.bf16 %v3881, %v3880
      %v3907 = vpack.c.bf16 %v3883, %v3882
      %v3908 = vpack.c.bf16 %v3885, %v3884
      %v3909 = vpack.c.bf16 %v3887, %v3886
      %v3910 = vpack.c.bf16 %v3889, %v3888
      %v3911 = vpack.c.bf16 %v3891, %v3890
      %v3912 = vpack.c.bf16 %v3893, %v3892
      %v3913 = vpack.c.bf16 %v3895, %v3894
      %v3914 = vpack.c.bf16 %v3897, %v3896
      %v3915 = vpack.c.bf16 %v3899, %v3898
      %v3916 = vld [vmem:[%s10] sm:$0xf]
      %v3917 = vld [vmem:[%s10 + $0x4] sm:$0xf]
      %v3918 = vld [vmem:[%s10 + $0x8] sm:$0xf]
      %v3919 = vld [vmem:[%s10 + $0xc] sm:$0xf]
      %v3920 = vld [vmem:[%s10 + $0x10] sm:$0xf]
      %v3921 = vld [vmem:[%s10 + $0x14] sm:$0xf]
      %v3922 = vld [vmem:[%s10 + $0x18] sm:$0xf]
      %v3923 = vld [vmem:[%s10 + $0x1c] sm:$0xf]
      %v3924 = vld [vmem:[%s10 + $0x20] sm:$0xf]
      %v3925 = vld [vmem:[%s10 + $0x24] sm:$0xf]
      %v3926 = vld [vmem:[%s10 + $0x28] sm:$0xf]
      %v3927 = vld [vmem:[%s10 + $0x2c] sm:$0xf]
      %v3928 = vld [vmem:[%s10 + $0x30] sm:$0xf]
      %v3929 = vld [vmem:[%s10 + $0x34] sm:$0xf]
      %v3930 = vld [vmem:[%s10 + $0x38] sm:$0xf]
      %v3931 = vld [vmem:[%s10 + $0x3c] sm:$0xf]
      %v3932 = vld [vmem:[#allocation4 + $0x1] sm:$0xff]
      %v3933 = vld [vmem:[#allocation4 + $0x9] sm:$0xff]
      %v3934 = vld [vmem:[#allocation4 + $0x19] sm:$0xff]
      %v3935 = vld [vmem:[#allocation4 + $0x21] sm:$0xff]
      %v3936 = vld [vmem:[#allocation4 + $0x31] sm:$0xff]
      %v3937 = vld [vmem:[#allocation4 + $0x39] sm:$0xff]
      %v3938 = vld [vmem:[#allocation4 + $0x49] sm:$0xff]
      %v3939 = vld [vmem:[#allocation4 + $0x51] sm:$0xff]
      %v3940 = vld [vmem:[#allocation4 + $0x61] sm:$0xff]
      %v3941 = vld [vmem:[#allocation4 + $0x69] sm:$0xff]
      %v3942 = vld [vmem:[#allocation4 + $0x79] sm:$0xff]
      %v3943 = vld [vmem:[#allocation4 + $0x81] sm:$0xff]
      %v3944 = vld [vmem:[#allocation4 + $0x91] sm:$0xff]
      %v3945 = vld [vmem:[#allocation4 + $0x99] sm:$0xff]
      %v3946 = vld [vmem:[#allocation4 + $0xa9] sm:$0xff]
      %v3947 = vld [vmem:[#allocation4 + $0xb1] sm:$0xff]
      %v3948 = vld [vmem:[#allocation4 + $0xc1] sm:$0xff]
      %v3949 = vld [vmem:[#allocation4 + $0xc9] sm:$0xff]
      %v3950 = vld [vmem:[#allocation4 + $0xd9] sm:$0xff]
      %v3951 = vld [vmem:[#allocation4 + $0xe1] sm:$0xff]
      %v3952 = vld [vmem:[#allocation4 + $0xf1] sm:$0xff]
      %v3953 = vld [vmem:[#allocation4 + $0xf9] sm:$0xff]
      %v3954 = vld [vmem:[#allocation4 + $0x109] sm:$0xff]
      %v3955 = vld [vmem:[#allocation4 + $0x111] sm:$0xff]
      %v3956 = vld [vmem:[#allocation4 + $0x121] sm:$0xff]
      %v3957 = vld [vmem:[#allocation4 + $0x129] sm:$0xff]
      %v3958 = vld [vmem:[#allocation4 + $0x139] sm:$0xff]
      %v3959 = vld [vmem:[#allocation4 + $0x141] sm:$0xff]
      %v3960 = vld [vmem:[#allocation4 + $0x151] sm:$0xff]
      %v3961 = vld [vmem:[#allocation4 + $0x159] sm:$0xff]
      %v3962 = vld [vmem:[#allocation4 + $0x169] sm:$0xff]
      %v3963 = vld [vmem:[#allocation4 + $0x171] sm:$0xff]
      %v3964 = vpack.c.bf16 %v3933, %v3932
      %v3965 = vpack.c.bf16 %v3935, %v3934
      %v3966 = vpack.c.bf16 %v3937, %v3936
      %v3967 = vpack.c.bf16 %v3939, %v3938
      %v3968 = vpack.c.bf16 %v3941, %v3940
      %v3969 = vpack.c.bf16 %v3943, %v3942
      %v3970 = vpack.c.bf16 %v3945, %v3944
      %v3971 = vpack.c.bf16 %v3947, %v3946
      %v3972 = vpack.c.bf16 %v3949, %v3948
      %v3973 = vpack.c.bf16 %v3951, %v3950
      %v3974 = vpack.c.bf16 %v3953, %v3952
      %v3975 = vpack.c.bf16 %v3955, %v3954
      %v3976 = vpack.c.bf16 %v3957, %v3956
      %v3977 = vpack.c.bf16 %v3959, %v3958
      %v3978 = vpack.c.bf16 %v3961, %v3960
      %v3979 = vpack.c.bf16 %v3963, %v3962
      %v3980 = vld [vmem:[%s10 + $0x40] sm:$0xf]
      %v3981 = vld [vmem:[%s10 + $0x44] sm:$0xf]
      %v3982 = vld [vmem:[%s10 + $0x48] sm:$0xf]
      %v3983 = vld [vmem:[%s10 + $0x4c] sm:$0xf]
      %v3984 = vld [vmem:[%s10 + $0x50] sm:$0xf]
      %v3985 = vld [vmem:[%s10 + $0x54] sm:$0xf]
      %v3986 = vld [vmem:[%s10 + $0x58] sm:$0xf]
      %v3987 = vld [vmem:[%s10 + $0x5c] sm:$0xf]
      %v3988 = vld [vmem:[%s10 + $0x60] sm:$0xf]
      %v3989 = vld [vmem:[%s10 + $0x64] sm:$0xf]
      %v3990 = vld [vmem:[%s10 + $0x68] sm:$0xf]
      %v3991 = vld [vmem:[%s10 + $0x6c] sm:$0xf]
      %v3992 = vld [vmem:[%s10 + $0x70] sm:$0xf]
      %v3993 = vld [vmem:[%s10 + $0x74] sm:$0xf]
      %v3994 = vld [vmem:[%s10 + $0x78] sm:$0xf]
      %v3995 = vld [vmem:[%s10 + $0x7c] sm:$0xf]
      %v4012 = vunpack.c.l.b16 %v3980
      %v4013 = vunpack.c.l.b16 %v3981
      %v4014 = vunpack.c.l.b16 %v3982
      %v4015 = vunpack.c.l.b16 %v3983
      %v4016 = vunpack.c.l.b16 %v3984
      %v4017 = vunpack.c.l.b16 %v3985
      %v4018 = vunpack.c.l.b16 %v3986
      %v4019 = vunpack.c.l.b16 %v3987
      %v4020 = vunpack.c.l.b16 %v3988
      %v4021 = vunpack.c.l.b16 %v3989
      %v4022 = vunpack.c.l.b16 %v3990
      %v4023 = vunpack.c.l.b16 %v3991
      %v4024 = vunpack.c.l.b16 %v3992
      %v4025 = vunpack.c.l.b16 %v3993
      %v4026 = vunpack.c.l.b16 %v3994
      %v4027 = vunpack.c.l.b16 %v3995
      %v4028 = vpack.c.b16 %v4013, %v4012
      %v4029 = vpack.c.b16 %v4015, %v4014
      %v4030 = vpack.c.b16 %v4017, %v4016
      %v4031 = vpack.c.b16 %v4019, %v4018
      %v4032 = vpack.c.b16 %v4021, %v4020
      %v4033 = vpack.c.b16 %v4023, %v4022
      %v4034 = vpack.c.b16 %v4025, %v4024
      %v4035 = vpack.c.b16 %v4027, %v4026
      %4044 = vmatpush.bf16.msra.mxu0 %v4035
      %4045 = vmatpush.bf16.msra.mxu0 %v4034
      %4046 = vmatpush.bf16.msra.mxu0 %v4033
      %4047 = vmatpush.bf16.msra.mxu0 %v4032
      %4048 = vmatpush.bf16.msra.mxu0 %v4031
      %4049 = vmatpush.bf16.msra.mxu0 %v4030
      %4050 = vmatpush.bf16.msra.mxu0 %v4029
      %4051 = vmatpush.bf16.msra.mxu0 %v4028
      %4052 = vmatmul.bf16.gmra.mxu0 %v3964
      %v4053 = vpop.f32.mrf.mxu0
      %v4054 = vadd.f32 0.0, %v4053
      %v4055 = vpop.f32.mrf.mxu0
      %v4056 = vadd.f32 0.0, %v4055
      %4057 = vmatmul.bf16.gmra.mxu0 %v3965
      %v4058 = vpop.f32.mrf.mxu0
      %v4059 = vadd.f32 0.0, %v4058
      %v4060 = vpop.f32.mrf.mxu0
      %v4061 = vadd.f32 0.0, %v4060
      %4062 = vmatmul.bf16.gmra.mxu0 %v3966
      %v4063 = vpop.f32.mrf.mxu0
      %v4064 = vadd.f32 0.0, %v4063
      %v4065 = vpop.f32.mrf.mxu0
      %v4066 = vadd.f32 0.0, %v4065
      %4067 = vmatmul.bf16.gmra.mxu0 %v3967
      %v4068 = vpop.f32.mrf.mxu0
      %v4069 = vadd.f32 0.0, %v4068
      %v4070 = vpop.f32.mrf.mxu0
      %v4071 = vadd.f32 0.0, %v4070
      %4072 = vmatmul.bf16.gmra.mxu0 %v3968
      %v4073 = vpop.f32.mrf.mxu0
      %v4074 = vadd.f32 0.0, %v4073
      %v4075 = vpop.f32.mrf.mxu0
      %v4076 = vadd.f32 0.0, %v4075
      %4077 = vmatmul.bf16.gmra.mxu0 %v3969
      %v4078 = vpop.f32.mrf.mxu0
      %v4079 = vadd.f32 0.0, %v4078
      %v4080 = vpop.f32.mrf.mxu0
      %v4081 = vadd.f32 0.0, %v4080
      %4082 = vmatmul.bf16.gmra.mxu0 %v3970
      %v4083 = vpop.f32.mrf.mxu0
      %v4084 = vadd.f32 0.0, %v4083
      %v4085 = vpop.f32.mrf.mxu0
      %v4086 = vadd.f32 0.0, %v4085
      %4087 = vmatmul.bf16.gmra.mxu0 %v3971
      %v4088 = vpop.f32.mrf.mxu0
      %v4089 = vadd.f32 0.0, %v4088
      %v4090 = vpop.f32.mrf.mxu0
      %v4091 = vadd.f32 0.0, %v4090
      %4092 = vmatmul.bf16.gmra.mxu0 %v3972
      %v4093 = vpop.f32.mrf.mxu0
      %v4094 = vadd.f32 0.0, %v4093
      %v4095 = vpop.f32.mrf.mxu0
      %v4096 = vadd.f32 0.0, %v4095
      %4097 = vmatmul.bf16.gmra.mxu0 %v3973
      %v4098 = vpop.f32.mrf.mxu0
      %v4099 = vadd.f32 0.0, %v4098
      %v4100 = vpop.f32.mrf.mxu0
      %v4101 = vadd.f32 0.0, %v4100
      %4102 = vmatmul.bf16.gmra.mxu0 %v3974
      %v4103 = vpop.f32.mrf.mxu0
      %v4104 = vadd.f32 0.0, %v4103
      %v4105 = vpop.f32.mrf.mxu0
      %v4106 = vadd.f32 0.0, %v4105
      %4107 = vmatmul.bf16.gmra.mxu0 %v3975
      %v4108 = vpop.f32.mrf.mxu0
      %v4109 = vadd.f32 0.0, %v4108
      %v4110 = vpop.f32.mrf.mxu0
      %v4111 = vadd.f32 0.0, %v4110
      %4112 = vmatmul.bf16.gmra.mxu0 %v3976
      %v4113 = vpop.f32.mrf.mxu0
      %v4114 = vadd.f32 0.0, %v4113
      %v4115 = vpop.f32.mrf.mxu0
      %v4116 = vadd.f32 0.0, %v4115
      %4117 = vmatmul.bf16.gmra.mxu0 %v3977
      %v4118 = vpop.f32.mrf.mxu0
      %v4119 = vadd.f32 0.0, %v4118
      %v4120 = vpop.f32.mrf.mxu0
      %v4121 = vadd.f32 0.0, %v4120
      %4122 = vmatmul.bf16.gmra.mxu0 %v3978
      %v4123 = vpop.f32.mrf.mxu0
      %v4124 = vadd.f32 0.0, %v4123
      %v4125 = vpop.f32.mrf.mxu0
      %v4126 = vadd.f32 0.0, %v4125
      %4127 = vmatmul.bf16.gmra.mxu0 %v3979
      %v4128 = vpop.f32.mrf.mxu0
      %v4129 = vadd.f32 0.0, %v4128
      %v4130 = vpop.f32.mrf.mxu0
      %v4131 = vadd.f32 0.0, %v4130
      %4132 = vdwg.mxu0
      %v4149 = vunpack.c.l.b16 %v3916
      %v4150 = vunpack.c.l.b16 %v3917
      %v4151 = vunpack.c.l.b16 %v3918
      %v4152 = vunpack.c.l.b16 %v3919
      %v4153 = vunpack.c.l.b16 %v3920
      %v4154 = vunpack.c.l.b16 %v3921
      %v4155 = vunpack.c.l.b16 %v3922
      %v4156 = vunpack.c.l.b16 %v3923
      %v4157 = vunpack.c.l.b16 %v3924
      %v4158 = vunpack.c.l.b16 %v3925
      %v4159 = vunpack.c.l.b16 %v3926
      %v4160 = vunpack.c.l.b16 %v3927
      %v4161 = vunpack.c.l.b16 %v3928
      %v4162 = vunpack.c.l.b16 %v3929
      %v4163 = vunpack.c.l.b16 %v3930
      %v4164 = vunpack.c.l.b16 %v3931
      %v4165 = vpack.c.b16 %v4150, %v4149
      %v4166 = vpack.c.b16 %v4152, %v4151
      %v4167 = vpack.c.b16 %v4154, %v4153
      %v4168 = vpack.c.b16 %v4156, %v4155
      %v4169 = vpack.c.b16 %v4158, %v4157
      %v4170 = vpack.c.b16 %v4160, %v4159
      %v4171 = vpack.c.b16 %v4162, %v4161
      %v4172 = vpack.c.b16 %v4164, %v4163
      %4181 = vmatpush.bf16.msra.mxu0 %v4172
      %4182 = vmatpush.bf16.msra.mxu0 %v4171
      %4183 = vmatpush.bf16.msra.mxu0 %v4170
      %4184 = vmatpush.bf16.msra.mxu0 %v4169
      %4185 = vmatpush.bf16.msra.mxu0 %v4168
      %4186 = vmatpush.bf16.msra.mxu0 %v4167
      %4187 = vmatpush.bf16.msra.mxu0 %v4166
      %4188 = vmatpush.bf16.msra.mxu0 %v4165
      %4189 = vmatmul.bf16.gmra.mxu0 %v3900
      %v4190 = vpop.f32.mrf.mxu0
      %v4191 = vadd.f32 %v4054, %v4190
      %v4192 = vpop.f32.mrf.mxu0
      %v4193 = vadd.f32 %v4056, %v4192
      %4194 = vmatmul.bf16.gmra.mxu0 %v3901
      %v4195 = vpop.f32.mrf.mxu0
      %v4196 = vadd.f32 %v4059, %v4195
      %v4197 = vpop.f32.mrf.mxu0
      %v4198 = vadd.f32 %v4061, %v4197
      %4199 = vmatmul.bf16.gmra.mxu0 %v3902
      %v4200 = vpop.f32.mrf.mxu0
      %v4201 = vadd.f32 %v4064, %v4200
      %v4202 = vpop.f32.mrf.mxu0
      %v4203 = vadd.f32 %v4066, %v4202
      %4204 = vmatmul.bf16.gmra.mxu0 %v3903
      %v4205 = vpop.f32.mrf.mxu0
      %v4206 = vadd.f32 %v4069, %v4205
      %v4207 = vpop.f32.mrf.mxu0
      %v4208 = vadd.f32 %v4071, %v4207
      %4209 = vmatmul.bf16.gmra.mxu0 %v3904
      %v4210 = vpop.f32.mrf.mxu0
      %v4211 = vadd.f32 %v4074, %v4210
      %v4212 = vpop.f32.mrf.mxu0
      %v4213 = vadd.f32 %v4076, %v4212
      %4214 = vmatmul.bf16.gmra.mxu0 %v3905
      %v4215 = vpop.f32.mrf.mxu0
      %v4216 = vadd.f32 %v4079, %v4215
      %v4217 = vpop.f32.mrf.mxu0
      %v4218 = vadd.f32 %v4081, %v4217
      %4219 = vmatmul.bf16.gmra.mxu0 %v3906
      %v4220 = vpop.f32.mrf.mxu0
      %v4221 = vadd.f32 %v4084, %v4220
      %v4222 = vpop.f32.mrf.mxu0
      %v4223 = vadd.f32 %v4086, %v4222
      %4224 = vmatmul.bf16.gmra.mxu0 %v3907
      %v4225 = vpop.f32.mrf.mxu0
      %v4226 = vadd.f32 %v4089, %v4225
      %v4227 = vpop.f32.mrf.mxu0
      %v4228 = vadd.f32 %v4091, %v4227
      %4229 = vmatmul.bf16.gmra.mxu0 %v3908
      %v4230 = vpop.f32.mrf.mxu0
      %v4231 = vadd.f32 %v4094, %v4230
      %v4232 = vpop.f32.mrf.mxu0
      %v4233 = vadd.f32 %v4096, %v4232
      %4234 = vmatmul.bf16.gmra.mxu0 %v3909
      %v4235 = vpop.f32.mrf.mxu0
      %v4236 = vadd.f32 %v4099, %v4235
      %v4237 = vpop.f32.mrf.mxu0
      %v4238 = vadd.f32 %v4101, %v4237
      %4239 = vmatmul.bf16.gmra.mxu0 %v3910
      %v4240 = vpop.f32.mrf.mxu0
      %v4241 = vadd.f32 %v4104, %v4240
      %v4242 = vpop.f32.mrf.mxu0
      %v4243 = vadd.f32 %v4106, %v4242
      %4244 = vmatmul.bf16.gmra.mxu0 %v3911
      %v4245 = vpop.f32.mrf.mxu0
      %v4246 = vadd.f32 %v4109, %v4245
      %v4247 = vpop.f32.mrf.mxu0
      %v4248 = vadd.f32 %v4111, %v4247
      %4249 = vmatmul.bf16.gmra.mxu0 %v3912
      %v4250 = vpop.f32.mrf.mxu0
      %v4251 = vadd.f32 %v4114, %v4250
      %v4252 = vpop.f32.mrf.mxu0
      %v4253 = vadd.f32 %v4116, %v4252
      %4254 = vmatmul.bf16.gmra.mxu0 %v3913
      %v4255 = vpop.f32.mrf.mxu0
      %v4256 = vadd.f32 %v4119, %v4255
      %v4257 = vpop.f32.mrf.mxu0
      %v4258 = vadd.f32 %v4121, %v4257
      %4259 = vmatmul.bf16.gmra.mxu0 %v3914
      %v4260 = vpop.f32.mrf.mxu0
      %v4261 = vadd.f32 %v4124, %v4260
      %v4262 = vpop.f32.mrf.mxu0
      %v4263 = vadd.f32 %v4126, %v4262
      %4264 = vmatmul.bf16.gmra.mxu0 %v3915
      %v4265 = vpop.f32.mrf.mxu0
      %v4266 = vadd.f32 %v4129, %v4265
      %v4267 = vpop.f32.mrf.mxu0
      %v4268 = vadd.f32 %v4131, %v4267
      %4269 = vdwg.mxu0
      %v4270 = vld [vmem:[#allocation4 + $0x2] sm:$0xff]
      %v4271 = vld [vmem:[#allocation4 + $0xa] sm:$0xff]
      %v4272 = vld [vmem:[#allocation4 + $0x1a] sm:$0xff]
      %v4273 = vld [vmem:[#allocation4 + $0x22] sm:$0xff]
      %v4274 = vld [vmem:[#allocation4 + $0x32] sm:$0xff]
      %v4275 = vld [vmem:[#allocation4 + $0x3a] sm:$0xff]
      %v4276 = vld [vmem:[#allocation4 + $0x4a] sm:$0xff]
      %v4277 = vld [vmem:[#allocation4 + $0x52] sm:$0xff]
      %v4278 = vld [vmem:[#allocation4 + $0x62] sm:$0xff]
      %v4279 = vld [vmem:[#allocation4 + $0x6a] sm:$0xff]
      %v4280 = vld [vmem:[#allocation4 + $0x7a] sm:$0xff]
      %v4281 = vld [vmem:[#allocation4 + $0x82] sm:$0xff]
      %v4282 = vld [vmem:[#allocation4 + $0x92] sm:$0xff]
      %v4283 = vld [vmem:[#allocation4 + $0x9a] sm:$0xff]
      %v4284 = vld [vmem:[#allocation4 + $0xaa] sm:$0xff]
      %v4285 = vld [vmem:[#allocation4 + $0xb2] sm:$0xff]
      %v4286 = vld [vmem:[#allocation4 + $0xc2] sm:$0xff]
      %v4287 = vld [vmem:[#allocation4 + $0xca] sm:$0xff]
      %v4288 = vld [vmem:[#allocation4 + $0xda] sm:$0xff]
      %v4289 = vld [vmem:[#allocation4 + $0xe2] sm:$0xff]
      %v4290 = vld [vmem:[#allocation4 + $0xf2] sm:$0xff]
      %v4291 = vld [vmem:[#allocation4 + $0xfa] sm:$0xff]
      %v4292 = vld [vmem:[#allocation4 + $0x10a] sm:$0xff]
      %v4293 = vld [vmem:[#allocation4 + $0x112] sm:$0xff]
      %v4294 = vld [vmem:[#allocation4 + $0x122] sm:$0xff]
      %v4295 = vld [vmem:[#allocation4 + $0x12a] sm:$0xff]
      %v4296 = vld [vmem:[#allocation4 + $0x13a] sm:$0xff]
      %v4297 = vld [vmem:[#allocation4 + $0x142] sm:$0xff]
      %v4298 = vld [vmem:[#allocation4 + $0x152] sm:$0xff]
      %v4299 = vld [vmem:[#allocation4 + $0x15a] sm:$0xff]
      %v4300 = vld [vmem:[#allocation4 + $0x16a] sm:$0xff]
      %v4301 = vld [vmem:[#allocation4 + $0x172] sm:$0xff]
      %v4302 = vpack.c.bf16 %v4271, %v4270
      %v4303 = vpack.c.bf16 %v4273, %v4272
      %v4304 = vpack.c.bf16 %v4275, %v4274
      %v4305 = vpack.c.bf16 %v4277, %v4276
      %v4306 = vpack.c.bf16 %v4279, %v4278
      %v4307 = vpack.c.bf16 %v4281, %v4280
      %v4308 = vpack.c.bf16 %v4283, %v4282
      %v4309 = vpack.c.bf16 %v4285, %v4284
      %v4310 = vpack.c.bf16 %v4287, %v4286
      %v4311 = vpack.c.bf16 %v4289, %v4288
      %v4312 = vpack.c.bf16 %v4291, %v4290
      %v4313 = vpack.c.bf16 %v4293, %v4292
      %v4314 = vpack.c.bf16 %v4295, %v4294
      %v4315 = vpack.c.bf16 %v4297, %v4296
      %v4316 = vpack.c.bf16 %v4299, %v4298
      %v4317 = vpack.c.bf16 %v4301, %v4300
      %v4318 = vld [vmem:[%s10 + $0x80] sm:$0xf]
      %v4319 = vld [vmem:[%s10 + $0x84] sm:$0xf]
      %v4320 = vld [vmem:[%s10 + $0x88] sm:$0xf]
      %v4321 = vld [vmem:[%s10 + $0x8c] sm:$0xf]
      %v4322 = vld [vmem:[%s10 + $0x90] sm:$0xf]
      %v4323 = vld [vmem:[%s10 + $0x94] sm:$0xf]
      %v4324 = vld [vmem:[%s10 + $0x98] sm:$0xf]
      %v4325 = vld [vmem:[%s10 + $0x9c] sm:$0xf]
      %v4326 = vld [vmem:[%s10 + $0xa0] sm:$0xf]
      %v4327 = vld [vmem:[%s10 + $0xa4] sm:$0xf]
      %v4328 = vld [vmem:[%s10 + $0xa8] sm:$0xf]
      %v4329 = vld [vmem:[%s10 + $0xac] sm:$0xf]
      %v4330 = vld [vmem:[%s10 + $0xb0] sm:$0xf]
      %v4331 = vld [vmem:[%s10 + $0xb4] sm:$0xf]
      %v4332 = vld [vmem:[%s10 + $0xb8] sm:$0xf]
      %v4333 = vld [vmem:[%s10 + $0xbc] sm:$0xf]
      %v4350 = vunpack.c.l.b16 %v4318
      %v4351 = vunpack.c.l.b16 %v4319
      %v4352 = vunpack.c.l.b16 %v4320
      %v4353 = vunpack.c.l.b16 %v4321
      %v4354 = vunpack.c.l.b16 %v4322
      %v4355 = vunpack.c.l.b16 %v4323
      %v4356 = vunpack.c.l.b16 %v4324
      %v4357 = vunpack.c.l.b16 %v4325
      %v4358 = vunpack.c.l.b16 %v4326
      %v4359 = vunpack.c.l.b16 %v4327
      %v4360 = vunpack.c.l.b16 %v4328
      %v4361 = vunpack.c.l.b16 %v4329
      %v4362 = vunpack.c.l.b16 %v4330
      %v4363 = vunpack.c.l.b16 %v4331
      %v4364 = vunpack.c.l.b16 %v4332
      %v4365 = vunpack.c.l.b16 %v4333
      %v4366 = vpack.c.b16 %v4351, %v4350
      %v4367 = vpack.c.b16 %v4353, %v4352
      %v4368 = vpack.c.b16 %v4355, %v4354
      %v4369 = vpack.c.b16 %v4357, %v4356
      %v4370 = vpack.c.b16 %v4359, %v4358
      %v4371 = vpack.c.b16 %v4361, %v4360
      %v4372 = vpack.c.b16 %v4363, %v4362
      %v4373 = vpack.c.b16 %v4365, %v4364
      %4382 = vmatpush.bf16.msra.mxu0 %v4373
      %4383 = vmatpush.bf16.msra.mxu0 %v4372
      %4384 = vmatpush.bf16.msra.mxu0 %v4371
      %4385 = vmatpush.bf16.msra.mxu0 %v4370
      %4386 = vmatpush.bf16.msra.mxu0 %v4369
      %4387 = vmatpush.bf16.msra.mxu0 %v4368
      %4388 = vmatpush.bf16.msra.mxu0 %v4367
      %4389 = vmatpush.bf16.msra.mxu0 %v4366
      %4390 = vmatmul.bf16.gmra.mxu0 %v4302
      %v4391 = vpop.f32.mrf.mxu0
      %v4392 = vadd.f32 0.0, %v4391
      %v4393 = vpop.f32.mrf.mxu0
      %v4394 = vadd.f32 0.0, %v4393
      %4395 = vmatmul.bf16.gmra.mxu0 %v4303
      %v4396 = vpop.f32.mrf.mxu0
      %v4397 = vadd.f32 0.0, %v4396
      %v4398 = vpop.f32.mrf.mxu0
      %v4399 = vadd.f32 0.0, %v4398
      %4400 = vmatmul.bf16.gmra.mxu0 %v4304
      %v4401 = vpop.f32.mrf.mxu0
      %v4402 = vadd.f32 0.0, %v4401
      %v4403 = vpop.f32.mrf.mxu0
      %v4404 = vadd.f32 0.0, %v4403
      %4405 = vmatmul.bf16.gmra.mxu0 %v4305
      %v4406 = vpop.f32.mrf.mxu0
      %v4407 = vadd.f32 0.0, %v4406
      %v4408 = vpop.f32.mrf.mxu0
      %v4409 = vadd.f32 0.0, %v4408
      %4410 = vmatmul.bf16.gmra.mxu0 %v4306
      %v4411 = vpop.f32.mrf.mxu0
      %v4412 = vadd.f32 0.0, %v4411
      %v4413 = vpop.f32.mrf.mxu0
      %v4414 = vadd.f32 0.0, %v4413
      %4415 = vmatmul.bf16.gmra.mxu0 %v4307
      %v4416 = vpop.f32.mrf.mxu0
      %v4417 = vadd.f32 0.0, %v4416
      %v4418 = vpop.f32.mrf.mxu0
      %v4419 = vadd.f32 0.0, %v4418
      %4420 = vmatmul.bf16.gmra.mxu0 %v4308
      %v4421 = vpop.f32.mrf.mxu0
      %v4422 = vadd.f32 0.0, %v4421
      %v4423 = vpop.f32.mrf.mxu0
      %v4424 = vadd.f32 0.0, %v4423
      %4425 = vmatmul.bf16.gmra.mxu0 %v4309
      %v4426 = vpop.f32.mrf.mxu0
      %v4427 = vadd.f32 0.0, %v4426
      %v4428 = vpop.f32.mrf.mxu0
      %v4429 = vadd.f32 0.0, %v4428
      %4430 = vmatmul.bf16.gmra.mxu0 %v4310
      %v4431 = vpop.f32.mrf.mxu0
      %v4432 = vadd.f32 0.0, %v4431
      %v4433 = vpop.f32.mrf.mxu0
      %v4434 = vadd.f32 0.0, %v4433
      %4435 = vmatmul.bf16.gmra.mxu0 %v4311
      %v4436 = vpop.f32.mrf.mxu0
      %v4437 = vadd.f32 0.0, %v4436
      %v4438 = vpop.f32.mrf.mxu0
      %v4439 = vadd.f32 0.0, %v4438
      %4440 = vmatmul.bf16.gmra.mxu0 %v4312
      %v4441 = vpop.f32.mrf.mxu0
      %v4442 = vadd.f32 0.0, %v4441
      %v4443 = vpop.f32.mrf.mxu0
      %v4444 = vadd.f32 0.0, %v4443
      %4445 = vmatmul.bf16.gmra.mxu0 %v4313
      %v4446 = vpop.f32.mrf.mxu0
      %v4447 = vadd.f32 0.0, %v4446
      %v4448 = vpop.f32.mrf.mxu0
      %v4449 = vadd.f32 0.0, %v4448
      %4450 = vmatmul.bf16.gmra.mxu0 %v4314
      %v4451 = vpop.f32.mrf.mxu0
      %v4452 = vadd.f32 0.0, %v4451
      %v4453 = vpop.f32.mrf.mxu0
      %v4454 = vadd.f32 0.0, %v4453
      %4455 = vmatmul.bf16.gmra.mxu0 %v4315
      %v4456 = vpop.f32.mrf.mxu0
      %v4457 = vadd.f32 0.0, %v4456
      %v4458 = vpop.f32.mrf.mxu0
      %v4459 = vadd.f32 0.0, %v4458
      %4460 = vmatmul.bf16.gmra.mxu0 %v4316
      %v4461 = vpop.f32.mrf.mxu0
      %v4462 = vadd.f32 0.0, %v4461
      %v4463 = vpop.f32.mrf.mxu0
      %v4464 = vadd.f32 0.0, %v4463
      %4465 = vmatmul.bf16.gmra.mxu0 %v4317
      %v4466 = vpop.f32.mrf.mxu0
      %v4467 = vadd.f32 0.0, %v4466
      %v4468 = vpop.f32.mrf.mxu0
      %v4469 = vadd.f32 0.0, %v4468
      %4470 = vdwg.mxu0
      %v4471 = vadd.f32 %v4191, %v4392
      %v4472 = vadd.f32 %v4193, %v4394
      %v4473 = vadd.f32 %v4196, %v4397
      %v4474 = vadd.f32 %v4198, %v4399
      %v4475 = vadd.f32 %v4201, %v4402
      %v4476 = vadd.f32 %v4203, %v4404
      %v4477 = vadd.f32 %v4206, %v4407
      %v4478 = vadd.f32 %v4208, %v4409
      %v4479 = vadd.f32 %v4211, %v4412
      %v4480 = vadd.f32 %v4213, %v4414
      %v4481 = vadd.f32 %v4216, %v4417
      %v4482 = vadd.f32 %v4218, %v4419
      %v4483 = vadd.f32 %v4221, %v4422
      %v4484 = vadd.f32 %v4223, %v4424
      %v4485 = vadd.f32 %v4226, %v4427
      %v4486 = vadd.f32 %v4228, %v4429
      %v4487 = vadd.f32 %v4231, %v4432
      %v4488 = vadd.f32 %v4233, %v4434
      %v4489 = vadd.f32 %v4236, %v4437
      %v4490 = vadd.f32 %v4238, %v4439
      %v4491 = vadd.f32 %v4241, %v4442
      %v4492 = vadd.f32 %v4243, %v4444
      %v4493 = vadd.f32 %v4246, %v4447
      %v4494 = vadd.f32 %v4248, %v4449
      %v4495 = vadd.f32 %v4251, %v4452
      %v4496 = vadd.f32 %v4253, %v4454
      %v4497 = vadd.f32 %v4256, %v4457
      %v4498 = vadd.f32 %v4258, %v4459
      %v4499 = vadd.f32 %v4261, %v4462
      %v4500 = vadd.f32 %v4263, %v4464
      %v4501 = vadd.f32 %v4266, %v4467
      %v4502 = vadd.f32 %v4268, %v4469
      %v4503 = vld [vmem:[%s3835] sm:$0xff]
      %v4504 = vld [vmem:[%s3835 + $0x8] sm:$0xff]
      %v4505 = vld [vmem:[%s3835 + $0x18] sm:$0xff]
      %v4506 = vld [vmem:[%s3835 + $0x20] sm:$0xff]
      %v4507 = vld [vmem:[%s3835 + $0x30] sm:$0xff]
      %v4508 = vld [vmem:[%s3835 + $0x38] sm:$0xff]
      %v4509 = vld [vmem:[%s3835 + $0x48] sm:$0xff]
      %v4510 = vld [vmem:[%s3835 + $0x50] sm:$0xff]
      %v4511 = vld [vmem:[%s3835 + $0x60] sm:$0xff]
      %v4512 = vld [vmem:[%s3835 + $0x68] sm:$0xff]
      %v4513 = vld [vmem:[%s3835 + $0x78] sm:$0xff]
      %v4514 = vld [vmem:[%s3835 + $0x80] sm:$0xff]
      %v4515 = vld [vmem:[%s3835 + $0x90] sm:$0xff]
      %v4516 = vld [vmem:[%s3835 + $0x98] sm:$0xff]
      %v4517 = vld [vmem:[%s3835 + $0xa8] sm:$0xff]
      %v4518 = vld [vmem:[%s3835 + $0xb0] sm:$0xff]
      %v4519 = vld [vmem:[%s3835 + $0xc0] sm:$0xff]
      %v4520 = vld [vmem:[%s3835 + $0xc8] sm:$0xff]
      %v4521 = vld [vmem:[%s3835 + $0xd8] sm:$0xff]
      %v4522 = vld [vmem:[%s3835 + $0xe0] sm:$0xff]
      %v4523 = vld [vmem:[%s3835 + $0xf0] sm:$0xff]
      %v4524 = vld [vmem:[%s3835 + $0xf8] sm:$0xff]
      %v4525 = vld [vmem:[%s3835 + $0x108] sm:$0xff]
      %v4526 = vld [vmem:[%s3835 + $0x110] sm:$0xff]
      %v4527 = vld [vmem:[%s3835 + $0x120] sm:$0xff]
      %v4528 = vld [vmem:[%s3835 + $0x128] sm:$0xff]
      %v4529 = vld [vmem:[%s3835 + $0x138] sm:$0xff]
      %v4530 = vld [vmem:[%s3835 + $0x140] sm:$0xff]
      %v4531 = vld [vmem:[%s3835 + $0x150] sm:$0xff]
      %v4532 = vld [vmem:[%s3835 + $0x158] sm:$0xff]
      %v4533 = vld [vmem:[%s3835 + $0x168] sm:$0xff]
      %v4534 = vld [vmem:[%s3835 + $0x170] sm:$0xff]
      %v4535 = vpack.c.bf16 %v4504, %v4503
      %v4536 = vpack.c.bf16 %v4506, %v4505
      %v4537 = vpack.c.bf16 %v4508, %v4507
      %v4538 = vpack.c.bf16 %v4510, %v4509
      %v4539 = vpack.c.bf16 %v4512, %v4511
      %v4540 = vpack.c.bf16 %v4514, %v4513
      %v4541 = vpack.c.bf16 %v4516, %v4515
      %v4542 = vpack.c.bf16 %v4518, %v4517
      %v4543 = vpack.c.bf16 %v4520, %v4519
      %v4544 = vpack.c.bf16 %v4522, %v4521
      %v4545 = vpack.c.bf16 %v4524, %v4523
      %v4546 = vpack.c.bf16 %v4526, %v4525
      %v4547 = vpack.c.bf16 %v4528, %v4527
      %v4548 = vpack.c.bf16 %v4530, %v4529
      %v4549 = vpack.c.bf16 %v4532, %v4531
      %v4550 = vpack.c.bf16 %v4534, %v4533
      %v4551 = vld [vmem:[%s10 + $0xc0] sm:$0xf]
      %v4552 = vld [vmem:[%s10 + $0xc4] sm:$0xf]
      %v4553 = vld [vmem:[%s10 + $0xc8] sm:$0xf]
      %v4554 = vld [vmem:[%s10 + $0xcc] sm:$0xf]
      %v4555 = vld [vmem:[%s10 + $0xd0] sm:$0xf]
      %v4556 = vld [vmem:[%s10 + $0xd4] sm:$0xf]
      %v4557 = vld [vmem:[%s10 + $0xd8] sm:$0xf]
      %v4558 = vld [vmem:[%s10 + $0xdc] sm:$0xf]
      %v4559 = vld [vmem:[%s10 + $0xe0] sm:$0xf]
      %v4560 = vld [vmem:[%s10 + $0xe4] sm:$0xf]
      %v4561 = vld [vmem:[%s10 + $0xe8] sm:$0xf]
      %v4562 = vld [vmem:[%s10 + $0xec] sm:$0xf]
      %v4563 = vld [vmem:[%s10 + $0xf0] sm:$0xf]
      %v4564 = vld [vmem:[%s10 + $0xf4] sm:$0xf]
      %v4565 = vld [vmem:[%s10 + $0xf8] sm:$0xf]
      %v4566 = vld [vmem:[%s10 + $0xfc] sm:$0xf]
      %v4583 = vunpack.c.l.b16 %v4551
      %v4584 = vunpack.c.l.b16 %v4552
      %v4585 = vunpack.c.l.b16 %v4553
      %v4586 = vunpack.c.l.b16 %v4554
      %v4587 = vunpack.c.l.b16 %v4555
      %v4588 = vunpack.c.l.b16 %v4556
      %v4589 = vunpack.c.l.b16 %v4557
      %v4590 = vunpack.c.l.b16 %v4558
      %v4591 = vunpack.c.l.b16 %v4559
      %v4592 = vunpack.c.l.b16 %v4560
      %v4593 = vunpack.c.l.b16 %v4561
      %v4594 = vunpack.c.l.b16 %v4562
      %v4595 = vunpack.c.l.b16 %v4563
      %v4596 = vunpack.c.l.b16 %v4564
      %v4597 = vunpack.c.l.b16 %v4565
      %v4598 = vunpack.c.l.b16 %v4566
      %v4599 = vpack.c.b16 %v4584, %v4583
      %v4600 = vpack.c.b16 %v4586, %v4585
      %v4601 = vpack.c.b16 %v4588, %v4587
      %v4602 = vpack.c.b16 %v4590, %v4589
      %v4603 = vpack.c.b16 %v4592, %v4591
      %v4604 = vpack.c.b16 %v4594, %v4593
      %v4605 = vpack.c.b16 %v4596, %v4595
      %v4606 = vpack.c.b16 %v4598, %v4597
      %4615 = vmatpush.bf16.msra.mxu0 %v4606
      %4616 = vmatpush.bf16.msra.mxu0 %v4605
      %4617 = vmatpush.bf16.msra.mxu0 %v4604
      %4618 = vmatpush.bf16.msra.mxu0 %v4603
      %4619 = vmatpush.bf16.msra.mxu0 %v4602
      %4620 = vmatpush.bf16.msra.mxu0 %v4601
      %4621 = vmatpush.bf16.msra.mxu0 %v4600
      %4622 = vmatpush.bf16.msra.mxu0 %v4599
      %4623 = vmatmul.bf16.gmra.mxu0 %v4535
      %v4624 = vpop.f32.mrf.mxu0
      %v4625 = vadd.f32 0.0, %v4624
      %v4626 = vpop.f32.mrf.mxu0
      %v4627 = vadd.f32 0.0, %v4626
      %4628 = vmatmul.bf16.gmra.mxu0 %v4536
      %v4629 = vpop.f32.mrf.mxu0
      %v4630 = vadd.f32 0.0, %v4629
      %v4631 = vpop.f32.mrf.mxu0
      %v4632 = vadd.f32 0.0, %v4631
      %4633 = vmatmul.bf16.gmra.mxu0 %v4537
      %v4634 = vpop.f32.mrf.mxu0
      %v4635 = vadd.f32 0.0, %v4634
      %v4636 = vpop.f32.mrf.mxu0
      %v4637 = vadd.f32 0.0, %v4636
      %4638 = vmatmul.bf16.gmra.mxu0 %v4538
      %v4639 = vpop.f32.mrf.mxu0
      %v4640 = vadd.f32 0.0, %v4639
      %v4641 = vpop.f32.mrf.mxu0
      %v4642 = vadd.f32 0.0, %v4641
      %4643 = vmatmul.bf16.gmra.mxu0 %v4539
      %v4644 = vpop.f32.mrf.mxu0
      %v4645 = vadd.f32 0.0, %v4644
      %v4646 = vpop.f32.mrf.mxu0
      %v4647 = vadd.f32 0.0, %v4646
      %4648 = vmatmul.bf16.gmra.mxu0 %v4540
      %v4649 = vpop.f32.mrf.mxu0
      %v4650 = vadd.f32 0.0, %v4649
      %v4651 = vpop.f32.mrf.mxu0
      %v4652 = vadd.f32 0.0, %v4651
      %4653 = vmatmul.bf16.gmra.mxu0 %v4541
      %v4654 = vpop.f32.mrf.mxu0
      %v4655 = vadd.f32 0.0, %v4654
      %v4656 = vpop.f32.mrf.mxu0
      %v4657 = vadd.f32 0.0, %v4656
      %4658 = vmatmul.bf16.gmra.mxu0 %v4542
      %v4659 = vpop.f32.mrf.mxu0
      %v4660 = vadd.f32 0.0, %v4659
      %v4661 = vpop.f32.mrf.mxu0
      %v4662 = vadd.f32 0.0, %v4661
      %4663 = vmatmul.bf16.gmra.mxu0 %v4543
      %v4664 = vpop.f32.mrf.mxu0
      %v4665 = vadd.f32 0.0, %v4664
      %v4666 = vpop.f32.mrf.mxu0
      %v4667 = vadd.f32 0.0, %v4666
      %4668 = vmatmul.bf16.gmra.mxu0 %v4544
      %v4669 = vpop.f32.mrf.mxu0
      %v4670 = vadd.f32 0.0, %v4669
      %v4671 = vpop.f32.mrf.mxu0
      %v4672 = vadd.f32 0.0, %v4671
      %4673 = vmatmul.bf16.gmra.mxu0 %v4545
      %v4674 = vpop.f32.mrf.mxu0
      %v4675 = vadd.f32 0.0, %v4674
      %v4676 = vpop.f32.mrf.mxu0
      %v4677 = vadd.f32 0.0, %v4676
      %4678 = vmatmul.bf16.gmra.mxu0 %v4546
      %v4679 = vpop.f32.mrf.mxu0
      %v4680 = vadd.f32 0.0, %v4679
      %v4681 = vpop.f32.mrf.mxu0
      %v4682 = vadd.f32 0.0, %v4681
      %4683 = vmatmul.bf16.gmra.mxu0 %v4547
      %v4684 = vpop.f32.mrf.mxu0
      %v4685 = vadd.f32 0.0, %v4684
      %v4686 = vpop.f32.mrf.mxu0
      %v4687 = vadd.f32 0.0, %v4686
      %4688 = vmatmul.bf16.gmra.mxu0 %v4548
      %v4689 = vpop.f32.mrf.mxu0
      %v4690 = vadd.f32 0.0, %v4689
      %v4691 = vpop.f32.mrf.mxu0
      %v4692 = vadd.f32 0.0, %v4691
      %4693 = vmatmul.bf16.gmra.mxu0 %v4549
      %v4694 = vpop.f32.mrf.mxu0
      %v4695 = vadd.f32 0.0, %v4694
      %v4696 = vpop.f32.mrf.mxu0
      %v4697 = vadd.f32 0.0, %v4696
      %4698 = vmatmul.bf16.gmra.mxu0 %v4550
      %v4699 = vpop.f32.mrf.mxu0
      %v4700 = vadd.f32 0.0, %v4699
      %v4701 = vpop.f32.mrf.mxu0
      %v4702 = vadd.f32 0.0, %v4701
      %4703 = vdwg.mxu0
      %v4704 = vadd.f32 %v4471, %v4625
      %v4705 = vadd.f32 %v4472, %v4627
      %v4706 = vadd.f32 %v4473, %v4630
      %v4707 = vadd.f32 %v4474, %v4632
      %v4708 = vadd.f32 %v4475, %v4635
      %v4709 = vadd.f32 %v4476, %v4637
      %v4710 = vadd.f32 %v4477, %v4640
      %v4711 = vadd.f32 %v4478, %v4642
      %v4712 = vadd.f32 %v4479, %v4645
      %v4713 = vadd.f32 %v4480, %v4647
      %v4714 = vadd.f32 %v4481, %v4650
      %v4715 = vadd.f32 %v4482, %v4652
      %v4716 = vadd.f32 %v4483, %v4655
      %v4717 = vadd.f32 %v4484, %v4657
      %v4718 = vadd.f32 %v4485, %v4660
      %v4719 = vadd.f32 %v4486, %v4662
      %v4720 = vadd.f32 %v4487, %v4665
      %v4721 = vadd.f32 %v4488, %v4667
      %v4722 = vadd.f32 %v4489, %v4670
      %v4723 = vadd.f32 %v4490, %v4672
      %v4724 = vadd.f32 %v4491, %v4675
      %v4725 = vadd.f32 %v4492, %v4677
      %v4726 = vadd.f32 %v4493, %v4680
      %v4727 = vadd.f32 %v4494, %v4682
      %v4728 = vadd.f32 %v4495, %v4685
      %v4729 = vadd.f32 %v4496, %v4687
      %v4730 = vadd.f32 %v4497, %v4690
      %v4731 = vadd.f32 %v4498, %v4692
      %v4732 = vadd.f32 %v4499, %v4695
      %v4733 = vadd.f32 %v4500, %v4697
      %v4734 = vadd.f32 %v4501, %v4700
      %v4735 = vadd.f32 %v4502, %v4702
      %v4736 = vld [vmem:[%s3835 + $0x1] sm:$0xff]
      %v4737 = vld [vmem:[%s3835 + $0x9] sm:$0xff]
      %v4738 = vld [vmem:[%s3835 + $0x19] sm:$0xff]
      %v4739 = vld [vmem:[%s3835 + $0x21] sm:$0xff]
      %v4740 = vld [vmem:[%s3835 + $0x31] sm:$0xff]
      %v4741 = vld [vmem:[%s3835 + $0x39] sm:$0xff]
      %v4742 = vld [vmem:[%s3835 + $0x49] sm:$0xff]
      %v4743 = vld [vmem:[%s3835 + $0x51] sm:$0xff]
      %v4744 = vld [vmem:[%s3835 + $0x61] sm:$0xff]
      %v4745 = vld [vmem:[%s3835 + $0x69] sm:$0xff]
      %v4746 = vld [vmem:[%s3835 + $0x79] sm:$0xff]
      %v4747 = vld [vmem:[%s3835 + $0x81] sm:$0xff]
      %v4748 = vld [vmem:[%s3835 + $0x91] sm:$0xff]
      %v4749 = vld [vmem:[%s3835 + $0x99] sm:$0xff]
      %v4750 = vld [vmem:[%s3835 + $0xa9] sm:$0xff]
      %v4751 = vld [vmem:[%s3835 + $0xb1] sm:$0xff]
      %v4752 = vld [vmem:[%s3835 + $0xc1] sm:$0xff]
      %v4753 = vld [vmem:[%s3835 + $0xc9] sm:$0xff]
      %v4754 = vld [vmem:[%s3835 + $0xd9] sm:$0xff]
      %v4755 = vld [vmem:[%s3835 + $0xe1] sm:$0xff]
      %v4756 = vld [vmem:[%s3835 + $0xf1] sm:$0xff]
      %v4757 = vld [vmem:[%s3835 + $0xf9] sm:$0xff]
      %v4758 = vld [vmem:[%s3835 + $0x109] sm:$0xff]
      %v4759 = vld [vmem:[%s3835 + $0x111] sm:$0xff]
      %v4760 = vld [vmem:[%s3835 + $0x121] sm:$0xff]
      %v4761 = vld [vmem:[%s3835 + $0x129] sm:$0xff]
      %v4762 = vld [vmem:[%s3835 + $0x139] sm:$0xff]
      %v4763 = vld [vmem:[%s3835 + $0x141] sm:$0xff]
      %v4764 = vld [vmem:[%s3835 + $0x151] sm:$0xff]
      %v4765 = vld [vmem:[%s3835 + $0x159] sm:$0xff]
      %v4766 = vld [vmem:[%s3835 + $0x169] sm:$0xff]
      %v4767 = vld [vmem:[%s3835 + $0x171] sm:$0xff]
      %v4768 = vpack.c.bf16 %v4737, %v4736
      %v4769 = vpack.c.bf16 %v4739, %v4738
      %v4770 = vpack.c.bf16 %v4741, %v4740
      %v4771 = vpack.c.bf16 %v4743, %v4742
      %v4772 = vpack.c.bf16 %v4745, %v4744
      %v4773 = vpack.c.bf16 %v4747, %v4746
      %v4774 = vpack.c.bf16 %v4749, %v4748
      %v4775 = vpack.c.bf16 %v4751, %v4750
      %v4776 = vpack.c.bf16 %v4753, %v4752
      %v4777 = vpack.c.bf16 %v4755, %v4754
      %v4778 = vpack.c.bf16 %v4757, %v4756
      %v4779 = vpack.c.bf16 %v4759, %v4758
      %v4780 = vpack.c.bf16 %v4761, %v4760
      %v4781 = vpack.c.bf16 %v4763, %v4762
      %v4782 = vpack.c.bf16 %v4765, %v4764
      %v4783 = vpack.c.bf16 %v4767, %v4766
      %v4784 = vld [vmem:[%s10 + $0x100] sm:$0xf]
      %v4785 = vld [vmem:[%s10 + $0x104] sm:$0xf]
      %v4786 = vld [vmem:[%s10 + $0x108] sm:$0xf]
      %v4787 = vld [vmem:[%s10 + $0x10c] sm:$0xf]
      %v4788 = vld [vmem:[%s10 + $0x110] sm:$0xf]
      %v4789 = vld [vmem:[%s10 + $0x114] sm:$0xf]
      %v4790 = vld [vmem:[%s10 + $0x118] sm:$0xf]
      %v4791 = vld [vmem:[%s10 + $0x11c] sm:$0xf]
      %v4792 = vld [vmem:[%s10 + $0x120] sm:$0xf]
      %v4793 = vld [vmem:[%s10 + $0x124] sm:$0xf]
      %v4794 = vld [vmem:[%s10 + $0x128] sm:$0xf]
      %v4795 = vld [vmem:[%s10 + $0x12c] sm:$0xf]
      %v4796 = vld [vmem:[%s10 + $0x130] sm:$0xf]
      %v4797 = vld [vmem:[%s10 + $0x134] sm:$0xf]
      %v4798 = vld [vmem:[%s10 + $0x138] sm:$0xf]
      %v4799 = vld [vmem:[%s10 + $0x13c] sm:$0xf]
      %v4816 = vunpack.c.l.b16 %v4784
      %v4817 = vunpack.c.l.b16 %v4785
      %v4818 = vunpack.c.l.b16 %v4786
      %v4819 = vunpack.c.l.b16 %v4787
      %v4820 = vunpack.c.l.b16 %v4788
      %v4821 = vunpack.c.l.b16 %v4789
      %v4822 = vunpack.c.l.b16 %v4790
      %v4823 = vunpack.c.l.b16 %v4791
      %v4824 = vunpack.c.l.b16 %v4792
      %v4825 = vunpack.c.l.b16 %v4793
      %v4826 = vunpack.c.l.b16 %v4794
      %v4827 = vunpack.c.l.b16 %v4795
      %v4828 = vunpack.c.l.b16 %v4796
      %v4829 = vunpack.c.l.b16 %v4797
      %v4830 = vunpack.c.l.b16 %v4798
      %v4831 = vunpack.c.l.b16 %v4799
      %v4832 = vpack.c.b16 %v4817, %v4816
      %v4833 = vpack.c.b16 %v4819, %v4818
      %v4834 = vpack.c.b16 %v4821, %v4820
      %v4835 = vpack.c.b16 %v4823, %v4822
      %v4836 = vpack.c.b16 %v4825, %v4824
      %v4837 = vpack.c.b16 %v4827, %v4826
      %v4838 = vpack.c.b16 %v4829, %v4828
      %v4839 = vpack.c.b16 %v4831, %v4830
      %4848 = vmatpush.bf16.msra.mxu0 %v4839
      %4849 = vmatpush.bf16.msra.mxu0 %v4838
      %4850 = vmatpush.bf16.msra.mxu0 %v4837
      %4851 = vmatpush.bf16.msra.mxu0 %v4836
      %4852 = vmatpush.bf16.msra.mxu0 %v4835
      %4853 = vmatpush.bf16.msra.mxu0 %v4834
      %4854 = vmatpush.bf16.msra.mxu0 %v4833
      %4855 = vmatpush.bf16.msra.mxu0 %v4832
      %4856 = vmatmul.bf16.gmra.mxu0 %v4768
      %v4857 = vpop.f32.mrf.mxu0
      %v4858 = vadd.f32 0.0, %v4857
      %v4859 = vpop.f32.mrf.mxu0
      %v4860 = vadd.f32 0.0, %v4859
      %4861 = vmatmul.bf16.gmra.mxu0 %v4769
      %v4862 = vpop.f32.mrf.mxu0
      %v4863 = vadd.f32 0.0, %v4862
      %v4864 = vpop.f32.mrf.mxu0
      %v4865 = vadd.f32 0.0, %v4864
      %4866 = vmatmul.bf16.gmra.mxu0 %v4770
      %v4867 = vpop.f32.mrf.mxu0
      %v4868 = vadd.f32 0.0, %v4867
      %v4869 = vpop.f32.mrf.mxu0
      %v4870 = vadd.f32 0.0, %v4869
      %4871 = vmatmul.bf16.gmra.mxu0 %v4771
      %v4872 = vpop.f32.mrf.mxu0
      %v4873 = vadd.f32 0.0, %v4872
      %v4874 = vpop.f32.mrf.mxu0
      %v4875 = vadd.f32 0.0, %v4874
      %4876 = vmatmul.bf16.gmra.mxu0 %v4772
      %v4877 = vpop.f32.mrf.mxu0
      %v4878 = vadd.f32 0.0, %v4877
      %v4879 = vpop.f32.mrf.mxu0
      %v4880 = vadd.f32 0.0, %v4879
      %4881 = vmatmul.bf16.gmra.mxu0 %v4773
      %v4882 = vpop.f32.mrf.mxu0
      %v4883 = vadd.f32 0.0, %v4882
      %v4884 = vpop.f32.mrf.mxu0
      %v4885 = vadd.f32 0.0, %v4884
      %4886 = vmatmul.bf16.gmra.mxu0 %v4774
      %v4887 = vpop.f32.mrf.mxu0
      %v4888 = vadd.f32 0.0, %v4887
      %v4889 = vpop.f32.mrf.mxu0
      %v4890 = vadd.f32 0.0, %v4889
      %4891 = vmatmul.bf16.gmra.mxu0 %v4775
      %v4892 = vpop.f32.mrf.mxu0
      %v4893 = vadd.f32 0.0, %v4892
      %v4894 = vpop.f32.mrf.mxu0
      %v4895 = vadd.f32 0.0, %v4894
      %4896 = vmatmul.bf16.gmra.mxu0 %v4776
      %v4897 = vpop.f32.mrf.mxu0
      %v4898 = vadd.f32 0.0, %v4897
      %v4899 = vpop.f32.mrf.mxu0
      %v4900 = vadd.f32 0.0, %v4899
      %4901 = vmatmul.bf16.gmra.mxu0 %v4777
      %v4902 = vpop.f32.mrf.mxu0
      %v4903 = vadd.f32 0.0, %v4902
      %v4904 = vpop.f32.mrf.mxu0
      %v4905 = vadd.f32 0.0, %v4904
      %4906 = vmatmul.bf16.gmra.mxu0 %v4778
      %v4907 = vpop.f32.mrf.mxu0
      %v4908 = vadd.f32 0.0, %v4907
      %v4909 = vpop.f32.mrf.mxu0
      %v4910 = vadd.f32 0.0, %v4909
      %4911 = vmatmul.bf16.gmra.mxu0 %v4779
      %v4912 = vpop.f32.mrf.mxu0
      %v4913 = vadd.f32 0.0, %v4912
      %v4914 = vpop.f32.mrf.mxu0
      %v4915 = vadd.f32 0.0, %v4914
      %4916 = vmatmul.bf16.gmra.mxu0 %v4780
      %v4917 = vpop.f32.mrf.mxu0
      %v4918 = vadd.f32 0.0, %v4917
      %v4919 = vpop.f32.mrf.mxu0
      %v4920 = vadd.f32 0.0, %v4919
      %4921 = vmatmul.bf16.gmra.mxu0 %v4781
      %v4922 = vpop.f32.mrf.mxu0
      %v4923 = vadd.f32 0.0, %v4922
      %v4924 = vpop.f32.mrf.mxu0
      %v4925 = vadd.f32 0.0, %v4924
      %4926 = vmatmul.bf16.gmra.mxu0 %v4782
      %v4927 = vpop.f32.mrf.mxu0
      %v4928 = vadd.f32 0.0, %v4927
      %v4929 = vpop.f32.mrf.mxu0
      %v4930 = vadd.f32 0.0, %v4929
      %4931 = vmatmul.bf16.gmra.mxu0 %v4783
      %v4932 = vpop.f32.mrf.mxu0
      %v4933 = vadd.f32 0.0, %v4932
      %v4934 = vpop.f32.mrf.mxu0
      %v4935 = vadd.f32 0.0, %v4934
      %4936 = vdwg.mxu0
      %v4937 = vadd.f32 %v4704, %v4858
      %v4938 = vadd.f32 %v4705, %v4860
      %v4939 = vadd.f32 %v4706, %v4863
      %v4940 = vadd.f32 %v4707, %v4865
      %v4941 = vadd.f32 %v4708, %v4868
      %v4942 = vadd.f32 %v4709, %v4870
      %v4943 = vadd.f32 %v4710, %v4873
      %v4944 = vadd.f32 %v4711, %v4875
      %v4945 = vadd.f32 %v4712, %v4878
      %v4946 = vadd.f32 %v4713, %v4880
      %v4947 = vadd.f32 %v4714, %v4883
      %v4948 = vadd.f32 %v4715, %v4885
      %v4949 = vadd.f32 %v4716, %v4888
      %v4950 = vadd.f32 %v4717, %v4890
      %v4951 = vadd.f32 %v4718, %v4893
      %v4952 = vadd.f32 %v4719, %v4895
      %v4953 = vadd.f32 %v4720, %v4898
      %v4954 = vadd.f32 %v4721, %v4900
      %v4955 = vadd.f32 %v4722, %v4903
      %v4956 = vadd.f32 %v4723, %v4905
      %v4957 = vadd.f32 %v4724, %v4908
      %v4958 = vadd.f32 %v4725, %v4910
      %v4959 = vadd.f32 %v4726, %v4913
      %v4960 = vadd.f32 %v4727, %v4915
      %v4961 = vadd.f32 %v4728, %v4918
      %v4962 = vadd.f32 %v4729, %v4920
      %v4963 = vadd.f32 %v4730, %v4923
      %v4964 = vadd.f32 %v4731, %v4925
      %v4965 = vadd.f32 %v4732, %v4928
      %v4966 = vadd.f32 %v4733, %v4930
      %v4967 = vadd.f32 %v4734, %v4933
      %v4968 = vadd.f32 %v4735, %v4935
      %v4969 = vld [vmem:[%s3835 + $0x2] sm:$0xff]
      %v4970 = vld [vmem:[%s3835 + $0xa] sm:$0xff]
      %v4971 = vld [vmem:[%s3835 + $0x1a] sm:$0xff]
      %v4972 = vld [vmem:[%s3835 + $0x22] sm:$0xff]
      %v4973 = vld [vmem:[%s3835 + $0x32] sm:$0xff]
      %v4974 = vld [vmem:[%s3835 + $0x3a] sm:$0xff]
      %v4975 = vld [vmem:[%s3835 + $0x4a] sm:$0xff]
      %v4976 = vld [vmem:[%s3835 + $0x52] sm:$0xff]
      %v4977 = vld [vmem:[%s3835 + $0x62] sm:$0xff]
      %v4978 = vld [vmem:[%s3835 + $0x6a] sm:$0xff]
      %v4979 = vld [vmem:[%s3835 + $0x7a] sm:$0xff]
      %v4980 = vld [vmem:[%s3835 + $0x82] sm:$0xff]
      %v4981 = vld [vmem:[%s3835 + $0x92] sm:$0xff]
      %v4982 = vld [vmem:[%s3835 + $0x9a] sm:$0xff]
      %v4983 = vld [vmem:[%s3835 + $0xaa] sm:$0xff]
      %v4984 = vld [vmem:[%s3835 + $0xb2] sm:$0xff]
      %v4985 = vld [vmem:[%s3835 + $0xc2] sm:$0xff]
      %v4986 = vld [vmem:[%s3835 + $0xca] sm:$0xff]
      %v4987 = vld [vmem:[%s3835 + $0xda] sm:$0xff]
      %v4988 = vld [vmem:[%s3835 + $0xe2] sm:$0xff]
      %v4989 = vld [vmem:[%s3835 + $0xf2] sm:$0xff]
      %v4990 = vld [vmem:[%s3835 + $0xfa] sm:$0xff]
      %v4991 = vld [vmem:[%s3835 + $0x10a] sm:$0xff]
      %v4992 = vld [vmem:[%s3835 + $0x112] sm:$0xff]
      %v4993 = vld [vmem:[%s3835 + $0x122] sm:$0xff]
      %v4994 = vld [vmem:[%s3835 + $0x12a] sm:$0xff]
      %v4995 = vld [vmem:[%s3835 + $0x13a] sm:$0xff]
      %v4996 = vld [vmem:[%s3835 + $0x142] sm:$0xff]
      %v4997 = vld [vmem:[%s3835 + $0x152] sm:$0xff]
      %v4998 = vld [vmem:[%s3835 + $0x15a] sm:$0xff]
      %v4999 = vld [vmem:[%s3835 + $0x16a] sm:$0xff]
      %v5000 = vld [vmem:[%s3835 + $0x172] sm:$0xff]
      %v5001 = vpack.c.bf16 %v4970, %v4969
      %v5002 = vpack.c.bf16 %v4972, %v4971
      %v5003 = vpack.c.bf16 %v4974, %v4973
      %v5004 = vpack.c.bf16 %v4976, %v4975
      %v5005 = vpack.c.bf16 %v4978, %v4977
      %v5006 = vpack.c.bf16 %v4980, %v4979
      %v5007 = vpack.c.bf16 %v4982, %v4981
      %v5008 = vpack.c.bf16 %v4984, %v4983
      %v5009 = vpack.c.bf16 %v4986, %v4985
      %v5010 = vpack.c.bf16 %v4988, %v4987
      %v5011 = vpack.c.bf16 %v4990, %v4989
      %v5012 = vpack.c.bf16 %v4992, %v4991
      %v5013 = vpack.c.bf16 %v4994, %v4993
      %v5014 = vpack.c.bf16 %v4996, %v4995
      %v5015 = vpack.c.bf16 %v4998, %v4997
      %v5016 = vpack.c.bf16 %v5000, %v4999
      %v5017 = vld [vmem:[%s10 + $0x140] sm:$0xf]
      %v5018 = vld [vmem:[%s10 + $0x144] sm:$0xf]
      %v5019 = vld [vmem:[%s10 + $0x148] sm:$0xf]
      %v5020 = vld [vmem:[%s10 + $0x14c] sm:$0xf]
      %v5021 = vld [vmem:[%s10 + $0x150] sm:$0xf]
      %v5022 = vld [vmem:[%s10 + $0x154] sm:$0xf]
      %v5023 = vld [vmem:[%s10 + $0x158] sm:$0xf]
      %v5024 = vld [vmem:[%s10 + $0x15c] sm:$0xf]
      %v5025 = vld [vmem:[%s10 + $0x160] sm:$0xf]
      %v5026 = vld [vmem:[%s10 + $0x164] sm:$0xf]
      %v5027 = vld [vmem:[%s10 + $0x168] sm:$0xf]
      %v5028 = vld [vmem:[%s10 + $0x16c] sm:$0xf]
      %v5029 = vld [vmem:[%s10 + $0x170] sm:$0xf]
      %v5030 = vld [vmem:[%s10 + $0x174] sm:$0xf]
      %v5031 = vld [vmem:[%s10 + $0x178] sm:$0xf]
      %v5032 = vld [vmem:[%s10 + $0x17c] sm:$0xf]
      %v5049 = vunpack.c.l.b16 %v5017
      %v5050 = vunpack.c.l.b16 %v5018
      %v5051 = vunpack.c.l.b16 %v5019
      %v5052 = vunpack.c.l.b16 %v5020
      %v5053 = vunpack.c.l.b16 %v5021
      %v5054 = vunpack.c.l.b16 %v5022
      %v5055 = vunpack.c.l.b16 %v5023
      %v5056 = vunpack.c.l.b16 %v5024
      %v5057 = vunpack.c.l.b16 %v5025
      %v5058 = vunpack.c.l.b16 %v5026
      %v5059 = vunpack.c.l.b16 %v5027
      %v5060 = vunpack.c.l.b16 %v5028
      %v5061 = vunpack.c.l.b16 %v5029
      %v5062 = vunpack.c.l.b16 %v5030
      %v5063 = vunpack.c.l.b16 %v5031
      %v5064 = vunpack.c.l.b16 %v5032
      %v5065 = vpack.c.b16 %v5050, %v5049
      %v5066 = vpack.c.b16 %v5052, %v5051
      %v5067 = vpack.c.b16 %v5054, %v5053
      %v5068 = vpack.c.b16 %v5056, %v5055
      %v5069 = vpack.c.b16 %v5058, %v5057
      %v5070 = vpack.c.b16 %v5060, %v5059
      %v5071 = vpack.c.b16 %v5062, %v5061
      %v5072 = vpack.c.b16 %v5064, %v5063
      %5081 = vmatpush.bf16.msra.mxu0 %v5072
      %5082 = vmatpush.bf16.msra.mxu0 %v5071
      %5083 = vmatpush.bf16.msra.mxu0 %v5070
      %5084 = vmatpush.bf16.msra.mxu0 %v5069
      %5085 = vmatpush.bf16.msra.mxu0 %v5068
      %5086 = vmatpush.bf16.msra.mxu0 %v5067
      %5087 = vmatpush.bf16.msra.mxu0 %v5066
      %5088 = vmatpush.bf16.msra.mxu0 %v5065
      %5089 = vmatmul.bf16.gmra.mxu0 %v5001
      %v5090 = vpop.f32.mrf.mxu0
      %v5091 = vadd.f32 0.0, %v5090
      %v5092 = vpop.f32.mrf.mxu0
      %v5093 = vadd.f32 0.0, %v5092
      %5094 = vmatmul.bf16.gmra.mxu0 %v5002
      %v5095 = vpop.f32.mrf.mxu0
      %v5096 = vadd.f32 0.0, %v5095
      %v5097 = vpop.f32.mrf.mxu0
      %v5098 = vadd.f32 0.0, %v5097
      %5099 = vmatmul.bf16.gmra.mxu0 %v5003
      %v5100 = vpop.f32.mrf.mxu0
      %v5101 = vadd.f32 0.0, %v5100
      %v5102 = vpop.f32.mrf.mxu0
      %v5103 = vadd.f32 0.0, %v5102
      %5104 = vmatmul.bf16.gmra.mxu0 %v5004
      %v5105 = vpop.f32.mrf.mxu0
      %v5106 = vadd.f32 0.0, %v5105
      %v5107 = vpop.f32.mrf.mxu0
      %v5108 = vadd.f32 0.0, %v5107
      %5109 = vmatmul.bf16.gmra.mxu0 %v5005
      %v5110 = vpop.f32.mrf.mxu0
      %v5111 = vadd.f32 0.0, %v5110
      %v5112 = vpop.f32.mrf.mxu0
      %v5113 = vadd.f32 0.0, %v5112
      %5114 = vmatmul.bf16.gmra.mxu0 %v5006
      %v5115 = vpop.f32.mrf.mxu0
      %v5116 = vadd.f32 0.0, %v5115
      %v5117 = vpop.f32.mrf.mxu0
      %v5118 = vadd.f32 0.0, %v5117
      %5119 = vmatmul.bf16.gmra.mxu0 %v5007
      %v5120 = vpop.f32.mrf.mxu0
      %v5121 = vadd.f32 0.0, %v5120
      %v5122 = vpop.f32.mrf.mxu0
      %v5123 = vadd.f32 0.0, %v5122
      %5124 = vmatmul.bf16.gmra.mxu0 %v5008
      %v5125 = vpop.f32.mrf.mxu0
      %v5126 = vadd.f32 0.0, %v5125
      %v5127 = vpop.f32.mrf.mxu0
      %v5128 = vadd.f32 0.0, %v5127
      %5129 = vmatmul.bf16.gmra.mxu0 %v5009
      %v5130 = vpop.f32.mrf.mxu0
      %v5131 = vadd.f32 0.0, %v5130
      %v5132 = vpop.f32.mrf.mxu0
      %v5133 = vadd.f32 0.0, %v5132
      %5134 = vmatmul.bf16.gmra.mxu0 %v5010
      %v5135 = vpop.f32.mrf.mxu0
      %v5136 = vadd.f32 0.0, %v5135
      %v5137 = vpop.f32.mrf.mxu0
      %v5138 = vadd.f32 0.0, %v5137
      %5139 = vmatmul.bf16.gmra.mxu0 %v5011
      %v5140 = vpop.f32.mrf.mxu0
      %v5141 = vadd.f32 0.0, %v5140
      %v5142 = vpop.f32.mrf.mxu0
      %v5143 = vadd.f32 0.0, %v5142
      %5144 = vmatmul.bf16.gmra.mxu0 %v5012
      %v5145 = vpop.f32.mrf.mxu0
      %v5146 = vadd.f32 0.0, %v5145
      %v5147 = vpop.f32.mrf.mxu0
      %v5148 = vadd.f32 0.0, %v5147
      %5149 = vmatmul.bf16.gmra.mxu0 %v5013
      %v5150 = vpop.f32.mrf.mxu0
      %v5151 = vadd.f32 0.0, %v5150
      %v5152 = vpop.f32.mrf.mxu0
      %v5153 = vadd.f32 0.0, %v5152
      %5154 = vmatmul.bf16.gmra.mxu0 %v5014
      %v5155 = vpop.f32.mrf.mxu0
      %v5156 = vadd.f32 0.0, %v5155
      %v5157 = vpop.f32.mrf.mxu0
      %v5158 = vadd.f32 0.0, %v5157
      %5159 = vmatmul.bf16.gmra.mxu0 %v5015
      %v5160 = vpop.f32.mrf.mxu0
      %v5161 = vadd.f32 0.0, %v5160
      %v5162 = vpop.f32.mrf.mxu0
      %v5163 = vadd.f32 0.0, %v5162
      %5164 = vmatmul.bf16.gmra.mxu0 %v5016
      %v5165 = vpop.f32.mrf.mxu0
      %v5166 = vadd.f32 0.0, %v5165
      %v5167 = vpop.f32.mrf.mxu0
      %v5168 = vadd.f32 0.0, %v5167
      %5169 = vdwg.mxu0
      %v5170 = vadd.f32 %v4937, %v5091
      %v5171 = vadd.f32 %v4938, %v5093
      %v5172 = vadd.f32 %v4939, %v5096
      %v5173 = vadd.f32 %v4940, %v5098
      %v5174 = vadd.f32 %v4941, %v5101
      %v5175 = vadd.f32 %v4942, %v5103
      %v5176 = vadd.f32 %v4943, %v5106
      %v5177 = vadd.f32 %v4944, %v5108
      %v5178 = vadd.f32 %v4945, %v5111
      %v5179 = vadd.f32 %v4946, %v5113
      %v5180 = vadd.f32 %v4947, %v5116
      %v5181 = vadd.f32 %v4948, %v5118
      %v5182 = vadd.f32 %v4949, %v5121
      %v5183 = vadd.f32 %v4950, %v5123
      %v5184 = vadd.f32 %v4951, %v5126
      %v5185 = vadd.f32 %v4952, %v5128
      %v5186 = vadd.f32 %v4953, %v5131
      %v5187 = vadd.f32 %v4954, %v5133
      %v5188 = vadd.f32 %v4955, %v5136
      %v5189 = vadd.f32 %v4956, %v5138
      %v5190 = vadd.f32 %v4957, %v5141
      %v5191 = vadd.f32 %v4958, %v5143
      %v5192 = vadd.f32 %v4959, %v5146
      %v5193 = vadd.f32 %v4960, %v5148
      %v5194 = vadd.f32 %v4961, %v5151
      %v5195 = vadd.f32 %v4962, %v5153
      %v5196 = vadd.f32 %v4963, %v5156
      %v5197 = vadd.f32 %v4964, %v5158
      %v5198 = vadd.f32 %v4965, %v5161
      %v5199 = vadd.f32 %v4966, %v5163
      %v5200 = vadd.f32 %v4967, %v5166
      %v5201 = vadd.f32 %v4968, %v5168
      %s5202 = scalar_lea.vmem [#allocation4], 48
      %v5203 = vld [vmem:[%s5202] sm:$0xff]
      %v5204 = vld [vmem:[%s5202 + $0x8] sm:$0xff]
      %v5205 = vld [vmem:[%s5202 + $0x18] sm:$0xff]
      %v5206 = vld [vmem:[%s5202 + $0x20] sm:$0xff]
      %v5207 = vld [vmem:[%s5202 + $0x30] sm:$0xff]
      %v5208 = vld [vmem:[%s5202 + $0x38] sm:$0xff]
      %v5209 = vld [vmem:[%s5202 + $0x48] sm:$0xff]
      %v5210 = vld [vmem:[%s5202 + $0x50] sm:$0xff]
      %v5211 = vld [vmem:[%s5202 + $0x60] sm:$0xff]
      %v5212 = vld [vmem:[%s5202 + $0x68] sm:$0xff]
      %v5213 = vld [vmem:[%s5202 + $0x78] sm:$0xff]
      %v5214 = vld [vmem:[%s5202 + $0x80] sm:$0xff]
      %v5215 = vld [vmem:[%s5202 + $0x90] sm:$0xff]
      %v5216 = vld [vmem:[%s5202 + $0x98] sm:$0xff]
      %v5217 = vld [vmem:[%s5202 + $0xa8] sm:$0xff]
      %v5218 = vld [vmem:[%s5202 + $0xb0] sm:$0xff]
      %v5219 = vld [vmem:[%s5202 + $0xc0] sm:$0xff]
      %v5220 = vld [vmem:[%s5202 + $0xc8] sm:$0xff]
      %v5221 = vld [vmem:[%s5202 + $0xd8] sm:$0xff]
      %v5222 = vld [vmem:[%s5202 + $0xe0] sm:$0xff]
      %v5223 = vld [vmem:[%s5202 + $0xf0] sm:$0xff]
      %v5224 = vld [vmem:[%s5202 + $0xf8] sm:$0xff]
      %v5225 = vld [vmem:[%s5202 + $0x108] sm:$0xff]
      %v5226 = vld [vmem:[%s5202 + $0x110] sm:$0xff]
      %v5227 = vld [vmem:[%s5202 + $0x120] sm:$0xff]
      %v5228 = vld [vmem:[%s5202 + $0x128] sm:$0xff]
      %v5229 = vld [vmem:[%s5202 + $0x138] sm:$0xff]
      %v5230 = vld [vmem:[%s5202 + $0x140] sm:$0xff]
      %v5231 = vld [vmem:[%s5202 + $0x150] sm:$0xff]
      %v5232 = vld [vmem:[%s5202 + $0x158] sm:$0xff]
      %v5233 = vld [vmem:[%s5202 + $0x168] sm:$0xff]
      %v5234 = vld [vmem:[%s5202 + $0x170] sm:$0xff]
      %v5235 = vpack.c.bf16 %v5204, %v5203
      %v5236 = vpack.c.bf16 %v5206, %v5205
      %v5237 = vpack.c.bf16 %v5208, %v5207
      %v5238 = vpack.c.bf16 %v5210, %v5209
      %v5239 = vpack.c.bf16 %v5212, %v5211
      %v5240 = vpack.c.bf16 %v5214, %v5213
      %v5241 = vpack.c.bf16 %v5216, %v5215
      %v5242 = vpack.c.bf16 %v5218, %v5217
      %v5243 = vpack.c.bf16 %v5220, %v5219
      %v5244 = vpack.c.bf16 %v5222, %v5221
      %v5245 = vpack.c.bf16 %v5224, %v5223
      %v5246 = vpack.c.bf16 %v5226, %v5225
      %v5247 = vpack.c.bf16 %v5228, %v5227
      %v5248 = vpack.c.bf16 %v5230, %v5229
      %v5249 = vpack.c.bf16 %v5232, %v5231
      %v5250 = vpack.c.bf16 %v5234, %v5233
      %v5251 = vld [vmem:[%s10 + $0x180] sm:$0xf]
      %v5252 = vld [vmem:[%s10 + $0x184] sm:$0xf]
      %v5253 = vld [vmem:[%s10 + $0x188] sm:$0xf]
      %v5254 = vld [vmem:[%s10 + $0x18c] sm:$0xf]
      %v5255 = vld [vmem:[%s10 + $0x190] sm:$0xf]
      %v5256 = vld [vmem:[%s10 + $0x194] sm:$0xf]
      %v5257 = vld [vmem:[%s10 + $0x198] sm:$0xf]
      %v5258 = vld [vmem:[%s10 + $0x19c] sm:$0xf]
      %v5259 = vld [vmem:[%s10 + $0x1a0] sm:$0xf]
      %v5260 = vld [vmem:[%s10 + $0x1a4] sm:$0xf]
      %v5261 = vld [vmem:[%s10 + $0x1a8] sm:$0xf]
      %v5262 = vld [vmem:[%s10 + $0x1ac] sm:$0xf]
      %v5263 = vld [vmem:[%s10 + $0x1b0] sm:$0xf]
      %v5264 = vld [vmem:[%s10 + $0x1b4] sm:$0xf]
      %v5265 = vld [vmem:[%s10 + $0x1b8] sm:$0xf]
      %v5266 = vld [vmem:[%s10 + $0x1bc] sm:$0xf]
      %v5283 = vunpack.c.l.b16 %v5251
      %v5284 = vunpack.c.l.b16 %v5252
      %v5285 = vunpack.c.l.b16 %v5253
      %v5286 = vunpack.c.l.b16 %v5254
      %v5287 = vunpack.c.l.b16 %v5255
      %v5288 = vunpack.c.l.b16 %v5256
      %v5289 = vunpack.c.l.b16 %v5257
      %v5290 = vunpack.c.l.b16 %v5258
      %v5291 = vunpack.c.l.b16 %v5259
      %v5292 = vunpack.c.l.b16 %v5260
      %v5293 = vunpack.c.l.b16 %v5261
      %v5294 = vunpack.c.l.b16 %v5262
      %v5295 = vunpack.c.l.b16 %v5263
      %v5296 = vunpack.c.l.b16 %v5264
      %v5297 = vunpack.c.l.b16 %v5265
      %v5298 = vunpack.c.l.b16 %v5266
      %v5299 = vpack.c.b16 %v5284, %v5283
      %v5300 = vpack.c.b16 %v5286, %v5285
      %v5301 = vpack.c.b16 %v5288, %v5287
      %v5302 = vpack.c.b16 %v5290, %v5289
      %v5303 = vpack.c.b16 %v5292, %v5291
      %v5304 = vpack.c.b16 %v5294, %v5293
      %v5305 = vpack.c.b16 %v5296, %v5295
      %v5306 = vpack.c.b16 %v5298, %v5297
      %5315 = vmatpush.bf16.msra.mxu0 %v5306
      %5316 = vmatpush.bf16.msra.mxu0 %v5305
      %5317 = vmatpush.bf16.msra.mxu0 %v5304
      %5318 = vmatpush.bf16.msra.mxu0 %v5303
      %5319 = vmatpush.bf16.msra.mxu0 %v5302
      %5320 = vmatpush.bf16.msra.mxu0 %v5301
      %5321 = vmatpush.bf16.msra.mxu0 %v5300
      %5322 = vmatpush.bf16.msra.mxu0 %v5299
      %5323 = vmatmul.bf16.gmra.mxu0 %v5235
      %v5324 = vpop.f32.mrf.mxu0
      %v5325 = vadd.f32 0.0, %v5324
      %v5326 = vpop.f32.mrf.mxu0
      %v5327 = vadd.f32 0.0, %v5326
      %5328 = vmatmul.bf16.gmra.mxu0 %v5236
      %v5329 = vpop.f32.mrf.mxu0
      %v5330 = vadd.f32 0.0, %v5329
      %v5331 = vpop.f32.mrf.mxu0
      %v5332 = vadd.f32 0.0, %v5331
      %5333 = vmatmul.bf16.gmra.mxu0 %v5237
      %v5334 = vpop.f32.mrf.mxu0
      %v5335 = vadd.f32 0.0, %v5334
      %v5336 = vpop.f32.mrf.mxu0
      %v5337 = vadd.f32 0.0, %v5336
      %5338 = vmatmul.bf16.gmra.mxu0 %v5238
      %v5339 = vpop.f32.mrf.mxu0
      %v5340 = vadd.f32 0.0, %v5339
      %v5341 = vpop.f32.mrf.mxu0
      %v5342 = vadd.f32 0.0, %v5341
      %5343 = vmatmul.bf16.gmra.mxu0 %v5239
      %v5344 = vpop.f32.mrf.mxu0
      %v5345 = vadd.f32 0.0, %v5344
      %v5346 = vpop.f32.mrf.mxu0
      %v5347 = vadd.f32 0.0, %v5346
      %5348 = vmatmul.bf16.gmra.mxu0 %v5240
      %v5349 = vpop.f32.mrf.mxu0
      %v5350 = vadd.f32 0.0, %v5349
      %v5351 = vpop.f32.mrf.mxu0
      %v5352 = vadd.f32 0.0, %v5351
      %5353 = vmatmul.bf16.gmra.mxu0 %v5241
      %v5354 = vpop.f32.mrf.mxu0
      %v5355 = vadd.f32 0.0, %v5354
      %v5356 = vpop.f32.mrf.mxu0
      %v5357 = vadd.f32 0.0, %v5356
      %5358 = vmatmul.bf16.gmra.mxu0 %v5242
      %v5359 = vpop.f32.mrf.mxu0
      %v5360 = vadd.f32 0.0, %v5359
      %v5361 = vpop.f32.mrf.mxu0
      %v5362 = vadd.f32 0.0, %v5361
      %5363 = vmatmul.bf16.gmra.mxu0 %v5243
      %v5364 = vpop.f32.mrf.mxu0
      %v5365 = vadd.f32 0.0, %v5364
      %v5366 = vpop.f32.mrf.mxu0
      %v5367 = vadd.f32 0.0, %v5366
      %5368 = vmatmul.bf16.gmra.mxu0 %v5244
      %v5369 = vpop.f32.mrf.mxu0
      %v5370 = vadd.f32 0.0, %v5369
      %v5371 = vpop.f32.mrf.mxu0
      %v5372 = vadd.f32 0.0, %v5371
      %5373 = vmatmul.bf16.gmra.mxu0 %v5245
      %v5374 = vpop.f32.mrf.mxu0
      %v5375 = vadd.f32 0.0, %v5374
      %v5376 = vpop.f32.mrf.mxu0
      %v5377 = vadd.f32 0.0, %v5376
      %5378 = vmatmul.bf16.gmra.mxu0 %v5246
      %v5379 = vpop.f32.mrf.mxu0
      %v5380 = vadd.f32 0.0, %v5379
      %v5381 = vpop.f32.mrf.mxu0
      %v5382 = vadd.f32 0.0, %v5381
      %5383 = vmatmul.bf16.gmra.mxu0 %v5247
      %v5384 = vpop.f32.mrf.mxu0
      %v5385 = vadd.f32 0.0, %v5384
      %v5386 = vpop.f32.mrf.mxu0
      %v5387 = vadd.f32 0.0, %v5386
      %5388 = vmatmul.bf16.gmra.mxu0 %v5248
      %v5389 = vpop.f32.mrf.mxu0
      %v5390 = vadd.f32 0.0, %v5389
      %v5391 = vpop.f32.mrf.mxu0
      %v5392 = vadd.f32 0.0, %v5391
      %5393 = vmatmul.bf16.gmra.mxu0 %v5249
      %v5394 = vpop.f32.mrf.mxu0
      %v5395 = vadd.f32 0.0, %v5394
      %v5396 = vpop.f32.mrf.mxu0
      %v5397 = vadd.f32 0.0, %v5396
      %5398 = vmatmul.bf16.gmra.mxu0 %v5250
      %v5399 = vpop.f32.mrf.mxu0
      %v5400 = vadd.f32 0.0, %v5399
      %v5401 = vpop.f32.mrf.mxu0
      %v5402 = vadd.f32 0.0, %v5401
      %5403 = vdwg.mxu0
      %v5404 = vadd.f32 %v5170, %v5325
      %v5405 = vadd.f32 %v5171, %v5327
      %v5406 = vadd.f32 %v5172, %v5330
      %v5407 = vadd.f32 %v5173, %v5332
      %v5408 = vadd.f32 %v5174, %v5335
      %v5409 = vadd.f32 %v5175, %v5337
      %v5410 = vadd.f32 %v5176, %v5340
      %v5411 = vadd.f32 %v5177, %v5342
      %v5412 = vadd.f32 %v5178, %v5345
      %v5413 = vadd.f32 %v5179, %v5347
      %v5414 = vadd.f32 %v5180, %v5350
      %v5415 = vadd.f32 %v5181, %v5352
      %v5416 = vadd.f32 %v5182, %v5355
      %v5417 = vadd.f32 %v5183, %v5357
      %v5418 = vadd.f32 %v5184, %v5360
      %v5419 = vadd.f32 %v5185, %v5362
      %v5420 = vadd.f32 %v5186, %v5365
      %v5421 = vadd.f32 %v5187, %v5367
      %v5422 = vadd.f32 %v5188, %v5370
      %v5423 = vadd.f32 %v5189, %v5372
      %v5424 = vadd.f32 %v5190, %v5375
      %v5425 = vadd.f32 %v5191, %v5377
      %v5426 = vadd.f32 %v5192, %v5380
      %v5427 = vadd.f32 %v5193, %v5382
      %v5428 = vadd.f32 %v5194, %v5385
      %v5429 = vadd.f32 %v5195, %v5387
      %v5430 = vadd.f32 %v5196, %v5390
      %v5431 = vadd.f32 %v5197, %v5392
      %v5432 = vadd.f32 %v5198, %v5395
      %v5433 = vadd.f32 %v5199, %v5397
      %v5434 = vadd.f32 %v5200, %v5400
      %v5435 = vadd.f32 %v5201, %v5402
      %v5436 = vld [vmem:[%s5202 + $0x1] sm:$0xff]
      %v5437 = vld [vmem:[%s5202 + $0x9] sm:$0xff]
      %v5438 = vld [vmem:[%s5202 + $0x19] sm:$0xff]
      %v5439 = vld [vmem:[%s5202 + $0x21] sm:$0xff]
      %v5440 = vld [vmem:[%s5202 + $0x31] sm:$0xff]
      %v5441 = vld [vmem:[%s5202 + $0x39] sm:$0xff]
      %v5442 = vld [vmem:[%s5202 + $0x49] sm:$0xff]
      %v5443 = vld [vmem:[%s5202 + $0x51] sm:$0xff]
      %v5444 = vld [vmem:[%s5202 + $0x61] sm:$0xff]
      %v5445 = vld [vmem:[%s5202 + $0x69] sm:$0xff]
      %v5446 = vld [vmem:[%s5202 + $0x79] sm:$0xff]
      %v5447 = vld [vmem:[%s5202 + $0x81] sm:$0xff]
      %v5448 = vld [vmem:[%s5202 + $0x91] sm:$0xff]
      %v5449 = vld [vmem:[%s5202 + $0x99] sm:$0xff]
      %v5450 = vld [vmem:[%s5202 + $0xa9] sm:$0xff]
      %v5451 = vld [vmem:[%s5202 + $0xb1] sm:$0xff]
      %v5452 = vld [vmem:[%s5202 + $0xc1] sm:$0xff]
      %v5453 = vld [vmem:[%s5202 + $0xc9] sm:$0xff]
      %v5454 = vld [vmem:[%s5202 + $0xd9] sm:$0xff]
      %v5455 = vld [vmem:[%s5202 + $0xe1] sm:$0xff]
      %v5456 = vld [vmem:[%s5202 + $0xf1] sm:$0xff]
      %v5457 = vld [vmem:[%s5202 + $0xf9] sm:$0xff]
      %v5458 = vld [vmem:[%s5202 + $0x109] sm:$0xff]
      %v5459 = vld [vmem:[%s5202 + $0x111] sm:$0xff]
      %v5460 = vld [vmem:[%s5202 + $0x121] sm:$0xff]
      %v5461 = vld [vmem:[%s5202 + $0x129] sm:$0xff]
      %v5462 = vld [vmem:[%s5202 + $0x139] sm:$0xff]
      %v5463 = vld [vmem:[%s5202 + $0x141] sm:$0xff]
      %v5464 = vld [vmem:[%s5202 + $0x151] sm:$0xff]
      %v5465 = vld [vmem:[%s5202 + $0x159] sm:$0xff]
      %v5466 = vld [vmem:[%s5202 + $0x169] sm:$0xff]
      %v5467 = vld [vmem:[%s5202 + $0x171] sm:$0xff]
      %v5468 = vpack.c.bf16 %v5437, %v5436
      %v5469 = vpack.c.bf16 %v5439, %v5438
      %v5470 = vpack.c.bf16 %v5441, %v5440
      %v5471 = vpack.c.bf16 %v5443, %v5442
      %v5472 = vpack.c.bf16 %v5445, %v5444
      %v5473 = vpack.c.bf16 %v5447, %v5446
      %v5474 = vpack.c.bf16 %v5449, %v5448
      %v5475 = vpack.c.bf16 %v5451, %v5450
      %v5476 = vpack.c.bf16 %v5453, %v5452
      %v5477 = vpack.c.bf16 %v5455, %v5454
      %v5478 = vpack.c.bf16 %v5457, %v5456
      %v5479 = vpack.c.bf16 %v5459, %v5458
      %v5480 = vpack.c.bf16 %v5461, %v5460
      %v5481 = vpack.c.bf16 %v5463, %v5462
      %v5482 = vpack.c.bf16 %v5465, %v5464
      %v5483 = vpack.c.bf16 %v5467, %v5466
      %v5484 = vld [vmem:[%s10 + $0x1c0] sm:$0xf]
      %v5485 = vld [vmem:[%s10 + $0x1c4] sm:$0xf]
      %v5486 = vld [vmem:[%s10 + $0x1c8] sm:$0xf]
      %v5487 = vld [vmem:[%s10 + $0x1cc] sm:$0xf]
      %v5488 = vld [vmem:[%s10 + $0x1d0] sm:$0xf]
      %v5489 = vld [vmem:[%s10 + $0x1d4] sm:$0xf]
      %v5490 = vld [vmem:[%s10 + $0x1d8] sm:$0xf]
      %v5491 = vld [vmem:[%s10 + $0x1dc] sm:$0xf]
      %v5492 = vld [vmem:[%s10 + $0x1e0] sm:$0xf]
      %v5493 = vld [vmem:[%s10 + $0x1e4] sm:$0xf]
      %v5494 = vld [vmem:[%s10 + $0x1e8] sm:$0xf]
      %v5495 = vld [vmem:[%s10 + $0x1ec] sm:$0xf]
      %v5496 = vld [vmem:[%s10 + $0x1f0] sm:$0xf]
      %v5497 = vld [vmem:[%s10 + $0x1f4] sm:$0xf]
      %v5498 = vld [vmem:[%s10 + $0x1f8] sm:$0xf]
      %v5499 = vld [vmem:[%s10 + $0x1fc] sm:$0xf]
      %v5516 = vunpack.c.l.b16 %v5484
      %v5517 = vunpack.c.l.b16 %v5485
      %v5518 = vunpack.c.l.b16 %v5486
      %v5519 = vunpack.c.l.b16 %v5487
      %v5520 = vunpack.c.l.b16 %v5488
      %v5521 = vunpack.c.l.b16 %v5489
      %v5522 = vunpack.c.l.b16 %v5490
      %v5523 = vunpack.c.l.b16 %v5491
      %v5524 = vunpack.c.l.b16 %v5492
      %v5525 = vunpack.c.l.b16 %v5493
      %v5526 = vunpack.c.l.b16 %v5494
      %v5527 = vunpack.c.l.b16 %v5495
      %v5528 = vunpack.c.l.b16 %v5496
      %v5529 = vunpack.c.l.b16 %v5497
      %v5530 = vunpack.c.l.b16 %v5498
      %v5531 = vunpack.c.l.b16 %v5499
      %v5532 = vpack.c.b16 %v5517, %v5516
      %v5533 = vpack.c.b16 %v5519, %v5518
      %v5534 = vpack.c.b16 %v5521, %v5520
      %v5535 = vpack.c.b16 %v5523, %v5522
      %v5536 = vpack.c.b16 %v5525, %v5524
      %v5537 = vpack.c.b16 %v5527, %v5526
      %v5538 = vpack.c.b16 %v5529, %v5528
      %v5539 = vpack.c.b16 %v5531, %v5530
      %5548 = vmatpush.bf16.msra.mxu0 %v5539
      %5549 = vmatpush.bf16.msra.mxu0 %v5538
      %5550 = vmatpush.bf16.msra.mxu0 %v5537
      %5551 = vmatpush.bf16.msra.mxu0 %v5536
      %5552 = vmatpush.bf16.msra.mxu0 %v5535
      %5553 = vmatpush.bf16.msra.mxu0 %v5534
      %5554 = vmatpush.bf16.msra.mxu0 %v5533
      %5555 = vmatpush.bf16.msra.mxu0 %v5532
      %5556 = vmatmul.bf16.gmra.mxu0 %v5468
      %v5557 = vpop.f32.mrf.mxu0
      %v5558 = vadd.f32 0.0, %v5557
      %v5559 = vpop.f32.mrf.mxu0
      %v5560 = vadd.f32 0.0, %v5559
      %5561 = vmatmul.bf16.gmra.mxu0 %v5469
      %v5562 = vpop.f32.mrf.mxu0
      %v5563 = vadd.f32 0.0, %v5562
      %v5564 = vpop.f32.mrf.mxu0
      %v5565 = vadd.f32 0.0, %v5564
      %5566 = vmatmul.bf16.gmra.mxu0 %v5470
      %v5567 = vpop.f32.mrf.mxu0
      %v5568 = vadd.f32 0.0, %v5567
      %v5569 = vpop.f32.mrf.mxu0
      %v5570 = vadd.f32 0.0, %v5569
      %5571 = vmatmul.bf16.gmra.mxu0 %v5471
      %v5572 = vpop.f32.mrf.mxu0
      %v5573 = vadd.f32 0.0, %v5572
      %v5574 = vpop.f32.mrf.mxu0
      %v5575 = vadd.f32 0.0, %v5574
      %5576 = vmatmul.bf16.gmra.mxu0 %v5472
      %v5577 = vpop.f32.mrf.mxu0
      %v5578 = vadd.f32 0.0, %v5577
      %v5579 = vpop.f32.mrf.mxu0
      %v5580 = vadd.f32 0.0, %v5579
      %5581 = vmatmul.bf16.gmra.mxu0 %v5473
      %v5582 = vpop.f32.mrf.mxu0
      %v5583 = vadd.f32 0.0, %v5582
      %v5584 = vpop.f32.mrf.mxu0
      %v5585 = vadd.f32 0.0, %v5584
      %5586 = vmatmul.bf16.gmra.mxu0 %v5474
      %v5587 = vpop.f32.mrf.mxu0
      %v5588 = vadd.f32 0.0, %v5587
      %v5589 = vpop.f32.mrf.mxu0
      %v5590 = vadd.f32 0.0, %v5589
      %5591 = vmatmul.bf16.gmra.mxu0 %v5475
      %v5592 = vpop.f32.mrf.mxu0
      %v5593 = vadd.f32 0.0, %v5592
      %v5594 = vpop.f32.mrf.mxu0
      %v5595 = vadd.f32 0.0, %v5594
      %5596 = vmatmul.bf16.gmra.mxu0 %v5476
      %v5597 = vpop.f32.mrf.mxu0
      %v5598 = vadd.f32 0.0, %v5597
      %v5599 = vpop.f32.mrf.mxu0
      %v5600 = vadd.f32 0.0, %v5599
      %5601 = vmatmul.bf16.gmra.mxu0 %v5477
      %v5602 = vpop.f32.mrf.mxu0
      %v5603 = vadd.f32 0.0, %v5602
      %v5604 = vpop.f32.mrf.mxu0
      %v5605 = vadd.f32 0.0, %v5604
      %5606 = vmatmul.bf16.gmra.mxu0 %v5478
      %v5607 = vpop.f32.mrf.mxu0
      %v5608 = vadd.f32 0.0, %v5607
      %v5609 = vpop.f32.mrf.mxu0
      %v5610 = vadd.f32 0.0, %v5609
      %5611 = vmatmul.bf16.gmra.mxu0 %v5479
      %v5612 = vpop.f32.mrf.mxu0
      %v5613 = vadd.f32 0.0, %v5612
      %v5614 = vpop.f32.mrf.mxu0
      %v5615 = vadd.f32 0.0, %v5614
      %5616 = vmatmul.bf16.gmra.mxu0 %v5480
      %v5617 = vpop.f32.mrf.mxu0
      %v5618 = vadd.f32 0.0, %v5617
      %v5619 = vpop.f32.mrf.mxu0
      %v5620 = vadd.f32 0.0, %v5619
      %5621 = vmatmul.bf16.gmra.mxu0 %v5481
      %v5622 = vpop.f32.mrf.mxu0
      %v5623 = vadd.f32 0.0, %v5622
      %v5624 = vpop.f32.mrf.mxu0
      %v5625 = vadd.f32 0.0, %v5624
      %5626 = vmatmul.bf16.gmra.mxu0 %v5482
      %v5627 = vpop.f32.mrf.mxu0
      %v5628 = vadd.f32 0.0, %v5627
      %v5629 = vpop.f32.mrf.mxu0
      %v5630 = vadd.f32 0.0, %v5629
      %5631 = vmatmul.bf16.gmra.mxu0 %v5483
      %v5632 = vpop.f32.mrf.mxu0
      %v5633 = vadd.f32 0.0, %v5632
      %v5634 = vpop.f32.mrf.mxu0
      %v5635 = vadd.f32 0.0, %v5634
      %5636 = vdwg.mxu0
      %v5637 = vadd.f32 %v5404, %v5558
      %v5638 = vadd.f32 %v5405, %v5560
      %v5639 = vadd.f32 %v5406, %v5563
      %v5640 = vadd.f32 %v5407, %v5565
      %v5641 = vadd.f32 %v5408, %v5568
      %v5642 = vadd.f32 %v5409, %v5570
      %v5643 = vadd.f32 %v5410, %v5573
      %v5644 = vadd.f32 %v5411, %v5575
      %v5645 = vadd.f32 %v5412, %v5578
      %v5646 = vadd.f32 %v5413, %v5580
      %v5647 = vadd.f32 %v5414, %v5583
      %v5648 = vadd.f32 %v5415, %v5585
      %v5649 = vadd.f32 %v5416, %v5588
      %v5650 = vadd.f32 %v5417, %v5590
      %v5651 = vadd.f32 %v5418, %v5593
      %v5652 = vadd.f32 %v5419, %v5595
      %v5653 = vadd.f32 %v5420, %v5598
      %v5654 = vadd.f32 %v5421, %v5600
      %v5655 = vadd.f32 %v5422, %v5603
      %v5656 = vadd.f32 %v5423, %v5605
      %v5657 = vadd.f32 %v5424, %v5608
      %v5658 = vadd.f32 %v5425, %v5610
      %v5659 = vadd.f32 %v5426, %v5613
      %v5660 = vadd.f32 %v5427, %v5615
      %v5661 = vadd.f32 %v5428, %v5618
      %v5662 = vadd.f32 %v5429, %v5620
      %v5663 = vadd.f32 %v5430, %v5623
      %v5664 = vadd.f32 %v5431, %v5625
      %v5665 = vadd.f32 %v5432, %v5628
      %v5666 = vadd.f32 %v5433, %v5630
      %v5667 = vadd.f32 %v5434, %v5633
      %v5668 = vadd.f32 %v5435, %v5635
      %v5669 = vld [vmem:[%s5202 + $0x2] sm:$0xff]
      %v5670 = vld [vmem:[%s5202 + $0xa] sm:$0xff]
      %v5671 = vld [vmem:[%s5202 + $0x1a] sm:$0xff]
      %v5672 = vld [vmem:[%s5202 + $0x22] sm:$0xff]
      %v5673 = vld [vmem:[%s5202 + $0x32] sm:$0xff]
      %v5674 = vld [vmem:[%s5202 + $0x3a] sm:$0xff]
      %v5675 = vld [vmem:[%s5202 + $0x4a] sm:$0xff]
      %v5676 = vld [vmem:[%s5202 + $0x52] sm:$0xff]
      %v5677 = vld [vmem:[%s5202 + $0x62] sm:$0xff]
      %v5678 = vld [vmem:[%s5202 + $0x6a] sm:$0xff]
      %v5679 = vld [vmem:[%s5202 + $0x7a] sm:$0xff]
      %v5680 = vld [vmem:[%s5202 + $0x82] sm:$0xff]
      %v5681 = vld [vmem:[%s5202 + $0x92] sm:$0xff]
      %v5682 = vld [vmem:[%s5202 + $0x9a] sm:$0xff]
      %v5683 = vld [vmem:[%s5202 + $0xaa] sm:$0xff]
      %v5684 = vld [vmem:[%s5202 + $0xb2] sm:$0xff]
      %v5685 = vld [vmem:[%s5202 + $0xc2] sm:$0xff]
      %v5686 = vld [vmem:[%s5202 + $0xca] sm:$0xff]
      %v5687 = vld [vmem:[%s5202 + $0xda] sm:$0xff]
      %v5688 = vld [vmem:[%s5202 + $0xe2] sm:$0xff]
      %v5689 = vld [vmem:[%s5202 + $0xf2] sm:$0xff]
      %v5690 = vld [vmem:[%s5202 + $0xfa] sm:$0xff]
      %v5691 = vld [vmem:[%s5202 + $0x10a] sm:$0xff]
      %v5692 = vld [vmem:[%s5202 + $0x112] sm:$0xff]
      %v5693 = vld [vmem:[%s5202 + $0x122] sm:$0xff]
      %v5694 = vld [vmem:[%s5202 + $0x12a] sm:$0xff]
      %v5695 = vld [vmem:[%s5202 + $0x13a] sm:$0xff]
      %v5696 = vld [vmem:[%s5202 + $0x142] sm:$0xff]
      %v5697 = vld [vmem:[%s5202 + $0x152] sm:$0xff]
      %v5698 = vld [vmem:[%s5202 + $0x15a] sm:$0xff]
      %v5699 = vld [vmem:[%s5202 + $0x16a] sm:$0xff]
      %v5700 = vld [vmem:[%s5202 + $0x172] sm:$0xff]
      %v5701 = vpack.c.bf16 %v5670, %v5669
      %v5702 = vpack.c.bf16 %v5672, %v5671
      %v5703 = vpack.c.bf16 %v5674, %v5673
      %v5704 = vpack.c.bf16 %v5676, %v5675
      %v5705 = vpack.c.bf16 %v5678, %v5677
      %v5706 = vpack.c.bf16 %v5680, %v5679
      %v5707 = vpack.c.bf16 %v5682, %v5681
      %v5708 = vpack.c.bf16 %v5684, %v5683
      %v5709 = vpack.c.bf16 %v5686, %v5685
      %v5710 = vpack.c.bf16 %v5688, %v5687
      %v5711 = vpack.c.bf16 %v5690, %v5689
      %v5712 = vpack.c.bf16 %v5692, %v5691
      %v5713 = vpack.c.bf16 %v5694, %v5693
      %v5714 = vpack.c.bf16 %v5696, %v5695
      %v5715 = vpack.c.bf16 %v5698, %v5697
      %v5716 = vpack.c.bf16 %v5700, %v5699
      %v5717 = vld [vmem:[%s10 + $0x200] sm:$0xf]
      %v5718 = vld [vmem:[%s10 + $0x204] sm:$0xf]
      %v5719 = vld [vmem:[%s10 + $0x208] sm:$0xf]
      %v5720 = vld [vmem:[%s10 + $0x20c] sm:$0xf]
      %v5721 = vld [vmem:[%s10 + $0x210] sm:$0xf]
      %v5722 = vld [vmem:[%s10 + $0x214] sm:$0xf]
      %v5723 = vld [vmem:[%s10 + $0x218] sm:$0xf]
      %v5724 = vld [vmem:[%s10 + $0x21c] sm:$0xf]
      %v5725 = vld [vmem:[%s10 + $0x220] sm:$0xf]
      %v5726 = vld [vmem:[%s10 + $0x224] sm:$0xf]
      %v5727 = vld [vmem:[%s10 + $0x228] sm:$0xf]
      %v5728 = vld [vmem:[%s10 + $0x22c] sm:$0xf]
      %v5729 = vld [vmem:[%s10 + $0x230] sm:$0xf]
      %v5730 = vld [vmem:[%s10 + $0x234] sm:$0xf]
      %v5731 = vld [vmem:[%s10 + $0x238] sm:$0xf]
      %v5732 = vld [vmem:[%s10 + $0x23c] sm:$0xf]
      %v5749 = vunpack.c.l.b16 %v5717
      %v5750 = vunpack.c.l.b16 %v5718
      %v5751 = vunpack.c.l.b16 %v5719
      %v5752 = vunpack.c.l.b16 %v5720
      %v5753 = vunpack.c.l.b16 %v5721
      %v5754 = vunpack.c.l.b16 %v5722
      %v5755 = vunpack.c.l.b16 %v5723
      %v5756 = vunpack.c.l.b16 %v5724
      %v5757 = vunpack.c.l.b16 %v5725
      %v5758 = vunpack.c.l.b16 %v5726
      %v5759 = vunpack.c.l.b16 %v5727
      %v5760 = vunpack.c.l.b16 %v5728
      %v5761 = vunpack.c.l.b16 %v5729
      %v5762 = vunpack.c.l.b16 %v5730
      %v5763 = vunpack.c.l.b16 %v5731
      %v5764 = vunpack.c.l.b16 %v5732
      %v5765 = vpack.c.b16 %v5750, %v5749
      %v5766 = vpack.c.b16 %v5752, %v5751
      %v5767 = vpack.c.b16 %v5754, %v5753
      %v5768 = vpack.c.b16 %v5756, %v5755
      %v5769 = vpack.c.b16 %v5758, %v5757
      %v5770 = vpack.c.b16 %v5760, %v5759
      %v5771 = vpack.c.b16 %v5762, %v5761
      %v5772 = vpack.c.b16 %v5764, %v5763
      %5781 = vmatpush.bf16.msra.mxu0 %v5772
      %5782 = vmatpush.bf16.msra.mxu0 %v5771
      %5783 = vmatpush.bf16.msra.mxu0 %v5770
      %5784 = vmatpush.bf16.msra.mxu0 %v5769
      %5785 = vmatpush.bf16.msra.mxu0 %v5768
      %5786 = vmatpush.bf16.msra.mxu0 %v5767
      %5787 = vmatpush.bf16.msra.mxu0 %v5766
      %5788 = vmatpush.bf16.msra.mxu0 %v5765
      %5789 = vmatmul.bf16.gmra.mxu0 %v5701
      %v5790 = vpop.f32.mrf.mxu0
      %v5791 = vadd.f32 0.0, %v5790
      %v5792 = vpop.f32.mrf.mxu0
      %v5793 = vadd.f32 0.0, %v5792
      %5794 = vmatmul.bf16.gmra.mxu0 %v5702
      %v5795 = vpop.f32.mrf.mxu0
      %v5796 = vadd.f32 0.0, %v5795
      %v5797 = vpop.f32.mrf.mxu0
      %v5798 = vadd.f32 0.0, %v5797
      %5799 = vmatmul.bf16.gmra.mxu0 %v5703
      %v5800 = vpop.f32.mrf.mxu0
      %v5801 = vadd.f32 0.0, %v5800
      %v5802 = vpop.f32.mrf.mxu0
      %v5803 = vadd.f32 0.0, %v5802
      %5804 = vmatmul.bf16.gmra.mxu0 %v5704
      %v5805 = vpop.f32.mrf.mxu0
      %v5806 = vadd.f32 0.0, %v5805
      %v5807 = vpop.f32.mrf.mxu0
      %v5808 = vadd.f32 0.0, %v5807
      %5809 = vmatmul.bf16.gmra.mxu0 %v5705
      %v5810 = vpop.f32.mrf.mxu0
      %v5811 = vadd.f32 0.0, %v5810
      %v5812 = vpop.f32.mrf.mxu0
      %v5813 = vadd.f32 0.0, %v5812
      %5814 = vmatmul.bf16.gmra.mxu0 %v5706
      %v5815 = vpop.f32.mrf.mxu0
      %v5816 = vadd.f32 0.0, %v5815
      %v5817 = vpop.f32.mrf.mxu0
      %v5818 = vadd.f32 0.0, %v5817
      %5819 = vmatmul.bf16.gmra.mxu0 %v5707
      %v5820 = vpop.f32.mrf.mxu0
      %v5821 = vadd.f32 0.0, %v5820
      %v5822 = vpop.f32.mrf.mxu0
      %v5823 = vadd.f32 0.0, %v5822
      %5824 = vmatmul.bf16.gmra.mxu0 %v5708
      %v5825 = vpop.f32.mrf.mxu0
      %v5826 = vadd.f32 0.0, %v5825
      %v5827 = vpop.f32.mrf.mxu0
      %v5828 = vadd.f32 0.0, %v5827
      %5829 = vmatmul.bf16.gmra.mxu0 %v5709
      %v5830 = vpop.f32.mrf.mxu0
      %v5831 = vadd.f32 0.0, %v5830
      %v5832 = vpop.f32.mrf.mxu0
      %v5833 = vadd.f32 0.0, %v5832
      %5834 = vmatmul.bf16.gmra.mxu0 %v5710
      %v5835 = vpop.f32.mrf.mxu0
      %v5836 = vadd.f32 0.0, %v5835
      %v5837 = vpop.f32.mrf.mxu0
      %v5838 = vadd.f32 0.0, %v5837
      %5839 = vmatmul.bf16.gmra.mxu0 %v5711
      %v5840 = vpop.f32.mrf.mxu0
      %v5841 = vadd.f32 0.0, %v5840
      %v5842 = vpop.f32.mrf.mxu0
      %v5843 = vadd.f32 0.0, %v5842
      %5844 = vmatmul.bf16.gmra.mxu0 %v5712
      %v5845 = vpop.f32.mrf.mxu0
      %v5846 = vadd.f32 0.0, %v5845
      %v5847 = vpop.f32.mrf.mxu0
      %v5848 = vadd.f32 0.0, %v5847
      %5849 = vmatmul.bf16.gmra.mxu0 %v5713
      %v5850 = vpop.f32.mrf.mxu0
      %v5851 = vadd.f32 0.0, %v5850
      %v5852 = vpop.f32.mrf.mxu0
      %v5853 = vadd.f32 0.0, %v5852
      %5854 = vmatmul.bf16.gmra.mxu0 %v5714
      %v5855 = vpop.f32.mrf.mxu0
      %v5856 = vadd.f32 0.0, %v5855
      %v5857 = vpop.f32.mrf.mxu0
      %v5858 = vadd.f32 0.0, %v5857
      %5859 = vmatmul.bf16.gmra.mxu0 %v5715
      %v5860 = vpop.f32.mrf.mxu0
      %v5861 = vadd.f32 0.0, %v5860
      %v5862 = vpop.f32.mrf.mxu0
      %v5863 = vadd.f32 0.0, %v5862
      %5864 = vmatmul.bf16.gmra.mxu0 %v5716
      %v5865 = vpop.f32.mrf.mxu0
      %v5866 = vadd.f32 0.0, %v5865
      %v5867 = vpop.f32.mrf.mxu0
      %v5868 = vadd.f32 0.0, %v5867
      %5869 = vdwg.mxu0
      %v5870 = vadd.f32 %v5637, %v5791
      %v5871 = vadd.f32 %v5638, %v5793
      %v5872 = vadd.f32 %v5639, %v5796
      %v5873 = vadd.f32 %v5640, %v5798
      %v5874 = vadd.f32 %v5641, %v5801
      %v5875 = vadd.f32 %v5642, %v5803
      %v5876 = vadd.f32 %v5643, %v5806
      %v5877 = vadd.f32 %v5644, %v5808
      %v5878 = vadd.f32 %v5645, %v5811
      %v5879 = vadd.f32 %v5646, %v5813
      %v5880 = vadd.f32 %v5647, %v5816
      %v5881 = vadd.f32 %v5648, %v5818
      %v5882 = vadd.f32 %v5649, %v5821
      %v5883 = vadd.f32 %v5650, %v5823
      %v5884 = vadd.f32 %v5651, %v5826
      %v5885 = vadd.f32 %v5652, %v5828
      %v5886 = vadd.f32 %v5653, %v5831
      %v5887 = vadd.f32 %v5654, %v5833
      %v5888 = vadd.f32 %v5655, %v5836
      %v5889 = vadd.f32 %v5656, %v5838
      %v5890 = vadd.f32 %v5657, %v5841
      %v5891 = vadd.f32 %v5658, %v5843
      %v5892 = vadd.f32 %v5659, %v5846
      %v5893 = vadd.f32 %v5660, %v5848
      %v5894 = vadd.f32 %v5661, %v5851
      %v5895 = vadd.f32 %v5662, %v5853
      %v5896 = vadd.f32 %v5663, %v5856
      %v5897 = vadd.f32 %v5664, %v5858
      %v5898 = vadd.f32 %v5665, %v5861
      %v5899 = vadd.f32 %v5666, %v5863
      %v5900 = vadd.f32 %v5667, %v5866
      %v5901 = vadd.f32 %v5668, %v5868
      %v5902 = vld [vmem:[%s11] sm:$0x1]
      %v5903 = vadd.f32 %v5902, %v1281
      %v5905 = vperm.slane %v5903, 0
      %v5907 = vadd.f32 %v5870, %v5905
      %v5908 = vadd.f32 %v5871, %v5905
      %v5909 = vadd.f32 %v5872, %v5905
      %v5910 = vadd.f32 %v5873, %v5905
      %v5911 = vadd.f32 %v5874, %v5905
      %v5912 = vadd.f32 %v5875, %v5905
      %v5913 = vadd.f32 %v5876, %v5905
      %v5914 = vadd.f32 %v5877, %v5905
      %v5915 = vadd.f32 %v5878, %v5905
      %v5916 = vadd.f32 %v5879, %v5905
      %v5917 = vadd.f32 %v5880, %v5905
      %v5918 = vadd.f32 %v5881, %v5905
      %v5919 = vadd.f32 %v5882, %v5905
      %v5920 = vadd.f32 %v5883, %v5905
      %v5921 = vadd.f32 %v5884, %v5905
      %v5922 = vadd.f32 %v5885, %v5905
      %v5923 = vadd.f32 %v5886, %v5905
      %v5924 = vadd.f32 %v5887, %v5905
      %v5925 = vadd.f32 %v5888, %v5905
      %v5926 = vadd.f32 %v5889, %v5905
      %v5927 = vadd.f32 %v5890, %v5905
      %v5928 = vadd.f32 %v5891, %v5905
      %v5929 = vadd.f32 %v5892, %v5905
      %v5930 = vadd.f32 %v5893, %v5905
      %v5931 = vadd.f32 %v5894, %v5905
      %v5932 = vadd.f32 %v5895, %v5905
      %v5933 = vadd.f32 %v5896, %v5905
      %v5934 = vadd.f32 %v5897, %v5905
      %v5935 = vadd.f32 %v5898, %v5905
      %v5936 = vadd.f32 %v5899, %v5905
      %v5937 = vadd.f32 %v5900, %v5905
      %v5938 = vadd.f32 %v5901, %v5905
      %5939 = vxpose.xlu0.b32.start [1/16] %v5907, 128
      %5940 = vxpose.xlu0.b32.cont [2/16] %v5908, 128
      %5941 = vxpose.xlu0.b32.cont [3/16] %v5909, 128
      %5942 = vxpose.xlu0.b32.cont [4/16] %v5910, 128
      %5943 = vxpose.xlu0.b32.cont [5/16] %v5911, 128
      %5944 = vxpose.xlu0.b32.cont [6/16] %v5912, 128
      %5945 = vxpose.xlu0.b32.cont [7/16] %v5913, 128
      %5946 = vxpose.xlu0.b32.cont [8/16] %v5914, 128
      %5947 = vxpose.xlu0.b32.cont [9/16] %v5915, 128
      %5948 = vxpose.xlu0.b32.cont [10/16] %v5916, 128
      %5949 = vxpose.xlu0.b32.cont [11/16] %v5917, 128
      %5950 = vxpose.xlu0.b32.cont [12/16] %v5918, 128
      %5951 = vxpose.xlu0.b32.cont [13/16] %v5919, 128
      %5952 = vxpose.xlu0.b32.cont [14/16] %v5920, 128
      %5953 = vxpose.xlu0.b32.cont [15/16] %v5921, 128
      %5954 = vxpose.xlu0.b32.end [16/16] %v5922, 128
      %v5955 = vpop.trf.xlu0
      %v5956 = vpop.trf.xlu0
      %v5957 = vpop.trf.xlu0
      %v5958 = vpop.trf.xlu0
      %v5959 = vpop.trf.xlu0
      %v5960 = vpop.trf.xlu0
      %v5961 = vpop.trf.xlu0
      %v5962 = vpop.trf.xlu0
      %v5963 = vpop.trf.xlu0
      %v5964 = vpop.trf.xlu0
      %v5965 = vpop.trf.xlu0
      %v5966 = vpop.trf.xlu0
      %v5967 = vpop.trf.xlu0
      %v5968 = vpop.trf.xlu0
      %v5969 = vpop.trf.xlu0
      %v5970 = vpop.trf.xlu0
      %5971 = vxpose.xlu0.b32.start [1/16] %v5923, 128
      %5972 = vxpose.xlu0.b32.cont [2/16] %v5924, 128
      %5973 = vxpose.xlu0.b32.cont [3/16] %v5925, 128
      %5974 = vxpose.xlu0.b32.cont [4/16] %v5926, 128
      %5975 = vxpose.xlu0.b32.cont [5/16] %v5927, 128
      %5976 = vxpose.xlu0.b32.cont [6/16] %v5928, 128
      %5977 = vxpose.xlu0.b32.cont [7/16] %v5929, 128
      %5978 = vxpose.xlu0.b32.cont [8/16] %v5930, 128
      %5979 = vxpose.xlu0.b32.cont [9/16] %v5931, 128
      %5980 = vxpose.xlu0.b32.cont [10/16] %v5932, 128
      %5981 = vxpose.xlu0.b32.cont [11/16] %v5933, 128
      %5982 = vxpose.xlu0.b32.cont [12/16] %v5934, 128
      %5983 = vxpose.xlu0.b32.cont [13/16] %v5935, 128
      %5984 = vxpose.xlu0.b32.cont [14/16] %v5936, 128
      %5985 = vxpose.xlu0.b32.cont [15/16] %v5937, 128
      %5986 = vxpose.xlu0.b32.end [16/16] %v5938, 128
      %v5987 = vpop.trf.xlu0
      %v5988 = vpop.trf.xlu0
      %v5989 = vpop.trf.xlu0
      %v5990 = vpop.trf.xlu0
      %v5991 = vpop.trf.xlu0
      %v5992 = vpop.trf.xlu0
      %v5993 = vpop.trf.xlu0
      %v5994 = vpop.trf.xlu0
      %v5995 = vpop.trf.xlu0
      %v5996 = vpop.trf.xlu0
      %v5997 = vpop.trf.xlu0
      %v5998 = vpop.trf.xlu0
      %v5999 = vpop.trf.xlu0
      %v6000 = vpop.trf.xlu0
      %v6001 = vpop.trf.xlu0
      %v6002 = vpop.trf.xlu0
      %v6003 = vld [vmem:[%s488] sm:$0xff]
      %6005 = vst [vmem:[#allocation1] ss:$2 sm:$0xff] %v6003
      %v6006 = vld.sshfl [vmem:[#allocation1] sm:$0xff pattern:$0x75316420]
      %v6007 = vld.sshfl [vmem:[#allocation1 + $0x8] sm:$0xff pattern:$0x75316420]
      %vm6010 = vcmask 1043456
      %v6011 = vsel %vm6010, %v6006, 0.0
      %v6012 = vsel %vm6010, %v6007, 0.0
      %v6013 = vadd.f32 %v6011, %v6012
      %6014 = vadd.xlane.f32.xlu0 %v6013
      %v6015 = vpop.xlane.xlu0 %6014
      %v6016 = vmul.f32 %v6015, 0.00390625
      %v6019 = vunpack.c.l.s4 839922192
      %v6020 = vunpack.c.0.s8 %v6019
      %v6021 = vperm.slane %v6016, %v6020
      %v6023 = vsub.f32 %v6003, %v6021
      %v6024 = vmul.f32 %v6023, %v6023
      %6026 = vst [vmem:[#allocation1] ss:$2 sm:$0xff] %v6024
      %v6027 = vld.sshfl [vmem:[#allocation1] sm:$0xff pattern:$0x75316420]
      %v6028 = vld.sshfl [vmem:[#allocation1 + $0x8] sm:$0xff pattern:$0x75316420]
      %v6031 = vsel %vm6010, %v6027, 0.0
      %v6032 = vsel %vm6010, %v6028, 0.0
      %v6033 = vadd.f32 %v6031, %v6032
      %6034 = vadd.xlane.f32.xlu0 %v6033
      %v6035 = vpop.xlane.xlu0 %6034
      %v6036 = vmul.f32 %v6035, 0.00390625
      %v6037 = vadd.f32 %v6036, 1e-05
      %v6038 = vrsqrt.pop %v6037
      %v6039 = vmul.f32 %v6038, %v6037
      %v6040 = vmul.f32 %v6039, %v6038
      %v6041 = vmul.f32 0.5, %v6040
      %v6042 = vsub.f32 1.5, %v6041
      %v6043 = vmul.f32 %v6038, %v6042
      %vm6044 = vweird.f32 %v6037
      %vm6045 = vweird.f32 %v6038
      %vm6046 = vmor %vm6044, %vm6045
      %v6047 = vsel %vm6046, %v6038, %v6043
      %v6050 = vunpack.c.l.s4 839922192
      %v6051 = vunpack.c.0.s8 %v6050
      %v6052 = vperm.slane %v6047, %v6051
      %v6054 = vmul.f32 %v6023, %v6052
      %v6055 = vadd.f32 %v5955, 1.0
      %v6056 = vadd.f32 %v5987, 1.0
      %v6059 = vrot.slane %v6056, 4
      %v6060 = vsel %vm6010, %v6055, %v6059
      %v6062 = vmul.f32 %v6054, %v6060
      %6065 = vst.sshfl [vmem:[#allocation1] sm:$0xff pattern:$0x75316420] %v5955
      %6066 = vst.sshfl [vmem:[#allocation1 + $0x8] sm:$0xff pattern:$0x75316420] %v5987
      %s6067 = scalar_lea.vmem [#allocation1], 1
      %v6068 = vld [vmem:[%s6067] ss:$2 sm:$0xff]
      %v6070 = vadd.f32 %v6062, %v6068
      %6071 = vst [vmem:[%s493] sm:$0xff] %v6070
      %p6072 = scmp.lt.s32.totalorder %s23, 1
      %s6073 = scalar_select %p6072, %s23, 1
      %s6074 = smul.addr %s6073, 2
      %s6075 = smul.addr %s6074, 4
      %s6076 = scalar_lea.vmem %s12, %s6075
      // Predicated region
      $region69: #{spade_avg_forward.1} parent=67 // pred_check
        %p6077 = pneg %p318
      $region70: #{spade_avg_forward.1} parent=67 // pred_check_branch
        %6079 = sbr.rel (%p6077) target = $region72
      $region71: #{spade_avg_forward.1} parent=67 // pred_region
        _
      $region72: #{spade_avg_forward.1} parent=67 // pred_fallthru
        _
    $region68: #{spade_avg_forward.1} parent=5 // pred_fallthru
      _
    %p6080 = scmp.le.s32.totalorder 2, %s18
    // Predicated region
    $region73: #{spade_avg_forward.1} parent=5 // pred_check
      %p6081 = pneg %p6080
    $region74: #{spade_avg_forward.1} parent=5 // pred_check_branch
      %6083 = sbr.rel (%p6081) target = $region76
    $region75: #{spade_avg_forward.1} parent=5 // pred_region
      %s6084 = ssub.s32 %s18, 2
      // Predicated region
      $region77: #{spade_avg_forward.1} parent=75 // pred_check
        %p6085 = pneg %p324
      $region78: #{spade_avg_forward.1} parent=75 // pred_check_branch
        %6087 = sbr.rel (%p6085) target = $region80
      $region79: #{spade_avg_forward.1} parent=75 // pred_region
        %p6088 = scmp.lt.s32.totalorder %s24, 1
        %s6089 = scalar_select %p6088, %s24, 1
        %s6090 = smul.addr %s6089, 2
        %s6091 = smul.addr %s6090, 4
        %s6092 = scalar_lea.vmem %s12, %s6091
      $region80: #{spade_avg_forward.1} parent=75 // pred_fallthru
        _
    $region76: #{spade_avg_forward.1} parent=5 // pred_fallthru
      _
  $region6: #{spade_avg_forward.1} parent=0 // loop_footer
    %s22 = sadd.s32 1, %s18
  $region7: #{spade_avg_forward.1} parent=0 // loop_footer_branch
    %17 = sbr.rel target = $region3
  $region8: #{spade_avg_forward.1} parent=0 // loop_exit
    _

</llo_original>
